<compile_context>
chip_gen: v7x
topology: tpu7x:2x2x1
jax: 0.10.0
libtpu: 0.0.40
codegen_flags: <defaults>
</compile_context>

<pallas_src>
import jax
import jax.numpy as jnp
from jax.experimental import pallas as pl
from jax.experimental.pallas import tpu as pltpu

# Module hyper-parameters (match the PyTorch spec), small seq/batch for the demo.
EMBED = 512                      # embed_size
NUM_HEADS = 8                    # num_heads
HEAD_DIM = EMBED // NUM_HEADS    # 64
HIDDEN = 2048                    # hidden_dim
SEQ = 16                         # sequence length L
BATCH = 2                        # batch N
EPS = 1e-5                       # nn.LayerNorm default eps

R = SEQ * BATCH                  # joint row count (batch-interleaved)
QKV_CHUNKS = 3                   # Q / K / V column chunks of the in-projection
H_CHUNK = 512                    # HIDDEN streaming chunk
H_CHUNKS = HIDDEN // H_CHUNK     # 4
NSTEPS = QKV_CHUNKS + H_CHUNKS   # 7 grid steps


def _layernorm(x, gamma, beta):
    # Centered two-pass variance (biased, like PyTorch); numerically safe.
    mean = jnp.mean(x, axis=-1, keepdims=True)
    xc = x - mean
    var = jnp.mean(xc * xc, axis=-1, keepdims=True)
    return xc * jax.lax.rsqrt(var + EPS) * gamma + beta


def encoder_kernel(x_ref, g1_ref, bt1_ref, g2_ref, bt2_ref,
                   w_in_ref, b_in_ref, w_out_ref, b_out_ref,
                   w1_ref, b1_ref, w2_ref, b2_ref,
                   out_ref,
                   q_s, k_s, xn1_s, xn2_s, acc_s):
    i = pl.program_id(0)

    # ---- step 0: LayerNorm-1 (cached bf16) + Q projection --------------------
    @pl.when(i == 0)
    def _():
        xn1 = _layernorm(x_ref[...], g1_ref[...], bt1_ref[...]).astype(jnp.bfloat16)
        xn1_s[...] = xn1
        # w_in chunk 0 = Q columns; softmax scale pre-folded into weight & bias.
        q_s[...] = jnp.dot(xn1, w_in_ref[...],
                           preferred_element_type=jnp.float32) + b_in_ref[...]

    # ---- step 1: K projection -------------------------------------------------
    @pl.when(i == 1)
    def _():
        k_s[...] = jnp.dot(xn1_s[...], w_in_ref[...],
                           preferred_element_type=jnp.float32) + b_in_ref[...]

    # ---- step 2: V projection + attention + out-proj + residual-1 + LN-2 -----
    @pl.when(i == QKV_CHUNKS - 1)
    def _():
        v = jnp.dot(xn1_s[...], w_in_ref[...],
                    preferred_element_type=jnp.float32) + b_in_ref[...]
        q = q_s[...]
        k = k_s[...]

        # Rows are interleaved by batch (row r belongs to batch r % BATCH);
        # block-diagonal mask keeps attention within each batch element.
        row = jax.lax.broadcasted_iota(jnp.int32, (R, R), 0)
        col = jax.lax.broadcasted_iota(jnp.int32, (R, R), 1)
        same_batch = (row % BATCH) == (col % BATCH)

        ctx_heads = []
        for h in range(NUM_HEADS):
            hs = slice(h * HEAD_DIM, (h + 1) * HEAD_DIM)
            # 'NT' matmul: contract last dims, no materialized K transpose.
            s = jax.lax.dot_general(q[:, hs], k[:, hs], (((1,), (1,)), ((), ())),
                                    preferred_element_type=jnp.float32)   # (R, R)
            s = jnp.where(same_batch, s, -1e30)
            m = jnp.max(s, axis=-1, keepdims=True)
            e = jnp.exp(s - m)
            p = e * pl.reciprocal(jnp.sum(e, axis=-1, keepdims=True), approx=True)
            ctx_heads.append(jnp.dot(p, v[:, hs],
                                     preferred_element_type=jnp.float32))  # (R, D)

        # One K=512 out-projection instead of 8 K=64 per-head dots.
        ctx = jnp.concatenate(ctx_heads, axis=-1)                          # (R, E)
        attn = jnp.dot(ctx.astype(jnp.bfloat16), w_out_ref[...],
                       preferred_element_type=jnp.float32) + b_out_ref[...]

        x1 = x_ref[...] + attn                       # residual 1
        acc_s[...] = x1                              # residual 2 folded into acc
        xn2_s[...] = _layernorm(x1, g2_ref[...], bt2_ref[...]).astype(jnp.bfloat16)

    # ---- steps 3..6: stream one HIDDEN chunk of the MLP per step --------------
    @pl.when(i >= QKV_CHUNKS)
    def _():
        h1 = jnp.dot(xn2_s[...], w1_ref[...],
                     preferred_element_type=jnp.float32) + b1_ref[...]
        h1 = jnp.maximum(h1, 0.0)
        acc_s[...] += jnp.dot(h1.astype(jnp.bfloat16), w2_ref[...],
                              preferred_element_type=jnp.float32)

    # ---- final step: bias + single lane-dense store ----------------------------
    @pl.when(i == NSTEPS - 1)
    def _():
        out_ref[...] = (acc_s[...] + b2_ref[...]).astype(out_ref.dtype)


def prepare_params(p):
    """One-time weight prep: transpose to (in,out), bf16 cast, fold softmax
    scale into the Q part of the in-projection. Do NOT call per forward."""
    scale = 1.0 / (HEAD_DIM ** 0.5)
    w_in = p["w_in"].at[:EMBED, :].multiply(scale)      # scale Q output rows
    b_in = p["b_in"].at[:EMBED].multiply(scale)         # and the Q bias
    return {
        "g1": p["g1"].reshape(1, EMBED),
        "bt1": p["b1"].reshape(1, EMBED),
        "g2": p["g2"].reshape(1, EMBED),
        "bt2": p["b2"].reshape(1, EMBED),
        "w_in": w_in.T.astype(jnp.bfloat16),             # (E, 3E)
        "b_in": b_in.reshape(1, 3 * EMBED),
        "w_out": p["w_out"].T.astype(jnp.bfloat16),      # (E, E)
        "b_out": p["b_out"].reshape(1, EMBED),
        "w1": p["w1"].T.astype(jnp.bfloat16),            # (E, HIDDEN)
        "b1m": p["b1m"].reshape(1, HIDDEN),
        "w2": p["w2"].T.astype(jnp.bfloat16),            # (HIDDEN, E)
        "b2m": p["b2m"].reshape(1, EMBED),
    }


@jax.jit
def transformer_encoder(x, prep):
    """x: (L, N, E) float32 — PyTorch nn.MultiheadAttention default convention."""
    L, N, E = x.shape
    x2d = x.reshape(L * N, E)    # free reshape; rows interleaved by batch

    const = lambda shape: pl.BlockSpec(shape, lambda i: (0,) * len(shape))
    qkv_idx = lambda i: (0, jnp.minimum(i, QKV_CHUNKS - 1))
    h_col_idx = lambda i: (0, jnp.maximum(i - QKV_CHUNKS, 0))
    h_row_idx = lambda i: (jnp.maximum(i - QKV_CHUNKS, 0), 0)

    out2d = pl.pallas_call(
        encoder_kernel,
        out_shape=jax.ShapeDtypeStruct((L * N, E), x.dtype),
        grid=(NSTEPS,),
        in_specs=[
            const((L * N, E)),                             # x (resident)
            const((1, E)), const((1, E)),                  # gamma1, beta1
            const((1, E)), const((1, E)),                  # gamma2, beta2
            pl.BlockSpec((E, E), qkv_idx),                 # w_in Q/K/V chunk (bf16)
            pl.BlockSpec((1, E), qkv_idx),                 # b_in chunk
            const((E, E)), const((1, E)),                  # w_out (bf16), bias
            pl.BlockSpec((E, H_CHUNK), h_col_idx),         # w1 chunk (bf16)
            pl.BlockSpec((1, H_CHUNK), h_col_idx),         # b1 chunk
            pl.BlockSpec((H_CHUNK, E), h_row_idx),         # w2 chunk (bf16)
            const((1, E)),                                 # b2
        ],
        out_specs=const((L * N, E)),
        scratch_shapes=[
            pltpu.VMEM((L * N, E), jnp.float32),           # q
            pltpu.VMEM((L * N, E), jnp.float32),           # k
            pltpu.VMEM((L * N, E), jnp.bfloat16),          # LN1(x)
            pltpu.VMEM((L * N, E), jnp.bfloat16),          # LN2(x1)
            pltpu.VMEM((L * N, E), jnp.float32),           # h2 accumulator (+x1)
        ],
        compiler_params=pltpu.CompilerParams(
            dimension_semantics=("arbitrary",),
            vmem_limit_bytes=24 * 1024 * 1024),
    )(x2d, prep["g1"], prep["bt1"], prep["g2"], prep["bt2"],
      prep["w_in"], prep["b_in"], prep["w_out"], prep["b_out"],
      prep["w1"], prep["b1m"], prep["w2"], prep["b2m"])

    return out2d.reshape(L, N, E)


def init_params(key):
    ks = jax.random.split(key, 10)
    s = 0.02
    return {
        "g1": 1.0 + 0.1 * jax.random.normal(ks[0], (EMBED,), jnp.float32),
        "b1": 0.1 * jax.random.normal(ks[1], (EMBED,), jnp.float32),
        "g2": 1.0 + 0.1 * jax.random.normal(ks[2], (EMBED,), jnp.float32),
        "b2": 0.1 * jax.random.normal(ks[3], (EMBED,), jnp.float32),
        "w_in": s * jax.random.normal(ks[4], (3 * EMBED, EMBED), jnp.float32),
        "b_in": jnp.zeros((3 * EMBED,), jnp.float32),
        "w_out": s * jax.random.normal(ks[5], (EMBED, EMBED), jnp.float32),
        "b_out": jnp.zeros((EMBED,), jnp.float32),
        "w1": s * jax.random.normal(ks[6], (HIDDEN, EMBED), jnp.float32),
        "b1m": 0.01 * jax.random.normal(ks[7], (HIDDEN,), jnp.float32),
        "w2": s * jax.random.normal(ks[8], (EMBED, HIDDEN), jnp.float32),
        "b2m": 0.01 * jax.random.normal(ks[9], (EMBED,), jnp.float32),
    }


def ref_forward(x, p):
    """Pure-JAX f32 reference mirroring PyTorch eval-mode forward, (L, N, E)."""
    L, N, E = x.shape

    def ln(t, g, b):
        m = t.mean(-1, keepdims=True)
        v = ((t - m) ** 2).mean(-1, keepdims=True)
        return (t - m) / jnp.sqrt(v + EPS) * g + b

    xn = ln(x, p["g1"], p["b1"])
    qkv = xn @ p["w_in"].T + p["b_in"]
    q, k, v = jnp.split(qkv, 3, axis=-1)

    def heads(t):
        return jnp.transpose(t.reshape(L, N, NUM_HEADS, HEAD_DIM), (1, 2, 0, 3))

    qh, kh, vh = heads(q), heads(k), heads(v)
    scale = 1.0 / (HEAD_DIM ** 0.5)
    scores = jnp.einsum("nhld,nhmd->nhlm", qh * scale, kh)
    attn = jax.nn.softmax(scores, axis=-1)
    ctx = jnp.einsum("nhlm,nhmd->nhld", attn, vh)
    ctx = jnp.transpose(ctx, (2, 0, 1, 3)).reshape(L, N, E)
    x = x + (ctx @ p["w_out"].T + p["b_out"])

    xn2 = ln(x, p["g2"], p["b2"])
    h = jax.nn.relu(xn2 @ p["w1"].T + p["b1m"])
    h = h @ p["w2"].T + p["b2m"]
    return x + h


if __name__ == "__main__":
    key = jax.random.PRNGKey(0)
    k_x, k_p = jax.random.split(key)
    x = jax.random.normal(k_x, (SEQ, BATCH, EMBED), jnp.float32)   # (L, N, E)
    params = init_params(k_p)

    # One-time weight prep (transpose / bf16 / scale folding) -- NOT per call.
    prep = jax.tree_util.tree_map(jax.block_until_ready, prepare_params(params))

    out = transformer_encoder(x, prep)
    out = jax.block_until_ready(out)

    ref = ref_forward(x, params)
    assert out.shape == ref.shape == (SEQ, BATCH, EMBED)
    # Tolerance widened vs. an all-f32 kernel because the weight matmuls use
    # bf16 operands (f32 accumulation) and softmax uses an approx reciprocal.
    assert jnp.allclose(out, ref, rtol=1e-2, atol=1e-2), "mismatch vs JAX reference"

    print("KERNEL_OK")
</pallas_src>

<mosaic_0001>
module attributes {stable_mosaic.version = 11 : i64} {
  func.func @encoder_kernel(%arg0: i32, %arg1: memref<32x512xf32, #tpu.memory_space<vmem>>, %arg2: memref<1x512xf32, #tpu.memory_space<vmem>>, %arg3: memref<1x512xf32, #tpu.memory_space<vmem>>, %arg4: memref<1x512xf32, #tpu.memory_space<vmem>>, %arg5: memref<1x512xf32, #tpu.memory_space<vmem>>, %arg6: memref<512x512xbf16, #tpu.memory_space<vmem>>, %arg7: memref<1x512xf32, #tpu.memory_space<vmem>>, %arg8: memref<512x512xbf16, #tpu.memory_space<vmem>>, %arg9: memref<1x512xf32, #tpu.memory_space<vmem>>, %arg10: memref<512x512xbf16, #tpu.memory_space<vmem>>, %arg11: memref<1x512xf32, #tpu.memory_space<vmem>>, %arg12: memref<512x512xbf16, #tpu.memory_space<vmem>>, %arg13: memref<1x512xf32, #tpu.memory_space<vmem>>, %arg14: memref<32x512xf32, #tpu.memory_space<vmem>>, %arg15: memref<32x512xf32, #tpu.memory_space<vmem>>, %arg16: memref<32x512xf32, #tpu.memory_space<vmem>>, %arg17: memref<32x512xbf16, #tpu.memory_space<vmem>>, %arg18: memref<32x512xbf16, #tpu.memory_space<vmem>>, %arg19: memref<32x512xf32, #tpu.memory_space<vmem>>) attributes {dimension_semantics = [#tpu.dimension_semantics<arbitrary>], iteration_bounds = array<i64: 7>, scalar_prefetch = 0 : i64, scratch_operands = 5 : i64, tpu.core_type = #tpu.core_type<tc>, window_params = [{pipeline_mode = #tpu.pipeline_mode<synchronous>, transform_indices = @transform_0, window_bounds = array<i64: 32, 512>}, {pipeline_mode = #tpu.pipeline_mode<synchronous>, transform_indices = @transform_1, window_bounds = array<i64: 1, 512>}, {pipeline_mode = #tpu.pipeline_mode<synchronous>, transform_indices = @transform_2, window_bounds = array<i64: 1, 512>}, {pipeline_mode = #tpu.pipeline_mode<synchronous>, transform_indices = @transform_3, window_bounds = array<i64: 1, 512>}, {pipeline_mode = #tpu.pipeline_mode<synchronous>, transform_indices = @transform_4, window_bounds = array<i64: 1, 512>}, {transform_indices = @transform_5, window_bounds = array<i64: 512, 512>}, {transform_indices = @transform_6, window_bounds = array<i64: 1, 512>}, {pipeline_mode = #tpu.pipeline_mode<synchronous>, transform_indices = @transform_7, window_bounds = array<i64: 512, 512>}, {pipeline_mode = #tpu.pipeline_mode<synchronous>, transform_indices = @transform_8, window_bounds = array<i64: 1, 512>}, {transform_indices = @transform_9, window_bounds = array<i64: 512, 512>}, {transform_indices = @transform_10, window_bounds = array<i64: 1, 512>}, {transform_indices = @transform_11, window_bounds = array<i64: 512, 512>}, {pipeline_mode = #tpu.pipeline_mode<synchronous>, transform_indices = @transform_12, window_bounds = array<i64: 1, 512>}, {pipeline_mode = #tpu.pipeline_mode<synchronous>, transform_indices = @transform_13, window_bounds = array<i64: 32, 512>}]} {
    %c0_i32 = arith.constant 0 : i32
    %0 = arith.cmpi eq, %arg0, %c0_i32 : i32
    %1 = arith.extui %0 : i1 to i32
    %c0_i32_0 = arith.constant 0 : i32
    %2 = arith.cmpi ne, %1, %c0_i32_0 : i32
    scf.if %2 {
      %c0 = arith.constant 0 : index
      %c0_5 = arith.constant 0 : index
      %15 = vector.load %arg1[%c0, %c0_5] : memref<32x512xf32, #tpu.memory_space<vmem>>, vector<32x512xf32>
      %c0_6 = arith.constant 0 : index
      %c0_7 = arith.constant 0 : index
      %16 = vector.load %arg2[%c0_6, %c0_7] : memref<1x512xf32, #tpu.memory_space<vmem>>, vector<1x512xf32>
      %c0_8 = arith.constant 0 : index
      %c0_9 = arith.constant 0 : index
      %17 = vector.load %arg3[%c0_8, %c0_9] : memref<1x512xf32, #tpu.memory_space<vmem>>, vector<1x512xf32>
      %cst = arith.constant dense<0.000000e+00> : vector<32xf32>
      %18 = vector.multi_reduction <add>, %15, %cst [1] : vector<32x512xf32> to vector<32xf32>
      %19 = vector.shape_cast %18 : vector<32xf32> to vector<32x1xf32>
      %cst_10 = arith.constant 5.120000e+02 : f32
      %20 = vector.broadcast %cst_10 : f32 to vector<32x1xf32>
      %21 = arith.divf %19, %20 : vector<32x1xf32>
      %22 = vector.broadcast %21 : vector<32x1xf32> to vector<32x512xf32>
      %23 = arith.subf %15, %22 : vector<32x512xf32>
      %24 = arith.mulf %23, %23 : vector<32x512xf32>
      %cst_11 = arith.constant dense<0.000000e+00> : vector<32xf32>
      %25 = vector.multi_reduction <add>, %24, %cst_11 [1] : vector<32x512xf32> to vector<32xf32>
      %26 = vector.shape_cast %25 : vector<32xf32> to vector<32x1xf32>
      %cst_12 = arith.constant 5.120000e+02 : f32
      %27 = vector.broadcast %cst_12 : f32 to vector<32x1xf32>
      %28 = arith.divf %26, %27 : vector<32x1xf32>
      %cst_13 = arith.constant 9.99999974E-6 : f32
      %29 = vector.broadcast %cst_13 : f32 to vector<32x1xf32>
      %30 = arith.addf %28, %29 : vector<32x1xf32>
      %31 = math.rsqrt %30 : vector<32x1xf32>
      %32 = vector.broadcast %31 : vector<32x1xf32> to vector<32x512xf32>
      %33 = arith.mulf %23, %32 : vector<32x512xf32>
      %34 = vector.broadcast %16 : vector<1x512xf32> to vector<32x512xf32>
      %35 = arith.mulf %33, %34 : vector<32x512xf32>
      %36 = vector.broadcast %17 : vector<1x512xf32> to vector<32x512xf32>
      %37 = arith.addf %35, %36 : vector<32x512xf32>
      %38 = arith.truncf %37 : vector<32x512xf32> to vector<32x512xbf16>
      %c0_14 = arith.constant 0 : index
      %c0_15 = arith.constant 0 : index
      %39 = vector.load %arg17[%c0_14, %c0_15] : memref<32x512xbf16, #tpu.memory_space<vmem>>, vector<32x512xbf16>
      tpu.vector_store %arg17[%c0_14, %c0_15], %38 {strides = array<i32>} : memref<32x512xbf16, #tpu.memory_space<vmem>>, vector<32x512xbf16>,
      %c0_16 = arith.constant 0 : index
      %c0_17 = arith.constant 0 : index
      %40 = vector.load %arg6[%c0_16, %c0_17] : memref<512x512xbf16, #tpu.memory_space<vmem>>, vector<512x512xbf16>
      %cst_18 = arith.constant dense<0.000000e+00> : vector<32x512xf32>
      %41 = tpu.matmul %38, %40, %cst_18 {dimension_numbers = #tpu.dot_dimension_numbers<[1], [0], [0], [1], [0, 0, 1, 1], [], []>} : vector<32x512xbf16>, vector<512x512xbf16>, vector<32x512xf32> -> vector<32x512xf32>
      %c0_19 = arith.constant 0 : index
      %c0_20 = arith.constant 0 : index
      %42 = vector.load %arg7[%c0_19, %c0_20] : memref<1x512xf32, #tpu.memory_space<vmem>>, vector<1x512xf32>
      %43 = vector.broadcast %42 : vector<1x512xf32> to vector<32x512xf32>
      %44 = arith.addf %41, %43 : vector<32x512xf32>
      %c0_21 = arith.constant 0 : index
      %c0_22 = arith.constant 0 : index
      %45 = vector.load %arg15[%c0_21, %c0_22] : memref<32x512xf32, #tpu.memory_space<vmem>>, vector<32x512xf32>
      tpu.vector_store %arg15[%c0_21, %c0_22], %44 {strides = array<i32>} : memref<32x512xf32, #tpu.memory_space<vmem>>, vector<32x512xf32>,
    } else {
    }
    %c1_i32 = arith.constant 1 : i32
    %3 = arith.cmpi eq, %arg0, %c1_i32 : i32
    %4 = arith.extui %3 : i1 to i32
    %c0_i32_1 = arith.constant 0 : i32
    %5 = arith.cmpi ne, %4, %c0_i32_1 : i32
    scf.if %5 {
      %c0 = arith.constant 0 : index
      %c0_5 = arith.constant 0 : index
      %15 = vector.load %arg17[%c0, %c0_5] : memref<32x512xbf16, #tpu.memory_space<vmem>>, vector<32x512xbf16>
      %c0_6 = arith.constant 0 : index
      %c0_7 = arith.constant 0 : index
      %16 = vector.load %arg6[%c0_6, %c0_7] : memref<512x512xbf16, #tpu.memory_space<vmem>>, vector<512x512xbf16>
      %cst = arith.constant dense<0.000000e+00> : vector<32x512xf32>
      %17 = tpu.matmul %15, %16, %cst {dimension_numbers = #tpu.dot_dimension_numbers<[1], [0], [0], [1], [0, 0, 1, 1], [], []>} : vector<32x512xbf16>, vector<512x512xbf16>, vector<32x512xf32> -> vector<32x512xf32>
      %c0_8 = arith.constant 0 : index
      %c0_9 = arith.constant 0 : index
      %18 = vector.load %arg7[%c0_8, %c0_9] : memref<1x512xf32, #tpu.memory_space<vmem>>, vector<1x512xf32>
      %19 = vector.broadcast %18 : vector<1x512xf32> to vector<32x512xf32>
      %20 = arith.addf %17, %19 : vector<32x512xf32>
      %c0_10 = arith.constant 0 : index
      %c0_11 = arith.constant 0 : index
      %21 = vector.load %arg16[%c0_10, %c0_11] : memref<32x512xf32, #tpu.memory_space<vmem>>, vector<32x512xf32>
      tpu.vector_store %arg16[%c0_10, %c0_11], %20 {strides = array<i32>} : memref<32x512xf32, #tpu.memory_space<vmem>>, vector<32x512xf32>,
    } else {
    }
    %c2_i32 = arith.constant 2 : i32
    %6 = arith.cmpi eq, %arg0, %c2_i32 : i32
    %7 = arith.extui %6 : i1 to i32
    %c0_i32_2 = arith.constant 0 : i32
    %8 = arith.cmpi ne, %7, %c0_i32_2 : i32
    scf.if %8 {
      %c0 = arith.constant 0 : index
      %c0_5 = arith.constant 0 : index
      %15 = vector.load %arg17[%c0, %c0_5] : memref<32x512xbf16, #tpu.memory_space<vmem>>, vector<32x512xbf16>
      %c0_6 = arith.constant 0 : index
      %c0_7 = arith.constant 0 : index
      %16 = vector.load %arg6[%c0_6, %c0_7] : memref<512x512xbf16, #tpu.memory_space<vmem>>, vector<512x512xbf16>
      %cst = arith.constant dense<0.000000e+00> : vector<32x512xf32>
      %17 = tpu.matmul %15, %16, %cst {dimension_numbers = #tpu.dot_dimension_numbers<[1], [0], [0], [1], [0, 0, 1, 1], [], []>} : vector<32x512xbf16>, vector<512x512xbf16>, vector<32x512xf32> -> vector<32x512xf32>
      %c0_8 = arith.constant 0 : index
      %c0_9 = arith.constant 0 : index
      %18 = vector.load %arg7[%c0_8, %c0_9] : memref<1x512xf32, #tpu.memory_space<vmem>>, vector<1x512xf32>
      %19 = vector.broadcast %18 : vector<1x512xf32> to vector<32x512xf32>
      %20 = arith.addf %17, %19 : vector<32x512xf32>
      %c0_10 = arith.constant 0 : index
      %c0_11 = arith.constant 0 : index
      %21 = vector.load %arg15[%c0_10, %c0_11] : memref<32x512xf32, #tpu.memory_space<vmem>>, vector<32x512xf32>
      %c0_12 = arith.constant 0 : index
      %c0_13 = arith.constant 0 : index
      %22 = vector.load %arg16[%c0_12, %c0_13] : memref<32x512xf32, #tpu.memory_space<vmem>>, vector<32x512xf32>
      %23 = tpu.iota {dimensions = array<i32: 0>} : vector<32x32xi32>
      %24 = tpu.iota {dimensions = array<i32: 1>} : vector<32x32xi32>
      %c2_i32_14 = arith.constant 2 : i32
      %c0_i32_15 = arith.constant 0 : i32
      %25 = arith.cmpi eq, %c2_i32_14, %c0_i32_15 : i32
      %c1_i32_16 = arith.constant 1 : i32
      %26 = arith.select %25, %c1_i32_16, %c2_i32_14 : i32
      %27 = vector.broadcast %26 : i32 to vector<32x32xi32>
      %28 = arith.remsi %23, %27 : vector<32x32xi32>
      %c0_i32_17 = arith.constant 0 : i32
      %29 = vector.broadcast %c0_i32_17 : i32 to vector<32x32xi32>
      %30 = arith.cmpi ne, %28, %29 : vector<32x32xi32>
      %c0_i32_18 = arith.constant 0 : i32
      %31 = vector.broadcast %c0_i32_18 : i32 to vector<32x32xi32>
      %32 = arith.cmpi slt, %28, %31 : vector<32x32xi32>
      %c0_i32_19 = arith.constant 0 : i32
      %33 = arith.cmpi slt, %26, %c0_i32_19 : i32
      %34 = vector.broadcast %33 : i1 to vector<32x32xi1>
      %35 = vector.broadcast %34 : vector<32x32xi1> to vector<32x32xi1>
      %36 = arith.xori %32, %35 : vector<32x32xi1>
      %37 = arith.andi %36, %30 : vector<32x32xi1>
      %38 = vector.broadcast %26 : i32 to vector<32x32xi32>
      %39 = arith.addi %28, %38 : vector<32x32xi32>
      %40 = arith.select %37, %39, %28 : vector<32x32xi1>, vector<32x32xi32>
      %c2_i32_20 = arith.constant 2 : i32
      %c0_i32_21 = arith.constant 0 : i32
      %41 = arith.cmpi eq, %c2_i32_20, %c0_i32_21 : i32
      %c1_i32_22 = arith.constant 1 : i32
      %42 = arith.select %41, %c1_i32_22, %c2_i32_20 : i32
      %43 = vector.broadcast %42 : i32 to vector<32x32xi32>
      %44 = arith.remsi %24, %43 : vector<32x32xi32>
      %c0_i32_23 = arith.constant 0 : i32
      %45 = vector.broadcast %c0_i32_23 : i32 to vector<32x32xi32>
      %46 = arith.cmpi ne, %44, %45 : vector<32x32xi32>
      %c0_i32_24 = arith.constant 0 : i32
      %47 = vector.broadcast %c0_i32_24 : i32 to vector<32x32xi32>
      %48 = arith.cmpi slt, %44, %47 : vector<32x32xi32>
      %c0_i32_25 = arith.constant 0 : i32
      %49 = arith.cmpi slt, %42, %c0_i32_25 : i32
      %50 = vector.broadcast %49 : i1 to vector<32x32xi1>
      %51 = vector.broadcast %50 : vector<32x32xi1> to vector<32x32xi1>
      %52 = arith.xori %48, %51 : vector<32x32xi1>
      %53 = arith.andi %52, %46 : vector<32x32xi1>
      %54 = vector.broadcast %42 : i32 to vector<32x32xi32>
      %55 = arith.addi %44, %54 : vector<32x32xi32>
      %56 = arith.select %53, %55, %44 : vector<32x32xi1>, vector<32x32xi32>
      %57 = arith.cmpi eq, %40, %56 : vector<32x32xi32>
      %58 = vector.extract_strided_slice %21 {offsets = [0, 0], sizes = [32, 64], strides = [1, 1]} : vector<32x512xf32> to vector<32x64xf32>
      %59 = vector.extract_strided_slice %22 {offsets = [0, 0], sizes = [32, 64], strides = [1, 1]} : vector<32x512xf32> to vector<32x64xf32>
      %cst_26 = arith.constant dense<0.000000e+00> : vector<32x32xf32>
      %60 = tpu.matmul %58, %59, %cst_26 {dimension_numbers = #tpu.dot_dimension_numbers<[1], [1], [0], [0], [0, 0, 1, 0], [], []>} : vector<32x64xf32>, vector<32x64xf32>, vector<32x32xf32> -> vector<32x32xf32>
      %cst_27 = arith.constant -1.000000e+30 : f32
      %61 = vector.broadcast %cst_27 : f32 to vector<32x32xf32>
      %62 = arith.select %57, %60, %61 : vector<32x32xi1>, vector<32x32xf32>
      %cst_28 = arith.constant dense<0xFF800000> : vector<32xf32>
      %63 = vector.multi_reduction <maximumf>, %62, %cst_28 [1] : vector<32x32xf32> to vector<32xf32>
      %64 = vector.shape_cast %63 : vector<32xf32> to vector<32x1xf32>
      %65 = vector.broadcast %64 : vector<32x1xf32> to vector<32x32xf32>
      %66 = arith.subf %62, %65 : vector<32x32xf32>
      %67 = math.exp %66 : vector<32x32xf32>
      %cst_29 = arith.constant dense<0.000000e+00> : vector<32xf32>
      %68 = vector.multi_reduction <add>, %67, %cst_29 [1] : vector<32x32xf32> to vector<32xf32>
      %69 = vector.shape_cast %68 : vector<32xf32> to vector<32x1xf32>
      %70 = tpu.reciprocal %69 {approx = true} : vector<32x1xf32> -> vector<32x1xf32>
      %71 = vector.broadcast %70 : vector<32x1xf32> to vector<32x32xf32>
      %72 = arith.mulf %67, %71 : vector<32x32xf32>
      %73 = vector.extract_strided_slice %20 {offsets = [0, 0], sizes = [32, 64], strides = [1, 1]} : vector<32x512xf32> to vector<32x64xf32>
      %cst_30 = arith.constant dense<0.000000e+00> : vector<32x64xf32>
      %74 = tpu.matmul %72, %73, %cst_30 {dimension_numbers = #tpu.dot_dimension_numbers<[1], [0], [0], [1], [0, 0, 1, 1], [], []>} : vector<32x32xf32>, vector<32x64xf32>, vector<32x64xf32> -> vector<32x64xf32>
      %75 = vector.extract_strided_slice %21 {offsets = [0, 64], sizes = [32, 64], strides = [1, 1]} : vector<32x512xf32> to vector<32x64xf32>
      %76 = vector.extract_strided_slice %22 {offsets = [0, 64], sizes = [32, 64], strides = [1, 1]} : vector<32x512xf32> to vector<32x64xf32>
      %cst_31 = arith.constant dense<0.000000e+00> : vector<32x32xf32>
      %77 = tpu.matmul %75, %76, %cst_31 {dimension_numbers = #tpu.dot_dimension_numbers<[1], [1], [0], [0], [0, 0, 1, 0], [], []>} : vector<32x64xf32>, vector<32x64xf32>, vector<32x32xf32> -> vector<32x32xf32>
      %cst_32 = arith.constant -1.000000e+30 : f32
      %78 = vector.broadcast %cst_32 : f32 to vector<32x32xf32>
      %79 = arith.select %57, %77, %78 : vector<32x32xi1>, vector<32x32xf32>
      %cst_33 = arith.constant dense<0xFF800000> : vector<32xf32>
      %80 = vector.multi_reduction <maximumf>, %79, %cst_33 [1] : vector<32x32xf32> to vector<32xf32>
      %81 = vector.shape_cast %80 : vector<32xf32> to vector<32x1xf32>
      %82 = vector.broadcast %81 : vector<32x1xf32> to vector<32x32xf32>
      %83 = arith.subf %79, %82 : vector<32x32xf32>
      %84 = math.exp %83 : vector<32x32xf32>
      %cst_34 = arith.constant dense<0.000000e+00> : vector<32xf32>
      %85 = vector.multi_reduction <add>, %84, %cst_34 [1] : vector<32x32xf32> to vector<32xf32>
      %86 = vector.shape_cast %85 : vector<32xf32> to vector<32x1xf32>
      %87 = tpu.reciprocal %86 {approx = true} : vector<32x1xf32> -> vector<32x1xf32>
      %88 = vector.broadcast %87 : vector<32x1xf32> to vector<32x32xf32>
      %89 = arith.mulf %84, %88 : vector<32x32xf32>
      %90 = vector.extract_strided_slice %20 {offsets = [0, 64], sizes = [32, 64], strides = [1, 1]} : vector<32x512xf32> to vector<32x64xf32>
      %cst_35 = arith.constant dense<0.000000e+00> : vector<32x64xf32>
      %91 = tpu.matmul %89, %90, %cst_35 {dimension_numbers = #tpu.dot_dimension_numbers<[1], [0], [0], [1], [0, 0, 1, 1], [], []>} : vector<32x32xf32>, vector<32x64xf32>, vector<32x64xf32> -> vector<32x64xf32>
      %92 = vector.extract_strided_slice %21 {offsets = [0, 128], sizes = [32, 64], strides = [1, 1]} : vector<32x512xf32> to vector<32x64xf32>
      %93 = vector.extract_strided_slice %22 {offsets = [0, 128], sizes = [32, 64], strides = [1, 1]} : vector<32x512xf32> to vector<32x64xf32>
      %cst_36 = arith.constant dense<0.000000e+00> : vector<32x32xf32>
      %94 = tpu.matmul %92, %93, %cst_36 {dimension_numbers = #tpu.dot_dimension_numbers<[1], [1], [0], [0], [0, 0, 1, 0], [], []>} : vector<32x64xf32>, vector<32x64xf32>, vector<32x32xf32> -> vector<32x32xf32>
      %cst_37 = arith.constant -1.000000e+30 : f32
      %95 = vector.broadcast %cst_37 : f32 to vector<32x32xf32>
      %96 = arith.select %57, %94, %95 : vector<32x32xi1>, vector<32x32xf32>
      %cst_38 = arith.constant dense<0xFF800000> : vector<32xf32>
      %97 = vector.multi_reduction <maximumf>, %96, %cst_38 [1] : vector<32x32xf32> to vector<32xf32>
      %98 = vector.shape_cast %97 : vector<32xf32> to vector<32x1xf32>
      %99 = vector.broadcast %98 : vector<32x1xf32> to vector<32x32xf32>
      %100 = arith.subf %96, %99 : vector<32x32xf32>
      %101 = math.exp %100 : vector<32x32xf32>
      %cst_39 = arith.constant dense<0.000000e+00> : vector<32xf32>
      %102 = vector.multi_reduction <add>, %101, %cst_39 [1] : vector<32x32xf32> to vector<32xf32>
      %103 = vector.shape_cast %102 : vector<32xf32> to vector<32x1xf32>
      %104 = tpu.reciprocal %103 {approx = true} : vector<32x1xf32> -> vector<32x1xf32>
      %105 = vector.broadcast %104 : vector<32x1xf32> to vector<32x32xf32>
      %106 = arith.mulf %101, %105 : vector<32x32xf32>
      %107 = vector.extract_strided_slice %20 {offsets = [0, 128], sizes = [32, 64], strides = [1, 1]} : vector<32x512xf32> to vector<32x64xf32>
      %cst_40 = arith.constant dense<0.000000e+00> : vector<32x64xf32>
      %108 = tpu.matmul %106, %107, %cst_40 {dimension_numbers = #tpu.dot_dimension_numbers<[1], [0], [0], [1], [0, 0, 1, 1], [], []>} : vector<32x32xf32>, vector<32x64xf32>, vector<32x64xf32> -> vector<32x64xf32>
      %109 = vector.extract_strided_slice %21 {offsets = [0, 192], sizes = [32, 64], strides = [1, 1]} : vector<32x512xf32> to vector<32x64xf32>
      %110 = vector.extract_strided_slice %22 {offsets = [0, 192], sizes = [32, 64], strides = [1, 1]} : vector<32x512xf32> to vector<32x64xf32>
      %cst_41 = arith.constant dense<0.000000e+00> : vector<32x32xf32>
      %111 = tpu.matmul %109, %110, %cst_41 {dimension_numbers = #tpu.dot_dimension_numbers<[1], [1], [0], [0], [0, 0, 1, 0], [], []>} : vector<32x64xf32>, vector<32x64xf32>, vector<32x32xf32> -> vector<32x32xf32>
      %cst_42 = arith.constant -1.000000e+30 : f32
      %112 = vector.broadcast %cst_42 : f32 to vector<32x32xf32>
      %113 = arith.select %57, %111, %112 : vector<32x32xi1>, vector<32x32xf32>
      %cst_43 = arith.constant dense<0xFF800000> : vector<32xf32>
      %114 = vector.multi_reduction <maximumf>, %113, %cst_43 [1] : vector<32x32xf32> to vector<32xf32>
      %115 = vector.shape_cast %114 : vector<32xf32> to vector<32x1xf32>
      %116 = vector.broadcast %115 : vector<32x1xf32> to vector<32x32xf32>
      %117 = arith.subf %113, %116 : vector<32x32xf32>
      %118 = math.exp %117 : vector<32x32xf32>
      %cst_44 = arith.constant dense<0.000000e+00> : vector<32xf32>
      %119 = vector.multi_reduction <add>, %118, %cst_44 [1] : vector<32x32xf32> to vector<32xf32>
      %120 = vector.shape_cast %119 : vector<32xf32> to vector<32x1xf32>
      %121 = tpu.reciprocal %120 {approx = true} : vector<32x1xf32> -> vector<32x1xf32>
      %122 = vector.broadcast %121 : vector<32x1xf32> to vector<32x32xf32>
      %123 = arith.mulf %118, %122 : vector<32x32xf32>
      %124 = vector.extract_strided_slice %20 {offsets = [0, 192], sizes = [32, 64], strides = [1, 1]} : vector<32x512xf32> to vector<32x64xf32>
      %cst_45 = arith.constant dense<0.000000e+00> : vector<32x64xf32>
      %125 = tpu.matmul %123, %124, %cst_45 {dimension_numbers = #tpu.dot_dimension_numbers<[1], [0], [0], [1], [0, 0, 1, 1], [], []>} : vector<32x32xf32>, vector<32x64xf32>, vector<32x64xf32> -> vector<32x64xf32>
      %126 = vector.extract_strided_slice %21 {offsets = [0, 256], sizes = [32, 64], strides = [1, 1]} : vector<32x512xf32> to vector<32x64xf32>
      %127 = vector.extract_strided_slice %22 {offsets = [0, 256], sizes = [32, 64], strides = [1, 1]} : vector<32x512xf32> to vector<32x64xf32>
      %cst_46 = arith.constant dense<0.000000e+00> : vector<32x32xf32>
      %128 = tpu.matmul %126, %127, %cst_46 {dimension_numbers = #tpu.dot_dimension_numbers<[1], [1], [0], [0], [0, 0, 1, 0], [], []>} : vector<32x64xf32>, vector<32x64xf32>, vector<32x32xf32> -> vector<32x32xf32>
      %cst_47 = arith.constant -1.000000e+30 : f32
      %129 = vector.broadcast %cst_47 : f32 to vector<32x32xf32>
      %130 = arith.select %57, %128, %129 : vector<32x32xi1>, vector<32x32xf32>
      %cst_48 = arith.constant dense<0xFF800000> : vector<32xf32>
      %131 = vector.multi_reduction <maximumf>, %130, %cst_48 [1] : vector<32x32xf32> to vector<32xf32>
      %132 = vector.shape_cast %131 : vector<32xf32> to vector<32x1xf32>
      %133 = vector.broadcast %132 : vector<32x1xf32> to vector<32x32xf32>
      %134 = arith.subf %130, %133 : vector<32x32xf32>
      %135 = math.exp %134 : vector<32x32xf32>
      %cst_49 = arith.constant dense<0.000000e+00> : vector<32xf32>
      %136 = vector.multi_reduction <add>, %135, %cst_49 [1] : vector<32x32xf32> to vector<32xf32>
      %137 = vector.shape_cast %136 : vector<32xf32> to vector<32x1xf32>
      %138 = tpu.reciprocal %137 {approx = true} : vector<32x1xf32> -> vector<32x1xf32>
      %139 = vector.broadcast %138 : vector<32x1xf32> to vector<32x32xf32>
      %140 = arith.mulf %135, %139 : vector<32x32xf32>
      %141 = vector.extract_strided_slice %20 {offsets = [0, 256], sizes = [32, 64], strides = [1, 1]} : vector<32x512xf32> to vector<32x64xf32>
      %cst_50 = arith.constant dense<0.000000e+00> : vector<32x64xf32>
      %142 = tpu.matmul %140, %141, %cst_50 {dimension_numbers = #tpu.dot_dimension_numbers<[1], [0], [0], [1], [0, 0, 1, 1], [], []>} : vector<32x32xf32>, vector<32x64xf32>, vector<32x64xf32> -> vector<32x64xf32>
      %143 = vector.extract_strided_slice %21 {offsets = [0, 320], sizes = [32, 64], strides = [1, 1]} : vector<32x512xf32> to vector<32x64xf32>
      %144 = vector.extract_strided_slice %22 {offsets = [0, 320], sizes = [32, 64], strides = [1, 1]} : vector<32x512xf32> to vector<32x64xf32>
      %cst_51 = arith.constant dense<0.000000e+00> : vector<32x32xf32>
      %145 = tpu.matmul %143, %144, %cst_51 {dimension_numbers = #tpu.dot_dimension_numbers<[1], [1], [0], [0], [0, 0, 1, 0], [], []>} : vector<32x64xf32>, vector<32x64xf32>, vector<32x32xf32> -> vector<32x32xf32>
      %cst_52 = arith.constant -1.000000e+30 : f32
      %146 = vector.broadcast %cst_52 : f32 to vector<32x32xf32>
      %147 = arith.select %57, %145, %146 : vector<32x32xi1>, vector<32x32xf32>
      %cst_53 = arith.constant dense<0xFF800000> : vector<32xf32>
      %148 = vector.multi_reduction <maximumf>, %147, %cst_53 [1] : vector<32x32xf32> to vector<32xf32>
      %149 = vector.shape_cast %148 : vector<32xf32> to vector<32x1xf32>
      %150 = vector.broadcast %149 : vector<32x1xf32> to vector<32x32xf32>
      %151 = arith.subf %147, %150 : vector<32x32xf32>
      %152 = math.exp %151 : vector<32x32xf32>
      %cst_54 = arith.constant dense<0.000000e+00> : vector<32xf32>
      %153 = vector.multi_reduction <add>, %152, %cst_54 [1] : vector<32x32xf32> to vector<32xf32>
      %154 = vector.shape_cast %153 : vector<32xf32> to vector<32x1xf32>
      %155 = tpu.reciprocal %154 {approx = true} : vector<32x1xf32> -> vector<32x1xf32>
      %156 = vector.broadcast %155 : vector<32x1xf32> to vector<32x32xf32>
      %157 = arith.mulf %152, %156 : vector<32x32xf32>
      %158 = vector.extract_strided_slice %20 {offsets = [0, 320], sizes = [32, 64], strides = [1, 1]} : vector<32x512xf32> to vector<32x64xf32>
      %cst_55 = arith.constant dense<0.000000e+00> : vector<32x64xf32>
      %159 = tpu.matmul %157, %158, %cst_55 {dimension_numbers = #tpu.dot_dimension_numbers<[1], [0], [0], [1], [0, 0, 1, 1], [], []>} : vector<32x32xf32>, vector<32x64xf32>, vector<32x64xf32> -> vector<32x64xf32>
      %160 = vector.extract_strided_slice %21 {offsets = [0, 384], sizes = [32, 64], strides = [1, 1]} : vector<32x512xf32> to vector<32x64xf32>
      %161 = vector.extract_strided_slice %22 {offsets = [0, 384], sizes = [32, 64], strides = [1, 1]} : vector<32x512xf32> to vector<32x64xf32>
      %cst_56 = arith.constant dense<0.000000e+00> : vector<32x32xf32>
      %162 = tpu.matmul %160, %161, %cst_56 {dimension_numbers = #tpu.dot_dimension_numbers<[1], [1], [0], [0], [0, 0, 1, 0], [], []>} : vector<32x64xf32>, vector<32x64xf32>, vector<32x32xf32> -> vector<32x32xf32>
      %cst_57 = arith.constant -1.000000e+30 : f32
      %163 = vector.broadcast %cst_57 : f32 to vector<32x32xf32>
      %164 = arith.select %57, %162, %163 : vector<32x32xi1>, vector<32x32xf32>
      %cst_58 = arith.constant dense<0xFF800000> : vector<32xf32>
      %165 = vector.multi_reduction <maximumf>, %164, %cst_58 [1] : vector<32x32xf32> to vector<32xf32>
      %166 = vector.shape_cast %165 : vector<32xf32> to vector<32x1xf32>
      %167 = vector.broadcast %166 : vector<32x1xf32> to vector<32x32xf32>
      %168 = arith.subf %164, %167 : vector<32x32xf32>
      %169 = math.exp %168 : vector<32x32xf32>
      %cst_59 = arith.constant dense<0.000000e+00> : vector<32xf32>
      %170 = vector.multi_reduction <add>, %169, %cst_59 [1] : vector<32x32xf32> to vector<32xf32>
      %171 = vector.shape_cast %170 : vector<32xf32> to vector<32x1xf32>
      %172 = tpu.reciprocal %171 {approx = true} : vector<32x1xf32> -> vector<32x1xf32>
      %173 = vector.broadcast %172 : vector<32x1xf32> to vector<32x32xf32>
      %174 = arith.mulf %169, %173 : vector<32x32xf32>
      %175 = vector.extract_strided_slice %20 {offsets = [0, 384], sizes = [32, 64], strides = [1, 1]} : vector<32x512xf32> to vector<32x64xf32>
      %cst_60 = arith.constant dense<0.000000e+00> : vector<32x64xf32>
      %176 = tpu.matmul %174, %175, %cst_60 {dimension_numbers = #tpu.dot_dimension_numbers<[1], [0], [0], [1], [0, 0, 1, 1], [], []>} : vector<32x32xf32>, vector<32x64xf32>, vector<32x64xf32> -> vector<32x64xf32>
      %177 = vector.extract_strided_slice %21 {offsets = [0, 448], sizes = [32, 64], strides = [1, 1]} : vector<32x512xf32> to vector<32x64xf32>
      %178 = vector.extract_strided_slice %22 {offsets = [0, 448], sizes = [32, 64], strides = [1, 1]} : vector<32x512xf32> to vector<32x64xf32>
      %cst_61 = arith.constant dense<0.000000e+00> : vector<32x32xf32>
      %179 = tpu.matmul %177, %178, %cst_61 {dimension_numbers = #tpu.dot_dimension_numbers<[1], [1], [0], [0], [0, 0, 1, 0], [], []>} : vector<32x64xf32>, vector<32x64xf32>, vector<32x32xf32> -> vector<32x32xf32>
      %cst_62 = arith.constant -1.000000e+30 : f32
      %180 = vector.broadcast %cst_62 : f32 to vector<32x32xf32>
      %181 = arith.select %57, %179, %180 : vector<32x32xi1>, vector<32x32xf32>
      %cst_63 = arith.constant dense<0xFF800000> : vector<32xf32>
      %182 = vector.multi_reduction <maximumf>, %181, %cst_63 [1] : vector<32x32xf32> to vector<32xf32>
      %183 = vector.shape_cast %182 : vector<32xf32> to vector<32x1xf32>
      %184 = vector.broadcast %183 : vector<32x1xf32> to vector<32x32xf32>
      %185 = arith.subf %181, %184 : vector<32x32xf32>
      %186 = math.exp %185 : vector<32x32xf32>
      %cst_64 = arith.constant dense<0.000000e+00> : vector<32xf32>
      %187 = vector.multi_reduction <add>, %186, %cst_64 [1] : vector<32x32xf32> to vector<32xf32>
      %188 = vector.shape_cast %187 : vector<32xf32> to vector<32x1xf32>
      %189 = tpu.reciprocal %188 {approx = true} : vector<32x1xf32> -> vector<32x1xf32>
      %190 = vector.broadcast %189 : vector<32x1xf32> to vector<32x32xf32>
      %191 = arith.mulf %186, %190 : vector<32x32xf32>
      %192 = vector.extract_strided_slice %20 {offsets = [0, 448], sizes = [32, 64], strides = [1, 1]} : vector<32x512xf32> to vector<32x64xf32>
      %cst_65 = arith.constant dense<0.000000e+00> : vector<32x64xf32>
      %193 = tpu.matmul %191, %192, %cst_65 {dimension_numbers = #tpu.dot_dimension_numbers<[1], [0], [0], [1], [0, 0, 1, 1], [], []>} : vector<32x32xf32>, vector<32x64xf32>, vector<32x64xf32> -> vector<32x64xf32>
      %194 = tpu.concatenate %74, %91, %108, %125, %142, %159, %176, %193 in 1 : vector<32x64xf32>, vector<32x64xf32>, vector<32x64xf32>, vector<32x64xf32>, vector<32x64xf32>, vector<32x64xf32>, vector<32x64xf32>, vector<32x64xf32> -> vector<32x512xf32>
      %195 = arith.truncf %194 : vector<32x512xf32> to vector<32x512xbf16>
      %c0_66 = arith.constant 0 : index
      %c0_67 = arith.constant 0 : index
      %196 = vector.load %arg8[%c0_66, %c0_67] : memref<512x512xbf16, #tpu.memory_space<vmem>>, vector<512x512xbf16>
      %cst_68 = arith.constant dense<0.000000e+00> : vector<32x512xf32>
      %197 = tpu.matmul %195, %196, %cst_68 {dimension_numbers = #tpu.dot_dimension_numbers<[1], [0], [0], [1], [0, 0, 1, 1], [], []>} : vector<32x512xbf16>, vector<512x512xbf16>, vector<32x512xf32> -> vector<32x512xf32>
      %c0_69 = arith.constant 0 : index
      %c0_70 = arith.constant 0 : index
      %198 = vector.load %arg9[%c0_69, %c0_70] : memref<1x512xf32, #tpu.memory_space<vmem>>, vector<1x512xf32>
      %199 = vector.broadcast %198 : vector<1x512xf32> to vector<32x512xf32>
      %200 = arith.addf %197, %199 : vector<32x512xf32>
      %c0_71 = arith.constant 0 : index
      %c0_72 = arith.constant 0 : index
      %201 = vector.load %arg1[%c0_71, %c0_72] : memref<32x512xf32, #tpu.memory_space<vmem>>, vector<32x512xf32>
      %202 = arith.addf %201, %200 : vector<32x512xf32>
      %c0_73 = arith.constant 0 : index
      %c0_74 = arith.constant 0 : index
      %203 = vector.load %arg19[%c0_73, %c0_74] : memref<32x512xf32, #tpu.memory_space<vmem>>, vector<32x512xf32>
      tpu.vector_store %arg19[%c0_73, %c0_74], %202 {strides = array<i32>} : memref<32x512xf32, #tpu.memory_space<vmem>>, vector<32x512xf32>,
      %c0_75 = arith.constant 0 : index
      %c0_76 = arith.constant 0 : index
      %204 = vector.load %arg4[%c0_75, %c0_76] : memref<1x512xf32, #tpu.memory_space<vmem>>, vector<1x512xf32>
      %c0_77 = arith.constant 0 : index
      %c0_78 = arith.constant 0 : index
      %205 = vector.load %arg5[%c0_77, %c0_78] : memref<1x512xf32, #tpu.memory_space<vmem>>, vector<1x512xf32>
      %cst_79 = arith.constant dense<0.000000e+00> : vector<32xf32>
      %206 = vector.multi_reduction <add>, %202, %cst_79 [1] : vector<32x512xf32> to vector<32xf32>
      %207 = vector.shape_cast %206 : vector<32xf32> to vector<32x1xf32>
      %cst_80 = arith.constant 5.120000e+02 : f32
      %208 = vector.broadcast %cst_80 : f32 to vector<32x1xf32>
      %209 = arith.divf %207, %208 : vector<32x1xf32>
      %210 = vector.broadcast %209 : vector<32x1xf32> to vector<32x512xf32>
      %211 = arith.subf %202, %210 : vector<32x512xf32>
      %212 = arith.mulf %211, %211 : vector<32x512xf32>
      %cst_81 = arith.constant dense<0.000000e+00> : vector<32xf32>
      %213 = vector.multi_reduction <add>, %212, %cst_81 [1] : vector<32x512xf32> to vector<32xf32>
      %214 = vector.shape_cast %213 : vector<32xf32> to vector<32x1xf32>
      %cst_82 = arith.constant 5.120000e+02 : f32
      %215 = vector.broadcast %cst_82 : f32 to vector<32x1xf32>
      %216 = arith.divf %214, %215 : vector<32x1xf32>
      %cst_83 = arith.constant 9.99999974E-6 : f32
      %217 = vector.broadcast %cst_83 : f32 to vector<32x1xf32>
      %218 = arith.addf %216, %217 : vector<32x1xf32>
      %219 = math.rsqrt %218 : vector<32x1xf32>
      %220 = vector.broadcast %219 : vector<32x1xf32> to vector<32x512xf32>
      %221 = arith.mulf %211, %220 : vector<32x512xf32>
      %222 = vector.broadcast %204 : vector<1x512xf32> to vector<32x512xf32>
      %223 = arith.mulf %221, %222 : vector<32x512xf32>
      %224 = vector.broadcast %205 : vector<1x512xf32> to vector<32x512xf32>
      %225 = arith.addf %223, %224 : vector<32x512xf32>
      %226 = arith.truncf %225 : vector<32x512xf32> to vector<32x512xbf16>
      %c0_84 = arith.constant 0 : index
      %c0_85 = arith.constant 0 : index
      %227 = vector.load %arg18[%c0_84, %c0_85] : memref<32x512xbf16, #tpu.memory_space<vmem>>, vector<32x512xbf16>
      tpu.vector_store %arg18[%c0_84, %c0_85], %226 {strides = array<i32>} : memref<32x512xbf16, #tpu.memory_space<vmem>>, vector<32x512xbf16>,
    } else {
    }
    %c3_i32 = arith.constant 3 : i32
    %9 = arith.cmpi sge, %arg0, %c3_i32 : i32
    %10 = arith.extui %9 : i1 to i32
    %c0_i32_3 = arith.constant 0 : i32
    %11 = arith.cmpi ne, %10, %c0_i32_3 : i32
    scf.if %11 {
      %c0 = arith.constant 0 : index
      %c0_5 = arith.constant 0 : index
      %15 = vector.load %arg18[%c0, %c0_5] : memref<32x512xbf16, #tpu.memory_space<vmem>>, vector<32x512xbf16>
      %c0_6 = arith.constant 0 : index
      %c0_7 = arith.constant 0 : index
      %16 = vector.load %arg10[%c0_6, %c0_7] : memref<512x512xbf16, #tpu.memory_space<vmem>>, vector<512x512xbf16>
      %cst = arith.constant dense<0.000000e+00> : vector<32x512xf32>
      %17 = tpu.matmul %15, %16, %cst {dimension_numbers = #tpu.dot_dimension_numbers<[1], [0], [0], [1], [0, 0, 1, 1], [], []>} : vector<32x512xbf16>, vector<512x512xbf16>, vector<32x512xf32> -> vector<32x512xf32>
      %c0_8 = arith.constant 0 : index
      %c0_9 = arith.constant 0 : index
      %18 = vector.load %arg11[%c0_8, %c0_9] : memref<1x512xf32, #tpu.memory_space<vmem>>, vector<1x512xf32>
      %19 = vector.broadcast %18 : vector<1x512xf32> to vector<32x512xf32>
      %20 = arith.addf %17, %19 : vector<32x512xf32>
      %cst_10 = arith.constant 0.000000e+00 : f32
      %21 = vector.broadcast %cst_10 : f32 to vector<32x512xf32>
      %22 = arith.maximumf %20, %21 : vector<32x512xf32>
      %c0_11 = arith.constant 0 : index
      %c0_12 = arith.constant 0 : index
      %23 = vector.load %arg19[%c0_11, %c0_12] : memref<32x512xf32, #tpu.memory_space<vmem>>, vector<32x512xf32>
      %24 = arith.truncf %22 : vector<32x512xf32> to vector<32x512xbf16>
      %c0_13 = arith.constant 0 : index
      %c0_14 = arith.constant 0 : index
      %25 = vector.load %arg12[%c0_13, %c0_14] : memref<512x512xbf16, #tpu.memory_space<vmem>>, vector<512x512xbf16>
      %cst_15 = arith.constant dense<0.000000e+00> : vector<32x512xf32>
      %26 = tpu.matmul %24, %25, %cst_15 {dimension_numbers = #tpu.dot_dimension_numbers<[1], [0], [0], [1], [0, 0, 1, 1], [], []>} : vector<32x512xbf16>, vector<512x512xbf16>, vector<32x512xf32> -> vector<32x512xf32>
      %27 = arith.addf %23, %26 : vector<32x512xf32>
      %c0_16 = arith.constant 0 : index
      %c0_17 = arith.constant 0 : index
      %28 = vector.load %arg19[%c0_16, %c0_17] : memref<32x512xf32, #tpu.memory_space<vmem>>, vector<32x512xf32>
      tpu.vector_store %arg19[%c0_16, %c0_17], %27 {strides = array<i32>} : memref<32x512xf32, #tpu.memory_space<vmem>>, vector<32x512xf32>,
    } else {
    }
    %c6_i32 = arith.constant 6 : i32
    %12 = arith.cmpi eq, %arg0, %c6_i32 : i32
    %13 = arith.extui %12 : i1 to i32
    %c0_i32_4 = arith.constant 0 : i32
    %14 = arith.cmpi ne, %13, %c0_i32_4 : i32
    scf.if %14 {
      %c0 = arith.constant 0 : index
      %c0_5 = arith.constant 0 : index
      %15 = vector.load %arg19[%c0, %c0_5] : memref<32x512xf32, #tpu.memory_space<vmem>>, vector<32x512xf32>
      %c0_6 = arith.constant 0 : index
      %c0_7 = arith.constant 0 : index
      %16 = vector.load %arg13[%c0_6, %c0_7] : memref<1x512xf32, #tpu.memory_space<vmem>>, vector<1x512xf32>
      %17 = vector.broadcast %16 : vector<1x512xf32> to vector<32x512xf32>
      %18 = arith.addf %15, %17 : vector<32x512xf32>
      %c0_8 = arith.constant 0 : index
      %c0_9 = arith.constant 0 : index
      %19 = vector.load %arg14[%c0_8, %c0_9] : memref<32x512xf32, #tpu.memory_space<vmem>>, vector<32x512xf32>
      tpu.vector_store %arg14[%c0_8, %c0_9], %18 {strides = array<i32>} : memref<32x512xf32, #tpu.memory_space<vmem>>, vector<32x512xf32>,
    } else {
    }
    return
  }
  func.func @transform_0(%arg0: i32) -> (i32, i32) {
    %c0_i32 = arith.constant 0 : i32
    %c0_i32_0 = arith.constant 0 : i32
    %c0_i32_1 = arith.constant 0 : i32
    return %c0_i32, %c0_i32_0 : i32, i32
  }
  func.func @transform_1(%arg0: i32) -> (i32, i32) {
    %c0_i32 = arith.constant 0 : i32
    %c0_i32_0 = arith.constant 0 : i32
    %c0_i32_1 = arith.constant 0 : i32
    return %c0_i32, %c0_i32_0 : i32, i32
  }
  func.func @transform_2(%arg0: i32) -> (i32, i32) {
    %c0_i32 = arith.constant 0 : i32
    %c0_i32_0 = arith.constant 0 : i32
    %c0_i32_1 = arith.constant 0 : i32
    return %c0_i32, %c0_i32_0 : i32, i32
  }
  func.func @transform_3(%arg0: i32) -> (i32, i32) {
    %c0_i32 = arith.constant 0 : i32
    %c0_i32_0 = arith.constant 0 : i32
    %c0_i32_1 = arith.constant 0 : i32
    return %c0_i32, %c0_i32_0 : i32, i32
  }
  func.func @transform_4(%arg0: i32) -> (i32, i32) {
    %c0_i32 = arith.constant 0 : i32
    %c0_i32_0 = arith.constant 0 : i32
    %c0_i32_1 = arith.constant 0 : i32
    return %c0_i32, %c0_i32_0 : i32, i32
  }
  func.func @transform_5(%arg0: i32) -> (i32, i32) {
    %c2_i32 = arith.constant 2 : i32
    %0 = arith.minsi %arg0, %c2_i32 : i32
    %c0_i32 = arith.constant 0 : i32
    %c0_i32_0 = arith.constant 0 : i32
    return %c0_i32, %0 : i32, i32
  }
  func.func @transform_6(%arg0: i32) -> (i32, i32) {
    %c2_i32 = arith.constant 2 : i32
    %0 = arith.minsi %arg0, %c2_i32 : i32
    %c0_i32 = arith.constant 0 : i32
    %c0_i32_0 = arith.constant 0 : i32
    return %c0_i32, %0 : i32, i32
  }
  func.func @transform_7(%arg0: i32) -> (i32, i32) {
    %c0_i32 = arith.constant 0 : i32
    %c0_i32_0 = arith.constant 0 : i32
    %c0_i32_1 = arith.constant 0 : i32
    return %c0_i32, %c0_i32_0 : i32, i32
  }
  func.func @transform_8(%arg0: i32) -> (i32, i32) {
    %c0_i32 = arith.constant 0 : i32
    %c0_i32_0 = arith.constant 0 : i32
    %c0_i32_1 = arith.constant 0 : i32
    return %c0_i32, %c0_i32_0 : i32, i32
  }
  func.func @transform_9(%arg0: i32) -> (i32, i32) {
    %c3_i32 = arith.constant 3 : i32
    %0 = arith.subi %arg0, %c3_i32 : i32
    %c0_i32 = arith.constant 0 : i32
    %1 = arith.maxsi %0, %c0_i32 : i32
    %c0_i32_0 = arith.constant 0 : i32
    %c0_i32_1 = arith.constant 0 : i32
    return %c0_i32_0, %1 : i32, i32
  }
  func.func @transform_10(%arg0: i32) -> (i32, i32) {
    %c3_i32 = arith.constant 3 : i32
    %0 = arith.subi %arg0, %c3_i32 : i32
    %c0_i32 = arith.constant 0 : i32
    %1 = arith.maxsi %0, %c0_i32 : i32
    %c0_i32_0 = arith.constant 0 : i32
    %c0_i32_1 = arith.constant 0 : i32
    return %c0_i32_0, %1 : i32, i32
  }
  func.func @transform_11(%arg0: i32) -> (i32, i32) {
    %c3_i32 = arith.constant 3 : i32
    %0 = arith.subi %arg0, %c3_i32 : i32
    %c0_i32 = arith.constant 0 : i32
    %1 = arith.maxsi %0, %c0_i32 : i32
    %c0_i32_0 = arith.constant 0 : i32
    %c0_i32_1 = arith.constant 0 : i32
    return %1, %c0_i32_0 : i32, i32
  }
  func.func @transform_12(%arg0: i32) -> (i32, i32) {
    %c0_i32 = arith.constant 0 : i32
    %c0_i32_0 = arith.constant 0 : i32
    %c0_i32_1 = arith.constant 0 : i32
    return %c0_i32, %c0_i32_0 : i32, i32
  }
  func.func @transform_13(%arg0: i32) -> (i32, i32) {
    %c0_i32 = arith.constant 0 : i32
    %c0_i32_0 = arith.constant 0 : i32
    %c0_i32_1 = arith.constant 0 : i32
    return %c0_i32, %c0_i32_0 : i32, i32
  }
}

</mosaic_0001>

<llo_original>
// kernel: transformer_encoder.1
$region0: #{transformer_encoder.1}
  #allocation0 [shape = 'u32[]', space=smem, size = 0x4, offset = 0x4, fixed_abs, tag = 'smem constant byte address 0x4 - core index']
  #allocation1 [shape = 'u32[144,128]{1,0:T(1,128)}', space=vmem, size = 0x12000, scoped, tag = 'internal scratch']
  #allocation2 [shape = 'f32[32,512]{1,0:T(8,128)}', space=vmem, size = 0x10000, scoped, tag = 'scratch operand']
  #allocation3 [shape = 'f32[32,512]{1,0:T(8,128)}', space=vmem, size = 0x10000, scoped, tag = 'scratch operand']
  #allocation4 [shape = 'bf16[32,512]{1,0:T(16,128)(2,1)}', space=vmem, size = 0x8000, scoped, tag = 'scratch operand']
  #allocation5 [shape = 'bf16[32,512]{1,0:T(16,128)(2,1)}', space=vmem, size = 0x8000, scoped, tag = 'scratch operand']
  #allocation6 [shape = 'f32[32,512]{1,0:T(8,128)}', space=vmem, size = 0x10000, scoped, tag = 'scratch operand']
  %s0 = inlined_call_operand.vmem [shape: f32[32,512], index: 0, kind: input, shape index: {}]
  %s1 = inlined_call_operand.hbm [shape: f32[1,512], index: 1, kind: input, shape index: {}]
  %s2 = inlined_call_operand.hbm [shape: f32[1,512], index: 2, kind: input, shape index: {}]
  %s3 = inlined_call_operand.hbm [shape: f32[1,512], index: 3, kind: input, shape index: {}]
  %s4 = inlined_call_operand.hbm [shape: f32[1,512], index: 4, kind: input, shape index: {}]
  %s5 = inlined_call_operand.hbm [shape: bf16[512,1536], index: 5, kind: input, shape index: {}]
  %s6 = inlined_call_operand.hbm [shape: f32[1,1536], index: 6, kind: input, shape index: {}]
  %s7 = inlined_call_operand.hbm [shape: bf16[512,512], index: 7, kind: input, shape index: {}]
  %s8 = inlined_call_operand.hbm [shape: f32[1,512], index: 8, kind: input, shape index: {}]
  %s9 = inlined_call_operand.hbm [shape: bf16[512,2048], index: 9, kind: input, shape index: {}]
  %s10 = inlined_call_operand.hbm [shape: f32[1,2048], index: 10, kind: input, shape index: {}]
  %s11 = inlined_call_operand.hbm [shape: bf16[2048,512], index: 11, kind: input, shape index: {}]
  %s12 = inlined_call_operand.hbm [shape: f32[1,512], index: 12, kind: input, shape index: {}]
  %s13 = inlined_call_operand.vmem [shape: f32[32,512], index: 13, kind: output, shape index: {}]
  %s14 = sld [smem:[#allocation0]]
  $region153: #{transformer_encoder.1} parent=0
    _
  %s16 = ssub.s32 1, %s14
  %s17 = scalar_select 0, %s16, %s14
  $region1: #{transformer_encoder.1} parent=0
    #allocation7 [shape = 'u8[2048]{0}', space=vmem, size = 0x800, scoped, tag = 'input window, operand 1, single buffered']
    #allocation8 [shape = 's32[2]{0}', space=sflag, size = 0x8, scoped, tag = 'scoped memory for transformer_encoder.1']
    #allocation9 [shape = 'u8[2048]{0}', space=vmem, size = 0x800, scoped, tag = 'input window, operand 2, single buffered']
    #allocation10 [shape = 's32[1]{0}', space=sflag, size = 0x4, scoped, tag = 'scoped memory for transformer_encoder.1']
    #allocation11 [shape = 'u8[2048]{0}', space=vmem, size = 0x800, scoped, tag = 'input window, operand 3, single buffered']
    #allocation12 [shape = 'u8[2048]{0}', space=vmem, size = 0x800, scoped, tag = 'input window, operand 4, single buffered']
    #allocation13 [shape = 's32[1]{0}', space=sflag, size = 0x4, scoped, tag = 'scoped memory for transformer_encoder.1']
    #allocation14 [shape = 'u8[1048576]{0}', space=vmem, size = 0x100000, scoped, tag = 'input window, operand 5']
    #allocation15 [shape = 'u8[4096]{0}', space=vmem, size = 0x1000, scoped, tag = 'input window, operand 6']
    #allocation16 [shape = 'u8[524288]{0}', space=vmem, size = 0x80000, scoped, tag = 'input window, operand 7, single buffered']
    #allocation17 [shape = 'u8[2048]{0}', space=vmem, size = 0x800, scoped, tag = 'input window, operand 8, single buffered']
    #allocation18 [shape = 'u8[1048576]{0}', space=vmem, size = 0x100000, scoped, tag = 'input window, operand 9']
    #allocation19 [shape = 's32[2]{0}', space=sflag, size = 0x8, scoped, tag = 'scoped memory for transformer_encoder.1']
    #allocation20 [shape = 'u8[4096]{0}', space=vmem, size = 0x1000, scoped, tag = 'input window, operand 10']
    #allocation21 [shape = 'u8[1048576]{0}', space=vmem, size = 0x100000, scoped, tag = 'input window, operand 11']
    #allocation22 [shape = 's32[2]{0}', space=sflag, size = 0x8, scoped, tag = 'scoped memory for transformer_encoder.1']
    #allocation23 [shape = 'u8[2048]{0}', space=vmem, size = 0x800, scoped, tag = 'input window, operand 12, single buffered']
    %18 = vsyncpa [#allocation8], 0
    %19 = vsyncpa [#allocation10], 0
    %20 = vsyncpa [#allocation13], 0
    %21 = vsyncpa [#allocation19], 0
    %s22 = scalar_lea.sflag [#allocation19], 1
    %23 = vsyncpa %s22, 0
    %24 = vsyncpa [#allocation22], 0
    %s25 = scalar_lea.sflag [#allocation22], 1
    %26 = vsyncpa %s25, 0
    loop: start=0, step=1, limit=9
    $region2: #{transformer_encoder.1} parent=1 // loop_pre_header
      _
    $region3: #{transformer_encoder.1} parent=1 // loop_header
      %s28 = sphi 0, %s32
      %p29 = scmp.ge.s32.totalorder %s28, 9
      %s36 = sphi 0, %s36
      %s38 = sphi 0, %s36
      %s39 = sphi 0, %s38
      %s53 = sphi 0, %s39
      %s57 = sphi 0, %s57
      %s59 = sphi 0, %s57
      %s60 = sphi 0, %s59
      %s74 = sphi 0, %s60
      %s78 = sphi 0, %s78
      %s80 = sphi 0, %s78
      %s81 = sphi 0, %s80
      %s95 = sphi 0, %s81
      %s99 = sphi 0, %s99
      %s101 = sphi 0, %s99
      %s102 = sphi 0, %s101
      %s116 = sphi 0, %s102
      %s120 = sphi 0, %s120
      %s122 = sphi 0, %s120
      %s123 = sphi 0, %s122
      %s137 = sphi 0, %s123
      %s147 = sphi 0, %s149
      %s150 = sphi 0, %s147
      %s151 = sphi 0, %s150
      %s167 = sphi 0, %s151
      %s177 = sphi 0, %s179
      %s180 = sphi 0, %s177
      %s181 = sphi 0, %s180
      %s197 = sphi 0, %s181
      %s201 = sphi 0, %s201
      %s203 = sphi 0, %s201
      %s204 = sphi 0, %s203
      %s218 = sphi 0, %s204
      %s222 = sphi 0, %s222
      %s224 = sphi 0, %s222
      %s225 = sphi 0, %s224
      %s239 = sphi 0, %s225
      %s251 = sphi 0, %s253
      %s254 = sphi 0, %s251
      %s255 = sphi 0, %s254
      %s271 = sphi 0, %s255
      %s283 = sphi 0, %s285
      %s286 = sphi 0, %s283
      %s287 = sphi 0, %s286
      %s303 = sphi 0, %s287
      %s315 = sphi 0, %s317
      %s318 = sphi 0, %s315
      %s319 = sphi 0, %s318
      %s335 = sphi 0, %s319
      %s339 = sphi 0, %s339
      %s341 = sphi 0, %s339
      %s342 = sphi 0, %s341
      %s356 = sphi 0, %s342
      %s360 = sphi 0, %s360
      %s362 = sphi 0, %s360
      %s363 = sphi 0, %s362
      %s377 = sphi 0, %s363
    $region4: #{transformer_encoder.1} parent=1 // loop_header_branch
      %31 = sbr.rel (%p29) target = $region8
    $region5: #{transformer_encoder.1} parent=1 // loop_body
      %s33 = ssub.s32 %s28, 1
      %s34 = ssub.s32 %s28, 2
      %s35 = sadd.s32 %s28, 1
      %s37 = sadd.s32 %s36, 1
      %p40 = scmp.eq.s32.totalorder %s28, 6
      %p41 = scmp.ne.s32.totalorder %s36, %s38
      %p42 = scmp.eq.s32.totalorder %s28, 0
      %p43 = por %p41, %p42
      %p44 = scmp.ne.s32.totalorder %s36, %s38
      %p45 = scmp.eq.s32.totalorder %s33, 6
      %p46 = por %p44, %p45
      %p47 = scmp.ne.s32.totalorder %s38, %s39
      %p48 = scmp.eq.s32.totalorder %s33, 0
      %p49 = por %p47, %p48
      %p50 = scmp.ne.s32.totalorder %s38, %s39
      %p51 = scmp.eq.s32.totalorder %s34, 6
      %p52 = por %p50, %p51
      %p54 = scmp.ne.s32.totalorder %s39, %s53
      %p55 = scmp.eq.s32.totalorder %s34, 0
      %p56 = por %p54, %p55
      %s58 = sadd.s32 %s57, 1
      %p61 = scmp.eq.s32.totalorder %s28, 6
      %p62 = scmp.ne.s32.totalorder %s57, %s59
      %p63 = scmp.eq.s32.totalorder %s28, 0
      %p64 = por %p62, %p63
      %p65 = scmp.ne.s32.totalorder %s57, %s59
      %p66 = scmp.eq.s32.totalorder %s33, 6
      %p67 = por %p65, %p66
      %p68 = scmp.ne.s32.totalorder %s59, %s60
      %p69 = scmp.eq.s32.totalorder %s33, 0
      %p70 = por %p68, %p69
      %p71 = scmp.ne.s32.totalorder %s59, %s60
      %p72 = scmp.eq.s32.totalorder %s34, 6
      %p73 = por %p71, %p72
      %p75 = scmp.ne.s32.totalorder %s60, %s74
      %p76 = scmp.eq.s32.totalorder %s34, 0
      %p77 = por %p75, %p76
      %s79 = sadd.s32 %s78, 1
      %p82 = scmp.eq.s32.totalorder %s28, 6
      %p83 = scmp.ne.s32.totalorder %s78, %s80
      %p84 = scmp.eq.s32.totalorder %s28, 0
      %p85 = por %p83, %p84
      %p86 = scmp.ne.s32.totalorder %s78, %s80
      %p87 = scmp.eq.s32.totalorder %s33, 6
      %p88 = por %p86, %p87
      %p89 = scmp.ne.s32.totalorder %s80, %s81
      %p90 = scmp.eq.s32.totalorder %s33, 0
      %p91 = por %p89, %p90
      %p92 = scmp.ne.s32.totalorder %s80, %s81
      %p93 = scmp.eq.s32.totalorder %s34, 6
      %p94 = por %p92, %p93
      %p96 = scmp.ne.s32.totalorder %s81, %s95
      %p97 = scmp.eq.s32.totalorder %s34, 0
      %p98 = por %p96, %p97
      %s100 = sadd.s32 %s99, 1
      %p103 = scmp.eq.s32.totalorder %s28, 6
      %p104 = scmp.ne.s32.totalorder %s99, %s101
      %p105 = scmp.eq.s32.totalorder %s28, 0
      %p106 = por %p104, %p105
      %p107 = scmp.ne.s32.totalorder %s99, %s101
      %p108 = scmp.eq.s32.totalorder %s33, 6
      %p109 = por %p107, %p108
      %p110 = scmp.ne.s32.totalorder %s101, %s102
      %p111 = scmp.eq.s32.totalorder %s33, 0
      %p112 = por %p110, %p111
      %p113 = scmp.ne.s32.totalorder %s101, %s102
      %p114 = scmp.eq.s32.totalorder %s34, 6
      %p115 = por %p113, %p114
      %p117 = scmp.ne.s32.totalorder %s102, %s116
      %p118 = scmp.eq.s32.totalorder %s34, 0
      %p119 = por %p117, %p118
      %s121 = sadd.s32 %s120, 1
      %p124 = scmp.eq.s32.totalorder %s28, 6
      %p125 = scmp.ne.s32.totalorder %s120, %s122
      %p126 = scmp.eq.s32.totalorder %s28, 0
      %p127 = por %p125, %p126
      %p128 = scmp.ne.s32.totalorder %s120, %s122
      %p129 = scmp.eq.s32.totalorder %s33, 6
      %p130 = por %p128, %p129
      %p131 = scmp.ne.s32.totalorder %s122, %s123
      %p132 = scmp.eq.s32.totalorder %s33, 0
      %p133 = por %p131, %p132
      %p134 = scmp.ne.s32.totalorder %s122, %s123
      %p135 = scmp.eq.s32.totalorder %s34, 6
      %p136 = por %p134, %p135
      %p138 = scmp.ne.s32.totalorder %s123, %s137
      %p139 = scmp.eq.s32.totalorder %s34, 0
      %p140 = por %p138, %p139
      %p141 = scmp.lt.s32.totalorder %s28, 2
      %s142 = scalar_select %p141, %s28, 2
      %p143 = scmp.lt.s32.totalorder %s35, 2
      %s144 = scalar_select %p143, %s35, 2
      %s145 = ssub.s32 %s142, %s144
      %p146 = scmp.eq.s32.totalorder %s145, 0
      %s148 = sadd.s32 %s147, 1
      %s149 = scalar_select %p146, %s147, %s148
      %p152 = pneg %p146
      %p153 = scmp.eq.s32.totalorder %s28, 6
      %p154 = por %p152, %p153
      %p155 = scmp.ne.s32.totalorder %s147, %s150
      %p156 = scmp.eq.s32.totalorder %s28, 0
      %p157 = por %p155, %p156
      %p158 = scmp.ne.s32.totalorder %s147, %s150
      %p159 = scmp.eq.s32.totalorder %s33, 6
      %p160 = por %p158, %p159
      %p161 = scmp.ne.s32.totalorder %s150, %s151
      %p162 = scmp.eq.s32.totalorder %s33, 0
      %p163 = por %p161, %p162
      %p164 = scmp.ne.s32.totalorder %s150, %s151
      %p165 = scmp.eq.s32.totalorder %s34, 6
      %p166 = por %p164, %p165
      %p168 = scmp.ne.s32.totalorder %s151, %s167
      %p169 = scmp.eq.s32.totalorder %s34, 0
      %p170 = por %p168, %p169
      %p171 = scmp.lt.s32.totalorder %s28, 2
      %s172 = scalar_select %p171, %s28, 2
      %p173 = scmp.lt.s32.totalorder %s35, 2
      %s174 = scalar_select %p173, %s35, 2
      %s175 = ssub.s32 %s172, %s174
      %p176 = scmp.eq.s32.totalorder %s175, 0
      %s178 = sadd.s32 %s177, 1
      %s179 = scalar_select %p176, %s177, %s178
      %p182 = pneg %p176
      %p183 = scmp.eq.s32.totalorder %s28, 6
      %p184 = por %p182, %p183
      %p185 = scmp.ne.s32.totalorder %s177, %s180
      %p186 = scmp.eq.s32.totalorder %s28, 0
      %p187 = por %p185, %p186
      %p188 = scmp.ne.s32.totalorder %s177, %s180
      %p189 = scmp.eq.s32.totalorder %s33, 6
      %p190 = por %p188, %p189
      %p191 = scmp.ne.s32.totalorder %s180, %s181
      %p192 = scmp.eq.s32.totalorder %s33, 0
      %p193 = por %p191, %p192
      %p194 = scmp.ne.s32.totalorder %s180, %s181
      %p195 = scmp.eq.s32.totalorder %s34, 6
      %p196 = por %p194, %p195
      %p198 = scmp.ne.s32.totalorder %s181, %s197
      %p199 = scmp.eq.s32.totalorder %s34, 0
      %p200 = por %p198, %p199
      %s202 = sadd.s32 %s201, 1
      %p205 = scmp.eq.s32.totalorder %s28, 6
      %p206 = scmp.ne.s32.totalorder %s201, %s203
      %p207 = scmp.eq.s32.totalorder %s28, 0
      %p208 = por %p206, %p207
      %p209 = scmp.ne.s32.totalorder %s201, %s203
      %p210 = scmp.eq.s32.totalorder %s33, 6
      %p211 = por %p209, %p210
      %p212 = scmp.ne.s32.totalorder %s203, %s204
      %p213 = scmp.eq.s32.totalorder %s33, 0
      %p214 = por %p212, %p213
      %p215 = scmp.ne.s32.totalorder %s203, %s204
      %p216 = scmp.eq.s32.totalorder %s34, 6
      %p217 = por %p215, %p216
      %p219 = scmp.ne.s32.totalorder %s204, %s218
      %p220 = scmp.eq.s32.totalorder %s34, 0
      %p221 = por %p219, %p220
      %s223 = sadd.s32 %s222, 1
      %p226 = scmp.eq.s32.totalorder %s28, 6
      %p227 = scmp.ne.s32.totalorder %s222, %s224
      %p228 = scmp.eq.s32.totalorder %s28, 0
      %p229 = por %p227, %p228
      %p230 = scmp.ne.s32.totalorder %s222, %s224
      %p231 = scmp.eq.s32.totalorder %s33, 6
      %p232 = por %p230, %p231
      %p233 = scmp.ne.s32.totalorder %s224, %s225
      %p234 = scmp.eq.s32.totalorder %s33, 0
      %p235 = por %p233, %p234
      %p236 = scmp.ne.s32.totalorder %s224, %s225
      %p237 = scmp.eq.s32.totalorder %s34, 6
      %p238 = por %p236, %p237
      %p240 = scmp.ne.s32.totalorder %s225, %s239
      %p241 = scmp.eq.s32.totalorder %s34, 0
      %p242 = por %p240, %p241
      %s243 = ssub.s32 %s28, 3
      %p244 = scmp.gt.s32.totalorder %s243, 0
      %s245 = scalar_select %p244, %s243, 0
      %s246 = ssub.s32 %s35, 3
      %p247 = scmp.gt.s32.totalorder %s246, 0
      %s248 = scalar_select %p247, %s246, 0
      %s249 = ssub.s32 %s245, %s248
      %p250 = scmp.eq.s32.totalorder %s249, 0
      %s252 = sadd.s32 %s251, 1
      %s253 = scalar_select %p250, %s251, %s252
      %p256 = pneg %p250
      %p257 = scmp.eq.s32.totalorder %s28, 6
      %p258 = por %p256, %p257
      %p259 = scmp.ne.s32.totalorder %s251, %s254
      %p260 = scmp.eq.s32.totalorder %s28, 0
      %p261 = por %p259, %p260
      %p262 = scmp.ne.s32.totalorder %s251, %s254
      %p263 = scmp.eq.s32.totalorder %s33, 6
      %p264 = por %p262, %p263
      %p265 = scmp.ne.s32.totalorder %s254, %s255
      %p266 = scmp.eq.s32.totalorder %s33, 0
      %p267 = por %p265, %p266
      %p268 = scmp.ne.s32.totalorder %s254, %s255
      %p269 = scmp.eq.s32.totalorder %s34, 6
      %p270 = por %p268, %p269
      %p272 = scmp.ne.s32.totalorder %s255, %s271
      %p273 = scmp.eq.s32.totalorder %s34, 0
      %p274 = por %p272, %p273
      %s275 = ssub.s32 %s28, 3
      %p276 = scmp.gt.s32.totalorder %s275, 0
      %s277 = scalar_select %p276, %s275, 0
      %s278 = ssub.s32 %s35, 3
      %p279 = scmp.gt.s32.totalorder %s278, 0
      %s280 = scalar_select %p279, %s278, 0
      %s281 = ssub.s32 %s277, %s280
      %p282 = scmp.eq.s32.totalorder %s281, 0
      %s284 = sadd.s32 %s283, 1
      %s285 = scalar_select %p282, %s283, %s284
      %p288 = pneg %p282
      %p289 = scmp.eq.s32.totalorder %s28, 6
      %p290 = por %p288, %p289
      %p291 = scmp.ne.s32.totalorder %s283, %s286
      %p292 = scmp.eq.s32.totalorder %s28, 0
      %p293 = por %p291, %p292
      %p294 = scmp.ne.s32.totalorder %s283, %s286
      %p295 = scmp.eq.s32.totalorder %s33, 6
      %p296 = por %p294, %p295
      %p297 = scmp.ne.s32.totalorder %s286, %s287
      %p298 = scmp.eq.s32.totalorder %s33, 0
      %p299 = por %p297, %p298
      %p300 = scmp.ne.s32.totalorder %s286, %s287
      %p301 = scmp.eq.s32.totalorder %s34, 6
      %p302 = por %p300, %p301
      %p304 = scmp.ne.s32.totalorder %s287, %s303
      %p305 = scmp.eq.s32.totalorder %s34, 0
      %p306 = por %p304, %p305
      %s307 = ssub.s32 %s28, 3
      %p308 = scmp.gt.s32.totalorder %s307, 0
      %s309 = scalar_select %p308, %s307, 0
      %s310 = ssub.s32 %s35, 3
      %p311 = scmp.gt.s32.totalorder %s310, 0
      %s312 = scalar_select %p311, %s310, 0
      %s313 = ssub.s32 %s309, %s312
      %p314 = scmp.eq.s32.totalorder %s313, 0
      %s316 = sadd.s32 %s315, 1
      %s317 = scalar_select %p314, %s315, %s316
      %p320 = pneg %p314
      %p321 = scmp.eq.s32.totalorder %s28, 6
      %p322 = por %p320, %p321
      %p323 = scmp.ne.s32.totalorder %s315, %s318
      %p324 = scmp.eq.s32.totalorder %s28, 0
      %p325 = por %p323, %p324
      %p326 = scmp.ne.s32.totalorder %s315, %s318
      %p327 = scmp.eq.s32.totalorder %s33, 6
      %p328 = por %p326, %p327
      %p329 = scmp.ne.s32.totalorder %s318, %s319
      %p330 = scmp.eq.s32.totalorder %s33, 0
      %p331 = por %p329, %p330
      %p332 = scmp.ne.s32.totalorder %s318, %s319
      %p333 = scmp.eq.s32.totalorder %s34, 6
      %p334 = por %p332, %p333
      %p336 = scmp.ne.s32.totalorder %s319, %s335
      %p337 = scmp.eq.s32.totalorder %s34, 0
      %p338 = por %p336, %p337
      %s340 = sadd.s32 %s339, 1
      %p343 = scmp.eq.s32.totalorder %s28, 6
      %p344 = scmp.ne.s32.totalorder %s339, %s341
      %p345 = scmp.eq.s32.totalorder %s28, 0
      %p346 = por %p344, %p345
      %p347 = scmp.ne.s32.totalorder %s339, %s341
      %p348 = scmp.eq.s32.totalorder %s33, 6
      %p349 = por %p347, %p348
      %p350 = scmp.ne.s32.totalorder %s341, %s342
      %p351 = scmp.eq.s32.totalorder %s33, 0
      %p352 = por %p350, %p351
      %p353 = scmp.ne.s32.totalorder %s341, %s342
      %p354 = scmp.eq.s32.totalorder %s34, 6
      %p355 = por %p353, %p354
      %p357 = scmp.ne.s32.totalorder %s342, %s356
      %p358 = scmp.eq.s32.totalorder %s34, 0
      %p359 = por %p357, %p358
      %s361 = sadd.s32 %s360, 1
      %p364 = scmp.eq.s32.totalorder %s28, 6
      %p365 = scmp.ne.s32.totalorder %s360, %s362
      %p366 = scmp.eq.s32.totalorder %s28, 0
      %p367 = por %p365, %p366
      %p368 = scmp.ne.s32.totalorder %s360, %s362
      %p369 = scmp.eq.s32.totalorder %s33, 6
      %p370 = por %p368, %p369
      %p371 = scmp.ne.s32.totalorder %s362, %s363
      %p372 = scmp.eq.s32.totalorder %s33, 0
      %p373 = por %p371, %p372
      %p374 = scmp.ne.s32.totalorder %s362, %s363
      %p375 = scmp.eq.s32.totalorder %s34, 6
      %p376 = por %p374, %p375
      %p378 = scmp.ne.s32.totalorder %s363, %s377
      %p379 = scmp.eq.s32.totalorder %s34, 0
      %p380 = por %p378, %p379
      %p381 = scmp.le.s32.totalorder 1, %s28
      %p382 = scmp.lt.s32.totalorder %s28, 8
      %p383 = pnand %p381, %p382
      %p384 = pneg %p383
      // Predicated region
      $region9: #{transformer_encoder.1} parent=5 // pred_check
        _
      $region10: #{transformer_encoder.1} parent=5 // pred_check_branch
        %386 = sbr.rel (%p383) target = $region12
      $region11: #{transformer_encoder.1} parent=5 // pred_region
        %s387 = ssub.s32 %s28, 1
        // Predicated region
        $region13: #{transformer_encoder.1} parent=11 // pred_check
          %p388 = pneg %p49
        $region14: #{transformer_encoder.1} parent=11 // pred_check_branch
          %390 = sbr.rel (%p388) target = $region16
        $region15: #{transformer_encoder.1} parent=11 // pred_region
          _
        $region16: #{transformer_encoder.1} parent=11 // pred_fallthru
          _
        // Predicated region
        $region17: #{transformer_encoder.1} parent=11 // pred_check
          %p391 = pneg %p70
        $region18: #{transformer_encoder.1} parent=11 // pred_check_branch
          %393 = sbr.rel (%p391) target = $region20
        $region19: #{transformer_encoder.1} parent=11 // pred_region
          %s395 = ssub.s32 64, 64
          %396 = vsyncadd [#allocation8], %s395
          %s398 = sshll.u32 [#allocation7], 4
          %s399 = int_to_ptr.vmem [resolvable:$true] %s398
          %401 = dma.hbm_to_vmem [thread:$0]  %s1, 64, %s399, [#allocation8]
        $region20: #{transformer_encoder.1} parent=11 // pred_fallthru
          _
        // Predicated region
        $region21: #{transformer_encoder.1} parent=11 // pred_check
          %p402 = pneg %p91
        $region22: #{transformer_encoder.1} parent=11 // pred_check_branch
          %404 = sbr.rel (%p402) target = $region24
        $region23: #{transformer_encoder.1} parent=11 // pred_region
          %s406 = ssub.s32 64, 64
          %407 = vsyncadd [#allocation10], %s406
          %s409 = sshll.u32 [#allocation9], 4
          %s410 = int_to_ptr.vmem [resolvable:$true] %s409
          %412 = dma.hbm_to_vmem [thread:$0]  %s2, 64, %s410, [#allocation10]
        $region24: #{transformer_encoder.1} parent=11 // pred_fallthru
          _
        // Predicated region
        $region25: #{transformer_encoder.1} parent=11 // pred_check
          %p413 = pneg %p112
        $region26: #{transformer_encoder.1} parent=11 // pred_check_branch
          %415 = sbr.rel (%p413) target = $region28
        $region27: #{transformer_encoder.1} parent=11 // pred_region
          %s417 = ssub.s32 64, 64
          %418 = vsyncadd [#allocation10], %s417
          %s420 = sshll.u32 [#allocation11], 4
          %s421 = int_to_ptr.vmem [resolvable:$true] %s420
          %423 = dma.hbm_to_vmem [thread:$0]  %s3, 64, %s421, [#allocation10]
        $region28: #{transformer_encoder.1} parent=11 // pred_fallthru
          _
        // Predicated region
        $region29: #{transformer_encoder.1} parent=11 // pred_check
          %p424 = pneg %p133
        $region30: #{transformer_encoder.1} parent=11 // pred_check_branch
          %426 = sbr.rel (%p424) target = $region32
        $region31: #{transformer_encoder.1} parent=11 // pred_region
          %s428 = ssub.s32 64, 64
          %429 = vsyncadd [#allocation13], %s428
          %s431 = sshll.u32 [#allocation12], 4
          %s432 = int_to_ptr.vmem [resolvable:$true] %s431
          %434 = dma.hbm_to_vmem [thread:$0]  %s4, 64, %s432, [#allocation13]
        $region32: #{transformer_encoder.1} parent=11 // pred_fallthru
          _
        // Predicated region
        $region33: #{transformer_encoder.1} parent=11 // pred_check
          %p435 = pneg %p214
        $region34: #{transformer_encoder.1} parent=11 // pred_check_branch
          %437 = sbr.rel (%p435) target = $region36
        $region35: #{transformer_encoder.1} parent=11 // pred_region
          %s439 = ssub.s32 16384, 16384
          %440 = vsyncadd [#allocation10], %s439
          %s441 = sshll.u32 [#allocation16], 4
          %s442 = int_to_ptr.vmem [resolvable:$true] %s441
          %447 = dma.hbm_to_vmem [thread:$0]  %s7, 16384, %s442, [#allocation10], 256, 256, 16
        $region36: #{transformer_encoder.1} parent=11 // pred_fallthru
          _
        // Predicated region
        $region37: #{transformer_encoder.1} parent=11 // pred_check
          %p448 = pneg %p235
        $region38: #{transformer_encoder.1} parent=11 // pred_check_branch
          %450 = sbr.rel (%p448) target = $region40
        $region39: #{transformer_encoder.1} parent=11 // pred_region
          %s452 = ssub.s32 64, 64
          %453 = vsyncadd [#allocation13], %s452
          %s455 = sshll.u32 [#allocation17], 4
          %s456 = int_to_ptr.vmem [resolvable:$true] %s455
          %458 = dma.hbm_to_vmem [thread:$0]  %s8, 64, %s456, [#allocation13]
        $region40: #{transformer_encoder.1} parent=11 // pred_fallthru
          _
        // Predicated region
        $region41: #{transformer_encoder.1} parent=11 // pred_check
          %p459 = pneg %p352
        $region42: #{transformer_encoder.1} parent=11 // pred_check_branch
          %461 = sbr.rel (%p459) target = $region44
        $region43: #{transformer_encoder.1} parent=11 // pred_region
          %s463 = ssub.s32 64, 64
          %464 = vsyncadd [#allocation22], %s463
          %s466 = sshll.u32 [#allocation23], 4
          %s467 = int_to_ptr.vmem [resolvable:$true] %s466
          %469 = dma.hbm_to_vmem [thread:$0]  %s12, 64, %s467, [#allocation22]
        $region44: #{transformer_encoder.1} parent=11 // pred_fallthru
          _
      $region12: #{transformer_encoder.1} parent=5 // pred_fallthru
        _
      %p470 = scmp.lt.s32.totalorder %s28, 7
      // Predicated region
      $region45: #{transformer_encoder.1} parent=5 // pred_check
        %p471 = pneg %p470
      $region46: #{transformer_encoder.1} parent=5 // pred_check_branch
        %473 = sbr.rel (%p471) target = $region48
      $region47: #{transformer_encoder.1} parent=5 // pred_region
        // Predicated region
        $region49: #{transformer_encoder.1} parent=47 // pred_check
          %p474 = pneg %p157
        $region50: #{transformer_encoder.1} parent=47 // pred_check_branch
          %476 = sbr.rel (%p474) target = $region52
        $region51: #{transformer_encoder.1} parent=47 // pred_region
          %s477 = sand.u32 %s28, 1
          %s478 = scalar_lea.sflag [#allocation8], %s477
          %s479 = sand.u32 %s147, 1
          %s480 = smul.addr %s479, 1024
          %s481 = scalar_lea.vmem [#allocation14], %s480
          %p482 = scmp.lt.s32.totalorder %s28, 2
          %s483 = scalar_select %p482, %s28, 2
          %s484 = smul.u32 4, %s483
          %s486 = ssub.s32 16384, 16384
          %487 = vsyncadd %s478, %s486
          %s488 = smul.addr %s484, 64
          %s489 = scalar_lea.hbm %s5, %s488
          %s490 = sshll.u32 %s481, 4
          %s491 = int_to_ptr.vmem [resolvable:$true] %s490
          %496 = dma.hbm_to_vmem [thread:$0]  %s489, 16384, %s491, %s478, 768, 256, 16
        $region52: #{transformer_encoder.1} parent=47 // pred_fallthru
          _
        // Predicated region
        $region53: #{transformer_encoder.1} parent=47 // pred_check
          %p497 = pneg %p187
        $region54: #{transformer_encoder.1} parent=47 // pred_check_branch
          %499 = sbr.rel (%p497) target = $region56
        $region55: #{transformer_encoder.1} parent=47 // pred_region
          %s500 = sand.u32 %s28, 1
          %s501 = scalar_lea.sflag [#allocation8], %s500
          %s502 = sand.u32 %s177, 1
          %s503 = smul.addr %s502, 4
          %s504 = scalar_lea.vmem [#allocation15], %s503
          %p505 = scmp.lt.s32.totalorder %s28, 2
          %s506 = scalar_select %p505, %s28, 2
          %s507 = smul.u32 4, %s506
          %s509 = ssub.s32 64, 64
          %510 = vsyncadd %s501, %s509
          %s511 = smul.addr %s507, 16
          %s512 = scalar_lea.hbm %s6, %s511
          %s514 = sshll.u32 %s504, 4
          %s515 = int_to_ptr.vmem [resolvable:$true] %s514
          %517 = dma.hbm_to_vmem [thread:$0]  %s512, 64, %s515, %s501
        $region56: #{transformer_encoder.1} parent=47 // pred_fallthru
          _
        // Predicated region
        $region57: #{transformer_encoder.1} parent=47 // pred_check
          %p518 = pneg %p261
        $region58: #{transformer_encoder.1} parent=47 // pred_check_branch
          %520 = sbr.rel (%p518) target = $region60
        $region59: #{transformer_encoder.1} parent=47 // pred_region
          %s521 = sand.u32 %s28, 1
          %s522 = scalar_lea.sflag [#allocation19], %s521
          %s523 = sand.u32 %s251, 1
          %s524 = smul.addr %s523, 1024
          %s525 = scalar_lea.vmem [#allocation18], %s524
          %s526 = ssub.s32 %s28, 3
          %p527 = scmp.gt.s32.totalorder %s526, 0
          %s528 = scalar_select %p527, %s526, 0
          %s529 = smul.u32 4, %s528
          %s531 = ssub.s32 16384, 16384
          %532 = vsyncadd %s522, %s531
          %s533 = smul.addr %s529, 64
          %s534 = scalar_lea.hbm %s9, %s533
          %s535 = sshll.u32 %s525, 4
          %s536 = int_to_ptr.vmem [resolvable:$true] %s535
          %541 = dma.hbm_to_vmem [thread:$0]  %s534, 16384, %s536, %s522, 1024, 256, 16
        $region60: #{transformer_encoder.1} parent=47 // pred_fallthru
          _
        // Predicated region
        $region61: #{transformer_encoder.1} parent=47 // pred_check
          %p542 = pneg %p293
        $region62: #{transformer_encoder.1} parent=47 // pred_check_branch
          %544 = sbr.rel (%p542) target = $region64
        $region63: #{transformer_encoder.1} parent=47 // pred_region
          %s545 = sand.u32 %s28, 1
          %s546 = scalar_lea.sflag [#allocation19], %s545
          %s547 = sand.u32 %s283, 1
          %s548 = smul.addr %s547, 4
          %s549 = scalar_lea.vmem [#allocation20], %s548
          %s550 = ssub.s32 %s28, 3
          %p551 = scmp.gt.s32.totalorder %s550, 0
          %s552 = scalar_select %p551, %s550, 0
          %s553 = smul.u32 4, %s552
          %s555 = ssub.s32 64, 64
          %556 = vsyncadd %s546, %s555
          %s557 = smul.addr %s553, 16
          %s558 = scalar_lea.hbm %s10, %s557
          %s560 = sshll.u32 %s549, 4
          %s561 = int_to_ptr.vmem [resolvable:$true] %s560
          %563 = dma.hbm_to_vmem [thread:$0]  %s558, 64, %s561, %s546
        $region64: #{transformer_encoder.1} parent=47 // pred_fallthru
          _
        // Predicated region
        $region65: #{transformer_encoder.1} parent=47 // pred_check
          %p564 = pneg %p325
        $region66: #{transformer_encoder.1} parent=47 // pred_check_branch
          %566 = sbr.rel (%p564) target = $region68
        $region67: #{transformer_encoder.1} parent=47 // pred_region
          %s567 = sand.u32 %s28, 1
          %s568 = scalar_lea.sflag [#allocation22], %s567
          %s569 = sand.u32 %s315, 1
          %s570 = smul.addr %s569, 1024
          %s571 = scalar_lea.vmem [#allocation21], %s570
          %s572 = ssub.s32 %s28, 3
          %p573 = scmp.gt.s32.totalorder %s572, 0
          %s574 = scalar_select %p573, %s572, 0
          %s575 = smul.u32 64, %s574
          %s577 = ssub.s32 16384, 16384
          %578 = vsyncadd %s568, %s577
          %s579 = smul.addr %s575, 4
          %s580 = smul.addr %s579, 64
          %s581 = scalar_lea.hbm %s11, %s580
          %s582 = sshll.u32 %s571, 4
          %s583 = int_to_ptr.vmem [resolvable:$true] %s582
          %588 = dma.hbm_to_vmem [thread:$0]  %s581, 16384, %s583, %s568, 256, 256, 16
        $region68: #{transformer_encoder.1} parent=47 // pred_fallthru
          _
      $region48: #{transformer_encoder.1} parent=5 // pred_fallthru
        _
      %p589 = scmp.le.s32.totalorder 1, %s28
      %p590 = scmp.lt.s32.totalorder %s28, 8
      %p591 = pnand %p589, %p590
      %p592 = pneg %p591
      // Predicated region
      $region69: #{transformer_encoder.1} parent=5 // pred_check
        _
      $region70: #{transformer_encoder.1} parent=5 // pred_check_branch
        %594 = sbr.rel (%p591) target = $region72
      $region71: #{transformer_encoder.1} parent=5 // pred_region
        %s595 = ssub.s32 %s28, 1
        // Predicated region
        $region73: #{transformer_encoder.1} parent=71 // pred_check
          %p596 = pneg %p70
        $region74: #{transformer_encoder.1} parent=71 // pred_check_branch
          %598 = sbr.rel (%p596) target = $region76
        $region75: #{transformer_encoder.1} parent=71 // pred_region
          %599 = dma.done [#allocation8], 64
        $region76: #{transformer_encoder.1} parent=71 // pred_fallthru
          _
        // Predicated region
        $region77: #{transformer_encoder.1} parent=71 // pred_check
          %p600 = pneg %p91
        $region78: #{transformer_encoder.1} parent=71 // pred_check_branch
          %602 = sbr.rel (%p600) target = $region80
        $region79: #{transformer_encoder.1} parent=71 // pred_region
          %603 = dma.done [#allocation10], 64
        $region80: #{transformer_encoder.1} parent=71 // pred_fallthru
          _
        // Predicated region
        $region81: #{transformer_encoder.1} parent=71 // pred_check
          %p604 = pneg %p112
        $region82: #{transformer_encoder.1} parent=71 // pred_check_branch
          %606 = sbr.rel (%p604) target = $region84
        $region83: #{transformer_encoder.1} parent=71 // pred_region
          %607 = dma.done [#allocation10], 64
        $region84: #{transformer_encoder.1} parent=71 // pred_fallthru
          _
        // Predicated region
        $region85: #{transformer_encoder.1} parent=71 // pred_check
          %p608 = pneg %p133
        $region86: #{transformer_encoder.1} parent=71 // pred_check_branch
          %610 = sbr.rel (%p608) target = $region88
        $region87: #{transformer_encoder.1} parent=71 // pred_region
          %611 = dma.done [#allocation13], 64
        $region88: #{transformer_encoder.1} parent=71 // pred_fallthru
          _
        %s612 = sand.u32 %s33, 1
        %s613 = scalar_lea.sflag [#allocation8], %s612
        %s614 = sand.u32 %s150, 1
        %s615 = smul.addr %s614, 1024
        %s616 = scalar_lea.vmem [#allocation14], %s615
        // Predicated region
        $region89: #{transformer_encoder.1} parent=71 // pred_check
          %p617 = pneg %p163
        $region90: #{transformer_encoder.1} parent=71 // pred_check_branch
          %619 = sbr.rel (%p617) target = $region92
        $region91: #{transformer_encoder.1} parent=71 // pred_region
          %620 = dma.done %s613, 16384
        $region92: #{transformer_encoder.1} parent=71 // pred_fallthru
          _
        %s621 = sand.u32 %s33, 1
        %s622 = scalar_lea.sflag [#allocation8], %s621
        %s623 = sand.u32 %s180, 1
        %s624 = smul.addr %s623, 4
        %s625 = scalar_lea.vmem [#allocation15], %s624
        // Predicated region
        $region93: #{transformer_encoder.1} parent=71 // pred_check
          %p626 = pneg %p193
        $region94: #{transformer_encoder.1} parent=71 // pred_check_branch
          %628 = sbr.rel (%p626) target = $region96
        $region95: #{transformer_encoder.1} parent=71 // pred_region
          %629 = dma.done %s622, 64
        $region96: #{transformer_encoder.1} parent=71 // pred_fallthru
          _
        // Predicated region
        $region97: #{transformer_encoder.1} parent=71 // pred_check
          %p630 = pneg %p214
        $region98: #{transformer_encoder.1} parent=71 // pred_check_branch
          %632 = sbr.rel (%p630) target = $region100
        $region99: #{transformer_encoder.1} parent=71 // pred_region
          %633 = dma.done [#allocation10], 16384
        $region100: #{transformer_encoder.1} parent=71 // pred_fallthru
          _
        // Predicated region
        $region101: #{transformer_encoder.1} parent=71 // pred_check
          %p634 = pneg %p235
        $region102: #{transformer_encoder.1} parent=71 // pred_check_branch
          %636 = sbr.rel (%p634) target = $region104
        $region103: #{transformer_encoder.1} parent=71 // pred_region
          %637 = dma.done [#allocation13], 64
        $region104: #{transformer_encoder.1} parent=71 // pred_fallthru
          _
        %s638 = sand.u32 %s33, 1
        %s639 = scalar_lea.sflag [#allocation19], %s638
        %s640 = sand.u32 %s254, 1
        %s641 = smul.addr %s640, 1024
        %s642 = scalar_lea.vmem [#allocation18], %s641
        // Predicated region
        $region105: #{transformer_encoder.1} parent=71 // pred_check
          %p643 = pneg %p267
        $region106: #{transformer_encoder.1} parent=71 // pred_check_branch
          %645 = sbr.rel (%p643) target = $region108
        $region107: #{transformer_encoder.1} parent=71 // pred_region
          %646 = dma.done %s639, 16384
        $region108: #{transformer_encoder.1} parent=71 // pred_fallthru
          _
        %s647 = sand.u32 %s33, 1
        %s648 = scalar_lea.sflag [#allocation19], %s647
        %s649 = sand.u32 %s286, 1
        %s650 = smul.addr %s649, 4
        %s651 = scalar_lea.vmem [#allocation20], %s650
        // Predicated region
        $region109: #{transformer_encoder.1} parent=71 // pred_check
          %p652 = pneg %p299
        $region110: #{transformer_encoder.1} parent=71 // pred_check_branch
          %654 = sbr.rel (%p652) target = $region112
        $region111: #{transformer_encoder.1} parent=71 // pred_region
          %655 = dma.done %s648, 64
        $region112: #{transformer_encoder.1} parent=71 // pred_fallthru
          _
        %s656 = sand.u32 %s33, 1
        %s657 = scalar_lea.sflag [#allocation22], %s656
        %s658 = sand.u32 %s318, 1
        %s659 = smul.addr %s658, 1024
        %s660 = scalar_lea.vmem [#allocation21], %s659
        // Predicated region
        $region113: #{transformer_encoder.1} parent=71 // pred_check
          %p661 = pneg %p331
        $region114: #{transformer_encoder.1} parent=71 // pred_check_branch
          %663 = sbr.rel (%p661) target = $region116
        $region115: #{transformer_encoder.1} parent=71 // pred_region
          %664 = dma.done %s657, 16384
        $region116: #{transformer_encoder.1} parent=71 // pred_fallthru
          _
        // Predicated region
        $region117: #{transformer_encoder.1} parent=71 // pred_check
          %p665 = pneg %p352
        $region118: #{transformer_encoder.1} parent=71 // pred_check_branch
          %667 = sbr.rel (%p665) target = $region120
        $region119: #{transformer_encoder.1} parent=71 // pred_region
          %668 = dma.done [#allocation22], 64
        $region120: #{transformer_encoder.1} parent=71 // pred_fallthru
          _
        %p669 = pneg %p49
        %p670 = pneg %p46
        %p671 = pneg %p70
        %p672 = pneg %p67
        %p673 = pneg %p91
        %p674 = pneg %p88
        %p675 = pneg %p112
        %p676 = pneg %p109
        %p677 = pneg %p133
        %p678 = pneg %p130
        %s679 = sand.u32 %s33, 1
        %s680 = scalar_lea.sflag [#allocation8], %s679
        %s681 = sand.u32 %s150, 1
        %s682 = smul.addr %s681, 1024
        %s683 = scalar_lea.vmem [#allocation14], %s682
        %p684 = pneg %p163
        %p685 = pneg %p160
        %s686 = sand.u32 %s33, 1
        %s687 = scalar_lea.sflag [#allocation8], %s686
        %s688 = sand.u32 %s180, 1
        %s689 = smul.addr %s688, 4
        %s690 = scalar_lea.vmem [#allocation15], %s689
        %p691 = pneg %p193
        %p692 = pneg %p190
        %p693 = pneg %p214
        %p694 = pneg %p211
        %p695 = pneg %p235
        %p696 = pneg %p232
        %s697 = sand.u32 %s33, 1
        %s698 = scalar_lea.sflag [#allocation19], %s697
        %s699 = sand.u32 %s254, 1
        %s700 = smul.addr %s699, 1024
        %s701 = scalar_lea.vmem [#allocation18], %s700
        %p702 = pneg %p267
        %p703 = pneg %p264
        %s704 = sand.u32 %s33, 1
        %s705 = scalar_lea.sflag [#allocation19], %s704
        %s706 = sand.u32 %s286, 1
        %s707 = smul.addr %s706, 4
        %s708 = scalar_lea.vmem [#allocation20], %s707
        %p709 = pneg %p299
        %p710 = pneg %p296
        %s711 = sand.u32 %s33, 1
        %s712 = scalar_lea.sflag [#allocation22], %s711
        %s713 = sand.u32 %s318, 1
        %s714 = smul.addr %s713, 1024
        %s715 = scalar_lea.vmem [#allocation21], %s714
        %p716 = pneg %p331
        %p717 = pneg %p328
        %p718 = pneg %p352
        %p719 = pneg %p349
        %p720 = pneg %p373
        %p721 = pneg %p370
        %p722 = scmp.lt.s32.totalorder %s33, 2
        %s723 = scalar_select %p722, %s33, 2
        %s724 = smul.u32 4, %s723
        %p725 = scmp.lt.s32.totalorder %s33, 2
        %s726 = scalar_select %p725, %s33, 2
        %s727 = smul.u32 4, %s726
        %s728 = ssub.s32 %s33, 3
        %p729 = scmp.gt.s32.totalorder %s728, 0
        %s730 = scalar_select %p729, %s728, 0
        %s731 = smul.u32 4, %s730
        %s732 = ssub.s32 %s33, 3
        %p733 = scmp.gt.s32.totalorder %s732, 0
        %s734 = scalar_select %p733, %s732, 0
        %s735 = smul.u32 4, %s734
        %s736 = ssub.s32 %s33, 3
        %p737 = scmp.gt.s32.totalorder %s736, 0
        %s738 = scalar_select %p737, %s736, 0
        %s739 = smul.u32 64, %s738
        %p740 = scmp.eq.s32.totalorder %s33, 0
        // Predicated region
        $region121: #{transformer_encoder.1} parent=71 // pred_check
          %p741 = pneg %p740
        $region122: #{transformer_encoder.1} parent=71 // pred_check_branch
          %743 = sbr.rel (%p741) target = $region124
        $region123: #{transformer_encoder.1} parent=71 // pred_region
          %v744 = vld [vmem:[%s0] sm:$0xff]
          %v745 = vld [vmem:[%s0 + $0x8] sm:$0xff]
          %v746 = vld [vmem:[%s0 + $0x10] sm:$0xff]
          %v747 = vld [vmem:[%s0 + $0x18] sm:$0xff]
          %v748 = vld [vmem:[%s0 + $0x20] sm:$0xff]
          %v749 = vld [vmem:[%s0 + $0x28] sm:$0xff]
          %v750 = vld [vmem:[%s0 + $0x30] sm:$0xff]
          %v751 = vld [vmem:[%s0 + $0x38] sm:$0xff]
          %v752 = vld [vmem:[%s0 + $0x40] sm:$0xff]
          %v753 = vld [vmem:[%s0 + $0x48] sm:$0xff]
          %v754 = vld [vmem:[%s0 + $0x50] sm:$0xff]
          %v755 = vld [vmem:[%s0 + $0x58] sm:$0xff]
          %v756 = vld [vmem:[%s0 + $0x60] sm:$0xff]
          %v757 = vld [vmem:[%s0 + $0x68] sm:$0xff]
          %v758 = vld [vmem:[%s0 + $0x70] sm:$0xff]
          %v759 = vld [vmem:[%s0 + $0x78] sm:$0xff]
          %v760 = vld [vmem:[#allocation7] sm:$0xf]
          %v761 = vld [vmem:[#allocation9] sm:$0xf]
          %v762 = vadd.f32 %v744, %v745
          %v763 = vadd.f32 %v762, %v746
          %v764 = vadd.f32 %v763, %v747
          %765 = vadd.xlane.f32.xlu0 %v764
          %v766 = vpop.xlane.xlu0 %765
          %v767 = vadd.f32 %v748, %v749
          %v768 = vadd.f32 %v767, %v750
          %v769 = vadd.f32 %v768, %v751
          %770 = vadd.xlane.f32.xlu0 %v769
          %v771 = vpop.xlane.xlu0 %770
          %v772 = vadd.f32 %v752, %v753
          %v773 = vadd.f32 %v772, %v754
          %v774 = vadd.f32 %v773, %v755
          %775 = vadd.xlane.f32.xlu0 %v774
          %v776 = vpop.xlane.xlu0 %775
          %v777 = vadd.f32 %v756, %v757
          %v778 = vadd.f32 %v777, %v758
          %v779 = vadd.f32 %v778, %v759
          %780 = vadd.xlane.f32.xlu0 %v779
          %v781 = vpop.xlane.xlu0 %780
          %v782 = vrcp.pop 512.0
          %v783 = vmul.f32 %v766, %v782
          %v784 = vmul.f32 %v771, %v782
          %v785 = vmul.f32 %v776, %v782
          %v786 = vmul.f32 %v781, %v782
          %v787 = vsub.f32 %v744, %v783
          %v788 = vsub.f32 %v745, %v783
          %v789 = vsub.f32 %v746, %v783
          %v790 = vsub.f32 %v747, %v783
          %v791 = vsub.f32 %v748, %v784
          %v792 = vsub.f32 %v749, %v784
          %v793 = vsub.f32 %v750, %v784
          %v794 = vsub.f32 %v751, %v784
          %v795 = vsub.f32 %v752, %v785
          %v796 = vsub.f32 %v753, %v785
          %v797 = vsub.f32 %v754, %v785
          %v798 = vsub.f32 %v755, %v785
          %v799 = vsub.f32 %v756, %v786
          %v800 = vsub.f32 %v757, %v786
          %v801 = vsub.f32 %v758, %v786
          %v802 = vsub.f32 %v759, %v786
          %v803 = vmul.f32 %v787, %v787
          %v804 = vmul.f32 %v788, %v788
          %v805 = vmul.f32 %v789, %v789
          %v806 = vmul.f32 %v790, %v790
          %v807 = vmul.f32 %v791, %v791
          %v808 = vmul.f32 %v792, %v792
          %v809 = vmul.f32 %v793, %v793
          %v810 = vmul.f32 %v794, %v794
          %v811 = vmul.f32 %v795, %v795
          %v812 = vmul.f32 %v796, %v796
          %v813 = vmul.f32 %v797, %v797
          %v814 = vmul.f32 %v798, %v798
          %v815 = vmul.f32 %v799, %v799
          %v816 = vmul.f32 %v800, %v800
          %v817 = vmul.f32 %v801, %v801
          %v818 = vmul.f32 %v802, %v802
          %v819 = vadd.f32 %v803, %v804
          %v820 = vadd.f32 %v819, %v805
          %v821 = vadd.f32 %v820, %v806
          %822 = vadd.xlane.f32.xlu0 %v821
          %v823 = vpop.xlane.xlu0 %822
          %v824 = vadd.f32 %v807, %v808
          %v825 = vadd.f32 %v824, %v809
          %v826 = vadd.f32 %v825, %v810
          %827 = vadd.xlane.f32.xlu0 %v826
          %v828 = vpop.xlane.xlu0 %827
          %v829 = vadd.f32 %v811, %v812
          %v830 = vadd.f32 %v829, %v813
          %v831 = vadd.f32 %v830, %v814
          %832 = vadd.xlane.f32.xlu0 %v831
          %v833 = vpop.xlane.xlu0 %832
          %v834 = vadd.f32 %v815, %v816
          %v835 = vadd.f32 %v834, %v817
          %v836 = vadd.f32 %v835, %v818
          %837 = vadd.xlane.f32.xlu0 %v836
          %v838 = vpop.xlane.xlu0 %837
          %v839 = vmul.f32 %v823, %v782
          %v840 = vmul.f32 %v828, %v782
          %v841 = vmul.f32 %v833, %v782
          %v842 = vmul.f32 %v838, %v782
          %v843 = vadd.f32 %v839, 1e-05
          %v844 = vadd.f32 %v840, 1e-05
          %v845 = vadd.f32 %v841, 1e-05
          %v846 = vadd.f32 %v842, 1e-05
          %v847 = vrsqrt.pop %v843
          %v848 = vrsqrt.pop %v844
          %v849 = vrsqrt.pop %v845
          %v850 = vrsqrt.pop %v846
          %v851 = vmul.f32 %v787, %v847
          %v852 = vmul.f32 %v788, %v847
          %v853 = vmul.f32 %v789, %v847
          %v854 = vmul.f32 %v790, %v847
          %v855 = vmul.f32 %v791, %v848
          %v856 = vmul.f32 %v792, %v848
          %v857 = vmul.f32 %v793, %v848
          %v858 = vmul.f32 %v794, %v848
          %v859 = vmul.f32 %v795, %v849
          %v860 = vmul.f32 %v796, %v849
          %v861 = vmul.f32 %v797, %v849
          %v862 = vmul.f32 %v798, %v849
          %v863 = vmul.f32 %v799, %v850
          %v864 = vmul.f32 %v800, %v850
          %v865 = vmul.f32 %v801, %v850
          %v866 = vmul.f32 %v802, %v850
          %v868 = vlaneseq
          %v869 = vshrl.u32 %v868, 7
          %v870 = vsub.s32 0, %v869
          %v871 = vrot.slane %v760, %v870
          %v872 = vlaneseq
          %v873 = vshrl.u32 %v872, 7
          %v874 = vsub.s32 1, %v873
          %v875 = vrot.slane %v760, %v874
          %v876 = vlaneseq
          %v877 = vshrl.u32 %v876, 7
          %v878 = vsub.s32 2, %v877
          %v879 = vrot.slane %v760, %v878
          %v880 = vlaneseq
          %v881 = vshrl.u32 %v880, 7
          %v882 = vsub.s32 3, %v881
          %v883 = vrot.slane %v760, %v882
          %v888 = vmul.f32 %v851, %v871
          %v889 = vmul.f32 %v852, %v875
          %v890 = vmul.f32 %v853, %v879
          %v891 = vmul.f32 %v854, %v883
          %v892 = vmul.f32 %v855, %v871
          %v893 = vmul.f32 %v856, %v875
          %v894 = vmul.f32 %v857, %v879
          %v895 = vmul.f32 %v858, %v883
          %v896 = vmul.f32 %v859, %v871
          %v897 = vmul.f32 %v860, %v875
          %v898 = vmul.f32 %v861, %v879
          %v899 = vmul.f32 %v862, %v883
          %v900 = vmul.f32 %v863, %v871
          %v901 = vmul.f32 %v864, %v875
          %v902 = vmul.f32 %v865, %v879
          %v903 = vmul.f32 %v866, %v883
          %v905 = vlaneseq
          %v906 = vshrl.u32 %v905, 7
          %v907 = vsub.s32 0, %v906
          %v908 = vrot.slane %v761, %v907
          %v909 = vlaneseq
          %v910 = vshrl.u32 %v909, 7
          %v911 = vsub.s32 1, %v910
          %v912 = vrot.slane %v761, %v911
          %v913 = vlaneseq
          %v914 = vshrl.u32 %v913, 7
          %v915 = vsub.s32 2, %v914
          %v916 = vrot.slane %v761, %v915
          %v917 = vlaneseq
          %v918 = vshrl.u32 %v917, 7
          %v919 = vsub.s32 3, %v918
          %v920 = vrot.slane %v761, %v919
          %v925 = vadd.f32 %v888, %v908
          %v926 = vadd.f32 %v889, %v912
          %v927 = vadd.f32 %v890, %v916
          %v928 = vadd.f32 %v891, %v920
          %v929 = vadd.f32 %v892, %v908
          %v930 = vadd.f32 %v893, %v912
          %v931 = vadd.f32 %v894, %v916
          %v932 = vadd.f32 %v895, %v920
          %v933 = vadd.f32 %v896, %v908
          %v934 = vadd.f32 %v897, %v912
          %v935 = vadd.f32 %v898, %v916
          %v936 = vadd.f32 %v899, %v920
          %v937 = vadd.f32 %v900, %v908
          %v938 = vadd.f32 %v901, %v912
          %v939 = vadd.f32 %v902, %v916
          %v940 = vadd.f32 %v903, %v920
          %v941 = vpack.c.bf16 %v929, %v925
          %v942 = vpack.c.bf16 %v930, %v926
          %v943 = vpack.c.bf16 %v931, %v927
          %v944 = vpack.c.bf16 %v932, %v928
          %v945 = vpack.c.bf16 %v937, %v933
          %v946 = vpack.c.bf16 %v938, %v934
          %v947 = vpack.c.bf16 %v939, %v935
          %v948 = vpack.c.bf16 %v940, %v936
          %949 = vst [vmem:[#allocation4] sm:$0xff] %v941
          %950 = vst [vmem:[#allocation4 + $0x8] sm:$0xff] %v942
          %951 = vst [vmem:[#allocation4 + $0x10] sm:$0xff] %v943
          %952 = vst [vmem:[#allocation4 + $0x18] sm:$0xff] %v944
          %953 = vst [vmem:[#allocation4 + $0x20] sm:$0xff] %v945
          %954 = vst [vmem:[#allocation4 + $0x28] sm:$0xff] %v946
          %955 = vst [vmem:[#allocation4 + $0x30] sm:$0xff] %v947
          %956 = vst [vmem:[#allocation4 + $0x38] sm:$0xff] %v948
          %v957 = vld [vmem:[%s616] sm:$0xff]
          %v958 = vld [vmem:[%s616 + $0x8] sm:$0xff]
          %v959 = vld [vmem:[%s616 + $0x10] sm:$0xff]
          %v960 = vld [vmem:[%s616 + $0x18] sm:$0xff]
          %v961 = vld [vmem:[%s616 + $0x20] sm:$0xff]
          %v962 = vld [vmem:[%s616 + $0x28] sm:$0xff]
          %v963 = vld [vmem:[%s616 + $0x30] sm:$0xff]
          %v964 = vld [vmem:[%s616 + $0x38] sm:$0xff]
          %v965 = vld [vmem:[%s616 + $0x40] sm:$0xff]
          %v966 = vld [vmem:[%s616 + $0x48] sm:$0xff]
          %v967 = vld [vmem:[%s616 + $0x50] sm:$0xff]
          %v968 = vld [vmem:[%s616 + $0x58] sm:$0xff]
          %v969 = vld [vmem:[%s616 + $0x60] sm:$0xff]
          %v970 = vld [vmem:[%s616 + $0x68] sm:$0xff]
          %v971 = vld [vmem:[%s616 + $0x70] sm:$0xff]
          %v972 = vld [vmem:[%s616 + $0x78] sm:$0xff]
          %v973 = vld [vmem:[%s616 + $0x80] sm:$0xff]
          %v974 = vld [vmem:[%s616 + $0x88] sm:$0xff]
          %v975 = vld [vmem:[%s616 + $0x90] sm:$0xff]
          %v976 = vld [vmem:[%s616 + $0x98] sm:$0xff]
          %v977 = vld [vmem:[%s616 + $0xa0] sm:$0xff]
          %v978 = vld [vmem:[%s616 + $0xa8] sm:$0xff]
          %v979 = vld [vmem:[%s616 + $0xb0] sm:$0xff]
          %v980 = vld [vmem:[%s616 + $0xb8] sm:$0xff]
          %v981 = vld [vmem:[%s616 + $0xc0] sm:$0xff]
          %v982 = vld [vmem:[%s616 + $0xc8] sm:$0xff]
          %v983 = vld [vmem:[%s616 + $0xd0] sm:$0xff]
          %v984 = vld [vmem:[%s616 + $0xd8] sm:$0xff]
          %v985 = vld [vmem:[%s616 + $0xe0] sm:$0xff]
          %v986 = vld [vmem:[%s616 + $0xe8] sm:$0xff]
          %v987 = vld [vmem:[%s616 + $0xf0] sm:$0xff]
          %v988 = vld [vmem:[%s616 + $0xf8] sm:$0xff]
          %v989 = vld [vmem:[%s616 + $0x100] sm:$0xff]
          %v990 = vld [vmem:[%s616 + $0x108] sm:$0xff]
          %v991 = vld [vmem:[%s616 + $0x110] sm:$0xff]
          %v992 = vld [vmem:[%s616 + $0x118] sm:$0xff]
          %v993 = vld [vmem:[%s616 + $0x120] sm:$0xff]
          %v994 = vld [vmem:[%s616 + $0x128] sm:$0xff]
          %v995 = vld [vmem:[%s616 + $0x130] sm:$0xff]
          %v996 = vld [vmem:[%s616 + $0x138] sm:$0xff]
          %v997 = vld [vmem:[%s616 + $0x140] sm:$0xff]
          %v998 = vld [vmem:[%s616 + $0x148] sm:$0xff]
          %v999 = vld [vmem:[%s616 + $0x150] sm:$0xff]
          %v1000 = vld [vmem:[%s616 + $0x158] sm:$0xff]
          %v1001 = vld [vmem:[%s616 + $0x160] sm:$0xff]
          %v1002 = vld [vmem:[%s616 + $0x168] sm:$0xff]
          %v1003 = vld [vmem:[%s616 + $0x170] sm:$0xff]
          %v1004 = vld [vmem:[%s616 + $0x178] sm:$0xff]
          %v1005 = vld [vmem:[%s616 + $0x180] sm:$0xff]
          %v1006 = vld [vmem:[%s616 + $0x188] sm:$0xff]
          %v1007 = vld [vmem:[%s616 + $0x190] sm:$0xff]
          %v1008 = vld [vmem:[%s616 + $0x198] sm:$0xff]
          %v1009 = vld [vmem:[%s616 + $0x1a0] sm:$0xff]
          %v1010 = vld [vmem:[%s616 + $0x1a8] sm:$0xff]
          %v1011 = vld [vmem:[%s616 + $0x1b0] sm:$0xff]
          %v1012 = vld [vmem:[%s616 + $0x1b8] sm:$0xff]
          %v1013 = vld [vmem:[%s616 + $0x1c0] sm:$0xff]
          %v1014 = vld [vmem:[%s616 + $0x1c8] sm:$0xff]
          %v1015 = vld [vmem:[%s616 + $0x1d0] sm:$0xff]
          %v1016 = vld [vmem:[%s616 + $0x1d8] sm:$0xff]
          %v1017 = vld [vmem:[%s616 + $0x1e0] sm:$0xff]
          %v1018 = vld [vmem:[%s616 + $0x1e8] sm:$0xff]
          %v1019 = vld [vmem:[%s616 + $0x1f0] sm:$0xff]
          %v1020 = vld [vmem:[%s616 + $0x1f8] sm:$0xff]
          %v1021 = vld [vmem:[%s616 + $0x200] sm:$0xff]
          %v1022 = vld [vmem:[%s616 + $0x208] sm:$0xff]
          %v1023 = vld [vmem:[%s616 + $0x210] sm:$0xff]
          %v1024 = vld [vmem:[%s616 + $0x218] sm:$0xff]
          %v1025 = vld [vmem:[%s616 + $0x220] sm:$0xff]
          %v1026 = vld [vmem:[%s616 + $0x228] sm:$0xff]
          %v1027 = vld [vmem:[%s616 + $0x230] sm:$0xff]
          %v1028 = vld [vmem:[%s616 + $0x238] sm:$0xff]
          %v1029 = vld [vmem:[%s616 + $0x240] sm:$0xff]
          %v1030 = vld [vmem:[%s616 + $0x248] sm:$0xff]
          %v1031 = vld [vmem:[%s616 + $0x250] sm:$0xff]
          %v1032 = vld [vmem:[%s616 + $0x258] sm:$0xff]
          %v1033 = vld [vmem:[%s616 + $0x260] sm:$0xff]
          %v1034 = vld [vmem:[%s616 + $0x268] sm:$0xff]
          %v1035 = vld [vmem:[%s616 + $0x270] sm:$0xff]
          %v1036 = vld [vmem:[%s616 + $0x278] sm:$0xff]
          %v1037 = vld [vmem:[%s616 + $0x280] sm:$0xff]
          %v1038 = vld [vmem:[%s616 + $0x288] sm:$0xff]
          %v1039 = vld [vmem:[%s616 + $0x290] sm:$0xff]
          %v1040 = vld [vmem:[%s616 + $0x298] sm:$0xff]
          %v1041 = vld [vmem:[%s616 + $0x2a0] sm:$0xff]
          %v1042 = vld [vmem:[%s616 + $0x2a8] sm:$0xff]
          %v1043 = vld [vmem:[%s616 + $0x2b0] sm:$0xff]
          %v1044 = vld [vmem:[%s616 + $0x2b8] sm:$0xff]
          %v1045 = vld [vmem:[%s616 + $0x2c0] sm:$0xff]
          %v1046 = vld [vmem:[%s616 + $0x2c8] sm:$0xff]
          %v1047 = vld [vmem:[%s616 + $0x2d0] sm:$0xff]
          %v1048 = vld [vmem:[%s616 + $0x2d8] sm:$0xff]
          %v1049 = vld [vmem:[%s616 + $0x2e0] sm:$0xff]
          %v1050 = vld [vmem:[%s616 + $0x2e8] sm:$0xff]
          %v1051 = vld [vmem:[%s616 + $0x2f0] sm:$0xff]
          %v1052 = vld [vmem:[%s616 + $0x2f8] sm:$0xff]
          %v1053 = vld [vmem:[%s616 + $0x300] sm:$0xff]
          %v1054 = vld [vmem:[%s616 + $0x308] sm:$0xff]
          %v1055 = vld [vmem:[%s616 + $0x310] sm:$0xff]
          %v1056 = vld [vmem:[%s616 + $0x318] sm:$0xff]
          %v1057 = vld [vmem:[%s616 + $0x320] sm:$0xff]
          %v1058 = vld [vmem:[%s616 + $0x328] sm:$0xff]
          %v1059 = vld [vmem:[%s616 + $0x330] sm:$0xff]
          %v1060 = vld [vmem:[%s616 + $0x338] sm:$0xff]
          %v1061 = vld [vmem:[%s616 + $0x340] sm:$0xff]
          %v1062 = vld [vmem:[%s616 + $0x348] sm:$0xff]
          %v1063 = vld [vmem:[%s616 + $0x350] sm:$0xff]
          %v1064 = vld [vmem:[%s616 + $0x358] sm:$0xff]
          %v1065 = vld [vmem:[%s616 + $0x360] sm:$0xff]
          %v1066 = vld [vmem:[%s616 + $0x368] sm:$0xff]
          %v1067 = vld [vmem:[%s616 + $0x370] sm:$0xff]
          %v1068 = vld [vmem:[%s616 + $0x378] sm:$0xff]
          %v1069 = vld [vmem:[%s616 + $0x380] sm:$0xff]
          %v1070 = vld [vmem:[%s616 + $0x388] sm:$0xff]
          %v1071 = vld [vmem:[%s616 + $0x390] sm:$0xff]
          %v1072 = vld [vmem:[%s616 + $0x398] sm:$0xff]
          %v1073 = vld [vmem:[%s616 + $0x3a0] sm:$0xff]
          %v1074 = vld [vmem:[%s616 + $0x3a8] sm:$0xff]
          %v1075 = vld [vmem:[%s616 + $0x3b0] sm:$0xff]
          %v1076 = vld [vmem:[%s616 + $0x3b8] sm:$0xff]
          %v1077 = vld [vmem:[%s616 + $0x3c0] sm:$0xff]
          %v1078 = vld [vmem:[%s616 + $0x3c8] sm:$0xff]
          %v1079 = vld [vmem:[%s616 + $0x3d0] sm:$0xff]
          %v1080 = vld [vmem:[%s616 + $0x3d8] sm:$0xff]
          %v1081 = vld [vmem:[%s616 + $0x3e0] sm:$0xff]
          %v1082 = vld [vmem:[%s616 + $0x3e8] sm:$0xff]
          %v1083 = vld [vmem:[%s616 + $0x3f0] sm:$0xff]
          %v1084 = vld [vmem:[%s616 + $0x3f8] sm:$0xff]
          %v1085 = vld [vmem:[%s625] sm:$0xf]
          %v1087 = vlaneseq
          %v1088 = vshrl.u32 %v1087, 7
          %v1089 = vsub.s32 0, %v1088
          %v1090 = vrot.slane %v1085, %v1089
          %v1091 = vlaneseq
          %v1092 = vshrl.u32 %v1091, 7
          %v1093 = vsub.s32 1, %v1092
          %v1094 = vrot.slane %v1085, %v1093
          %v1095 = vlaneseq
          %v1096 = vshrl.u32 %v1095, 7
          %v1097 = vsub.s32 2, %v1096
          %v1098 = vrot.slane %v1085, %v1097
          %v1099 = vlaneseq
          %v1100 = vshrl.u32 %v1099, 7
          %v1101 = vsub.s32 3, %v1100
          %v1102 = vrot.slane %v1085, %v1101
          %v1235 = vunpack.c.l.b16 %v957
          %v1236 = vunpack.c.h.b16 %v957
          %v1237 = vunpack.c.l.b16 %v958
          %v1238 = vunpack.c.h.b16 %v958
          %v1239 = vunpack.c.l.b16 %v959
          %v1240 = vunpack.c.h.b16 %v959
          %v1241 = vunpack.c.l.b16 %v960
          %v1242 = vunpack.c.h.b16 %v960
          %v1243 = vunpack.c.l.b16 %v961
          %v1244 = vunpack.c.h.b16 %v961
          %v1245 = vunpack.c.l.b16 %v962
          %v1246 = vunpack.c.h.b16 %v962
          %v1247 = vunpack.c.l.b16 %v963
          %v1248 = vunpack.c.h.b16 %v963
          %v1249 = vunpack.c.l.b16 %v964
          %v1250 = vunpack.c.h.b16 %v964
          %v1251 = vunpack.c.l.b16 %v965
          %v1252 = vunpack.c.h.b16 %v965
          %v1253 = vunpack.c.l.b16 %v966
          %v1254 = vunpack.c.h.b16 %v966
          %v1255 = vunpack.c.l.b16 %v967
          %v1256 = vunpack.c.h.b16 %v967
          %v1257 = vunpack.c.l.b16 %v968
          %v1258 = vunpack.c.h.b16 %v968
          %v1259 = vunpack.c.l.b16 %v969
          %v1260 = vunpack.c.h.b16 %v969
          %v1261 = vunpack.c.l.b16 %v970
          %v1262 = vunpack.c.h.b16 %v970
          %v1263 = vunpack.c.l.b16 %v971
          %v1264 = vunpack.c.h.b16 %v971
          %v1265 = vunpack.c.l.b16 %v972
          %v1266 = vunpack.c.h.b16 %v972
          %v1267 = vunpack.c.l.b16 %v973
          %v1268 = vunpack.c.h.b16 %v973
          %v1269 = vunpack.c.l.b16 %v974
          %v1270 = vunpack.c.h.b16 %v974
          %v1271 = vunpack.c.l.b16 %v975
          %v1272 = vunpack.c.h.b16 %v975
          %v1273 = vunpack.c.l.b16 %v976
          %v1274 = vunpack.c.h.b16 %v976
          %v1275 = vunpack.c.l.b16 %v977
          %v1276 = vunpack.c.h.b16 %v977
          %v1277 = vunpack.c.l.b16 %v978
          %v1278 = vunpack.c.h.b16 %v978
          %v1279 = vunpack.c.l.b16 %v979
          %v1280 = vunpack.c.h.b16 %v979
          %v1281 = vunpack.c.l.b16 %v980
          %v1282 = vunpack.c.h.b16 %v980
          %v1283 = vunpack.c.l.b16 %v981
          %v1284 = vunpack.c.h.b16 %v981
          %v1285 = vunpack.c.l.b16 %v982
          %v1286 = vunpack.c.h.b16 %v982
          %v1287 = vunpack.c.l.b16 %v983
          %v1288 = vunpack.c.h.b16 %v983
          %v1289 = vunpack.c.l.b16 %v984
          %v1290 = vunpack.c.h.b16 %v984
          %v1291 = vunpack.c.l.b16 %v985
          %v1292 = vunpack.c.h.b16 %v985
          %v1293 = vunpack.c.l.b16 %v986
          %v1294 = vunpack.c.h.b16 %v986
          %v1295 = vunpack.c.l.b16 %v987
          %v1296 = vunpack.c.h.b16 %v987
          %v1297 = vunpack.c.l.b16 %v988
          %v1298 = vunpack.c.h.b16 %v988
          %v1299 = vunpack.c.l.b16 %v989
          %v1300 = vunpack.c.h.b16 %v989
          %v1301 = vunpack.c.l.b16 %v990
          %v1302 = vunpack.c.h.b16 %v990
          %v1303 = vunpack.c.l.b16 %v991
          %v1304 = vunpack.c.h.b16 %v991
          %v1305 = vunpack.c.l.b16 %v992
          %v1306 = vunpack.c.h.b16 %v992
          %v1307 = vunpack.c.l.b16 %v993
          %v1308 = vunpack.c.h.b16 %v993
          %v1309 = vunpack.c.l.b16 %v994
          %v1310 = vunpack.c.h.b16 %v994
          %v1311 = vunpack.c.l.b16 %v995
          %v1312 = vunpack.c.h.b16 %v995
          %v1313 = vunpack.c.l.b16 %v996
          %v1314 = vunpack.c.h.b16 %v996
          %v1315 = vunpack.c.l.b16 %v997
          %v1316 = vunpack.c.h.b16 %v997
          %v1317 = vunpack.c.l.b16 %v998
          %v1318 = vunpack.c.h.b16 %v998
          %v1319 = vunpack.c.l.b16 %v999
          %v1320 = vunpack.c.h.b16 %v999
          %v1321 = vunpack.c.l.b16 %v1000
          %v1322 = vunpack.c.h.b16 %v1000
          %v1323 = vunpack.c.l.b16 %v1001
          %v1324 = vunpack.c.h.b16 %v1001
          %v1325 = vunpack.c.l.b16 %v1002
          %v1326 = vunpack.c.h.b16 %v1002
          %v1327 = vunpack.c.l.b16 %v1003
          %v1328 = vunpack.c.h.b16 %v1003
          %v1329 = vunpack.c.l.b16 %v1004
          %v1330 = vunpack.c.h.b16 %v1004
          %v1331 = vunpack.c.l.b16 %v1005
          %v1332 = vunpack.c.h.b16 %v1005
          %v1333 = vunpack.c.l.b16 %v1006
          %v1334 = vunpack.c.h.b16 %v1006
          %v1335 = vunpack.c.l.b16 %v1007
          %v1336 = vunpack.c.h.b16 %v1007
          %v1337 = vunpack.c.l.b16 %v1008
          %v1338 = vunpack.c.h.b16 %v1008
          %v1339 = vunpack.c.l.b16 %v1009
          %v1340 = vunpack.c.h.b16 %v1009
          %v1341 = vunpack.c.l.b16 %v1010
          %v1342 = vunpack.c.h.b16 %v1010
          %v1343 = vunpack.c.l.b16 %v1011
          %v1344 = vunpack.c.h.b16 %v1011
          %v1345 = vunpack.c.l.b16 %v1012
          %v1346 = vunpack.c.h.b16 %v1012
          %v1347 = vunpack.c.l.b16 %v1013
          %v1348 = vunpack.c.h.b16 %v1013
          %v1349 = vunpack.c.l.b16 %v1014
          %v1350 = vunpack.c.h.b16 %v1014
          %v1351 = vunpack.c.l.b16 %v1015
          %v1352 = vunpack.c.h.b16 %v1015
          %v1353 = vunpack.c.l.b16 %v1016
          %v1354 = vunpack.c.h.b16 %v1016
          %v1355 = vunpack.c.l.b16 %v1017
          %v1356 = vunpack.c.h.b16 %v1017
          %v1357 = vunpack.c.l.b16 %v1018
          %v1358 = vunpack.c.h.b16 %v1018
          %v1359 = vunpack.c.l.b16 %v1019
          %v1360 = vunpack.c.h.b16 %v1019
          %v1361 = vunpack.c.l.b16 %v1020
          %v1362 = vunpack.c.h.b16 %v1020
          %v1363 = vunpack.c.l.b16 %v1021
          %v1364 = vunpack.c.h.b16 %v1021
          %v1365 = vunpack.c.l.b16 %v1022
          %v1366 = vunpack.c.h.b16 %v1022
          %v1367 = vunpack.c.l.b16 %v1023
          %v1368 = vunpack.c.h.b16 %v1023
          %v1369 = vunpack.c.l.b16 %v1024
          %v1370 = vunpack.c.h.b16 %v1024
          %v1371 = vunpack.c.l.b16 %v1025
          %v1372 = vunpack.c.h.b16 %v1025
          %v1373 = vunpack.c.l.b16 %v1026
          %v1374 = vunpack.c.h.b16 %v1026
          %v1375 = vunpack.c.l.b16 %v1027
          %v1376 = vunpack.c.h.b16 %v1027
          %v1377 = vunpack.c.l.b16 %v1028
          %v1378 = vunpack.c.h.b16 %v1028
          %v1379 = vunpack.c.l.b16 %v1029
          %v1380 = vunpack.c.h.b16 %v1029
          %v1381 = vunpack.c.l.b16 %v1030
          %v1382 = vunpack.c.h.b16 %v1030
          %v1383 = vunpack.c.l.b16 %v1031
          %v1384 = vunpack.c.h.b16 %v1031
          %v1385 = vunpack.c.l.b16 %v1032
          %v1386 = vunpack.c.h.b16 %v1032
          %v1387 = vunpack.c.l.b16 %v1033
          %v1388 = vunpack.c.h.b16 %v1033
          %v1389 = vunpack.c.l.b16 %v1034
          %v1390 = vunpack.c.h.b16 %v1034
          %v1391 = vunpack.c.l.b16 %v1035
          %v1392 = vunpack.c.h.b16 %v1035
          %v1393 = vunpack.c.l.b16 %v1036
          %v1394 = vunpack.c.h.b16 %v1036
          %v1395 = vunpack.c.l.b16 %v1037
          %v1396 = vunpack.c.h.b16 %v1037
          %v1397 = vunpack.c.l.b16 %v1038
          %v1398 = vunpack.c.h.b16 %v1038
          %v1399 = vunpack.c.l.b16 %v1039
          %v1400 = vunpack.c.h.b16 %v1039
          %v1401 = vunpack.c.l.b16 %v1040
          %v1402 = vunpack.c.h.b16 %v1040
          %v1403 = vunpack.c.l.b16 %v1041
          %v1404 = vunpack.c.h.b16 %v1041
          %v1405 = vunpack.c.l.b16 %v1042
          %v1406 = vunpack.c.h.b16 %v1042
          %v1407 = vunpack.c.l.b16 %v1043
          %v1408 = vunpack.c.h.b16 %v1043
          %v1409 = vunpack.c.l.b16 %v1044
          %v1410 = vunpack.c.h.b16 %v1044
          %v1411 = vunpack.c.l.b16 %v1045
          %v1412 = vunpack.c.h.b16 %v1045
          %v1413 = vunpack.c.l.b16 %v1046
          %v1414 = vunpack.c.h.b16 %v1046
          %v1415 = vunpack.c.l.b16 %v1047
          %v1416 = vunpack.c.h.b16 %v1047
          %v1417 = vunpack.c.l.b16 %v1048
          %v1418 = vunpack.c.h.b16 %v1048
          %v1419 = vunpack.c.l.b16 %v1049
          %v1420 = vunpack.c.h.b16 %v1049
          %v1421 = vunpack.c.l.b16 %v1050
          %v1422 = vunpack.c.h.b16 %v1050
          %v1423 = vunpack.c.l.b16 %v1051
          %v1424 = vunpack.c.h.b16 %v1051
          %v1425 = vunpack.c.l.b16 %v1052
          %v1426 = vunpack.c.h.b16 %v1052
          %v1427 = vunpack.c.l.b16 %v1053
          %v1428 = vunpack.c.h.b16 %v1053
          %v1429 = vunpack.c.l.b16 %v1054
          %v1430 = vunpack.c.h.b16 %v1054
          %v1431 = vunpack.c.l.b16 %v1055
          %v1432 = vunpack.c.h.b16 %v1055
          %v1433 = vunpack.c.l.b16 %v1056
          %v1434 = vunpack.c.h.b16 %v1056
          %v1435 = vunpack.c.l.b16 %v1057
          %v1436 = vunpack.c.h.b16 %v1057
          %v1437 = vunpack.c.l.b16 %v1058
          %v1438 = vunpack.c.h.b16 %v1058
          %v1439 = vunpack.c.l.b16 %v1059
          %v1440 = vunpack.c.h.b16 %v1059
          %v1441 = vunpack.c.l.b16 %v1060
          %v1442 = vunpack.c.h.b16 %v1060
          %v1443 = vunpack.c.l.b16 %v1061
          %v1444 = vunpack.c.h.b16 %v1061
          %v1445 = vunpack.c.l.b16 %v1062
          %v1446 = vunpack.c.h.b16 %v1062
          %v1447 = vunpack.c.l.b16 %v1063
          %v1448 = vunpack.c.h.b16 %v1063
          %v1449 = vunpack.c.l.b16 %v1064
          %v1450 = vunpack.c.h.b16 %v1064
          %v1451 = vunpack.c.l.b16 %v1065
          %v1452 = vunpack.c.h.b16 %v1065
          %v1453 = vunpack.c.l.b16 %v1066
          %v1454 = vunpack.c.h.b16 %v1066
          %v1455 = vunpack.c.l.b16 %v1067
          %v1456 = vunpack.c.h.b16 %v1067
          %v1457 = vunpack.c.l.b16 %v1068
          %v1458 = vunpack.c.h.b16 %v1068
          %v1459 = vunpack.c.l.b16 %v1069
          %v1460 = vunpack.c.h.b16 %v1069
          %v1461 = vunpack.c.l.b16 %v1070
          %v1462 = vunpack.c.h.b16 %v1070
          %v1463 = vunpack.c.l.b16 %v1071
          %v1464 = vunpack.c.h.b16 %v1071
          %v1465 = vunpack.c.l.b16 %v1072
          %v1466 = vunpack.c.h.b16 %v1072
          %v1467 = vunpack.c.l.b16 %v1073
          %v1468 = vunpack.c.h.b16 %v1073
          %v1469 = vunpack.c.l.b16 %v1074
          %v1470 = vunpack.c.h.b16 %v1074
          %v1471 = vunpack.c.l.b16 %v1075
          %v1472 = vunpack.c.h.b16 %v1075
          %v1473 = vunpack.c.l.b16 %v1076
          %v1474 = vunpack.c.h.b16 %v1076
          %v1475 = vunpack.c.l.b16 %v1077
          %v1476 = vunpack.c.h.b16 %v1077
          %v1477 = vunpack.c.l.b16 %v1078
          %v1478 = vunpack.c.h.b16 %v1078
          %v1479 = vunpack.c.l.b16 %v1079
          %v1480 = vunpack.c.h.b16 %v1079
          %v1481 = vunpack.c.l.b16 %v1080
          %v1482 = vunpack.c.h.b16 %v1080
          %v1483 = vunpack.c.l.b16 %v1081
          %v1484 = vunpack.c.h.b16 %v1081
          %v1485 = vunpack.c.l.b16 %v1082
          %v1486 = vunpack.c.h.b16 %v1082
          %v1487 = vunpack.c.l.b16 %v1083
          %v1488 = vunpack.c.h.b16 %v1083
          %v1489 = vunpack.c.l.b16 %v1084
          %v1490 = vunpack.c.h.b16 %v1084
          %v1491 = vpack.c.b16 %v1239, %v1235
          %v1492 = vpack.c.b16 %v1240, %v1236
          %v1493 = vpack.c.b16 %v1241, %v1237
          %v1494 = vpack.c.b16 %v1242, %v1238
          %v1495 = vpack.c.b16 %v1247, %v1243
          %v1496 = vpack.c.b16 %v1248, %v1244
          %v1497 = vpack.c.b16 %v1249, %v1245
          %v1498 = vpack.c.b16 %v1250, %v1246
          %v1499 = vpack.c.b16 %v1255, %v1251
          %v1500 = vpack.c.b16 %v1256, %v1252
          %v1501 = vpack.c.b16 %v1257, %v1253
          %v1502 = vpack.c.b16 %v1258, %v1254
          %v1503 = vpack.c.b16 %v1263, %v1259
          %v1504 = vpack.c.b16 %v1264, %v1260
          %v1505 = vpack.c.b16 %v1265, %v1261
          %v1506 = vpack.c.b16 %v1266, %v1262
          %v1507 = vpack.c.b16 %v1271, %v1267
          %v1508 = vpack.c.b16 %v1272, %v1268
          %v1509 = vpack.c.b16 %v1273, %v1269
          %v1510 = vpack.c.b16 %v1274, %v1270
          %v1511 = vpack.c.b16 %v1279, %v1275
          %v1512 = vpack.c.b16 %v1280, %v1276
          %v1513 = vpack.c.b16 %v1281, %v1277
          %v1514 = vpack.c.b16 %v1282, %v1278
          %v1515 = vpack.c.b16 %v1287, %v1283
          %v1516 = vpack.c.b16 %v1288, %v1284
          %v1517 = vpack.c.b16 %v1289, %v1285
          %v1518 = vpack.c.b16 %v1290, %v1286
          %v1519 = vpack.c.b16 %v1295, %v1291
          %v1520 = vpack.c.b16 %v1296, %v1292
          %v1521 = vpack.c.b16 %v1297, %v1293
          %v1522 = vpack.c.b16 %v1298, %v1294
          %v1523 = vpack.c.b16 %v1303, %v1299
          %v1524 = vpack.c.b16 %v1304, %v1300
          %v1525 = vpack.c.b16 %v1305, %v1301
          %v1526 = vpack.c.b16 %v1306, %v1302
          %v1527 = vpack.c.b16 %v1311, %v1307
          %v1528 = vpack.c.b16 %v1312, %v1308
          %v1529 = vpack.c.b16 %v1313, %v1309
          %v1530 = vpack.c.b16 %v1314, %v1310
          %v1531 = vpack.c.b16 %v1319, %v1315
          %v1532 = vpack.c.b16 %v1320, %v1316
          %v1533 = vpack.c.b16 %v1321, %v1317
          %v1534 = vpack.c.b16 %v1322, %v1318
          %v1535 = vpack.c.b16 %v1327, %v1323
          %v1536 = vpack.c.b16 %v1328, %v1324
          %v1537 = vpack.c.b16 %v1329, %v1325
          %v1538 = vpack.c.b16 %v1330, %v1326
          %v1539 = vpack.c.b16 %v1335, %v1331
          %v1540 = vpack.c.b16 %v1336, %v1332
          %v1541 = vpack.c.b16 %v1337, %v1333
          %v1542 = vpack.c.b16 %v1338, %v1334
          %v1543 = vpack.c.b16 %v1343, %v1339
          %v1544 = vpack.c.b16 %v1344, %v1340
          %v1545 = vpack.c.b16 %v1345, %v1341
          %v1546 = vpack.c.b16 %v1346, %v1342
          %v1547 = vpack.c.b16 %v1351, %v1347
          %v1548 = vpack.c.b16 %v1352, %v1348
          %v1549 = vpack.c.b16 %v1353, %v1349
          %v1550 = vpack.c.b16 %v1354, %v1350
          %v1551 = vpack.c.b16 %v1359, %v1355
          %v1552 = vpack.c.b16 %v1360, %v1356
          %v1553 = vpack.c.b16 %v1361, %v1357
          %v1554 = vpack.c.b16 %v1362, %v1358
          %v1555 = vpack.c.b16 %v1367, %v1363
          %v1556 = vpack.c.b16 %v1368, %v1364
          %v1557 = vpack.c.b16 %v1369, %v1365
          %v1558 = vpack.c.b16 %v1370, %v1366
          %v1559 = vpack.c.b16 %v1375, %v1371
          %v1560 = vpack.c.b16 %v1376, %v1372
          %v1561 = vpack.c.b16 %v1377, %v1373
          %v1562 = vpack.c.b16 %v1378, %v1374
          %v1563 = vpack.c.b16 %v1383, %v1379
          %v1564 = vpack.c.b16 %v1384, %v1380
          %v1565 = vpack.c.b16 %v1385, %v1381
          %v1566 = vpack.c.b16 %v1386, %v1382
          %v1567 = vpack.c.b16 %v1391, %v1387
          %v1568 = vpack.c.b16 %v1392, %v1388
          %v1569 = vpack.c.b16 %v1393, %v1389
          %v1570 = vpack.c.b16 %v1394, %v1390
          %v1571 = vpack.c.b16 %v1399, %v1395
          %v1572 = vpack.c.b16 %v1400, %v1396
          %v1573 = vpack.c.b16 %v1401, %v1397
          %v1574 = vpack.c.b16 %v1402, %v1398
          %v1575 = vpack.c.b16 %v1407, %v1403
          %v1576 = vpack.c.b16 %v1408, %v1404
          %v1577 = vpack.c.b16 %v1409, %v1405
          %v1578 = vpack.c.b16 %v1410, %v1406
          %v1579 = vpack.c.b16 %v1415, %v1411
          %v1580 = vpack.c.b16 %v1416, %v1412
          %v1581 = vpack.c.b16 %v1417, %v1413
          %v1582 = vpack.c.b16 %v1418, %v1414
          %v1583 = vpack.c.b16 %v1423, %v1419
          %v1584 = vpack.c.b16 %v1424, %v1420
          %v1585 = vpack.c.b16 %v1425, %v1421
          %v1586 = vpack.c.b16 %v1426, %v1422
          %v1587 = vpack.c.b16 %v1431, %v1427
          %v1588 = vpack.c.b16 %v1432, %v1428
          %v1589 = vpack.c.b16 %v1433, %v1429
          %v1590 = vpack.c.b16 %v1434, %v1430
          %v1591 = vpack.c.b16 %v1439, %v1435
          %v1592 = vpack.c.b16 %v1440, %v1436
          %v1593 = vpack.c.b16 %v1441, %v1437
          %v1594 = vpack.c.b16 %v1442, %v1438
          %v1595 = vpack.c.b16 %v1447, %v1443
          %v1596 = vpack.c.b16 %v1448, %v1444
          %v1597 = vpack.c.b16 %v1449, %v1445
          %v1598 = vpack.c.b16 %v1450, %v1446
          %v1599 = vpack.c.b16 %v1455, %v1451
          %v1600 = vpack.c.b16 %v1456, %v1452
          %v1601 = vpack.c.b16 %v1457, %v1453
          %v1602 = vpack.c.b16 %v1458, %v1454
          %v1603 = vpack.c.b16 %v1463, %v1459
          %v1604 = vpack.c.b16 %v1464, %v1460
          %v1605 = vpack.c.b16 %v1465, %v1461
          %v1606 = vpack.c.b16 %v1466, %v1462
          %v1607 = vpack.c.b16 %v1471, %v1467
          %v1608 = vpack.c.b16 %v1472, %v1468
          %v1609 = vpack.c.b16 %v1473, %v1469
          %v1610 = vpack.c.b16 %v1474, %v1470
          %v1611 = vpack.c.b16 %v1479, %v1475
          %v1612 = vpack.c.b16 %v1480, %v1476
          %v1613 = vpack.c.b16 %v1481, %v1477
          %v1614 = vpack.c.b16 %v1482, %v1478
          %v1615 = vpack.c.b16 %v1487, %v1483
          %v1616 = vpack.c.b16 %v1488, %v1484
          %v1617 = vpack.c.b16 %v1489, %v1485
          %v1618 = vpack.c.b16 %v1490, %v1486
          %1747 = vmatprep.subr.bf16.mxu0 %v1492
          %1748 = vmatpush1.bf16.msra.mxu0 %v1491
          %1749 = vmatprep.subr.bf16.mxu0 %v1496
          %1750 = vmatpush1.bf16.msra.mxu0 %v1495
          %1751 = vmatprep.subr.bf16.mxu0 %v1500
          %1752 = vmatpush1.bf16.msra.mxu0 %v1499
          %1753 = vmatprep.subr.bf16.mxu0 %v1504
          %1754 = vmatpush1.bf16.msra.mxu0 %v1503
          %1755 = vmatprep.subr.bf16.mxu0 %v1508
          %1756 = vmatpush1.bf16.msra.mxu0 %v1507
          %1757 = vmatprep.subr.bf16.mxu0 %v1512
          %1758 = vmatpush1.bf16.msra.mxu0 %v1511
          %1759 = vmatprep.subr.bf16.mxu0 %v1516
          %1760 = vmatpush1.bf16.msra.mxu0 %v1515
          %1761 = vmatprep.subr.bf16.mxu0 %v1520
          %1762 = vmatpush1.bf16.msra.mxu0 %v1519
          %1763 = vmatprep.subr.bf16.mxu0 %v1524
          %1764 = vmatpush1.bf16.msra.mxu0 %v1523
          %1765 = vmatprep.subr.bf16.mxu0 %v1528
          %1766 = vmatpush1.bf16.msra.mxu0 %v1527
          %1767 = vmatprep.subr.bf16.mxu0 %v1532
          %1768 = vmatpush1.bf16.msra.mxu0 %v1531
          %1769 = vmatprep.subr.bf16.mxu0 %v1536
          %1770 = vmatpush1.bf16.msra.mxu0 %v1535
          %1771 = vmatprep.subr.bf16.mxu0 %v1540
          %1772 = vmatpush1.bf16.msra.mxu0 %v1539
          %1773 = vmatprep.subr.bf16.mxu0 %v1544
          %1774 = vmatpush1.bf16.msra.mxu0 %v1543
          %1775 = vmatprep.subr.bf16.mxu0 %v1548
          %1776 = vmatpush1.bf16.msra.mxu0 %v1547
          %1777 = vmatprep.subr.bf16.mxu0 %v1552
          %1778 = vmatpush1.bf16.msra.mxu0 %v1551
          %1779 = vmatprep.mubr.bf16.mxu0 %v942
          %1780 = vmatmul.mubr.bf16.gmra.mrb[0].mxu0 %v941
          %v1781 = vpop.f32.mrb[0].mxu0
          %v1782 = vadd.f32 %v1090, %v1781
          %v1783 = vpop.f32.mrb[0].mxu0
          %v1784 = vadd.f32 %v1094, %v1783
          %v1785 = vpop.f32.mrb[0].mxu0
          %v1786 = vadd.f32 %v1090, %v1785
          %v1787 = vpop.f32.mrb[0].mxu0
          %v1788 = vadd.f32 %v1094, %v1787
          %1789 = vmatprep.mubr.bf16.mxu0 %v946
          %1790 = vmatmul.mubr.bf16.gmra.mrb[0].mxu0 %v945
          %v1791 = vpop.f32.mrb[0].mxu0
          %v1792 = vadd.f32 %v1090, %v1791
          %v1793 = vpop.f32.mrb[0].mxu0
          %v1794 = vadd.f32 %v1094, %v1793
          %v1795 = vpop.f32.mrb[0].mxu0
          %v1796 = vadd.f32 %v1090, %v1795
          %v1797 = vpop.f32.mrb[0].mxu0
          %v1798 = vadd.f32 %v1094, %v1797
          %1799 = vdwg.mxu0
          %1800 = vmatprep.subr.bf16.mxu0 %v1556
          %1801 = vmatpush1.bf16.msra.mxu0 %v1555
          %1802 = vmatprep.subr.bf16.mxu0 %v1560
          %1803 = vmatpush1.bf16.msra.mxu0 %v1559
          %1804 = vmatprep.subr.bf16.mxu0 %v1564
          %1805 = vmatpush1.bf16.msra.mxu0 %v1563
          %1806 = vmatprep.subr.bf16.mxu0 %v1568
          %1807 = vmatpush1.bf16.msra.mxu0 %v1567
          %1808 = vmatprep.subr.bf16.mxu0 %v1572
          %1809 = vmatpush1.bf16.msra.mxu0 %v1571
          %1810 = vmatprep.subr.bf16.mxu0 %v1576
          %1811 = vmatpush1.bf16.msra.mxu0 %v1575
          %1812 = vmatprep.subr.bf16.mxu0 %v1580
          %1813 = vmatpush1.bf16.msra.mxu0 %v1579
          %1814 = vmatprep.subr.bf16.mxu0 %v1584
          %1815 = vmatpush1.bf16.msra.mxu0 %v1583
          %1816 = vmatprep.subr.bf16.mxu0 %v1588
          %1817 = vmatpush1.bf16.msra.mxu0 %v1587
          %1818 = vmatprep.subr.bf16.mxu0 %v1592
          %1819 = vmatpush1.bf16.msra.mxu0 %v1591
          %1820 = vmatprep.subr.bf16.mxu0 %v1596
          %1821 = vmatpush1.bf16.msra.mxu0 %v1595
          %1822 = vmatprep.subr.bf16.mxu0 %v1600
          %1823 = vmatpush1.bf16.msra.mxu0 %v1599
          %1824 = vmatprep.subr.bf16.mxu0 %v1604
          %1825 = vmatpush1.bf16.msra.mxu0 %v1603
          %1826 = vmatprep.subr.bf16.mxu0 %v1608
          %1827 = vmatpush1.bf16.msra.mxu0 %v1607
          %1828 = vmatprep.subr.bf16.mxu0 %v1612
          %1829 = vmatpush1.bf16.msra.mxu0 %v1611
          %1830 = vmatprep.subr.bf16.mxu0 %v1616
          %1831 = vmatpush1.bf16.msra.mxu0 %v1615
          %1832 = vmatprep.mubr.bf16.mxu0 %v944
          %1833 = vmatmul.mubr.bf16.gmra.mrb[0].mxu0 %v943
          %v1834 = vpop.f32.mrb[0].mxu0
          %v1835 = vadd.f32 %v1782, %v1834
          %v1836 = vpop.f32.mrb[0].mxu0
          %v1837 = vadd.f32 %v1784, %v1836
          %v1838 = vpop.f32.mrb[0].mxu0
          %v1839 = vadd.f32 %v1786, %v1838
          %v1840 = vpop.f32.mrb[0].mxu0
          %v1841 = vadd.f32 %v1788, %v1840
          %1842 = vmatprep.mubr.bf16.mxu0 %v948
          %1843 = vmatmul.mubr.bf16.gmra.mrb[0].mxu0 %v947
          %v1844 = vpop.f32.mrb[0].mxu0
          %v1845 = vadd.f32 %v1792, %v1844
          %v1846 = vpop.f32.mrb[0].mxu0
          %v1847 = vadd.f32 %v1794, %v1846
          %v1848 = vpop.f32.mrb[0].mxu0
          %v1849 = vadd.f32 %v1796, %v1848
          %v1850 = vpop.f32.mrb[0].mxu0
          %v1851 = vadd.f32 %v1798, %v1850
          %1852 = vdwg.mxu0
          %1853 = vmatprep.subr.bf16.mxu0 %v1494
          %1854 = vmatpush1.bf16.msra.mxu0 %v1493
          %1855 = vmatprep.subr.bf16.mxu0 %v1498
          %1856 = vmatpush1.bf16.msra.mxu0 %v1497
          %1857 = vmatprep.subr.bf16.mxu0 %v1502
          %1858 = vmatpush1.bf16.msra.mxu0 %v1501
          %1859 = vmatprep.subr.bf16.mxu0 %v1506
          %1860 = vmatpush1.bf16.msra.mxu0 %v1505
          %1861 = vmatprep.subr.bf16.mxu0 %v1510
          %1862 = vmatpush1.bf16.msra.mxu0 %v1509
          %1863 = vmatprep.subr.bf16.mxu0 %v1514
          %1864 = vmatpush1.bf16.msra.mxu0 %v1513
          %1865 = vmatprep.subr.bf16.mxu0 %v1518
          %1866 = vmatpush1.bf16.msra.mxu0 %v1517
          %1867 = vmatprep.subr.bf16.mxu0 %v1522
          %1868 = vmatpush1.bf16.msra.mxu0 %v1521
          %1869 = vmatprep.subr.bf16.mxu0 %v1526
          %1870 = vmatpush1.bf16.msra.mxu0 %v1525
          %1871 = vmatprep.subr.bf16.mxu0 %v1530
          %1872 = vmatpush1.bf16.msra.mxu0 %v1529
          %1873 = vmatprep.subr.bf16.mxu0 %v1534
          %1874 = vmatpush1.bf16.msra.mxu0 %v1533
          %1875 = vmatprep.subr.bf16.mxu0 %v1538
          %1876 = vmatpush1.bf16.msra.mxu0 %v1537
          %1877 = vmatprep.subr.bf16.mxu0 %v1542
          %1878 = vmatpush1.bf16.msra.mxu0 %v1541
          %1879 = vmatprep.subr.bf16.mxu0 %v1546
          %1880 = vmatpush1.bf16.msra.mxu0 %v1545
          %1881 = vmatprep.subr.bf16.mxu0 %v1550
          %1882 = vmatpush1.bf16.msra.mxu0 %v1549
          %1883 = vmatprep.subr.bf16.mxu0 %v1554
          %1884 = vmatpush1.bf16.msra.mxu0 %v1553
          %1885 = vmatprep.mubr.bf16.mxu0 %v942
          %1886 = vmatmul.mubr.bf16.gmra.mrb[0].mxu0 %v941
          %v1887 = vpop.f32.mrb[0].mxu0
          %v1888 = vadd.f32 %v1098, %v1887
          %v1889 = vpop.f32.mrb[0].mxu0
          %v1890 = vadd.f32 %v1102, %v1889
          %v1891 = vpop.f32.mrb[0].mxu0
          %v1892 = vadd.f32 %v1098, %v1891
          %v1893 = vpop.f32.mrb[0].mxu0
          %v1894 = vadd.f32 %v1102, %v1893
          %1895 = vmatprep.mubr.bf16.mxu0 %v946
          %1896 = vmatmul.mubr.bf16.gmra.mrb[0].mxu0 %v945
          %v1897 = vpop.f32.mrb[0].mxu0
          %v1898 = vadd.f32 %v1098, %v1897
          %v1899 = vpop.f32.mrb[0].mxu0
          %v1900 = vadd.f32 %v1102, %v1899
          %v1901 = vpop.f32.mrb[0].mxu0
          %v1902 = vadd.f32 %v1098, %v1901
          %v1903 = vpop.f32.mrb[0].mxu0
          %v1904 = vadd.f32 %v1102, %v1903
          %1905 = vdwg.mxu0
          %1906 = vmatprep.subr.bf16.mxu0 %v1558
          %1907 = vmatpush1.bf16.msra.mxu0 %v1557
          %1908 = vmatprep.subr.bf16.mxu0 %v1562
          %1909 = vmatpush1.bf16.msra.mxu0 %v1561
          %1910 = vmatprep.subr.bf16.mxu0 %v1566
          %1911 = vmatpush1.bf16.msra.mxu0 %v1565
          %1912 = vmatprep.subr.bf16.mxu0 %v1570
          %1913 = vmatpush1.bf16.msra.mxu0 %v1569
          %1914 = vmatprep.subr.bf16.mxu0 %v1574
          %1915 = vmatpush1.bf16.msra.mxu0 %v1573
          %1916 = vmatprep.subr.bf16.mxu0 %v1578
          %1917 = vmatpush1.bf16.msra.mxu0 %v1577
          %1918 = vmatprep.subr.bf16.mxu0 %v1582
          %1919 = vmatpush1.bf16.msra.mxu0 %v1581
          %1920 = vmatprep.subr.bf16.mxu0 %v1586
          %1921 = vmatpush1.bf16.msra.mxu0 %v1585
          %1922 = vmatprep.subr.bf16.mxu0 %v1590
          %1923 = vmatpush1.bf16.msra.mxu0 %v1589
          %1924 = vmatprep.subr.bf16.mxu0 %v1594
          %1925 = vmatpush1.bf16.msra.mxu0 %v1593
          %1926 = vmatprep.subr.bf16.mxu0 %v1598
          %1927 = vmatpush1.bf16.msra.mxu0 %v1597
          %1928 = vmatprep.subr.bf16.mxu0 %v1602
          %1929 = vmatpush1.bf16.msra.mxu0 %v1601
          %1930 = vmatprep.subr.bf16.mxu0 %v1606
          %1931 = vmatpush1.bf16.msra.mxu0 %v1605
          %1932 = vmatprep.subr.bf16.mxu0 %v1610
          %1933 = vmatpush1.bf16.msra.mxu0 %v1609
          %1934 = vmatprep.subr.bf16.mxu0 %v1614
          %1935 = vmatpush1.bf16.msra.mxu0 %v1613
          %1936 = vmatprep.subr.bf16.mxu0 %v1618
          %1937 = vmatpush1.bf16.msra.mxu0 %v1617
          %1938 = vmatprep.mubr.bf16.mxu0 %v944
          %1939 = vmatmul.mubr.bf16.gmra.mrb[0].mxu0 %v943
          %v1940 = vpop.f32.mrb[0].mxu0
          %v1941 = vadd.f32 %v1888, %v1940
          %v1942 = vpop.f32.mrb[0].mxu0
          %v1943 = vadd.f32 %v1890, %v1942
          %v1944 = vpop.f32.mrb[0].mxu0
          %v1945 = vadd.f32 %v1892, %v1944
          %v1946 = vpop.f32.mrb[0].mxu0
          %v1947 = vadd.f32 %v1894, %v1946
          %1948 = vmatprep.mubr.bf16.mxu0 %v948
          %1949 = vmatmul.mubr.bf16.gmra.mrb[0].mxu0 %v947
          %v1950 = vpop.f32.mrb[0].mxu0
          %v1951 = vadd.f32 %v1898, %v1950
          %v1952 = vpop.f32.mrb[0].mxu0
          %v1953 = vadd.f32 %v1900, %v1952
          %v1954 = vpop.f32.mrb[0].mxu0
          %v1955 = vadd.f32 %v1902, %v1954
          %v1956 = vpop.f32.mrb[0].mxu0
          %v1957 = vadd.f32 %v1904, %v1956
          %1958 = vdwg.mxu0
          %1959 = vst [vmem:[#allocation2] sm:$0xff] %v1835
          %1960 = vst [vmem:[#allocation2 + $0x8] sm:$0xff] %v1837
          %1961 = vst [vmem:[#allocation2 + $0x10] sm:$0xff] %v1941
          %1962 = vst [vmem:[#allocation2 + $0x18] sm:$0xff] %v1943
          %1963 = vst [vmem:[#allocation2 + $0x20] sm:$0xff] %v1839
          %1964 = vst [vmem:[#allocation2 + $0x28] sm:$0xff] %v1841
          %1965 = vst [vmem:[#allocation2 + $0x30] sm:$0xff] %v1945
          %1966 = vst [vmem:[#allocation2 + $0x38] sm:$0xff] %v1947
          %1967 = vst [vmem:[#allocation2 + $0x40] sm:$0xff] %v1845
          %1968 = vst [vmem:[#allocation2 + $0x48] sm:$0xff] %v1847
          %1969 = vst [vmem:[#allocation2 + $0x50] sm:$0xff] %v1951
          %1970 = vst [vmem:[#allocation2 + $0x58] sm:$0xff] %v1953
          %1971 = vst [vmem:[#allocation2 + $0x60] sm:$0xff] %v1849
          %1972 = vst [vmem:[#allocation2 + $0x68] sm:$0xff] %v1851
          %1973 = vst [vmem:[#allocation2 + $0x70] sm:$0xff] %v1955
          %1974 = vst [vmem:[#allocation2 + $0x78] sm:$0xff] %v1957
        $region124: #{transformer_encoder.1} parent=71 // pred_fallthru
          _
        %p1975 = scmp.eq.s32.totalorder %s33, 1
        // Predicated region
        $region125: #{transformer_encoder.1} parent=71 // pred_check
          %p1976 = pneg %p1975
        $region126: #{transformer_encoder.1} parent=71 // pred_check_branch
          %1978 = sbr.rel (%p1976) target = $region128
        $region127: #{transformer_encoder.1} parent=71 // pred_region
          %v1979 = vld [vmem:[#allocation4] sm:$0xff]
          %v1980 = vld [vmem:[#allocation4 + $0x8] sm:$0xff]
          %v1981 = vld [vmem:[#allocation4 + $0x10] sm:$0xff]
          %v1982 = vld [vmem:[#allocation4 + $0x18] sm:$0xff]
          %v1983 = vld [vmem:[#allocation4 + $0x20] sm:$0xff]
          %v1984 = vld [vmem:[#allocation4 + $0x28] sm:$0xff]
          %v1985 = vld [vmem:[#allocation4 + $0x30] sm:$0xff]
          %v1986 = vld [vmem:[#allocation4 + $0x38] sm:$0xff]
          %v1987 = vld [vmem:[%s616] sm:$0xff]
          %v1988 = vld [vmem:[%s616 + $0x8] sm:$0xff]
          %v1989 = vld [vmem:[%s616 + $0x10] sm:$0xff]
          %v1990 = vld [vmem:[%s616 + $0x18] sm:$0xff]
          %v1991 = vld [vmem:[%s616 + $0x20] sm:$0xff]
          %v1992 = vld [vmem:[%s616 + $0x28] sm:$0xff]
          %v1993 = vld [vmem:[%s616 + $0x30] sm:$0xff]
          %v1994 = vld [vmem:[%s616 + $0x38] sm:$0xff]
          %v1995 = vld [vmem:[%s616 + $0x40] sm:$0xff]
          %v1996 = vld [vmem:[%s616 + $0x48] sm:$0xff]
          %v1997 = vld [vmem:[%s616 + $0x50] sm:$0xff]
          %v1998 = vld [vmem:[%s616 + $0x58] sm:$0xff]
          %v1999 = vld [vmem:[%s616 + $0x60] sm:$0xff]
          %v2000 = vld [vmem:[%s616 + $0x68] sm:$0xff]
          %v2001 = vld [vmem:[%s616 + $0x70] sm:$0xff]
          %v2002 = vld [vmem:[%s616 + $0x78] sm:$0xff]
          %v2003 = vld [vmem:[%s616 + $0x80] sm:$0xff]
          %v2004 = vld [vmem:[%s616 + $0x88] sm:$0xff]
          %v2005 = vld [vmem:[%s616 + $0x90] sm:$0xff]
          %v2006 = vld [vmem:[%s616 + $0x98] sm:$0xff]
          %v2007 = vld [vmem:[%s616 + $0xa0] sm:$0xff]
          %v2008 = vld [vmem:[%s616 + $0xa8] sm:$0xff]
          %v2009 = vld [vmem:[%s616 + $0xb0] sm:$0xff]
          %v2010 = vld [vmem:[%s616 + $0xb8] sm:$0xff]
          %v2011 = vld [vmem:[%s616 + $0xc0] sm:$0xff]
          %v2012 = vld [vmem:[%s616 + $0xc8] sm:$0xff]
          %v2013 = vld [vmem:[%s616 + $0xd0] sm:$0xff]
          %v2014 = vld [vmem:[%s616 + $0xd8] sm:$0xff]
          %v2015 = vld [vmem:[%s616 + $0xe0] sm:$0xff]
          %v2016 = vld [vmem:[%s616 + $0xe8] sm:$0xff]
          %v2017 = vld [vmem:[%s616 + $0xf0] sm:$0xff]
          %v2018 = vld [vmem:[%s616 + $0xf8] sm:$0xff]
          %v2019 = vld [vmem:[%s616 + $0x100] sm:$0xff]
          %v2020 = vld [vmem:[%s616 + $0x108] sm:$0xff]
          %v2021 = vld [vmem:[%s616 + $0x110] sm:$0xff]
          %v2022 = vld [vmem:[%s616 + $0x118] sm:$0xff]
          %v2023 = vld [vmem:[%s616 + $0x120] sm:$0xff]
          %v2024 = vld [vmem:[%s616 + $0x128] sm:$0xff]
          %v2025 = vld [vmem:[%s616 + $0x130] sm:$0xff]
          %v2026 = vld [vmem:[%s616 + $0x138] sm:$0xff]
          %v2027 = vld [vmem:[%s616 + $0x140] sm:$0xff]
          %v2028 = vld [vmem:[%s616 + $0x148] sm:$0xff]
          %v2029 = vld [vmem:[%s616 + $0x150] sm:$0xff]
          %v2030 = vld [vmem:[%s616 + $0x158] sm:$0xff]
          %v2031 = vld [vmem:[%s616 + $0x160] sm:$0xff]
          %v2032 = vld [vmem:[%s616 + $0x168] sm:$0xff]
          %v2033 = vld [vmem:[%s616 + $0x170] sm:$0xff]
          %v2034 = vld [vmem:[%s616 + $0x178] sm:$0xff]
          %v2035 = vld [vmem:[%s616 + $0x180] sm:$0xff]
          %v2036 = vld [vmem:[%s616 + $0x188] sm:$0xff]
          %v2037 = vld [vmem:[%s616 + $0x190] sm:$0xff]
          %v2038 = vld [vmem:[%s616 + $0x198] sm:$0xff]
          %v2039 = vld [vmem:[%s616 + $0x1a0] sm:$0xff]
          %v2040 = vld [vmem:[%s616 + $0x1a8] sm:$0xff]
          %v2041 = vld [vmem:[%s616 + $0x1b0] sm:$0xff]
          %v2042 = vld [vmem:[%s616 + $0x1b8] sm:$0xff]
          %v2043 = vld [vmem:[%s616 + $0x1c0] sm:$0xff]
          %v2044 = vld [vmem:[%s616 + $0x1c8] sm:$0xff]
          %v2045 = vld [vmem:[%s616 + $0x1d0] sm:$0xff]
          %v2046 = vld [vmem:[%s616 + $0x1d8] sm:$0xff]
          %v2047 = vld [vmem:[%s616 + $0x1e0] sm:$0xff]
          %v2048 = vld [vmem:[%s616 + $0x1e8] sm:$0xff]
          %v2049 = vld [vmem:[%s616 + $0x1f0] sm:$0xff]
          %v2050 = vld [vmem:[%s616 + $0x1f8] sm:$0xff]
          %v2051 = vld [vmem:[%s616 + $0x200] sm:$0xff]
          %v2052 = vld [vmem:[%s616 + $0x208] sm:$0xff]
          %v2053 = vld [vmem:[%s616 + $0x210] sm:$0xff]
          %v2054 = vld [vmem:[%s616 + $0x218] sm:$0xff]
          %v2055 = vld [vmem:[%s616 + $0x220] sm:$0xff]
          %v2056 = vld [vmem:[%s616 + $0x228] sm:$0xff]
          %v2057 = vld [vmem:[%s616 + $0x230] sm:$0xff]
          %v2058 = vld [vmem:[%s616 + $0x238] sm:$0xff]
          %v2059 = vld [vmem:[%s616 + $0x240] sm:$0xff]
          %v2060 = vld [vmem:[%s616 + $0x248] sm:$0xff]
          %v2061 = vld [vmem:[%s616 + $0x250] sm:$0xff]
          %v2062 = vld [vmem:[%s616 + $0x258] sm:$0xff]
          %v2063 = vld [vmem:[%s616 + $0x260] sm:$0xff]
          %v2064 = vld [vmem:[%s616 + $0x268] sm:$0xff]
          %v2065 = vld [vmem:[%s616 + $0x270] sm:$0xff]
          %v2066 = vld [vmem:[%s616 + $0x278] sm:$0xff]
          %v2067 = vld [vmem:[%s616 + $0x280] sm:$0xff]
          %v2068 = vld [vmem:[%s616 + $0x288] sm:$0xff]
          %v2069 = vld [vmem:[%s616 + $0x290] sm:$0xff]
          %v2070 = vld [vmem:[%s616 + $0x298] sm:$0xff]
          %v2071 = vld [vmem:[%s616 + $0x2a0] sm:$0xff]
          %v2072 = vld [vmem:[%s616 + $0x2a8] sm:$0xff]
          %v2073 = vld [vmem:[%s616 + $0x2b0] sm:$0xff]
          %v2074 = vld [vmem:[%s616 + $0x2b8] sm:$0xff]
          %v2075 = vld [vmem:[%s616 + $0x2c0] sm:$0xff]
          %v2076 = vld [vmem:[%s616 + $0x2c8] sm:$0xff]
          %v2077 = vld [vmem:[%s616 + $0x2d0] sm:$0xff]
          %v2078 = vld [vmem:[%s616 + $0x2d8] sm:$0xff]
          %v2079 = vld [vmem:[%s616 + $0x2e0] sm:$0xff]
          %v2080 = vld [vmem:[%s616 + $0x2e8] sm:$0xff]
          %v2081 = vld [vmem:[%s616 + $0x2f0] sm:$0xff]
          %v2082 = vld [vmem:[%s616 + $0x2f8] sm:$0xff]
          %v2083 = vld [vmem:[%s616 + $0x300] sm:$0xff]
          %v2084 = vld [vmem:[%s616 + $0x308] sm:$0xff]
          %v2085 = vld [vmem:[%s616 + $0x310] sm:$0xff]
          %v2086 = vld [vmem:[%s616 + $0x318] sm:$0xff]
          %v2087 = vld [vmem:[%s616 + $0x320] sm:$0xff]
          %v2088 = vld [vmem:[%s616 + $0x328] sm:$0xff]
          %v2089 = vld [vmem:[%s616 + $0x330] sm:$0xff]
          %v2090 = vld [vmem:[%s616 + $0x338] sm:$0xff]
          %v2091 = vld [vmem:[%s616 + $0x340] sm:$0xff]
          %v2092 = vld [vmem:[%s616 + $0x348] sm:$0xff]
          %v2093 = vld [vmem:[%s616 + $0x350] sm:$0xff]
          %v2094 = vld [vmem:[%s616 + $0x358] sm:$0xff]
          %v2095 = vld [vmem:[%s616 + $0x360] sm:$0xff]
          %v2096 = vld [vmem:[%s616 + $0x368] sm:$0xff]
          %v2097 = vld [vmem:[%s616 + $0x370] sm:$0xff]
          %v2098 = vld [vmem:[%s616 + $0x378] sm:$0xff]
          %v2099 = vld [vmem:[%s616 + $0x380] sm:$0xff]
          %v2100 = vld [vmem:[%s616 + $0x388] sm:$0xff]
          %v2101 = vld [vmem:[%s616 + $0x390] sm:$0xff]
          %v2102 = vld [vmem:[%s616 + $0x398] sm:$0xff]
          %v2103 = vld [vmem:[%s616 + $0x3a0] sm:$0xff]
          %v2104 = vld [vmem:[%s616 + $0x3a8] sm:$0xff]
          %v2105 = vld [vmem:[%s616 + $0x3b0] sm:$0xff]
          %v2106 = vld [vmem:[%s616 + $0x3b8] sm:$0xff]
          %v2107 = vld [vmem:[%s616 + $0x3c0] sm:$0xff]
          %v2108 = vld [vmem:[%s616 + $0x3c8] sm:$0xff]
          %v2109 = vld [vmem:[%s616 + $0x3d0] sm:$0xff]
          %v2110 = vld [vmem:[%s616 + $0x3d8] sm:$0xff]
          %v2111 = vld [vmem:[%s616 + $0x3e0] sm:$0xff]
          %v2112 = vld [vmem:[%s616 + $0x3e8] sm:$0xff]
          %v2113 = vld [vmem:[%s616 + $0x3f0] sm:$0xff]
          %v2114 = vld [vmem:[%s616 + $0x3f8] sm:$0xff]
          %v2115 = vld [vmem:[%s625] sm:$0xf]
          %v2117 = vlaneseq
          %v2118 = vshrl.u32 %v2117, 7
          %v2119 = vsub.s32 0, %v2118
          %v2120 = vrot.slane %v2115, %v2119
          %v2121 = vlaneseq
          %v2122 = vshrl.u32 %v2121, 7
          %v2123 = vsub.s32 1, %v2122
          %v2124 = vrot.slane %v2115, %v2123
          %v2125 = vlaneseq
          %v2126 = vshrl.u32 %v2125, 7
          %v2127 = vsub.s32 2, %v2126
          %v2128 = vrot.slane %v2115, %v2127
          %v2129 = vlaneseq
          %v2130 = vshrl.u32 %v2129, 7
          %v2131 = vsub.s32 3, %v2130
          %v2132 = vrot.slane %v2115, %v2131
          %v2265 = vunpack.c.l.b16 %v1987
          %v2266 = vunpack.c.h.b16 %v1987
          %v2267 = vunpack.c.l.b16 %v1988
          %v2268 = vunpack.c.h.b16 %v1988
          %v2269 = vunpack.c.l.b16 %v1989
          %v2270 = vunpack.c.h.b16 %v1989
          %v2271 = vunpack.c.l.b16 %v1990
          %v2272 = vunpack.c.h.b16 %v1990
          %v2273 = vunpack.c.l.b16 %v1991
          %v2274 = vunpack.c.h.b16 %v1991
          %v2275 = vunpack.c.l.b16 %v1992
          %v2276 = vunpack.c.h.b16 %v1992
          %v2277 = vunpack.c.l.b16 %v1993
          %v2278 = vunpack.c.h.b16 %v1993
          %v2279 = vunpack.c.l.b16 %v1994
          %v2280 = vunpack.c.h.b16 %v1994
          %v2281 = vunpack.c.l.b16 %v1995
          %v2282 = vunpack.c.h.b16 %v1995
          %v2283 = vunpack.c.l.b16 %v1996
          %v2284 = vunpack.c.h.b16 %v1996
          %v2285 = vunpack.c.l.b16 %v1997
          %v2286 = vunpack.c.h.b16 %v1997
          %v2287 = vunpack.c.l.b16 %v1998
          %v2288 = vunpack.c.h.b16 %v1998
          %v2289 = vunpack.c.l.b16 %v1999
          %v2290 = vunpack.c.h.b16 %v1999
          %v2291 = vunpack.c.l.b16 %v2000
          %v2292 = vunpack.c.h.b16 %v2000
          %v2293 = vunpack.c.l.b16 %v2001
          %v2294 = vunpack.c.h.b16 %v2001
          %v2295 = vunpack.c.l.b16 %v2002
          %v2296 = vunpack.c.h.b16 %v2002
          %v2297 = vunpack.c.l.b16 %v2003
          %v2298 = vunpack.c.h.b16 %v2003
          %v2299 = vunpack.c.l.b16 %v2004
          %v2300 = vunpack.c.h.b16 %v2004
          %v2301 = vunpack.c.l.b16 %v2005
          %v2302 = vunpack.c.h.b16 %v2005
          %v2303 = vunpack.c.l.b16 %v2006
          %v2304 = vunpack.c.h.b16 %v2006
          %v2305 = vunpack.c.l.b16 %v2007
          %v2306 = vunpack.c.h.b16 %v2007
          %v2307 = vunpack.c.l.b16 %v2008
          %v2308 = vunpack.c.h.b16 %v2008
          %v2309 = vunpack.c.l.b16 %v2009
          %v2310 = vunpack.c.h.b16 %v2009
          %v2311 = vunpack.c.l.b16 %v2010
          %v2312 = vunpack.c.h.b16 %v2010
          %v2313 = vunpack.c.l.b16 %v2011
          %v2314 = vunpack.c.h.b16 %v2011
          %v2315 = vunpack.c.l.b16 %v2012
          %v2316 = vunpack.c.h.b16 %v2012
          %v2317 = vunpack.c.l.b16 %v2013
          %v2318 = vunpack.c.h.b16 %v2013
          %v2319 = vunpack.c.l.b16 %v2014
          %v2320 = vunpack.c.h.b16 %v2014
          %v2321 = vunpack.c.l.b16 %v2015
          %v2322 = vunpack.c.h.b16 %v2015
          %v2323 = vunpack.c.l.b16 %v2016
          %v2324 = vunpack.c.h.b16 %v2016
          %v2325 = vunpack.c.l.b16 %v2017
          %v2326 = vunpack.c.h.b16 %v2017
          %v2327 = vunpack.c.l.b16 %v2018
          %v2328 = vunpack.c.h.b16 %v2018
          %v2329 = vunpack.c.l.b16 %v2019
          %v2330 = vunpack.c.h.b16 %v2019
          %v2331 = vunpack.c.l.b16 %v2020
          %v2332 = vunpack.c.h.b16 %v2020
          %v2333 = vunpack.c.l.b16 %v2021
          %v2334 = vunpack.c.h.b16 %v2021
          %v2335 = vunpack.c.l.b16 %v2022
          %v2336 = vunpack.c.h.b16 %v2022
          %v2337 = vunpack.c.l.b16 %v2023
          %v2338 = vunpack.c.h.b16 %v2023
          %v2339 = vunpack.c.l.b16 %v2024
          %v2340 = vunpack.c.h.b16 %v2024
          %v2341 = vunpack.c.l.b16 %v2025
          %v2342 = vunpack.c.h.b16 %v2025
          %v2343 = vunpack.c.l.b16 %v2026
          %v2344 = vunpack.c.h.b16 %v2026
          %v2345 = vunpack.c.l.b16 %v2027
          %v2346 = vunpack.c.h.b16 %v2027
          %v2347 = vunpack.c.l.b16 %v2028
          %v2348 = vunpack.c.h.b16 %v2028
          %v2349 = vunpack.c.l.b16 %v2029
          %v2350 = vunpack.c.h.b16 %v2029
          %v2351 = vunpack.c.l.b16 %v2030
          %v2352 = vunpack.c.h.b16 %v2030
          %v2353 = vunpack.c.l.b16 %v2031
          %v2354 = vunpack.c.h.b16 %v2031
          %v2355 = vunpack.c.l.b16 %v2032
          %v2356 = vunpack.c.h.b16 %v2032
          %v2357 = vunpack.c.l.b16 %v2033
          %v2358 = vunpack.c.h.b16 %v2033
          %v2359 = vunpack.c.l.b16 %v2034
          %v2360 = vunpack.c.h.b16 %v2034
          %v2361 = vunpack.c.l.b16 %v2035
          %v2362 = vunpack.c.h.b16 %v2035
          %v2363 = vunpack.c.l.b16 %v2036
          %v2364 = vunpack.c.h.b16 %v2036
          %v2365 = vunpack.c.l.b16 %v2037
          %v2366 = vunpack.c.h.b16 %v2037
          %v2367 = vunpack.c.l.b16 %v2038
          %v2368 = vunpack.c.h.b16 %v2038
          %v2369 = vunpack.c.l.b16 %v2039
          %v2370 = vunpack.c.h.b16 %v2039
          %v2371 = vunpack.c.l.b16 %v2040
          %v2372 = vunpack.c.h.b16 %v2040
          %v2373 = vunpack.c.l.b16 %v2041
          %v2374 = vunpack.c.h.b16 %v2041
          %v2375 = vunpack.c.l.b16 %v2042
          %v2376 = vunpack.c.h.b16 %v2042
          %v2377 = vunpack.c.l.b16 %v2043
          %v2378 = vunpack.c.h.b16 %v2043
          %v2379 = vunpack.c.l.b16 %v2044
          %v2380 = vunpack.c.h.b16 %v2044
          %v2381 = vunpack.c.l.b16 %v2045
          %v2382 = vunpack.c.h.b16 %v2045
          %v2383 = vunpack.c.l.b16 %v2046
          %v2384 = vunpack.c.h.b16 %v2046
          %v2385 = vunpack.c.l.b16 %v2047
          %v2386 = vunpack.c.h.b16 %v2047
          %v2387 = vunpack.c.l.b16 %v2048
          %v2388 = vunpack.c.h.b16 %v2048
          %v2389 = vunpack.c.l.b16 %v2049
          %v2390 = vunpack.c.h.b16 %v2049
          %v2391 = vunpack.c.l.b16 %v2050
          %v2392 = vunpack.c.h.b16 %v2050
          %v2393 = vunpack.c.l.b16 %v2051
          %v2394 = vunpack.c.h.b16 %v2051
          %v2395 = vunpack.c.l.b16 %v2052
          %v2396 = vunpack.c.h.b16 %v2052
          %v2397 = vunpack.c.l.b16 %v2053
          %v2398 = vunpack.c.h.b16 %v2053
          %v2399 = vunpack.c.l.b16 %v2054
          %v2400 = vunpack.c.h.b16 %v2054
          %v2401 = vunpack.c.l.b16 %v2055
          %v2402 = vunpack.c.h.b16 %v2055
          %v2403 = vunpack.c.l.b16 %v2056
          %v2404 = vunpack.c.h.b16 %v2056
          %v2405 = vunpack.c.l.b16 %v2057
          %v2406 = vunpack.c.h.b16 %v2057
          %v2407 = vunpack.c.l.b16 %v2058
          %v2408 = vunpack.c.h.b16 %v2058
          %v2409 = vunpack.c.l.b16 %v2059
          %v2410 = vunpack.c.h.b16 %v2059
          %v2411 = vunpack.c.l.b16 %v2060
          %v2412 = vunpack.c.h.b16 %v2060
          %v2413 = vunpack.c.l.b16 %v2061
          %v2414 = vunpack.c.h.b16 %v2061
          %v2415 = vunpack.c.l.b16 %v2062
          %v2416 = vunpack.c.h.b16 %v2062
          %v2417 = vunpack.c.l.b16 %v2063
          %v2418 = vunpack.c.h.b16 %v2063
          %v2419 = vunpack.c.l.b16 %v2064
          %v2420 = vunpack.c.h.b16 %v2064
          %v2421 = vunpack.c.l.b16 %v2065
          %v2422 = vunpack.c.h.b16 %v2065
          %v2423 = vunpack.c.l.b16 %v2066
          %v2424 = vunpack.c.h.b16 %v2066
          %v2425 = vunpack.c.l.b16 %v2067
          %v2426 = vunpack.c.h.b16 %v2067
          %v2427 = vunpack.c.l.b16 %v2068
          %v2428 = vunpack.c.h.b16 %v2068
          %v2429 = vunpack.c.l.b16 %v2069
          %v2430 = vunpack.c.h.b16 %v2069
          %v2431 = vunpack.c.l.b16 %v2070
          %v2432 = vunpack.c.h.b16 %v2070
          %v2433 = vunpack.c.l.b16 %v2071
          %v2434 = vunpack.c.h.b16 %v2071
          %v2435 = vunpack.c.l.b16 %v2072
          %v2436 = vunpack.c.h.b16 %v2072
          %v2437 = vunpack.c.l.b16 %v2073
          %v2438 = vunpack.c.h.b16 %v2073
          %v2439 = vunpack.c.l.b16 %v2074
          %v2440 = vunpack.c.h.b16 %v2074
          %v2441 = vunpack.c.l.b16 %v2075
          %v2442 = vunpack.c.h.b16 %v2075
          %v2443 = vunpack.c.l.b16 %v2076
          %v2444 = vunpack.c.h.b16 %v2076
          %v2445 = vunpack.c.l.b16 %v2077
          %v2446 = vunpack.c.h.b16 %v2077
          %v2447 = vunpack.c.l.b16 %v2078
          %v2448 = vunpack.c.h.b16 %v2078
          %v2449 = vunpack.c.l.b16 %v2079
          %v2450 = vunpack.c.h.b16 %v2079
          %v2451 = vunpack.c.l.b16 %v2080
          %v2452 = vunpack.c.h.b16 %v2080
          %v2453 = vunpack.c.l.b16 %v2081
          %v2454 = vunpack.c.h.b16 %v2081
          %v2455 = vunpack.c.l.b16 %v2082
          %v2456 = vunpack.c.h.b16 %v2082
          %v2457 = vunpack.c.l.b16 %v2083
          %v2458 = vunpack.c.h.b16 %v2083
          %v2459 = vunpack.c.l.b16 %v2084
          %v2460 = vunpack.c.h.b16 %v2084
          %v2461 = vunpack.c.l.b16 %v2085
          %v2462 = vunpack.c.h.b16 %v2085
          %v2463 = vunpack.c.l.b16 %v2086
          %v2464 = vunpack.c.h.b16 %v2086
          %v2465 = vunpack.c.l.b16 %v2087
          %v2466 = vunpack.c.h.b16 %v2087
          %v2467 = vunpack.c.l.b16 %v2088
          %v2468 = vunpack.c.h.b16 %v2088
          %v2469 = vunpack.c.l.b16 %v2089
          %v2470 = vunpack.c.h.b16 %v2089
          %v2471 = vunpack.c.l.b16 %v2090
          %v2472 = vunpack.c.h.b16 %v2090
          %v2473 = vunpack.c.l.b16 %v2091
          %v2474 = vunpack.c.h.b16 %v2091
          %v2475 = vunpack.c.l.b16 %v2092
          %v2476 = vunpack.c.h.b16 %v2092
          %v2477 = vunpack.c.l.b16 %v2093
          %v2478 = vunpack.c.h.b16 %v2093
          %v2479 = vunpack.c.l.b16 %v2094
          %v2480 = vunpack.c.h.b16 %v2094
          %v2481 = vunpack.c.l.b16 %v2095
          %v2482 = vunpack.c.h.b16 %v2095
          %v2483 = vunpack.c.l.b16 %v2096
          %v2484 = vunpack.c.h.b16 %v2096
          %v2485 = vunpack.c.l.b16 %v2097
          %v2486 = vunpack.c.h.b16 %v2097
          %v2487 = vunpack.c.l.b16 %v2098
          %v2488 = vunpack.c.h.b16 %v2098
          %v2489 = vunpack.c.l.b16 %v2099
          %v2490 = vunpack.c.h.b16 %v2099
          %v2491 = vunpack.c.l.b16 %v2100
          %v2492 = vunpack.c.h.b16 %v2100
          %v2493 = vunpack.c.l.b16 %v2101
          %v2494 = vunpack.c.h.b16 %v2101
          %v2495 = vunpack.c.l.b16 %v2102
          %v2496 = vunpack.c.h.b16 %v2102
          %v2497 = vunpack.c.l.b16 %v2103
          %v2498 = vunpack.c.h.b16 %v2103
          %v2499 = vunpack.c.l.b16 %v2104
          %v2500 = vunpack.c.h.b16 %v2104
          %v2501 = vunpack.c.l.b16 %v2105
          %v2502 = vunpack.c.h.b16 %v2105
          %v2503 = vunpack.c.l.b16 %v2106
          %v2504 = vunpack.c.h.b16 %v2106
          %v2505 = vunpack.c.l.b16 %v2107
          %v2506 = vunpack.c.h.b16 %v2107
          %v2507 = vunpack.c.l.b16 %v2108
          %v2508 = vunpack.c.h.b16 %v2108
          %v2509 = vunpack.c.l.b16 %v2109
          %v2510 = vunpack.c.h.b16 %v2109
          %v2511 = vunpack.c.l.b16 %v2110
          %v2512 = vunpack.c.h.b16 %v2110
          %v2513 = vunpack.c.l.b16 %v2111
          %v2514 = vunpack.c.h.b16 %v2111
          %v2515 = vunpack.c.l.b16 %v2112
          %v2516 = vunpack.c.h.b16 %v2112
          %v2517 = vunpack.c.l.b16 %v2113
          %v2518 = vunpack.c.h.b16 %v2113
          %v2519 = vunpack.c.l.b16 %v2114
          %v2520 = vunpack.c.h.b16 %v2114
          %v2521 = vpack.c.b16 %v2269, %v2265
          %v2522 = vpack.c.b16 %v2270, %v2266
          %v2523 = vpack.c.b16 %v2271, %v2267
          %v2524 = vpack.c.b16 %v2272, %v2268
          %v2525 = vpack.c.b16 %v2277, %v2273
          %v2526 = vpack.c.b16 %v2278, %v2274
          %v2527 = vpack.c.b16 %v2279, %v2275
          %v2528 = vpack.c.b16 %v2280, %v2276
          %v2529 = vpack.c.b16 %v2285, %v2281
          %v2530 = vpack.c.b16 %v2286, %v2282
          %v2531 = vpack.c.b16 %v2287, %v2283
          %v2532 = vpack.c.b16 %v2288, %v2284
          %v2533 = vpack.c.b16 %v2293, %v2289
          %v2534 = vpack.c.b16 %v2294, %v2290
          %v2535 = vpack.c.b16 %v2295, %v2291
          %v2536 = vpack.c.b16 %v2296, %v2292
          %v2537 = vpack.c.b16 %v2301, %v2297
          %v2538 = vpack.c.b16 %v2302, %v2298
          %v2539 = vpack.c.b16 %v2303, %v2299
          %v2540 = vpack.c.b16 %v2304, %v2300
          %v2541 = vpack.c.b16 %v2309, %v2305
          %v2542 = vpack.c.b16 %v2310, %v2306
          %v2543 = vpack.c.b16 %v2311, %v2307
          %v2544 = vpack.c.b16 %v2312, %v2308
          %v2545 = vpack.c.b16 %v2317, %v2313
          %v2546 = vpack.c.b16 %v2318, %v2314
          %v2547 = vpack.c.b16 %v2319, %v2315
          %v2548 = vpack.c.b16 %v2320, %v2316
          %v2549 = vpack.c.b16 %v2325, %v2321
          %v2550 = vpack.c.b16 %v2326, %v2322
          %v2551 = vpack.c.b16 %v2327, %v2323
          %v2552 = vpack.c.b16 %v2328, %v2324
          %v2553 = vpack.c.b16 %v2333, %v2329
          %v2554 = vpack.c.b16 %v2334, %v2330
          %v2555 = vpack.c.b16 %v2335, %v2331
          %v2556 = vpack.c.b16 %v2336, %v2332
          %v2557 = vpack.c.b16 %v2341, %v2337
          %v2558 = vpack.c.b16 %v2342, %v2338
          %v2559 = vpack.c.b16 %v2343, %v2339
          %v2560 = vpack.c.b16 %v2344, %v2340
          %v2561 = vpack.c.b16 %v2349, %v2345
          %v2562 = vpack.c.b16 %v2350, %v2346
          %v2563 = vpack.c.b16 %v2351, %v2347
          %v2564 = vpack.c.b16 %v2352, %v2348
          %v2565 = vpack.c.b16 %v2357, %v2353
          %v2566 = vpack.c.b16 %v2358, %v2354
          %v2567 = vpack.c.b16 %v2359, %v2355
          %v2568 = vpack.c.b16 %v2360, %v2356
          %v2569 = vpack.c.b16 %v2365, %v2361
          %v2570 = vpack.c.b16 %v2366, %v2362
          %v2571 = vpack.c.b16 %v2367, %v2363
          %v2572 = vpack.c.b16 %v2368, %v2364
          %v2573 = vpack.c.b16 %v2373, %v2369
          %v2574 = vpack.c.b16 %v2374, %v2370
          %v2575 = vpack.c.b16 %v2375, %v2371
          %v2576 = vpack.c.b16 %v2376, %v2372
          %v2577 = vpack.c.b16 %v2381, %v2377
          %v2578 = vpack.c.b16 %v2382, %v2378
          %v2579 = vpack.c.b16 %v2383, %v2379
          %v2580 = vpack.c.b16 %v2384, %v2380
          %v2581 = vpack.c.b16 %v2389, %v2385
          %v2582 = vpack.c.b16 %v2390, %v2386
          %v2583 = vpack.c.b16 %v2391, %v2387
          %v2584 = vpack.c.b16 %v2392, %v2388
          %v2585 = vpack.c.b16 %v2397, %v2393
          %v2586 = vpack.c.b16 %v2398, %v2394
          %v2587 = vpack.c.b16 %v2399, %v2395
          %v2588 = vpack.c.b16 %v2400, %v2396
          %v2589 = vpack.c.b16 %v2405, %v2401
          %v2590 = vpack.c.b16 %v2406, %v2402
          %v2591 = vpack.c.b16 %v2407, %v2403
          %v2592 = vpack.c.b16 %v2408, %v2404
          %v2593 = vpack.c.b16 %v2413, %v2409
          %v2594 = vpack.c.b16 %v2414, %v2410
          %v2595 = vpack.c.b16 %v2415, %v2411
          %v2596 = vpack.c.b16 %v2416, %v2412
          %v2597 = vpack.c.b16 %v2421, %v2417
          %v2598 = vpack.c.b16 %v2422, %v2418
          %v2599 = vpack.c.b16 %v2423, %v2419
          %v2600 = vpack.c.b16 %v2424, %v2420
          %v2601 = vpack.c.b16 %v2429, %v2425
          %v2602 = vpack.c.b16 %v2430, %v2426
          %v2603 = vpack.c.b16 %v2431, %v2427
          %v2604 = vpack.c.b16 %v2432, %v2428
          %v2605 = vpack.c.b16 %v2437, %v2433
          %v2606 = vpack.c.b16 %v2438, %v2434
          %v2607 = vpack.c.b16 %v2439, %v2435
          %v2608 = vpack.c.b16 %v2440, %v2436
          %v2609 = vpack.c.b16 %v2445, %v2441
          %v2610 = vpack.c.b16 %v2446, %v2442
          %v2611 = vpack.c.b16 %v2447, %v2443
          %v2612 = vpack.c.b16 %v2448, %v2444
          %v2613 = vpack.c.b16 %v2453, %v2449
          %v2614 = vpack.c.b16 %v2454, %v2450
          %v2615 = vpack.c.b16 %v2455, %v2451
          %v2616 = vpack.c.b16 %v2456, %v2452
          %v2617 = vpack.c.b16 %v2461, %v2457
          %v2618 = vpack.c.b16 %v2462, %v2458
          %v2619 = vpack.c.b16 %v2463, %v2459
          %v2620 = vpack.c.b16 %v2464, %v2460
          %v2621 = vpack.c.b16 %v2469, %v2465
          %v2622 = vpack.c.b16 %v2470, %v2466
          %v2623 = vpack.c.b16 %v2471, %v2467
          %v2624 = vpack.c.b16 %v2472, %v2468
          %v2625 = vpack.c.b16 %v2477, %v2473
          %v2626 = vpack.c.b16 %v2478, %v2474
          %v2627 = vpack.c.b16 %v2479, %v2475
          %v2628 = vpack.c.b16 %v2480, %v2476
          %v2629 = vpack.c.b16 %v2485, %v2481
          %v2630 = vpack.c.b16 %v2486, %v2482
          %v2631 = vpack.c.b16 %v2487, %v2483
          %v2632 = vpack.c.b16 %v2488, %v2484
          %v2633 = vpack.c.b16 %v2493, %v2489
          %v2634 = vpack.c.b16 %v2494, %v2490
          %v2635 = vpack.c.b16 %v2495, %v2491
          %v2636 = vpack.c.b16 %v2496, %v2492
          %v2637 = vpack.c.b16 %v2501, %v2497
          %v2638 = vpack.c.b16 %v2502, %v2498
          %v2639 = vpack.c.b16 %v2503, %v2499
          %v2640 = vpack.c.b16 %v2504, %v2500
          %v2641 = vpack.c.b16 %v2509, %v2505
          %v2642 = vpack.c.b16 %v2510, %v2506
          %v2643 = vpack.c.b16 %v2511, %v2507
          %v2644 = vpack.c.b16 %v2512, %v2508
          %v2645 = vpack.c.b16 %v2517, %v2513
          %v2646 = vpack.c.b16 %v2518, %v2514
          %v2647 = vpack.c.b16 %v2519, %v2515
          %v2648 = vpack.c.b16 %v2520, %v2516
          %2777 = vmatprep.subr.bf16.mxu0 %v2522
          %2778 = vmatpush1.bf16.msra.mxu0 %v2521
          %2779 = vmatprep.subr.bf16.mxu0 %v2526
          %2780 = vmatpush1.bf16.msra.mxu0 %v2525
          %2781 = vmatprep.subr.bf16.mxu0 %v2530
          %2782 = vmatpush1.bf16.msra.mxu0 %v2529
          %2783 = vmatprep.subr.bf16.mxu0 %v2534
          %2784 = vmatpush1.bf16.msra.mxu0 %v2533
          %2785 = vmatprep.subr.bf16.mxu0 %v2538
          %2786 = vmatpush1.bf16.msra.mxu0 %v2537
          %2787 = vmatprep.subr.bf16.mxu0 %v2542
          %2788 = vmatpush1.bf16.msra.mxu0 %v2541
          %2789 = vmatprep.subr.bf16.mxu0 %v2546
          %2790 = vmatpush1.bf16.msra.mxu0 %v2545
          %2791 = vmatprep.subr.bf16.mxu0 %v2550
          %2792 = vmatpush1.bf16.msra.mxu0 %v2549
          %2793 = vmatprep.subr.bf16.mxu0 %v2554
          %2794 = vmatpush1.bf16.msra.mxu0 %v2553
          %2795 = vmatprep.subr.bf16.mxu0 %v2558
          %2796 = vmatpush1.bf16.msra.mxu0 %v2557
          %2797 = vmatprep.subr.bf16.mxu0 %v2562
          %2798 = vmatpush1.bf16.msra.mxu0 %v2561
          %2799 = vmatprep.subr.bf16.mxu0 %v2566
          %2800 = vmatpush1.bf16.msra.mxu0 %v2565
          %2801 = vmatprep.subr.bf16.mxu0 %v2570
          %2802 = vmatpush1.bf16.msra.mxu0 %v2569
          %2803 = vmatprep.subr.bf16.mxu0 %v2574
          %2804 = vmatpush1.bf16.msra.mxu0 %v2573
          %2805 = vmatprep.subr.bf16.mxu0 %v2578
          %2806 = vmatpush1.bf16.msra.mxu0 %v2577
          %2807 = vmatprep.subr.bf16.mxu0 %v2582
          %2808 = vmatpush1.bf16.msra.mxu0 %v2581
          %2809 = vmatprep.mubr.bf16.mxu0 %v1980
          %2810 = vmatmul.mubr.bf16.gmra.mrb[0].mxu0 %v1979
          %v2811 = vpop.f32.mrb[0].mxu0
          %v2812 = vadd.f32 %v2120, %v2811
          %v2813 = vpop.f32.mrb[0].mxu0
          %v2814 = vadd.f32 %v2124, %v2813
          %v2815 = vpop.f32.mrb[0].mxu0
          %v2816 = vadd.f32 %v2120, %v2815
          %v2817 = vpop.f32.mrb[0].mxu0
          %v2818 = vadd.f32 %v2124, %v2817
          %2819 = vmatprep.mubr.bf16.mxu0 %v1984
          %2820 = vmatmul.mubr.bf16.gmra.mrb[0].mxu0 %v1983
          %v2821 = vpop.f32.mrb[0].mxu0
          %v2822 = vadd.f32 %v2120, %v2821
          %v2823 = vpop.f32.mrb[0].mxu0
          %v2824 = vadd.f32 %v2124, %v2823
          %v2825 = vpop.f32.mrb[0].mxu0
          %v2826 = vadd.f32 %v2120, %v2825
          %v2827 = vpop.f32.mrb[0].mxu0
          %v2828 = vadd.f32 %v2124, %v2827
          %2829 = vdwg.mxu0
          %2830 = vmatprep.subr.bf16.mxu0 %v2586
          %2831 = vmatpush1.bf16.msra.mxu0 %v2585
          %2832 = vmatprep.subr.bf16.mxu0 %v2590
          %2833 = vmatpush1.bf16.msra.mxu0 %v2589
          %2834 = vmatprep.subr.bf16.mxu0 %v2594
          %2835 = vmatpush1.bf16.msra.mxu0 %v2593
          %2836 = vmatprep.subr.bf16.mxu0 %v2598
          %2837 = vmatpush1.bf16.msra.mxu0 %v2597
          %2838 = vmatprep.subr.bf16.mxu0 %v2602
          %2839 = vmatpush1.bf16.msra.mxu0 %v2601
          %2840 = vmatprep.subr.bf16.mxu0 %v2606
          %2841 = vmatpush1.bf16.msra.mxu0 %v2605
          %2842 = vmatprep.subr.bf16.mxu0 %v2610
          %2843 = vmatpush1.bf16.msra.mxu0 %v2609
          %2844 = vmatprep.subr.bf16.mxu0 %v2614
          %2845 = vmatpush1.bf16.msra.mxu0 %v2613
          %2846 = vmatprep.subr.bf16.mxu0 %v2618
          %2847 = vmatpush1.bf16.msra.mxu0 %v2617
          %2848 = vmatprep.subr.bf16.mxu0 %v2622
          %2849 = vmatpush1.bf16.msra.mxu0 %v2621
          %2850 = vmatprep.subr.bf16.mxu0 %v2626
          %2851 = vmatpush1.bf16.msra.mxu0 %v2625
          %2852 = vmatprep.subr.bf16.mxu0 %v2630
          %2853 = vmatpush1.bf16.msra.mxu0 %v2629
          %2854 = vmatprep.subr.bf16.mxu0 %v2634
          %2855 = vmatpush1.bf16.msra.mxu0 %v2633
          %2856 = vmatprep.subr.bf16.mxu0 %v2638
          %2857 = vmatpush1.bf16.msra.mxu0 %v2637
          %2858 = vmatprep.subr.bf16.mxu0 %v2642
          %2859 = vmatpush1.bf16.msra.mxu0 %v2641
          %2860 = vmatprep.subr.bf16.mxu0 %v2646
          %2861 = vmatpush1.bf16.msra.mxu0 %v2645
          %2862 = vmatprep.mubr.bf16.mxu0 %v1982
          %2863 = vmatmul.mubr.bf16.gmra.mrb[0].mxu0 %v1981
          %v2864 = vpop.f32.mrb[0].mxu0
          %v2865 = vadd.f32 %v2812, %v2864
          %v2866 = vpop.f32.mrb[0].mxu0
          %v2867 = vadd.f32 %v2814, %v2866
          %v2868 = vpop.f32.mrb[0].mxu0
          %v2869 = vadd.f32 %v2816, %v2868
          %v2870 = vpop.f32.mrb[0].mxu0
          %v2871 = vadd.f32 %v2818, %v2870
          %2872 = vmatprep.mubr.bf16.mxu0 %v1986
          %2873 = vmatmul.mubr.bf16.gmra.mrb[0].mxu0 %v1985
          %v2874 = vpop.f32.mrb[0].mxu0
          %v2875 = vadd.f32 %v2822, %v2874
          %v2876 = vpop.f32.mrb[0].mxu0
          %v2877 = vadd.f32 %v2824, %v2876
          %v2878 = vpop.f32.mrb[0].mxu0
          %v2879 = vadd.f32 %v2826, %v2878
          %v2880 = vpop.f32.mrb[0].mxu0
          %v2881 = vadd.f32 %v2828, %v2880
          %2882 = vdwg.mxu0
          %2883 = vmatprep.subr.bf16.mxu0 %v2524
          %2884 = vmatpush1.bf16.msra.mxu0 %v2523
          %2885 = vmatprep.subr.bf16.mxu0 %v2528
          %2886 = vmatpush1.bf16.msra.mxu0 %v2527
          %2887 = vmatprep.subr.bf16.mxu0 %v2532
          %2888 = vmatpush1.bf16.msra.mxu0 %v2531
          %2889 = vmatprep.subr.bf16.mxu0 %v2536
          %2890 = vmatpush1.bf16.msra.mxu0 %v2535
          %2891 = vmatprep.subr.bf16.mxu0 %v2540
          %2892 = vmatpush1.bf16.msra.mxu0 %v2539
          %2893 = vmatprep.subr.bf16.mxu0 %v2544
          %2894 = vmatpush1.bf16.msra.mxu0 %v2543
          %2895 = vmatprep.subr.bf16.mxu0 %v2548
          %2896 = vmatpush1.bf16.msra.mxu0 %v2547
          %2897 = vmatprep.subr.bf16.mxu0 %v2552
          %2898 = vmatpush1.bf16.msra.mxu0 %v2551
          %2899 = vmatprep.subr.bf16.mxu0 %v2556
          %2900 = vmatpush1.bf16.msra.mxu0 %v2555
          %2901 = vmatprep.subr.bf16.mxu0 %v2560
          %2902 = vmatpush1.bf16.msra.mxu0 %v2559
          %2903 = vmatprep.subr.bf16.mxu0 %v2564
          %2904 = vmatpush1.bf16.msra.mxu0 %v2563
          %2905 = vmatprep.subr.bf16.mxu0 %v2568
          %2906 = vmatpush1.bf16.msra.mxu0 %v2567
          %2907 = vmatprep.subr.bf16.mxu0 %v2572
          %2908 = vmatpush1.bf16.msra.mxu0 %v2571
          %2909 = vmatprep.subr.bf16.mxu0 %v2576
          %2910 = vmatpush1.bf16.msra.mxu0 %v2575
          %2911 = vmatprep.subr.bf16.mxu0 %v2580
          %2912 = vmatpush1.bf16.msra.mxu0 %v2579
          %2913 = vmatprep.subr.bf16.mxu0 %v2584
          %2914 = vmatpush1.bf16.msra.mxu0 %v2583
          %2915 = vmatprep.mubr.bf16.mxu0 %v1980
          %2916 = vmatmul.mubr.bf16.gmra.mrb[0].mxu0 %v1979
          %v2917 = vpop.f32.mrb[0].mxu0
          %v2918 = vadd.f32 %v2128, %v2917
          %v2919 = vpop.f32.mrb[0].mxu0
          %v2920 = vadd.f32 %v2132, %v2919
          %v2921 = vpop.f32.mrb[0].mxu0
          %v2922 = vadd.f32 %v2128, %v2921
          %v2923 = vpop.f32.mrb[0].mxu0
          %v2924 = vadd.f32 %v2132, %v2923
          %2925 = vmatprep.mubr.bf16.mxu0 %v1984
          %2926 = vmatmul.mubr.bf16.gmra.mrb[0].mxu0 %v1983
          %v2927 = vpop.f32.mrb[0].mxu0
          %v2928 = vadd.f32 %v2128, %v2927
          %v2929 = vpop.f32.mrb[0].mxu0
          %v2930 = vadd.f32 %v2132, %v2929
          %v2931 = vpop.f32.mrb[0].mxu0
          %v2932 = vadd.f32 %v2128, %v2931
          %v2933 = vpop.f32.mrb[0].mxu0
          %v2934 = vadd.f32 %v2132, %v2933
          %2935 = vdwg.mxu0
          %2936 = vmatprep.subr.bf16.mxu0 %v2588
          %2937 = vmatpush1.bf16.msra.mxu0 %v2587
          %2938 = vmatprep.subr.bf16.mxu0 %v2592
          %2939 = vmatpush1.bf16.msra.mxu0 %v2591
          %2940 = vmatprep.subr.bf16.mxu0 %v2596
          %2941 = vmatpush1.bf16.msra.mxu0 %v2595
          %2942 = vmatprep.subr.bf16.mxu0 %v2600
          %2943 = vmatpush1.bf16.msra.mxu0 %v2599
          %2944 = vmatprep.subr.bf16.mxu0 %v2604
          %2945 = vmatpush1.bf16.msra.mxu0 %v2603
          %2946 = vmatprep.subr.bf16.mxu0 %v2608
          %2947 = vmatpush1.bf16.msra.mxu0 %v2607
          %2948 = vmatprep.subr.bf16.mxu0 %v2612
          %2949 = vmatpush1.bf16.msra.mxu0 %v2611
          %2950 = vmatprep.subr.bf16.mxu0 %v2616
          %2951 = vmatpush1.bf16.msra.mxu0 %v2615
          %2952 = vmatprep.subr.bf16.mxu0 %v2620
          %2953 = vmatpush1.bf16.msra.mxu0 %v2619
          %2954 = vmatprep.subr.bf16.mxu0 %v2624
          %2955 = vmatpush1.bf16.msra.mxu0 %v2623
          %2956 = vmatprep.subr.bf16.mxu0 %v2628
          %2957 = vmatpush1.bf16.msra.mxu0 %v2627
          %2958 = vmatprep.subr.bf16.mxu0 %v2632
          %2959 = vmatpush1.bf16.msra.mxu0 %v2631
          %2960 = vmatprep.subr.bf16.mxu0 %v2636
          %2961 = vmatpush1.bf16.msra.mxu0 %v2635
          %2962 = vmatprep.subr.bf16.mxu0 %v2640
          %2963 = vmatpush1.bf16.msra.mxu0 %v2639
          %2964 = vmatprep.subr.bf16.mxu0 %v2644
          %2965 = vmatpush1.bf16.msra.mxu0 %v2643
          %2966 = vmatprep.subr.bf16.mxu0 %v2648
          %2967 = vmatpush1.bf16.msra.mxu0 %v2647
          %2968 = vmatprep.mubr.bf16.mxu0 %v1982
          %2969 = vmatmul.mubr.bf16.gmra.mrb[0].mxu0 %v1981
          %v2970 = vpop.f32.mrb[0].mxu0
          %v2971 = vadd.f32 %v2918, %v2970
          %v2972 = vpop.f32.mrb[0].mxu0
          %v2973 = vadd.f32 %v2920, %v2972
          %v2974 = vpop.f32.mrb[0].mxu0
          %v2975 = vadd.f32 %v2922, %v2974
          %v2976 = vpop.f32.mrb[0].mxu0
          %v2977 = vadd.f32 %v2924, %v2976
          %2978 = vmatprep.mubr.bf16.mxu0 %v1986
          %2979 = vmatmul.mubr.bf16.gmra.mrb[0].mxu0 %v1985
          %v2980 = vpop.f32.mrb[0].mxu0
          %v2981 = vadd.f32 %v2928, %v2980
          %v2982 = vpop.f32.mrb[0].mxu0
          %v2983 = vadd.f32 %v2930, %v2982
          %v2984 = vpop.f32.mrb[0].mxu0
          %v2985 = vadd.f32 %v2932, %v2984
          %v2986 = vpop.f32.mrb[0].mxu0
          %v2987 = vadd.f32 %v2934, %v2986
          %2988 = vdwg.mxu0
          %2989 = vst [vmem:[#allocation3] sm:$0xff] %v2865
          %2990 = vst [vmem:[#allocation3 + $0x8] sm:$0xff] %v2867
          %2991 = vst [vmem:[#allocation3 + $0x10] sm:$0xff] %v2971
          %2992 = vst [vmem:[#allocation3 + $0x18] sm:$0xff] %v2973
          %2993 = vst [vmem:[#allocation3 + $0x20] sm:$0xff] %v2869
          %2994 = vst [vmem:[#allocation3 + $0x28] sm:$0xff] %v2871
          %2995 = vst [vmem:[#allocation3 + $0x30] sm:$0xff] %v2975
          %2996 = vst [vmem:[#allocation3 + $0x38] sm:$0xff] %v2977
          %2997 = vst [vmem:[#allocation3 + $0x40] sm:$0xff] %v2875
          %2998 = vst [vmem:[#allocation3 + $0x48] sm:$0xff] %v2877
          %2999 = vst [vmem:[#allocation3 + $0x50] sm:$0xff] %v2981
          %3000 = vst [vmem:[#allocation3 + $0x58] sm:$0xff] %v2983
          %3001 = vst [vmem:[#allocation3 + $0x60] sm:$0xff] %v2879
          %3002 = vst [vmem:[#allocation3 + $0x68] sm:$0xff] %v2881
          %3003 = vst [vmem:[#allocation3 + $0x70] sm:$0xff] %v2985
          %3004 = vst [vmem:[#allocation3 + $0x78] sm:$0xff] %v2987
        $region128: #{transformer_encoder.1} parent=71 // pred_fallthru
          _
        %p3005 = scmp.eq.s32.totalorder %s33, 2
        // Predicated region
        $region129: #{transformer_encoder.1} parent=71 // pred_check
          %p3006 = pneg %p3005
        $region130: #{transformer_encoder.1} parent=71 // pred_check_branch
          %3008 = sbr.rel (%p3006) target = $region132
        $region131: #{transformer_encoder.1} parent=71 // pred_region
          %v3009 = vld [vmem:[#allocation4] sm:$0xff]
          %v3010 = vld [vmem:[#allocation4 + $0x8] sm:$0xff]
          %v3011 = vld [vmem:[#allocation4 + $0x10] sm:$0xff]
          %v3012 = vld [vmem:[#allocation4 + $0x18] sm:$0xff]
          %v3013 = vld [vmem:[#allocation4 + $0x20] sm:$0xff]
          %v3014 = vld [vmem:[#allocation4 + $0x28] sm:$0xff]
          %v3015 = vld [vmem:[#allocation4 + $0x30] sm:$0xff]
          %v3016 = vld [vmem:[#allocation4 + $0x38] sm:$0xff]
          %v3017 = vld [vmem:[%s616] sm:$0xff]
          %v3018 = vld [vmem:[%s616 + $0x8] sm:$0xff]
          %v3019 = vld [vmem:[%s616 + $0x10] sm:$0xff]
          %v3020 = vld [vmem:[%s616 + $0x18] sm:$0xff]
          %v3021 = vld [vmem:[%s616 + $0x20] sm:$0xff]
          %v3022 = vld [vmem:[%s616 + $0x28] sm:$0xff]
          %v3023 = vld [vmem:[%s616 + $0x30] sm:$0xff]
          %v3024 = vld [vmem:[%s616 + $0x38] sm:$0xff]
          %v3025 = vld [vmem:[%s616 + $0x40] sm:$0xff]
          %v3026 = vld [vmem:[%s616 + $0x48] sm:$0xff]
          %v3027 = vld [vmem:[%s616 + $0x50] sm:$0xff]
          %v3028 = vld [vmem:[%s616 + $0x58] sm:$0xff]
          %v3029 = vld [vmem:[%s616 + $0x60] sm:$0xff]
          %v3030 = vld [vmem:[%s616 + $0x68] sm:$0xff]
          %v3031 = vld [vmem:[%s616 + $0x70] sm:$0xff]
          %v3032 = vld [vmem:[%s616 + $0x78] sm:$0xff]
          %v3033 = vld [vmem:[%s616 + $0x80] sm:$0xff]
          %v3034 = vld [vmem:[%s616 + $0x88] sm:$0xff]
          %v3035 = vld [vmem:[%s616 + $0x90] sm:$0xff]
          %v3036 = vld [vmem:[%s616 + $0x98] sm:$0xff]
          %v3037 = vld [vmem:[%s616 + $0xa0] sm:$0xff]
          %v3038 = vld [vmem:[%s616 + $0xa8] sm:$0xff]
          %v3039 = vld [vmem:[%s616 + $0xb0] sm:$0xff]
          %v3040 = vld [vmem:[%s616 + $0xb8] sm:$0xff]
          %v3041 = vld [vmem:[%s616 + $0xc0] sm:$0xff]
          %v3042 = vld [vmem:[%s616 + $0xc8] sm:$0xff]
          %v3043 = vld [vmem:[%s616 + $0xd0] sm:$0xff]
          %v3044 = vld [vmem:[%s616 + $0xd8] sm:$0xff]
          %v3045 = vld [vmem:[%s616 + $0xe0] sm:$0xff]
          %v3046 = vld [vmem:[%s616 + $0xe8] sm:$0xff]
          %v3047 = vld [vmem:[%s616 + $0xf0] sm:$0xff]
          %v3048 = vld [vmem:[%s616 + $0xf8] sm:$0xff]
          %v3049 = vld [vmem:[%s616 + $0x100] sm:$0xff]
          %v3050 = vld [vmem:[%s616 + $0x108] sm:$0xff]
          %v3051 = vld [vmem:[%s616 + $0x110] sm:$0xff]
          %v3052 = vld [vmem:[%s616 + $0x118] sm:$0xff]
          %v3053 = vld [vmem:[%s616 + $0x120] sm:$0xff]
          %v3054 = vld [vmem:[%s616 + $0x128] sm:$0xff]
          %v3055 = vld [vmem:[%s616 + $0x130] sm:$0xff]
          %v3056 = vld [vmem:[%s616 + $0x138] sm:$0xff]
          %v3057 = vld [vmem:[%s616 + $0x140] sm:$0xff]
          %v3058 = vld [vmem:[%s616 + $0x148] sm:$0xff]
          %v3059 = vld [vmem:[%s616 + $0x150] sm:$0xff]
          %v3060 = vld [vmem:[%s616 + $0x158] sm:$0xff]
          %v3061 = vld [vmem:[%s616 + $0x160] sm:$0xff]
          %v3062 = vld [vmem:[%s616 + $0x168] sm:$0xff]
          %v3063 = vld [vmem:[%s616 + $0x170] sm:$0xff]
          %v3064 = vld [vmem:[%s616 + $0x178] sm:$0xff]
          %v3065 = vld [vmem:[%s616 + $0x180] sm:$0xff]
          %v3066 = vld [vmem:[%s616 + $0x188] sm:$0xff]
          %v3067 = vld [vmem:[%s616 + $0x190] sm:$0xff]
          %v3068 = vld [vmem:[%s616 + $0x198] sm:$0xff]
          %v3069 = vld [vmem:[%s616 + $0x1a0] sm:$0xff]
          %v3070 = vld [vmem:[%s616 + $0x1a8] sm:$0xff]
          %v3071 = vld [vmem:[%s616 + $0x1b0] sm:$0xff]
          %v3072 = vld [vmem:[%s616 + $0x1b8] sm:$0xff]
          %v3073 = vld [vmem:[%s616 + $0x1c0] sm:$0xff]
          %v3074 = vld [vmem:[%s616 + $0x1c8] sm:$0xff]
          %v3075 = vld [vmem:[%s616 + $0x1d0] sm:$0xff]
          %v3076 = vld [vmem:[%s616 + $0x1d8] sm:$0xff]
          %v3077 = vld [vmem:[%s616 + $0x1e0] sm:$0xff]
          %v3078 = vld [vmem:[%s616 + $0x1e8] sm:$0xff]
          %v3079 = vld [vmem:[%s616 + $0x1f0] sm:$0xff]
          %v3080 = vld [vmem:[%s616 + $0x1f8] sm:$0xff]
          %v3081 = vld [vmem:[%s616 + $0x200] sm:$0xff]
          %v3082 = vld [vmem:[%s616 + $0x208] sm:$0xff]
          %v3083 = vld [vmem:[%s616 + $0x210] sm:$0xff]
          %v3084 = vld [vmem:[%s616 + $0x218] sm:$0xff]
          %v3085 = vld [vmem:[%s616 + $0x220] sm:$0xff]
          %v3086 = vld [vmem:[%s616 + $0x228] sm:$0xff]
          %v3087 = vld [vmem:[%s616 + $0x230] sm:$0xff]
          %v3088 = vld [vmem:[%s616 + $0x238] sm:$0xff]
          %v3089 = vld [vmem:[%s616 + $0x240] sm:$0xff]
          %v3090 = vld [vmem:[%s616 + $0x248] sm:$0xff]
          %v3091 = vld [vmem:[%s616 + $0x250] sm:$0xff]
          %v3092 = vld [vmem:[%s616 + $0x258] sm:$0xff]
          %v3093 = vld [vmem:[%s616 + $0x260] sm:$0xff]
          %v3094 = vld [vmem:[%s616 + $0x268] sm:$0xff]
          %v3095 = vld [vmem:[%s616 + $0x270] sm:$0xff]
          %v3096 = vld [vmem:[%s616 + $0x278] sm:$0xff]
          %v3097 = vld [vmem:[%s616 + $0x280] sm:$0xff]
          %v3098 = vld [vmem:[%s616 + $0x288] sm:$0xff]
          %v3099 = vld [vmem:[%s616 + $0x290] sm:$0xff]
          %v3100 = vld [vmem:[%s616 + $0x298] sm:$0xff]
          %v3101 = vld [vmem:[%s616 + $0x2a0] sm:$0xff]
          %v3102 = vld [vmem:[%s616 + $0x2a8] sm:$0xff]
          %v3103 = vld [vmem:[%s616 + $0x2b0] sm:$0xff]
          %v3104 = vld [vmem:[%s616 + $0x2b8] sm:$0xff]
          %v3105 = vld [vmem:[%s616 + $0x2c0] sm:$0xff]
          %v3106 = vld [vmem:[%s616 + $0x2c8] sm:$0xff]
          %v3107 = vld [vmem:[%s616 + $0x2d0] sm:$0xff]
          %v3108 = vld [vmem:[%s616 + $0x2d8] sm:$0xff]
          %v3109 = vld [vmem:[%s616 + $0x2e0] sm:$0xff]
          %v3110 = vld [vmem:[%s616 + $0x2e8] sm:$0xff]
          %v3111 = vld [vmem:[%s616 + $0x2f0] sm:$0xff]
          %v3112 = vld [vmem:[%s616 + $0x2f8] sm:$0xff]
          %v3113 = vld [vmem:[%s616 + $0x300] sm:$0xff]
          %v3114 = vld [vmem:[%s616 + $0x308] sm:$0xff]
          %v3115 = vld [vmem:[%s616 + $0x310] sm:$0xff]
          %v3116 = vld [vmem:[%s616 + $0x318] sm:$0xff]
          %v3117 = vld [vmem:[%s616 + $0x320] sm:$0xff]
          %v3118 = vld [vmem:[%s616 + $0x328] sm:$0xff]
          %v3119 = vld [vmem:[%s616 + $0x330] sm:$0xff]
          %v3120 = vld [vmem:[%s616 + $0x338] sm:$0xff]
          %v3121 = vld [vmem:[%s616 + $0x340] sm:$0xff]
          %v3122 = vld [vmem:[%s616 + $0x348] sm:$0xff]
          %v3123 = vld [vmem:[%s616 + $0x350] sm:$0xff]
          %v3124 = vld [vmem:[%s616 + $0x358] sm:$0xff]
          %v3125 = vld [vmem:[%s616 + $0x360] sm:$0xff]
          %v3126 = vld [vmem:[%s616 + $0x368] sm:$0xff]
          %v3127 = vld [vmem:[%s616 + $0x370] sm:$0xff]
          %v3128 = vld [vmem:[%s616 + $0x378] sm:$0xff]
          %v3129 = vld [vmem:[%s616 + $0x380] sm:$0xff]
          %v3130 = vld [vmem:[%s616 + $0x388] sm:$0xff]
          %v3131 = vld [vmem:[%s616 + $0x390] sm:$0xff]
          %v3132 = vld [vmem:[%s616 + $0x398] sm:$0xff]
          %v3133 = vld [vmem:[%s616 + $0x3a0] sm:$0xff]
          %v3134 = vld [vmem:[%s616 + $0x3a8] sm:$0xff]
          %v3135 = vld [vmem:[%s616 + $0x3b0] sm:$0xff]
          %v3136 = vld [vmem:[%s616 + $0x3b8] sm:$0xff]
          %v3137 = vld [vmem:[%s616 + $0x3c0] sm:$0xff]
          %v3138 = vld [vmem:[%s616 + $0x3c8] sm:$0xff]
          %v3139 = vld [vmem:[%s616 + $0x3d0] sm:$0xff]
          %v3140 = vld [vmem:[%s616 + $0x3d8] sm:$0xff]
          %v3141 = vld [vmem:[%s616 + $0x3e0] sm:$0xff]
          %v3142 = vld [vmem:[%s616 + $0x3e8] sm:$0xff]
          %v3143 = vld [vmem:[%s616 + $0x3f0] sm:$0xff]
          %v3144 = vld [vmem:[%s616 + $0x3f8] sm:$0xff]
          %v3145 = vld [vmem:[%s625] sm:$0xf]
          %v3147 = vlaneseq
          %v3148 = vshrl.u32 %v3147, 7
          %v3149 = vsub.s32 0, %v3148
          %v3150 = vrot.slane %v3145, %v3149
          %v3151 = vlaneseq
          %v3152 = vshrl.u32 %v3151, 7
          %v3153 = vsub.s32 1, %v3152
          %v3154 = vrot.slane %v3145, %v3153
          %v3155 = vlaneseq
          %v3156 = vshrl.u32 %v3155, 7
          %v3157 = vsub.s32 2, %v3156
          %v3158 = vrot.slane %v3145, %v3157
          %v3159 = vlaneseq
          %v3160 = vshrl.u32 %v3159, 7
          %v3161 = vsub.s32 3, %v3160
          %v3162 = vrot.slane %v3145, %v3161
          %v3295 = vunpack.c.l.b16 %v3017
          %v3296 = vunpack.c.h.b16 %v3017
          %v3297 = vunpack.c.l.b16 %v3018
          %v3298 = vunpack.c.h.b16 %v3018
          %v3299 = vunpack.c.l.b16 %v3019
          %v3300 = vunpack.c.h.b16 %v3019
          %v3301 = vunpack.c.l.b16 %v3020
          %v3302 = vunpack.c.h.b16 %v3020
          %v3303 = vunpack.c.l.b16 %v3021
          %v3304 = vunpack.c.h.b16 %v3021
          %v3305 = vunpack.c.l.b16 %v3022
          %v3306 = vunpack.c.h.b16 %v3022
          %v3307 = vunpack.c.l.b16 %v3023
          %v3308 = vunpack.c.h.b16 %v3023
          %v3309 = vunpack.c.l.b16 %v3024
          %v3310 = vunpack.c.h.b16 %v3024
          %v3311 = vunpack.c.l.b16 %v3025
          %v3312 = vunpack.c.h.b16 %v3025
          %v3313 = vunpack.c.l.b16 %v3026
          %v3314 = vunpack.c.h.b16 %v3026
          %v3315 = vunpack.c.l.b16 %v3027
          %v3316 = vunpack.c.h.b16 %v3027
          %v3317 = vunpack.c.l.b16 %v3028
          %v3318 = vunpack.c.h.b16 %v3028
          %v3319 = vunpack.c.l.b16 %v3029
          %v3320 = vunpack.c.h.b16 %v3029
          %v3321 = vunpack.c.l.b16 %v3030
          %v3322 = vunpack.c.h.b16 %v3030
          %v3323 = vunpack.c.l.b16 %v3031
          %v3324 = vunpack.c.h.b16 %v3031
          %v3325 = vunpack.c.l.b16 %v3032
          %v3326 = vunpack.c.h.b16 %v3032
          %v3327 = vunpack.c.l.b16 %v3033
          %v3328 = vunpack.c.h.b16 %v3033
          %v3329 = vunpack.c.l.b16 %v3034
          %v3330 = vunpack.c.h.b16 %v3034
          %v3331 = vunpack.c.l.b16 %v3035
          %v3332 = vunpack.c.h.b16 %v3035
          %v3333 = vunpack.c.l.b16 %v3036
          %v3334 = vunpack.c.h.b16 %v3036
          %v3335 = vunpack.c.l.b16 %v3037
          %v3336 = vunpack.c.h.b16 %v3037
          %v3337 = vunpack.c.l.b16 %v3038
          %v3338 = vunpack.c.h.b16 %v3038
          %v3339 = vunpack.c.l.b16 %v3039
          %v3340 = vunpack.c.h.b16 %v3039
          %v3341 = vunpack.c.l.b16 %v3040
          %v3342 = vunpack.c.h.b16 %v3040
          %v3343 = vunpack.c.l.b16 %v3041
          %v3344 = vunpack.c.h.b16 %v3041
          %v3345 = vunpack.c.l.b16 %v3042
          %v3346 = vunpack.c.h.b16 %v3042
          %v3347 = vunpack.c.l.b16 %v3043
          %v3348 = vunpack.c.h.b16 %v3043
          %v3349 = vunpack.c.l.b16 %v3044
          %v3350 = vunpack.c.h.b16 %v3044
          %v3351 = vunpack.c.l.b16 %v3045
          %v3352 = vunpack.c.h.b16 %v3045
          %v3353 = vunpack.c.l.b16 %v3046
          %v3354 = vunpack.c.h.b16 %v3046
          %v3355 = vunpack.c.l.b16 %v3047
          %v3356 = vunpack.c.h.b16 %v3047
          %v3357 = vunpack.c.l.b16 %v3048
          %v3358 = vunpack.c.h.b16 %v3048
          %v3359 = vunpack.c.l.b16 %v3049
          %v3360 = vunpack.c.h.b16 %v3049
          %v3361 = vunpack.c.l.b16 %v3050
          %v3362 = vunpack.c.h.b16 %v3050
          %v3363 = vunpack.c.l.b16 %v3051
          %v3364 = vunpack.c.h.b16 %v3051
          %v3365 = vunpack.c.l.b16 %v3052
          %v3366 = vunpack.c.h.b16 %v3052
          %v3367 = vunpack.c.l.b16 %v3053
          %v3368 = vunpack.c.h.b16 %v3053
          %v3369 = vunpack.c.l.b16 %v3054
          %v3370 = vunpack.c.h.b16 %v3054
          %v3371 = vunpack.c.l.b16 %v3055
          %v3372 = vunpack.c.h.b16 %v3055
          %v3373 = vunpack.c.l.b16 %v3056
          %v3374 = vunpack.c.h.b16 %v3056
          %v3375 = vunpack.c.l.b16 %v3057
          %v3376 = vunpack.c.h.b16 %v3057
          %v3377 = vunpack.c.l.b16 %v3058
          %v3378 = vunpack.c.h.b16 %v3058
          %v3379 = vunpack.c.l.b16 %v3059
          %v3380 = vunpack.c.h.b16 %v3059
          %v3381 = vunpack.c.l.b16 %v3060
          %v3382 = vunpack.c.h.b16 %v3060
          %v3383 = vunpack.c.l.b16 %v3061
          %v3384 = vunpack.c.h.b16 %v3061
          %v3385 = vunpack.c.l.b16 %v3062
          %v3386 = vunpack.c.h.b16 %v3062
          %v3387 = vunpack.c.l.b16 %v3063
          %v3388 = vunpack.c.h.b16 %v3063
          %v3389 = vunpack.c.l.b16 %v3064
          %v3390 = vunpack.c.h.b16 %v3064
          %v3391 = vunpack.c.l.b16 %v3065
          %v3392 = vunpack.c.h.b16 %v3065
          %v3393 = vunpack.c.l.b16 %v3066
          %v3394 = vunpack.c.h.b16 %v3066
          %v3395 = vunpack.c.l.b16 %v3067
          %v3396 = vunpack.c.h.b16 %v3067
          %v3397 = vunpack.c.l.b16 %v3068
          %v3398 = vunpack.c.h.b16 %v3068
          %v3399 = vunpack.c.l.b16 %v3069
          %v3400 = vunpack.c.h.b16 %v3069
          %v3401 = vunpack.c.l.b16 %v3070
          %v3402 = vunpack.c.h.b16 %v3070
          %v3403 = vunpack.c.l.b16 %v3071
          %v3404 = vunpack.c.h.b16 %v3071
          %v3405 = vunpack.c.l.b16 %v3072
          %v3406 = vunpack.c.h.b16 %v3072
          %v3407 = vunpack.c.l.b16 %v3073
          %v3408 = vunpack.c.h.b16 %v3073
          %v3409 = vunpack.c.l.b16 %v3074
          %v3410 = vunpack.c.h.b16 %v3074
          %v3411 = vunpack.c.l.b16 %v3075
          %v3412 = vunpack.c.h.b16 %v3075
          %v3413 = vunpack.c.l.b16 %v3076
          %v3414 = vunpack.c.h.b16 %v3076
          %v3415 = vunpack.c.l.b16 %v3077
          %v3416 = vunpack.c.h.b16 %v3077
          %v3417 = vunpack.c.l.b16 %v3078
          %v3418 = vunpack.c.h.b16 %v3078
          %v3419 = vunpack.c.l.b16 %v3079
          %v3420 = vunpack.c.h.b16 %v3079
          %v3421 = vunpack.c.l.b16 %v3080
          %v3422 = vunpack.c.h.b16 %v3080
          %v3423 = vunpack.c.l.b16 %v3081
          %v3424 = vunpack.c.h.b16 %v3081
          %v3425 = vunpack.c.l.b16 %v3082
          %v3426 = vunpack.c.h.b16 %v3082
          %v3427 = vunpack.c.l.b16 %v3083
          %v3428 = vunpack.c.h.b16 %v3083
          %v3429 = vunpack.c.l.b16 %v3084
          %v3430 = vunpack.c.h.b16 %v3084
          %v3431 = vunpack.c.l.b16 %v3085
          %v3432 = vunpack.c.h.b16 %v3085
          %v3433 = vunpack.c.l.b16 %v3086
          %v3434 = vunpack.c.h.b16 %v3086
          %v3435 = vunpack.c.l.b16 %v3087
          %v3436 = vunpack.c.h.b16 %v3087
          %v3437 = vunpack.c.l.b16 %v3088
          %v3438 = vunpack.c.h.b16 %v3088
          %v3439 = vunpack.c.l.b16 %v3089
          %v3440 = vunpack.c.h.b16 %v3089
          %v3441 = vunpack.c.l.b16 %v3090
          %v3442 = vunpack.c.h.b16 %v3090
          %v3443 = vunpack.c.l.b16 %v3091
          %v3444 = vunpack.c.h.b16 %v3091
          %v3445 = vunpack.c.l.b16 %v3092
          %v3446 = vunpack.c.h.b16 %v3092
          %v3447 = vunpack.c.l.b16 %v3093
          %v3448 = vunpack.c.h.b16 %v3093
          %v3449 = vunpack.c.l.b16 %v3094
          %v3450 = vunpack.c.h.b16 %v3094
          %v3451 = vunpack.c.l.b16 %v3095
          %v3452 = vunpack.c.h.b16 %v3095
          %v3453 = vunpack.c.l.b16 %v3096
          %v3454 = vunpack.c.h.b16 %v3096
          %v3455 = vunpack.c.l.b16 %v3097
          %v3456 = vunpack.c.h.b16 %v3097
          %v3457 = vunpack.c.l.b16 %v3098
          %v3458 = vunpack.c.h.b16 %v3098
          %v3459 = vunpack.c.l.b16 %v3099
          %v3460 = vunpack.c.h.b16 %v3099
          %v3461 = vunpack.c.l.b16 %v3100
          %v3462 = vunpack.c.h.b16 %v3100
          %v3463 = vunpack.c.l.b16 %v3101
          %v3464 = vunpack.c.h.b16 %v3101
          %v3465 = vunpack.c.l.b16 %v3102
          %v3466 = vunpack.c.h.b16 %v3102
          %v3467 = vunpack.c.l.b16 %v3103
          %v3468 = vunpack.c.h.b16 %v3103
          %v3469 = vunpack.c.l.b16 %v3104
          %v3470 = vunpack.c.h.b16 %v3104
          %v3471 = vunpack.c.l.b16 %v3105
          %v3472 = vunpack.c.h.b16 %v3105
          %v3473 = vunpack.c.l.b16 %v3106
          %v3474 = vunpack.c.h.b16 %v3106
          %v3475 = vunpack.c.l.b16 %v3107
          %v3476 = vunpack.c.h.b16 %v3107
          %v3477 = vunpack.c.l.b16 %v3108
          %v3478 = vunpack.c.h.b16 %v3108
          %v3479 = vunpack.c.l.b16 %v3109
          %v3480 = vunpack.c.h.b16 %v3109
          %v3481 = vunpack.c.l.b16 %v3110
          %v3482 = vunpack.c.h.b16 %v3110
          %v3483 = vunpack.c.l.b16 %v3111
          %v3484 = vunpack.c.h.b16 %v3111
          %v3485 = vunpack.c.l.b16 %v3112
          %v3486 = vunpack.c.h.b16 %v3112
          %v3487 = vunpack.c.l.b16 %v3113
          %v3488 = vunpack.c.h.b16 %v3113
          %v3489 = vunpack.c.l.b16 %v3114
          %v3490 = vunpack.c.h.b16 %v3114
          %v3491 = vunpack.c.l.b16 %v3115
          %v3492 = vunpack.c.h.b16 %v3115
          %v3493 = vunpack.c.l.b16 %v3116
          %v3494 = vunpack.c.h.b16 %v3116
          %v3495 = vunpack.c.l.b16 %v3117
          %v3496 = vunpack.c.h.b16 %v3117
          %v3497 = vunpack.c.l.b16 %v3118
          %v3498 = vunpack.c.h.b16 %v3118
          %v3499 = vunpack.c.l.b16 %v3119
          %v3500 = vunpack.c.h.b16 %v3119
          %v3501 = vunpack.c.l.b16 %v3120
          %v3502 = vunpack.c.h.b16 %v3120
          %v3503 = vunpack.c.l.b16 %v3121
          %v3504 = vunpack.c.h.b16 %v3121
          %v3505 = vunpack.c.l.b16 %v3122
          %v3506 = vunpack.c.h.b16 %v3122
          %v3507 = vunpack.c.l.b16 %v3123
          %v3508 = vunpack.c.h.b16 %v3123
          %v3509 = vunpack.c.l.b16 %v3124
          %v3510 = vunpack.c.h.b16 %v3124
          %v3511 = vunpack.c.l.b16 %v3125
          %v3512 = vunpack.c.h.b16 %v3125
          %v3513 = vunpack.c.l.b16 %v3126
          %v3514 = vunpack.c.h.b16 %v3126
          %v3515 = vunpack.c.l.b16 %v3127
          %v3516 = vunpack.c.h.b16 %v3127
          %v3517 = vunpack.c.l.b16 %v3128
          %v3518 = vunpack.c.h.b16 %v3128
          %v3519 = vunpack.c.l.b16 %v3129
          %v3520 = vunpack.c.h.b16 %v3129
          %v3521 = vunpack.c.l.b16 %v3130
          %v3522 = vunpack.c.h.b16 %v3130
          %v3523 = vunpack.c.l.b16 %v3131
          %v3524 = vunpack.c.h.b16 %v3131
          %v3525 = vunpack.c.l.b16 %v3132
          %v3526 = vunpack.c.h.b16 %v3132
          %v3527 = vunpack.c.l.b16 %v3133
          %v3528 = vunpack.c.h.b16 %v3133
          %v3529 = vunpack.c.l.b16 %v3134
          %v3530 = vunpack.c.h.b16 %v3134
          %v3531 = vunpack.c.l.b16 %v3135
          %v3532 = vunpack.c.h.b16 %v3135
          %v3533 = vunpack.c.l.b16 %v3136
          %v3534 = vunpack.c.h.b16 %v3136
          %v3535 = vunpack.c.l.b16 %v3137
          %v3536 = vunpack.c.h.b16 %v3137
          %v3537 = vunpack.c.l.b16 %v3138
          %v3538 = vunpack.c.h.b16 %v3138
          %v3539 = vunpack.c.l.b16 %v3139
          %v3540 = vunpack.c.h.b16 %v3139
          %v3541 = vunpack.c.l.b16 %v3140
          %v3542 = vunpack.c.h.b16 %v3140
          %v3543 = vunpack.c.l.b16 %v3141
          %v3544 = vunpack.c.h.b16 %v3141
          %v3545 = vunpack.c.l.b16 %v3142
          %v3546 = vunpack.c.h.b16 %v3142
          %v3547 = vunpack.c.l.b16 %v3143
          %v3548 = vunpack.c.h.b16 %v3143
          %v3549 = vunpack.c.l.b16 %v3144
          %v3550 = vunpack.c.h.b16 %v3144
          %v3551 = vpack.c.b16 %v3299, %v3295
          %v3552 = vpack.c.b16 %v3300, %v3296
          %v3553 = vpack.c.b16 %v3301, %v3297
          %v3554 = vpack.c.b16 %v3302, %v3298
          %v3555 = vpack.c.b16 %v3307, %v3303
          %v3556 = vpack.c.b16 %v3308, %v3304
          %v3557 = vpack.c.b16 %v3309, %v3305
          %v3558 = vpack.c.b16 %v3310, %v3306
          %v3559 = vpack.c.b16 %v3315, %v3311
          %v3560 = vpack.c.b16 %v3316, %v3312
          %v3561 = vpack.c.b16 %v3317, %v3313
          %v3562 = vpack.c.b16 %v3318, %v3314
          %v3563 = vpack.c.b16 %v3323, %v3319
          %v3564 = vpack.c.b16 %v3324, %v3320
          %v3565 = vpack.c.b16 %v3325, %v3321
          %v3566 = vpack.c.b16 %v3326, %v3322
          %v3567 = vpack.c.b16 %v3331, %v3327
          %v3568 = vpack.c.b16 %v3332, %v3328
          %v3569 = vpack.c.b16 %v3333, %v3329
          %v3570 = vpack.c.b16 %v3334, %v3330
          %v3571 = vpack.c.b16 %v3339, %v3335
          %v3572 = vpack.c.b16 %v3340, %v3336
          %v3573 = vpack.c.b16 %v3341, %v3337
          %v3574 = vpack.c.b16 %v3342, %v3338
          %v3575 = vpack.c.b16 %v3347, %v3343
          %v3576 = vpack.c.b16 %v3348, %v3344
          %v3577 = vpack.c.b16 %v3349, %v3345
          %v3578 = vpack.c.b16 %v3350, %v3346
          %v3579 = vpack.c.b16 %v3355, %v3351
          %v3580 = vpack.c.b16 %v3356, %v3352
          %v3581 = vpack.c.b16 %v3357, %v3353
          %v3582 = vpack.c.b16 %v3358, %v3354
          %v3583 = vpack.c.b16 %v3363, %v3359
          %v3584 = vpack.c.b16 %v3364, %v3360
          %v3585 = vpack.c.b16 %v3365, %v3361
          %v3586 = vpack.c.b16 %v3366, %v3362
          %v3587 = vpack.c.b16 %v3371, %v3367
          %v3588 = vpack.c.b16 %v3372, %v3368
          %v3589 = vpack.c.b16 %v3373, %v3369
          %v3590 = vpack.c.b16 %v3374, %v3370
          %v3591 = vpack.c.b16 %v3379, %v3375
          %v3592 = vpack.c.b16 %v3380, %v3376
          %v3593 = vpack.c.b16 %v3381, %v3377
          %v3594 = vpack.c.b16 %v3382, %v3378
          %v3595 = vpack.c.b16 %v3387, %v3383
          %v3596 = vpack.c.b16 %v3388, %v3384
          %v3597 = vpack.c.b16 %v3389, %v3385
          %v3598 = vpack.c.b16 %v3390, %v3386
          %v3599 = vpack.c.b16 %v3395, %v3391
          %v3600 = vpack.c.b16 %v3396, %v3392
          %v3601 = vpack.c.b16 %v3397, %v3393
          %v3602 = vpack.c.b16 %v3398, %v3394
          %v3603 = vpack.c.b16 %v3403, %v3399
          %v3604 = vpack.c.b16 %v3404, %v3400
          %v3605 = vpack.c.b16 %v3405, %v3401
          %v3606 = vpack.c.b16 %v3406, %v3402
          %v3607 = vpack.c.b16 %v3411, %v3407
          %v3608 = vpack.c.b16 %v3412, %v3408
          %v3609 = vpack.c.b16 %v3413, %v3409
          %v3610 = vpack.c.b16 %v3414, %v3410
          %v3611 = vpack.c.b16 %v3419, %v3415
          %v3612 = vpack.c.b16 %v3420, %v3416
          %v3613 = vpack.c.b16 %v3421, %v3417
          %v3614 = vpack.c.b16 %v3422, %v3418
          %v3615 = vpack.c.b16 %v3427, %v3423
          %v3616 = vpack.c.b16 %v3428, %v3424
          %v3617 = vpack.c.b16 %v3429, %v3425
          %v3618 = vpack.c.b16 %v3430, %v3426
          %v3619 = vpack.c.b16 %v3435, %v3431
          %v3620 = vpack.c.b16 %v3436, %v3432
          %v3621 = vpack.c.b16 %v3437, %v3433
          %v3622 = vpack.c.b16 %v3438, %v3434
          %v3623 = vpack.c.b16 %v3443, %v3439
          %v3624 = vpack.c.b16 %v3444, %v3440
          %v3625 = vpack.c.b16 %v3445, %v3441
          %v3626 = vpack.c.b16 %v3446, %v3442
          %v3627 = vpack.c.b16 %v3451, %v3447
          %v3628 = vpack.c.b16 %v3452, %v3448
          %v3629 = vpack.c.b16 %v3453, %v3449
          %v3630 = vpack.c.b16 %v3454, %v3450
          %v3631 = vpack.c.b16 %v3459, %v3455
          %v3632 = vpack.c.b16 %v3460, %v3456
          %v3633 = vpack.c.b16 %v3461, %v3457
          %v3634 = vpack.c.b16 %v3462, %v3458
          %v3635 = vpack.c.b16 %v3467, %v3463
          %v3636 = vpack.c.b16 %v3468, %v3464
          %v3637 = vpack.c.b16 %v3469, %v3465
          %v3638 = vpack.c.b16 %v3470, %v3466
          %v3639 = vpack.c.b16 %v3475, %v3471
          %v3640 = vpack.c.b16 %v3476, %v3472
          %v3641 = vpack.c.b16 %v3477, %v3473
          %v3642 = vpack.c.b16 %v3478, %v3474
          %v3643 = vpack.c.b16 %v3483, %v3479
          %v3644 = vpack.c.b16 %v3484, %v3480
          %v3645 = vpack.c.b16 %v3485, %v3481
          %v3646 = vpack.c.b16 %v3486, %v3482
          %v3647 = vpack.c.b16 %v3491, %v3487
          %v3648 = vpack.c.b16 %v3492, %v3488
          %v3649 = vpack.c.b16 %v3493, %v3489
          %v3650 = vpack.c.b16 %v3494, %v3490
          %v3651 = vpack.c.b16 %v3499, %v3495
          %v3652 = vpack.c.b16 %v3500, %v3496
          %v3653 = vpack.c.b16 %v3501, %v3497
          %v3654 = vpack.c.b16 %v3502, %v3498
          %v3655 = vpack.c.b16 %v3507, %v3503
          %v3656 = vpack.c.b16 %v3508, %v3504
          %v3657 = vpack.c.b16 %v3509, %v3505
          %v3658 = vpack.c.b16 %v3510, %v3506
          %v3659 = vpack.c.b16 %v3515, %v3511
          %v3660 = vpack.c.b16 %v3516, %v3512
          %v3661 = vpack.c.b16 %v3517, %v3513
          %v3662 = vpack.c.b16 %v3518, %v3514
          %v3663 = vpack.c.b16 %v3523, %v3519
          %v3664 = vpack.c.b16 %v3524, %v3520
          %v3665 = vpack.c.b16 %v3525, %v3521
          %v3666 = vpack.c.b16 %v3526, %v3522
          %v3667 = vpack.c.b16 %v3531, %v3527
          %v3668 = vpack.c.b16 %v3532, %v3528
          %v3669 = vpack.c.b16 %v3533, %v3529
          %v3670 = vpack.c.b16 %v3534, %v3530
          %v3671 = vpack.c.b16 %v3539, %v3535
          %v3672 = vpack.c.b16 %v3540, %v3536
          %v3673 = vpack.c.b16 %v3541, %v3537
          %v3674 = vpack.c.b16 %v3542, %v3538
          %v3675 = vpack.c.b16 %v3547, %v3543
          %v3676 = vpack.c.b16 %v3548, %v3544
          %v3677 = vpack.c.b16 %v3549, %v3545
          %v3678 = vpack.c.b16 %v3550, %v3546
          %3807 = vmatprep.subr.bf16.mxu0 %v3552
          %3808 = vmatpush1.bf16.msra.mxu0 %v3551
          %3809 = vmatprep.subr.bf16.mxu0 %v3556
          %3810 = vmatpush1.bf16.msra.mxu0 %v3555
          %3811 = vmatprep.subr.bf16.mxu0 %v3560
          %3812 = vmatpush1.bf16.msra.mxu0 %v3559
          %3813 = vmatprep.subr.bf16.mxu0 %v3564
          %3814 = vmatpush1.bf16.msra.mxu0 %v3563
          %3815 = vmatprep.subr.bf16.mxu0 %v3568
          %3816 = vmatpush1.bf16.msra.mxu0 %v3567
          %3817 = vmatprep.subr.bf16.mxu0 %v3572
          %3818 = vmatpush1.bf16.msra.mxu0 %v3571
          %3819 = vmatprep.subr.bf16.mxu0 %v3576
          %3820 = vmatpush1.bf16.msra.mxu0 %v3575
          %3821 = vmatprep.subr.bf16.mxu0 %v3580
          %3822 = vmatpush1.bf16.msra.mxu0 %v3579
          %3823 = vmatprep.subr.bf16.mxu0 %v3584
          %3824 = vmatpush1.bf16.msra.mxu0 %v3583
          %3825 = vmatprep.subr.bf16.mxu0 %v3588
          %3826 = vmatpush1.bf16.msra.mxu0 %v3587
          %3827 = vmatprep.subr.bf16.mxu0 %v3592
          %3828 = vmatpush1.bf16.msra.mxu0 %v3591
          %3829 = vmatprep.subr.bf16.mxu0 %v3596
          %3830 = vmatpush1.bf16.msra.mxu0 %v3595
          %3831 = vmatprep.subr.bf16.mxu0 %v3600
          %3832 = vmatpush1.bf16.msra.mxu0 %v3599
          %3833 = vmatprep.subr.bf16.mxu0 %v3604
          %3834 = vmatpush1.bf16.msra.mxu0 %v3603
          %3835 = vmatprep.subr.bf16.mxu0 %v3608
          %3836 = vmatpush1.bf16.msra.mxu0 %v3607
          %3837 = vmatprep.subr.bf16.mxu0 %v3612
          %3838 = vmatpush1.bf16.msra.mxu0 %v3611
          %3839 = vmatprep.mubr.bf16.mxu0 %v3010
          %3840 = vmatmul.mubr.bf16.gmra.mrb[0].mxu0 %v3009
          %v3841 = vpop.f32.mrb[0].mxu0
          %v3842 = vadd.f32 %v3150, %v3841
          %v3843 = vpop.f32.mrb[0].mxu0
          %v3844 = vadd.f32 %v3154, %v3843
          %v3845 = vpop.f32.mrb[0].mxu0
          %v3846 = vadd.f32 %v3150, %v3845
          %v3847 = vpop.f32.mrb[0].mxu0
          %v3848 = vadd.f32 %v3154, %v3847
          %3849 = vmatprep.mubr.bf16.mxu0 %v3014
          %3850 = vmatmul.mubr.bf16.gmra.mrb[0].mxu0 %v3013
          %v3851 = vpop.f32.mrb[0].mxu0
          %v3852 = vadd.f32 %v3150, %v3851
          %v3853 = vpop.f32.mrb[0].mxu0
          %v3854 = vadd.f32 %v3154, %v3853
          %v3855 = vpop.f32.mrb[0].mxu0
          %v3856 = vadd.f32 %v3150, %v3855
          %v3857 = vpop.f32.mrb[0].mxu0
          %v3858 = vadd.f32 %v3154, %v3857
          %3859 = vdwg.mxu0
          %3860 = vmatprep.subr.bf16.mxu0 %v3616
          %3861 = vmatpush1.bf16.msra.mxu0 %v3615
          %3862 = vmatprep.subr.bf16.mxu0 %v3620
          %3863 = vmatpush1.bf16.msra.mxu0 %v3619
          %3864 = vmatprep.subr.bf16.mxu0 %v3624
          %3865 = vmatpush1.bf16.msra.mxu0 %v3623
          %3866 = vmatprep.subr.bf16.mxu0 %v3628
          %3867 = vmatpush1.bf16.msra.mxu0 %v3627
          %3868 = vmatprep.subr.bf16.mxu0 %v3632
          %3869 = vmatpush1.bf16.msra.mxu0 %v3631
          %3870 = vmatprep.subr.bf16.mxu0 %v3636
          %3871 = vmatpush1.bf16.msra.mxu0 %v3635
          %3872 = vmatprep.subr.bf16.mxu0 %v3640
          %3873 = vmatpush1.bf16.msra.mxu0 %v3639
          %3874 = vmatprep.subr.bf16.mxu0 %v3644
          %3875 = vmatpush1.bf16.msra.mxu0 %v3643
          %3876 = vmatprep.subr.bf16.mxu0 %v3648
          %3877 = vmatpush1.bf16.msra.mxu0 %v3647
          %3878 = vmatprep.subr.bf16.mxu0 %v3652
          %3879 = vmatpush1.bf16.msra.mxu0 %v3651
          %3880 = vmatprep.subr.bf16.mxu0 %v3656
          %3881 = vmatpush1.bf16.msra.mxu0 %v3655
          %3882 = vmatprep.subr.bf16.mxu0 %v3660
          %3883 = vmatpush1.bf16.msra.mxu0 %v3659
          %3884 = vmatprep.subr.bf16.mxu0 %v3664
          %3885 = vmatpush1.bf16.msra.mxu0 %v3663
          %3886 = vmatprep.subr.bf16.mxu0 %v3668
          %3887 = vmatpush1.bf16.msra.mxu0 %v3667
          %3888 = vmatprep.subr.bf16.mxu0 %v3672
          %3889 = vmatpush1.bf16.msra.mxu0 %v3671
          %3890 = vmatprep.subr.bf16.mxu0 %v3676
          %3891 = vmatpush1.bf16.msra.mxu0 %v3675
          %3892 = vmatprep.mubr.bf16.mxu0 %v3012
          %3893 = vmatmul.mubr.bf16.gmra.mrb[0].mxu0 %v3011
          %v3894 = vpop.f32.mrb[0].mxu0
          %v3895 = vadd.f32 %v3842, %v3894
          %v3896 = vpop.f32.mrb[0].mxu0
          %v3897 = vadd.f32 %v3844, %v3896
          %v3898 = vpop.f32.mrb[0].mxu0
          %v3899 = vadd.f32 %v3846, %v3898
          %v3900 = vpop.f32.mrb[0].mxu0
          %v3901 = vadd.f32 %v3848, %v3900
          %3902 = vmatprep.mubr.bf16.mxu0 %v3016
          %3903 = vmatmul.mubr.bf16.gmra.mrb[0].mxu0 %v3015
          %v3904 = vpop.f32.mrb[0].mxu0
          %v3905 = vadd.f32 %v3852, %v3904
          %v3906 = vpop.f32.mrb[0].mxu0
          %v3907 = vadd.f32 %v3854, %v3906
          %v3908 = vpop.f32.mrb[0].mxu0
          %v3909 = vadd.f32 %v3856, %v3908
          %v3910 = vpop.f32.mrb[0].mxu0
          %v3911 = vadd.f32 %v3858, %v3910
          %3912 = vdwg.mxu0
          %3913 = vmatprep.subr.bf16.mxu0 %v3554
          %3914 = vmatpush1.bf16.msra.mxu0 %v3553
          %3915 = vmatprep.subr.bf16.mxu0 %v3558
          %3916 = vmatpush1.bf16.msra.mxu0 %v3557
          %3917 = vmatprep.subr.bf16.mxu0 %v3562
          %3918 = vmatpush1.bf16.msra.mxu0 %v3561
          %3919 = vmatprep.subr.bf16.mxu0 %v3566
          %3920 = vmatpush1.bf16.msra.mxu0 %v3565
          %3921 = vmatprep.subr.bf16.mxu0 %v3570
          %3922 = vmatpush1.bf16.msra.mxu0 %v3569
          %3923 = vmatprep.subr.bf16.mxu0 %v3574
          %3924 = vmatpush1.bf16.msra.mxu0 %v3573
          %3925 = vmatprep.subr.bf16.mxu0 %v3578
          %3926 = vmatpush1.bf16.msra.mxu0 %v3577
          %3927 = vmatprep.subr.bf16.mxu0 %v3582
          %3928 = vmatpush1.bf16.msra.mxu0 %v3581
          %3929 = vmatprep.subr.bf16.mxu0 %v3586
          %3930 = vmatpush1.bf16.msra.mxu0 %v3585
          %3931 = vmatprep.subr.bf16.mxu0 %v3590
          %3932 = vmatpush1.bf16.msra.mxu0 %v3589
          %3933 = vmatprep.subr.bf16.mxu0 %v3594
          %3934 = vmatpush1.bf16.msra.mxu0 %v3593
          %3935 = vmatprep.subr.bf16.mxu0 %v3598
          %3936 = vmatpush1.bf16.msra.mxu0 %v3597
          %3937 = vmatprep.subr.bf16.mxu0 %v3602
          %3938 = vmatpush1.bf16.msra.mxu0 %v3601
          %3939 = vmatprep.subr.bf16.mxu0 %v3606
          %3940 = vmatpush1.bf16.msra.mxu0 %v3605
          %3941 = vmatprep.subr.bf16.mxu0 %v3610
          %3942 = vmatpush1.bf16.msra.mxu0 %v3609
          %3943 = vmatprep.subr.bf16.mxu0 %v3614
          %3944 = vmatpush1.bf16.msra.mxu0 %v3613
          %3945 = vmatprep.mubr.bf16.mxu0 %v3010
          %3946 = vmatmul.mubr.bf16.gmra.mrb[0].mxu0 %v3009
          %v3947 = vpop.f32.mrb[0].mxu0
          %v3948 = vadd.f32 %v3158, %v3947
          %v3949 = vpop.f32.mrb[0].mxu0
          %v3950 = vadd.f32 %v3162, %v3949
          %v3951 = vpop.f32.mrb[0].mxu0
          %v3952 = vadd.f32 %v3158, %v3951
          %v3953 = vpop.f32.mrb[0].mxu0
          %v3954 = vadd.f32 %v3162, %v3953
          %3955 = vmatprep.mubr.bf16.mxu0 %v3014
          %3956 = vmatmul.mubr.bf16.gmra.mrb[0].mxu0 %v3013
          %v3957 = vpop.f32.mrb[0].mxu0
          %v3958 = vadd.f32 %v3158, %v3957
          %v3959 = vpop.f32.mrb[0].mxu0
          %v3960 = vadd.f32 %v3162, %v3959
          %v3961 = vpop.f32.mrb[0].mxu0
          %v3962 = vadd.f32 %v3158, %v3961
          %v3963 = vpop.f32.mrb[0].mxu0
          %v3964 = vadd.f32 %v3162, %v3963
          %3965 = vdwg.mxu0
          %3966 = vmatprep.subr.bf16.mxu0 %v3618
          %3967 = vmatpush1.bf16.msra.mxu0 %v3617
          %3968 = vmatprep.subr.bf16.mxu0 %v3622
          %3969 = vmatpush1.bf16.msra.mxu0 %v3621
          %3970 = vmatprep.subr.bf16.mxu0 %v3626
          %3971 = vmatpush1.bf16.msra.mxu0 %v3625
          %3972 = vmatprep.subr.bf16.mxu0 %v3630
          %3973 = vmatpush1.bf16.msra.mxu0 %v3629
          %3974 = vmatprep.subr.bf16.mxu0 %v3634
          %3975 = vmatpush1.bf16.msra.mxu0 %v3633
          %3976 = vmatprep.subr.bf16.mxu0 %v3638
          %3977 = vmatpush1.bf16.msra.mxu0 %v3637
          %3978 = vmatprep.subr.bf16.mxu0 %v3642
          %3979 = vmatpush1.bf16.msra.mxu0 %v3641
          %3980 = vmatprep.subr.bf16.mxu0 %v3646
          %3981 = vmatpush1.bf16.msra.mxu0 %v3645
          %3982 = vmatprep.subr.bf16.mxu0 %v3650
          %3983 = vmatpush1.bf16.msra.mxu0 %v3649
          %3984 = vmatprep.subr.bf16.mxu0 %v3654
          %3985 = vmatpush1.bf16.msra.mxu0 %v3653
          %3986 = vmatprep.subr.bf16.mxu0 %v3658
          %3987 = vmatpush1.bf16.msra.mxu0 %v3657
          %3988 = vmatprep.subr.bf16.mxu0 %v3662
          %3989 = vmatpush1.bf16.msra.mxu0 %v3661
          %3990 = vmatprep.subr.bf16.mxu0 %v3666
          %3991 = vmatpush1.bf16.msra.mxu0 %v3665
          %3992 = vmatprep.subr.bf16.mxu0 %v3670
          %3993 = vmatpush1.bf16.msra.mxu0 %v3669
          %3994 = vmatprep.subr.bf16.mxu0 %v3674
          %3995 = vmatpush1.bf16.msra.mxu0 %v3673
          %3996 = vmatprep.subr.bf16.mxu0 %v3678
          %3997 = vmatpush1.bf16.msra.mxu0 %v3677
          %3998 = vmatprep.mubr.bf16.mxu0 %v3012
          %3999 = vmatmul.mubr.bf16.gmra.mrb[0].mxu0 %v3011
          %v4000 = vpop.f32.mrb[0].mxu0
          %v4001 = vadd.f32 %v3948, %v4000
          %v4002 = vpop.f32.mrb[0].mxu0
          %v4003 = vadd.f32 %v3950, %v4002
          %v4004 = vpop.f32.mrb[0].mxu0
          %v4005 = vadd.f32 %v3952, %v4004
          %v4006 = vpop.f32.mrb[0].mxu0
          %v4007 = vadd.f32 %v3954, %v4006
          %4008 = vmatprep.mubr.bf16.mxu0 %v3016
          %4009 = vmatmul.mubr.bf16.gmra.mrb[0].mxu0 %v3015
          %v4010 = vpop.f32.mrb[0].mxu0
          %v4011 = vadd.f32 %v3958, %v4010
          %v4012 = vpop.f32.mrb[0].mxu0
          %v4013 = vadd.f32 %v3960, %v4012
          %v4014 = vpop.f32.mrb[0].mxu0
          %v4015 = vadd.f32 %v3962, %v4014
          %v4016 = vpop.f32.mrb[0].mxu0
          %v4017 = vadd.f32 %v3964, %v4016
          %4018 = vdwg.mxu0
          %v4019 = vld [vmem:[#allocation2] sm:$0xff]
          %v4020 = vld [vmem:[#allocation2 + $0x8] sm:$0xff]
          %v4021 = vld [vmem:[#allocation2 + $0x10] sm:$0xff]
          %v4022 = vld [vmem:[#allocation2 + $0x18] sm:$0xff]
          %v4023 = vld [vmem:[#allocation2 + $0x20] sm:$0xff]
          %v4024 = vld [vmem:[#allocation2 + $0x28] sm:$0xff]
          %v4025 = vld [vmem:[#allocation2 + $0x30] sm:$0xff]
          %v4026 = vld [vmem:[#allocation2 + $0x38] sm:$0xff]
          %v4027 = vld [vmem:[#allocation2 + $0x40] sm:$0xff]
          %v4028 = vld [vmem:[#allocation2 + $0x48] sm:$0xff]
          %v4029 = vld [vmem:[#allocation2 + $0x50] sm:$0xff]
          %v4030 = vld [vmem:[#allocation2 + $0x58] sm:$0xff]
          %v4031 = vld [vmem:[#allocation2 + $0x60] sm:$0xff]
          %v4032 = vld [vmem:[#allocation2 + $0x68] sm:$0xff]
          %v4033 = vld [vmem:[#allocation2 + $0x70] sm:$0xff]
          %v4034 = vld [vmem:[#allocation2 + $0x78] sm:$0xff]
          %v4035 = vld [vmem:[#allocation3] sm:$0xff]
          %v4036 = vld [vmem:[#allocation3 + $0x8] sm:$0xff]
          %v4037 = vld [vmem:[#allocation3 + $0x10] sm:$0xff]
          %v4038 = vld [vmem:[#allocation3 + $0x18] sm:$0xff]
          %v4039 = vld [vmem:[#allocation3 + $0x20] sm:$0xff]
          %v4040 = vld [vmem:[#allocation3 + $0x28] sm:$0xff]
          %v4041 = vld [vmem:[#allocation3 + $0x30] sm:$0xff]
          %v4042 = vld [vmem:[#allocation3 + $0x38] sm:$0xff]
          %v4043 = vld [vmem:[#allocation3 + $0x40] sm:$0xff]
          %v4044 = vld [vmem:[#allocation3 + $0x48] sm:$0xff]
          %v4045 = vld [vmem:[#allocation3 + $0x50] sm:$0xff]
          %v4046 = vld [vmem:[#allocation3 + $0x58] sm:$0xff]
          %v4047 = vld [vmem:[#allocation3 + $0x60] sm:$0xff]
          %v4048 = vld [vmem:[#allocation3 + $0x68] sm:$0xff]
          %v4049 = vld [vmem:[#allocation3 + $0x70] sm:$0xff]
          %v4050 = vld [vmem:[#allocation3 + $0x78] sm:$0xff]
          %v4051 = vlaneseq
          %v4052 = vshrl.u32 %v4051, 7
          %v4053 = vadd.s32 %v4052, 8
          %v4054 = vadd.s32 %v4052, 16
          %v4055 = vadd.s32 %v4052, 24
          %v4056 = vlaneseq
          %v4057 = vand.u32 %v4056, 127
          %vm4058 = vcmp.lt.s32.totalorder %v4052, 0
          %v4059 = vsub.s32 0, %v4052
          %v4060 = vsel %vm4058, %v4059, %v4052
          %v4061 = vshrl.u32 %v4060, 1
          %v4062 = vand.u32 %v4060, 1
          %v4063 = vsub.s32 0, %v4062
          %v4064 = vsel %vm4058, %v4063, %v4062
          %vm4065 = vcmp.lt.s32.totalorder %v4053, 0
          %v4066 = vsub.s32 0, %v4053
          %v4067 = vsel %vm4065, %v4066, %v4053
          %v4068 = vshrl.u32 %v4067, 1
          %v4069 = vand.u32 %v4067, 1
          %v4070 = vsub.s32 0, %v4069
          %v4071 = vsel %vm4065, %v4070, %v4069
          %vm4072 = vcmp.lt.s32.totalorder %v4054, 0
          %v4073 = vsub.s32 0, %v4054
          %v4074 = vsel %vm4072, %v4073, %v4054
          %v4075 = vshrl.u32 %v4074, 1
          %v4076 = vand.u32 %v4074, 1
          %v4077 = vsub.s32 0, %v4076
          %v4078 = vsel %vm4072, %v4077, %v4076
          %vm4079 = vcmp.lt.s32.totalorder %v4055, 0
          %v4080 = vsub.s32 0, %v4055
          %v4081 = vsel %vm4079, %v4080, %v4055
          %v4082 = vshrl.u32 %v4081, 1
          %v4083 = vand.u32 %v4081, 1
          %v4084 = vsub.s32 0, %v4083
          %v4085 = vsel %vm4079, %v4084, %v4083
          %vm4086 = vcmp.ne.s32.totalorder %v4064, 0
          %vm4087 = vcmp.ne.s32.totalorder %v4071, 0
          %vm4088 = vcmp.ne.s32.totalorder %v4078, 0
          %vm4089 = vcmp.ne.s32.totalorder %v4085, 0
          %vm4090 = vcmp.lt.s32.totalorder %v4064, 0
          %vm4091 = vcmp.lt.s32.totalorder %v4071, 0
          %vm4092 = vcmp.lt.s32.totalorder %v4078, 0
          %vm4093 = vcmp.lt.s32.totalorder %v4085, 0
          %vm4094 = vmand %vm4090, %vm4086
          %vm4095 = vmand %vm4091, %vm4087
          %vm4096 = vmand %vm4092, %vm4088
          %vm4097 = vmand %vm4093, %vm4089
          %v4098 = vadd.s32 %v4064, 2
          %v4099 = vadd.s32 %v4071, 2
          %v4100 = vadd.s32 %v4078, 2
          %v4101 = vadd.s32 %v4085, 2
          %v4102 = vsel %vm4094, %v4098, %v4064
          %v4103 = vsel %vm4095, %v4099, %v4071
          %v4104 = vsel %vm4096, %v4100, %v4078
          %v4105 = vsel %vm4097, %v4101, %v4085
          %vm4106 = vcmp.lt.s32.totalorder %v4057, 0
          %v4107 = vsub.s32 0, %v4057
          %v4108 = vsel %vm4106, %v4107, %v4057
          %v4109 = vshrl.u32 %v4108, 1
          %v4110 = vand.u32 %v4108, 1
          %v4111 = vsub.s32 0, %v4110
          %v4112 = vsel %vm4106, %v4111, %v4110
          %vm4113 = vcmp.ne.s32.totalorder %v4112, 0
          %vm4114 = vcmp.lt.s32.totalorder %v4112, 0
          %vm4115 = vmand %vm4114, %vm4113
          %v4116 = vadd.s32 %v4112, 2
          %v4117 = vsel %vm4115, %v4116, %v4112
          %vm4118 = vcmp.eq.s32.totalorder %v4102, %v4117
          %vm4119 = vcmp.eq.s32.totalorder %v4103, %v4117
          %vm4120 = vcmp.eq.s32.totalorder %v4104, %v4117
          %vm4121 = vcmp.eq.s32.totalorder %v4105, %v4117
          %vm4122 = vcmask 523264
          %v4124 = vsel %vm4122, %v4019, 0
          %v4127 = vsel %vm4122, %v4023, 0
          %v4130 = vsel %vm4122, %v4027, 0
          %v4133 = vsel %vm4122, %v4031, 0
          %v4136 = vsel %vm4122, %v4035, 0
          %v4139 = vsel %vm4122, %v4039, 0
          %v4142 = vsel %vm4122, %v4043, 0
          %v4145 = vsel %vm4122, %v4047, 0
          %4147 = vmatprep.subr.mxu0 0.0
          %4148 = vmatpush1.xpose.msra.mxu0 %v4136
          %4149 = vmatprep.subr.mxu0 0.0
          %4150 = vmatpush1.xpose.msra.mxu0 %v4139
          %4151 = vmatprep.subr.mxu0 0.0
          %4152 = vmatpush1.xpose.msra.mxu0 %v4142
          %4153 = vmatprep.subr.mxu0 0.0
          %4154 = vmatpush1.xpose.msra.mxu0 %v4145
          %4155 = vmatprep.subr.mxu0 0.0
          %4156 = vmatpush1.xpose.msra.mxu0 0.0
          %4157 = vmatprep.subr.mxu0 0.0
          %4158 = vmatpush1.xpose.msra.mxu0 0.0
          %4159 = vmatprep.subr.mxu0 0.0
          %4160 = vmatpush1.xpose.msra.mxu0 0.0
          %4161 = vmatprep.subr.mxu0 0.0
          %4162 = vmatpush1.xpose.msra.mxu0 0.0
          %4163 = vmatprep.subr.mxu0 0.0
          %4164 = vmatpush1.xpose.msra.mxu0 0.0
          %4165 = vmatprep.subr.mxu0 0.0
          %4166 = vmatpush1.xpose.msra.mxu0 0.0
          %4167 = vmatprep.subr.mxu0 0.0
          %4168 = vmatpush1.xpose.msra.mxu0 0.0
          %4169 = vmatprep.subr.mxu0 0.0
          %4170 = vmatpush1.xpose.msra.mxu0 0.0
          %4171 = vmatprep.subr.mxu0 0.0
          %4172 = vmatpush1.xpose.msra.mxu0 0.0
          %4173 = vmatprep.subr.mxu0 0.0
          %4174 = vmatpush1.xpose.msra.mxu0 0.0
          %4175 = vmatprep.subr.mxu0 0.0
          %4176 = vmatpush1.xpose.msra.mxu0 0.0
          %4177 = vmatprep.subr.mxu0 0.0
          %4178 = vmatpush1.xpose.msra.mxu0 0.0
          %4179 = vmatprep.subr.mxu0 0.0
          %4180 = vmatpush1.xpose.msra.mxu0 0.0
          %4181 = vmatprep.subr.mxu0 0.0
          %4182 = vmatpush1.xpose.msra.mxu0 0.0
          %4183 = vmatprep.subr.mxu0 0.0
          %4184 = vmatpush1.xpose.msra.mxu0 0.0
          %4185 = vmatprep.subr.mxu0 0.0
          %4186 = vmatpush1.xpose.msra.mxu0 0.0
          %4187 = vmatprep.subr.mxu0 0.0
          %4188 = vmatpush1.xpose.msra.mxu0 0.0
          %4189 = vmatprep.subr.mxu0 0.0
          %4190 = vmatpush1.xpose.msra.mxu0 0.0
          %4191 = vmatprep.subr.mxu0 0.0
          %4192 = vmatpush1.xpose.msra.mxu0 0.0
          %4193 = vmatprep.subr.mxu0 0.0
          %4194 = vmatpush1.xpose.msra.mxu0 0.0
          %4195 = vmatprep.subr.mxu0 0.0
          %4196 = vmatpush1.xpose.msra.mxu0 0.0
          %4197 = vmatprep.subr.mxu0 0.0
          %4198 = vmatpush1.xpose.msra.mxu0 0.0
          %4199 = vmatprep.subr.mxu0 0.0
          %4200 = vmatpush1.xpose.msra.mxu0 0.0
          %4201 = vmatprep.subr.mxu0 0.0
          %4202 = vmatpush1.xpose.msra.mxu0 0.0
          %4203 = vmatprep.subr.mxu0 0.0
          %4204 = vmatpush1.xpose.msra.mxu0 0.0
          %4205 = vmatprep.subr.mxu0 0.0
          %4206 = vmatpush1.xpose.msra.mxu0 0.0
          %4207 = vmatprep.subr.mxu0 0.0
          %4208 = vmatpush1.xpose.msra.mxu0 0.0
          %4209 = vmatprep.subr.mxu0 0.0
          %4210 = vmatpush1.xpose.msra.mxu0 0.0
          %4211 = vmatprep.mubr.f32.mxu0 0.0
          %4212 = vmatmul.mubr.f32.gmra.mrb[0].mxu0 %v4124
          %v4213 = vpop.f32.mrb[0].mxu0
          %v4214 = vadd.f32 0.0, %v4213
          %v4215 = vpop.f32.mrb[0].mxu0
          %4216 = vmatprep.mubr.f32.mxu0 0.0
          %4217 = vmatmul.mubr.f32.gmra.mrb[0].mxu0 %v4127
          %v4218 = vpop.f32.mrb[0].mxu0
          %v4219 = vadd.f32 0.0, %v4218
          %v4220 = vpop.f32.mrb[0].mxu0
          %4221 = vmatprep.mubr.f32.mxu0 0.0
          %4222 = vmatmul.mubr.f32.gmra.mrb[0].mxu0 %v4130
          %v4223 = vpop.f32.mrb[0].mxu0
          %v4224 = vadd.f32 0.0, %v4223
          %v4225 = vpop.f32.mrb[0].mxu0
          %4226 = vmatprep.mubr.f32.mxu0 0.0
          %4227 = vmatmul.mubr.f32.gmra.mrb[0].mxu0 %v4133
          %v4228 = vpop.f32.mrb[0].mxu0
          %v4229 = vadd.f32 0.0, %v4228
          %v4230 = vpop.f32.mrb[0].mxu0
          %4231 = vdwg.mxu0
          %v4232 = vsel %vm4118, %v4214, -1e+30
          %v4233 = vsel %vm4119, %v4219, -1e+30
          %v4234 = vsel %vm4120, %v4224, -1e+30
          %v4235 = vsel %vm4121, %v4229, -1e+30
          %vm4236 = vcmask 261120
          %v4237 = vsel %vm4236, %v4232, -inf
          %4238 = vmax.xlane.f32.xlu0 %v4237
          %v4239 = vpop.xlane.xlu0 %4238
          %v4240 = vsel %vm4236, %v4233, -inf
          %4241 = vmax.xlane.f32.xlu0 %v4240
          %v4242 = vpop.xlane.xlu0 %4241
          %v4243 = vsel %vm4236, %v4234, -inf
          %4244 = vmax.xlane.f32.xlu0 %v4243
          %v4245 = vpop.xlane.xlu0 %4244
          %v4246 = vsel %vm4236, %v4235, -inf
          %4247 = vmax.xlane.f32.xlu0 %v4246
          %v4248 = vpop.xlane.xlu0 %4247
          %v4249 = vsub.f32 %v4232, %v4239
          %v4250 = vsub.f32 %v4233, %v4242
          %v4251 = vsub.f32 %v4234, %v4245
          %v4252 = vsub.f32 %v4235, %v4248
          %v4253 = vmul.f32 %v4249, 1.442695
          %v4254 = vpow.pop %v4253
          %v4255 = vmul.f32 %v4250, 1.442695
          %v4256 = vpow.pop %v4255
          %v4257 = vmul.f32 %v4251, 1.442695
          %v4258 = vpow.pop %v4257
          %v4259 = vmul.f32 %v4252, 1.442695
          %v4260 = vpow.pop %v4259
          %v4261 = vsel %vm4236, %v4254, 0.0
          %4262 = vadd.xlane.f32.xlu0 %v4261
          %v4263 = vpop.xlane.xlu0 %4262
          %v4264 = vsel %vm4236, %v4256, 0.0
          %4265 = vadd.xlane.f32.xlu0 %v4264
          %v4266 = vpop.xlane.xlu0 %4265
          %v4267 = vsel %vm4236, %v4258, 0.0
          %4268 = vadd.xlane.f32.xlu0 %v4267
          %v4269 = vpop.xlane.xlu0 %4268
          %v4270 = vsel %vm4236, %v4260, 0.0
          %4271 = vadd.xlane.f32.xlu0 %v4270
          %v4272 = vpop.xlane.xlu0 %4271
          %v4273 = vrcp.pop %v4263
          %v4274 = vrcp.pop %v4266
          %v4275 = vrcp.pop %v4269
          %v4276 = vrcp.pop %v4272
          %v4277 = vmul.f32 %v4254, %v4273
          %v4278 = vmul.f32 %v4256, %v4274
          %v4279 = vmul.f32 %v4258, %v4275
          %v4280 = vmul.f32 %v4260, %v4276
          %v4282 = vsel %vm4236, %v4277, 0
          %v4285 = vsel %vm4236, %v4278, 0
          %v4288 = vsel %vm4236, %v4279, 0
          %v4291 = vsel %vm4236, %v4280, 0
          %4293 = vmatprep.subr.mxu0 0.0
          %4294 = vmatpush1.msra.mxu0 %v3895
          %4295 = vmatprep.subr.mxu0 0.0
          %4296 = vmatpush1.msra.mxu0 %v3899
          %4297 = vmatprep.subr.mxu0 0.0
          %4298 = vmatpush1.msra.mxu0 %v3905
          %4299 = vmatprep.subr.mxu0 0.0
          %4300 = vmatpush1.msra.mxu0 %v3909
          %4301 = vmatprep.subr.mxu0 0.0
          %4302 = vmatpush1.msra.mxu0 0.0
          %4303 = vmatprep.subr.mxu0 0.0
          %4304 = vmatpush1.msra.mxu0 0.0
          %4305 = vmatprep.subr.mxu0 0.0
          %4306 = vmatpush1.msra.mxu0 0.0
          %4307 = vmatprep.subr.mxu0 0.0
          %4308 = vmatpush1.msra.mxu0 0.0
          %4309 = vmatprep.subr.mxu0 0.0
          %4310 = vmatpush1.msra.mxu0 0.0
          %4311 = vmatprep.subr.mxu0 0.0
          %4312 = vmatpush1.msra.mxu0 0.0
          %4313 = vmatprep.subr.mxu0 0.0
          %4314 = vmatpush1.msra.mxu0 0.0
          %4315 = vmatprep.subr.mxu0 0.0
          %4316 = vmatpush1.msra.mxu0 0.0
          %4317 = vmatprep.subr.mxu0 0.0
          %4318 = vmatpush1.msra.mxu0 0.0
          %4319 = vmatprep.subr.mxu0 0.0
          %4320 = vmatpush1.msra.mxu0 0.0
          %4321 = vmatprep.subr.mxu0 0.0
          %4322 = vmatpush1.msra.mxu0 0.0
          %4323 = vmatprep.subr.mxu0 0.0
          %4324 = vmatpush1.msra.mxu0 0.0
          %4325 = vmatprep.subr.mxu0 0.0
          %4326 = vmatpush1.msra.mxu0 0.0
          %4327 = vmatprep.subr.mxu0 0.0
          %4328 = vmatpush1.msra.mxu0 0.0
          %4329 = vmatprep.subr.mxu0 0.0
          %4330 = vmatpush1.msra.mxu0 0.0
          %4331 = vmatprep.subr.mxu0 0.0
          %4332 = vmatpush1.msra.mxu0 0.0
          %4333 = vmatprep.subr.mxu0 0.0
          %4334 = vmatpush1.msra.mxu0 0.0
          %4335 = vmatprep.subr.mxu0 0.0
          %4336 = vmatpush1.msra.mxu0 0.0
          %4337 = vmatprep.subr.mxu0 0.0
          %4338 = vmatpush1.msra.mxu0 0.0
          %4339 = vmatprep.subr.mxu0 0.0
          %4340 = vmatpush1.msra.mxu0 0.0
          %4341 = vmatprep.subr.mxu0 0.0
          %4342 = vmatpush1.msra.mxu0 0.0
          %4343 = vmatprep.subr.mxu0 0.0
          %4344 = vmatpush1.msra.mxu0 0.0
          %4345 = vmatprep.subr.mxu0 0.0
          %4346 = vmatpush1.msra.mxu0 0.0
          %4347 = vmatprep.subr.mxu0 0.0
          %4348 = vmatpush1.msra.mxu0 0.0
          %4349 = vmatprep.subr.mxu0 0.0
          %4350 = vmatpush1.msra.mxu0 0.0
          %4351 = vmatprep.subr.mxu0 0.0
          %4352 = vmatpush1.msra.mxu0 0.0
          %4353 = vmatprep.subr.mxu0 0.0
          %4354 = vmatpush1.msra.mxu0 0.0
          %4355 = vmatprep.subr.mxu0 0.0
          %4356 = vmatpush1.msra.mxu0 0.0
          %4357 = vmatprep.mubr.f32.mxu0 0.0
          %4358 = vmatmul.mubr.f32.gmra.mrb[0].mxu0 %v4282
          %v4359 = vpop.f32.mrb[0].mxu0
          %v4360 = vadd.f32 0.0, %v4359
          %v4361 = vpop.f32.mrb[0].mxu0
          %4362 = vmatprep.mubr.f32.mxu0 0.0
          %4363 = vmatmul.mubr.f32.gmra.mrb[0].mxu0 %v4285
          %v4364 = vpop.f32.mrb[0].mxu0
          %v4365 = vadd.f32 0.0, %v4364
          %v4366 = vpop.f32.mrb[0].mxu0
          %4367 = vmatprep.mubr.f32.mxu0 0.0
          %4368 = vmatmul.mubr.f32.gmra.mrb[0].mxu0 %v4288
          %v4369 = vpop.f32.mrb[0].mxu0
          %v4370 = vadd.f32 0.0, %v4369
          %v4371 = vpop.f32.mrb[0].mxu0
          %4372 = vmatprep.mubr.f32.mxu0 0.0
          %4373 = vmatmul.mubr.f32.gmra.mrb[0].mxu0 %v4291
          %v4374 = vpop.f32.mrb[0].mxu0
          %v4375 = vadd.f32 0.0, %v4374
          %v4376 = vpop.f32.mrb[0].mxu0
          %4377 = vdwg.mxu0
          %4378 = vrot.lane.b32.xlu0 %v4019, 64
          %v4379 = vpop.permute.xlu0 %4378
          %4380 = vrot.lane.b32.xlu0 %v4023, 64
          %v4381 = vpop.permute.xlu0 %4380
          %4382 = vrot.lane.b32.xlu0 %v4027, 64
          %v4383 = vpop.permute.xlu0 %4382
          %4384 = vrot.lane.b32.xlu0 %v4031, 64
          %v4385 = vpop.permute.xlu0 %4384
          %4386 = vrot.lane.b32.xlu0 %v4035, 64
          %v4387 = vpop.permute.xlu0 %4386
          %4388 = vrot.lane.b32.xlu0 %v4039, 64
          %v4389 = vpop.permute.xlu0 %4388
          %4390 = vrot.lane.b32.xlu0 %v4043, 64
          %v4391 = vpop.permute.xlu0 %4390
          %4392 = vrot.lane.b32.xlu0 %v4047, 64
          %v4393 = vpop.permute.xlu0 %4392
          %v4394 = vsel %vm4122, %v4379, 0
          %v4396 = vsel %vm4122, %v4381, 0
          %v4398 = vsel %vm4122, %v4383, 0
          %v4400 = vsel %vm4122, %v4385, 0
          %v4402 = vsel %vm4122, %v4387, 0
          %v4404 = vsel %vm4122, %v4389, 0
          %v4406 = vsel %vm4122, %v4391, 0
          %v4408 = vsel %vm4122, %v4393, 0
          %4410 = vmatprep.subr.mxu0 0.0
          %4411 = vmatpush1.xpose.msra.mxu0 %v4402
          %4412 = vmatprep.subr.mxu0 0.0
          %4413 = vmatpush1.xpose.msra.mxu0 %v4404
          %4414 = vmatprep.subr.mxu0 0.0
          %4415 = vmatpush1.xpose.msra.mxu0 %v4406
          %4416 = vmatprep.subr.mxu0 0.0
          %4417 = vmatpush1.xpose.msra.mxu0 %v4408
          %4418 = vmatprep.subr.mxu0 0.0
          %4419 = vmatpush1.xpose.msra.mxu0 0.0
          %4420 = vmatprep.subr.mxu0 0.0
          %4421 = vmatpush1.xpose.msra.mxu0 0.0
          %4422 = vmatprep.subr.mxu0 0.0
          %4423 = vmatpush1.xpose.msra.mxu0 0.0
          %4424 = vmatprep.subr.mxu0 0.0
          %4425 = vmatpush1.xpose.msra.mxu0 0.0
          %4426 = vmatprep.subr.mxu0 0.0
          %4427 = vmatpush1.xpose.msra.mxu0 0.0
          %4428 = vmatprep.subr.mxu0 0.0
          %4429 = vmatpush1.xpose.msra.mxu0 0.0
          %4430 = vmatprep.subr.mxu0 0.0
          %4431 = vmatpush1.xpose.msra.mxu0 0.0
          %4432 = vmatprep.subr.mxu0 0.0
          %4433 = vmatpush1.xpose.msra.mxu0 0.0
          %4434 = vmatprep.subr.mxu0 0.0
          %4435 = vmatpush1.xpose.msra.mxu0 0.0
          %4436 = vmatprep.subr.mxu0 0.0
          %4437 = vmatpush1.xpose.msra.mxu0 0.0
          %4438 = vmatprep.subr.mxu0 0.0
          %4439 = vmatpush1.xpose.msra.mxu0 0.0
          %4440 = vmatprep.subr.mxu0 0.0
          %4441 = vmatpush1.xpose.msra.mxu0 0.0
          %4442 = vmatprep.subr.mxu0 0.0
          %4443 = vmatpush1.xpose.msra.mxu0 0.0
          %4444 = vmatprep.subr.mxu0 0.0
          %4445 = vmatpush1.xpose.msra.mxu0 0.0
          %4446 = vmatprep.subr.mxu0 0.0
          %4447 = vmatpush1.xpose.msra.mxu0 0.0
          %4448 = vmatprep.subr.mxu0 0.0
          %4449 = vmatpush1.xpose.msra.mxu0 0.0
          %4450 = vmatprep.subr.mxu0 0.0
          %4451 = vmatpush1.xpose.msra.mxu0 0.0
          %4452 = vmatprep.subr.mxu0 0.0
          %4453 = vmatpush1.xpose.msra.mxu0 0.0
          %4454 = vmatprep.subr.mxu0 0.0
          %4455 = vmatpush1.xpose.msra.mxu0 0.0
          %4456 = vmatprep.subr.mxu0 0.0
          %4457 = vmatpush1.xpose.msra.mxu0 0.0
          %4458 = vmatprep.subr.mxu0 0.0
          %4459 = vmatpush1.xpose.msra.mxu0 0.0
          %4460 = vmatprep.subr.mxu0 0.0
          %4461 = vmatpush1.xpose.msra.mxu0 0.0
          %4462 = vmatprep.subr.mxu0 0.0
          %4463 = vmatpush1.xpose.msra.mxu0 0.0
          %4464 = vmatprep.subr.mxu0 0.0
          %4465 = vmatpush1.xpose.msra.mxu0 0.0
          %4466 = vmatprep.subr.mxu0 0.0
          %4467 = vmatpush1.xpose.msra.mxu0 0.0
          %4468 = vmatprep.subr.mxu0 0.0
          %4469 = vmatpush1.xpose.msra.mxu0 0.0
          %4470 = vmatprep.subr.mxu0 0.0
          %4471 = vmatpush1.xpose.msra.mxu0 0.0
          %4472 = vmatprep.subr.mxu0 0.0
          %4473 = vmatpush1.xpose.msra.mxu0 0.0
          %4474 = vmatprep.mubr.f32.mxu0 0.0
          %4475 = vmatmul.mubr.f32.gmra.mrb[0].mxu0 %v4394
          %v4476 = vpop.f32.mrb[0].mxu0
          %v4477 = vadd.f32 0.0, %v4476
          %v4478 = vpop.f32.mrb[0].mxu0
          %4479 = vmatprep.mubr.f32.mxu0 0.0
          %4480 = vmatmul.mubr.f32.gmra.mrb[0].mxu0 %v4396
          %v4481 = vpop.f32.mrb[0].mxu0
          %v4482 = vadd.f32 0.0, %v4481
          %v4483 = vpop.f32.mrb[0].mxu0
          %4484 = vmatprep.mubr.f32.mxu0 0.0
          %4485 = vmatmul.mubr.f32.gmra.mrb[0].mxu0 %v4398
          %v4486 = vpop.f32.mrb[0].mxu0
          %v4487 = vadd.f32 0.0, %v4486
          %v4488 = vpop.f32.mrb[0].mxu0
          %4489 = vmatprep.mubr.f32.mxu0 0.0
          %4490 = vmatmul.mubr.f32.gmra.mrb[0].mxu0 %v4400
          %v4491 = vpop.f32.mrb[0].mxu0
          %v4492 = vadd.f32 0.0, %v4491
          %v4493 = vpop.f32.mrb[0].mxu0
          %4494 = vdwg.mxu0
          %v4495 = vsel %vm4118, %v4477, -1e+30
          %v4496 = vsel %vm4119, %v4482, -1e+30
          %v4497 = vsel %vm4120, %v4487, -1e+30
          %v4498 = vsel %vm4121, %v4492, -1e+30
          %v4499 = vsel %vm4236, %v4495, -inf
          %4500 = vmax.xlane.f32.xlu0 %v4499
          %v4501 = vpop.xlane.xlu0 %4500
          %v4502 = vsel %vm4236, %v4496, -inf
          %4503 = vmax.xlane.f32.xlu0 %v4502
          %v4504 = vpop.xlane.xlu0 %4503
          %v4505 = vsel %vm4236, %v4497, -inf
          %4506 = vmax.xlane.f32.xlu0 %v4505
          %v4507 = vpop.xlane.xlu0 %4506
          %v4508 = vsel %vm4236, %v4498, -inf
          %4509 = vmax.xlane.f32.xlu0 %v4508
          %v4510 = vpop.xlane.xlu0 %4509
          %v4511 = vsub.f32 %v4495, %v4501
          %v4512 = vsub.f32 %v4496, %v4504
          %v4513 = vsub.f32 %v4497, %v4507
          %v4514 = vsub.f32 %v4498, %v4510
          %v4515 = vmul.f32 %v4511, 1.442695
          %v4516 = vpow.pop %v4515
          %v4517 = vmul.f32 %v4512, 1.442695
          %v4518 = vpow.pop %v4517
          %v4519 = vmul.f32 %v4513, 1.442695
          %v4520 = vpow.pop %v4519
          %v4521 = vmul.f32 %v4514, 1.442695
          %v4522 = vpow.pop %v4521
          %v4523 = vsel %vm4236, %v4516, 0.0
          %4524 = vadd.xlane.f32.xlu0 %v4523
          %v4525 = vpop.xlane.xlu0 %4524
          %v4526 = vsel %vm4236, %v4518, 0.0
          %4527 = vadd.xlane.f32.xlu0 %v4526
          %v4528 = vpop.xlane.xlu0 %4527
          %v4529 = vsel %vm4236, %v4520, 0.0
          %4530 = vadd.xlane.f32.xlu0 %v4529
          %v4531 = vpop.xlane.xlu0 %4530
          %v4532 = vsel %vm4236, %v4522, 0.0
          %4533 = vadd.xlane.f32.xlu0 %v4532
          %v4534 = vpop.xlane.xlu0 %4533
          %v4535 = vrcp.pop %v4525
          %v4536 = vrcp.pop %v4528
          %v4537 = vrcp.pop %v4531
          %v4538 = vrcp.pop %v4534
          %v4539 = vmul.f32 %v4516, %v4535
          %v4540 = vmul.f32 %v4518, %v4536
          %v4541 = vmul.f32 %v4520, %v4537
          %v4542 = vmul.f32 %v4522, %v4538
          %4547 = vrot.lane.b32.xlu0 %v3895, 64
          %v4548 = vpop.permute.xlu0 %4547
          %4549 = vrot.lane.b32.xlu0 %v3899, 64
          %v4550 = vpop.permute.xlu0 %4549
          %4551 = vrot.lane.b32.xlu0 %v3905, 64
          %v4552 = vpop.permute.xlu0 %4551
          %4553 = vrot.lane.b32.xlu0 %v3909, 64
          %v4554 = vpop.permute.xlu0 %4553
          %v4560 = vsel %vm4236, %v4539, 0
          %v4563 = vsel %vm4236, %v4540, 0
          %v4566 = vsel %vm4236, %v4541, 0
          %v4569 = vsel %vm4236, %v4542, 0
          %4571 = vmatprep.subr.mxu0 0.0
          %4572 = vmatpush1.msra.mxu0 %v4548
          %4573 = vmatprep.subr.mxu0 0.0
          %4574 = vmatpush1.msra.mxu0 %v4550
          %4575 = vmatprep.subr.mxu0 0.0
          %4576 = vmatpush1.msra.mxu0 %v4552
          %4577 = vmatprep.subr.mxu0 0.0
          %4578 = vmatpush1.msra.mxu0 %v4554
          %4579 = vmatprep.subr.mxu0 0.0
          %4580 = vmatpush1.msra.mxu0 0.0
          %4581 = vmatprep.subr.mxu0 0.0
          %4582 = vmatpush1.msra.mxu0 0.0
          %4583 = vmatprep.subr.mxu0 0.0
          %4584 = vmatpush1.msra.mxu0 0.0
          %4585 = vmatprep.subr.mxu0 0.0
          %4586 = vmatpush1.msra.mxu0 0.0
          %4587 = vmatprep.subr.mxu0 0.0
          %4588 = vmatpush1.msra.mxu0 0.0
          %4589 = vmatprep.subr.mxu0 0.0
          %4590 = vmatpush1.msra.mxu0 0.0
          %4591 = vmatprep.subr.mxu0 0.0
          %4592 = vmatpush1.msra.mxu0 0.0
          %4593 = vmatprep.subr.mxu0 0.0
          %4594 = vmatpush1.msra.mxu0 0.0
          %4595 = vmatprep.subr.mxu0 0.0
          %4596 = vmatpush1.msra.mxu0 0.0
          %4597 = vmatprep.subr.mxu0 0.0
          %4598 = vmatpush1.msra.mxu0 0.0
          %4599 = vmatprep.subr.mxu0 0.0
          %4600 = vmatpush1.msra.mxu0 0.0
          %4601 = vmatprep.subr.mxu0 0.0
          %4602 = vmatpush1.msra.mxu0 0.0
          %4603 = vmatprep.subr.mxu0 0.0
          %4604 = vmatpush1.msra.mxu0 0.0
          %4605 = vmatprep.subr.mxu0 0.0
          %4606 = vmatpush1.msra.mxu0 0.0
          %4607 = vmatprep.subr.mxu0 0.0
          %4608 = vmatpush1.msra.mxu0 0.0
          %4609 = vmatprep.subr.mxu0 0.0
          %4610 = vmatpush1.msra.mxu0 0.0
          %4611 = vmatprep.subr.mxu0 0.0
          %4612 = vmatpush1.msra.mxu0 0.0
          %4613 = vmatprep.subr.mxu0 0.0
          %4614 = vmatpush1.msra.mxu0 0.0
          %4615 = vmatprep.subr.mxu0 0.0
          %4616 = vmatpush1.msra.mxu0 0.0
          %4617 = vmatprep.subr.mxu0 0.0
          %4618 = vmatpush1.msra.mxu0 0.0
          %4619 = vmatprep.subr.mxu0 0.0
          %4620 = vmatpush1.msra.mxu0 0.0
          %4621 = vmatprep.subr.mxu0 0.0
          %4622 = vmatpush1.msra.mxu0 0.0
          %4623 = vmatprep.subr.mxu0 0.0
          %4624 = vmatpush1.msra.mxu0 0.0
          %4625 = vmatprep.subr.mxu0 0.0
          %4626 = vmatpush1.msra.mxu0 0.0
          %4627 = vmatprep.subr.mxu0 0.0
          %4628 = vmatpush1.msra.mxu0 0.0
          %4629 = vmatprep.subr.mxu0 0.0
          %4630 = vmatpush1.msra.mxu0 0.0
          %4631 = vmatprep.subr.mxu0 0.0
          %4632 = vmatpush1.msra.mxu0 0.0
          %4633 = vmatprep.subr.mxu0 0.0
          %4634 = vmatpush1.msra.mxu0 0.0
          %4635 = vmatprep.mubr.f32.mxu0 0.0
          %4636 = vmatmul.mubr.f32.gmra.mrb[0].mxu0 %v4560
          %v4637 = vpop.f32.mrb[0].mxu0
          %v4638 = vadd.f32 0.0, %v4637
          %v4639 = vpop.f32.mrb[0].mxu0
          %4640 = vmatprep.mubr.f32.mxu0 0.0
          %4641 = vmatmul.mubr.f32.gmra.mrb[0].mxu0 %v4563
          %v4642 = vpop.f32.mrb[0].mxu0
          %v4643 = vadd.f32 0.0, %v4642
          %v4644 = vpop.f32.mrb[0].mxu0
          %4645 = vmatprep.mubr.f32.mxu0 0.0
          %4646 = vmatmul.mubr.f32.gmra.mrb[0].mxu0 %v4566
          %v4647 = vpop.f32.mrb[0].mxu0
          %v4648 = vadd.f32 0.0, %v4647
          %v4649 = vpop.f32.mrb[0].mxu0
          %4650 = vmatprep.mubr.f32.mxu0 0.0
          %4651 = vmatmul.mubr.f32.gmra.mrb[0].mxu0 %v4569
          %v4652 = vpop.f32.mrb[0].mxu0
          %v4653 = vadd.f32 0.0, %v4652
          %v4654 = vpop.f32.mrb[0].mxu0
          %4655 = vdwg.mxu0
          %v4657 = vsel %vm4122, %v4020, 0
          %v4660 = vsel %vm4122, %v4024, 0
          %v4663 = vsel %vm4122, %v4028, 0
          %v4666 = vsel %vm4122, %v4032, 0
          %v4669 = vsel %vm4122, %v4036, 0
          %v4672 = vsel %vm4122, %v4040, 0
          %v4675 = vsel %vm4122, %v4044, 0
          %v4678 = vsel %vm4122, %v4048, 0
          %4680 = vmatprep.subr.mxu0 0.0
          %4681 = vmatpush1.xpose.msra.mxu0 %v4669
          %4682 = vmatprep.subr.mxu0 0.0
          %4683 = vmatpush1.xpose.msra.mxu0 %v4672
          %4684 = vmatprep.subr.mxu0 0.0
          %4685 = vmatpush1.xpose.msra.mxu0 %v4675
          %4686 = vmatprep.subr.mxu0 0.0
          %4687 = vmatpush1.xpose.msra.mxu0 %v4678
          %4688 = vmatprep.subr.mxu0 0.0
          %4689 = vmatpush1.xpose.msra.mxu0 0.0
          %4690 = vmatprep.subr.mxu0 0.0
          %4691 = vmatpush1.xpose.msra.mxu0 0.0
          %4692 = vmatprep.subr.mxu0 0.0
          %4693 = vmatpush1.xpose.msra.mxu0 0.0
          %4694 = vmatprep.subr.mxu0 0.0
          %4695 = vmatpush1.xpose.msra.mxu0 0.0
          %4696 = vmatprep.subr.mxu0 0.0
          %4697 = vmatpush1.xpose.msra.mxu0 0.0
          %4698 = vmatprep.subr.mxu0 0.0
          %4699 = vmatpush1.xpose.msra.mxu0 0.0
          %4700 = vmatprep.subr.mxu0 0.0
          %4701 = vmatpush1.xpose.msra.mxu0 0.0
          %4702 = vmatprep.subr.mxu0 0.0
          %4703 = vmatpush1.xpose.msra.mxu0 0.0
          %4704 = vmatprep.subr.mxu0 0.0
          %4705 = vmatpush1.xpose.msra.mxu0 0.0
          %4706 = vmatprep.subr.mxu0 0.0
          %4707 = vmatpush1.xpose.msra.mxu0 0.0
          %4708 = vmatprep.subr.mxu0 0.0
          %4709 = vmatpush1.xpose.msra.mxu0 0.0
          %4710 = vmatprep.subr.mxu0 0.0
          %4711 = vmatpush1.xpose.msra.mxu0 0.0
          %4712 = vmatprep.subr.mxu0 0.0
          %4713 = vmatpush1.xpose.msra.mxu0 0.0
          %4714 = vmatprep.subr.mxu0 0.0
          %4715 = vmatpush1.xpose.msra.mxu0 0.0
          %4716 = vmatprep.subr.mxu0 0.0
          %4717 = vmatpush1.xpose.msra.mxu0 0.0
          %4718 = vmatprep.subr.mxu0 0.0
          %4719 = vmatpush1.xpose.msra.mxu0 0.0
          %4720 = vmatprep.subr.mxu0 0.0
          %4721 = vmatpush1.xpose.msra.mxu0 0.0
          %4722 = vmatprep.subr.mxu0 0.0
          %4723 = vmatpush1.xpose.msra.mxu0 0.0
          %4724 = vmatprep.subr.mxu0 0.0
          %4725 = vmatpush1.xpose.msra.mxu0 0.0
          %4726 = vmatprep.subr.mxu0 0.0
          %4727 = vmatpush1.xpose.msra.mxu0 0.0
          %4728 = vmatprep.subr.mxu0 0.0
          %4729 = vmatpush1.xpose.msra.mxu0 0.0
          %4730 = vmatprep.subr.mxu0 0.0
          %4731 = vmatpush1.xpose.msra.mxu0 0.0
          %4732 = vmatprep.subr.mxu0 0.0
          %4733 = vmatpush1.xpose.msra.mxu0 0.0
          %4734 = vmatprep.subr.mxu0 0.0
          %4735 = vmatpush1.xpose.msra.mxu0 0.0
          %4736 = vmatprep.subr.mxu0 0.0
          %4737 = vmatpush1.xpose.msra.mxu0 0.0
          %4738 = vmatprep.subr.mxu0 0.0
          %4739 = vmatpush1.xpose.msra.mxu0 0.0
          %4740 = vmatprep.subr.mxu0 0.0
          %4741 = vmatpush1.xpose.msra.mxu0 0.0
          %4742 = vmatprep.subr.mxu0 0.0
          %4743 = vmatpush1.xpose.msra.mxu0 0.0
          %4744 = vmatprep.mubr.f32.mxu0 0.0
          %4745 = vmatmul.mubr.f32.gmra.mrb[0].mxu0 %v4657
          %v4746 = vpop.f32.mrb[0].mxu0
          %v4747 = vadd.f32 0.0, %v4746
          %v4748 = vpop.f32.mrb[0].mxu0
          %4749 = vmatprep.mubr.f32.mxu0 0.0
          %4750 = vmatmul.mubr.f32.gmra.mrb[0].mxu0 %v4660
          %v4751 = vpop.f32.mrb[0].mxu0
          %v4752 = vadd.f32 0.0, %v4751
          %v4753 = vpop.f32.mrb[0].mxu0
          %4754 = vmatprep.mubr.f32.mxu0 0.0
          %4755 = vmatmul.mubr.f32.gmra.mrb[0].mxu0 %v4663
          %v4756 = vpop.f32.mrb[0].mxu0
          %v4757 = vadd.f32 0.0, %v4756
          %v4758 = vpop.f32.mrb[0].mxu0
          %4759 = vmatprep.mubr.f32.mxu0 0.0
          %4760 = vmatmul.mubr.f32.gmra.mrb[0].mxu0 %v4666
          %v4761 = vpop.f32.mrb[0].mxu0
          %v4762 = vadd.f32 0.0, %v4761
          %v4763 = vpop.f32.mrb[0].mxu0
          %4764 = vdwg.mxu0
          %v4765 = vsel %vm4118, %v4747, -1e+30
          %v4766 = vsel %vm4119, %v4752, -1e+30
          %v4767 = vsel %vm4120, %v4757, -1e+30
          %v4768 = vsel %vm4121, %v4762, -1e+30
          %v4769 = vsel %vm4236, %v4765, -inf
          %4770 = vmax.xlane.f32.xlu0 %v4769
          %v4771 = vpop.xlane.xlu0 %4770
          %v4772 = vsel %vm4236, %v4766, -inf
          %4773 = vmax.xlane.f32.xlu0 %v4772
          %v4774 = vpop.xlane.xlu0 %4773
          %v4775 = vsel %vm4236, %v4767, -inf
          %4776 = vmax.xlane.f32.xlu0 %v4775
          %v4777 = vpop.xlane.xlu0 %4776
          %v4778 = vsel %vm4236, %v4768, -inf
          %4779 = vmax.xlane.f32.xlu0 %v4778
          %v4780 = vpop.xlane.xlu0 %4779
          %v4781 = vsub.f32 %v4765, %v4771
          %v4782 = vsub.f32 %v4766, %v4774
          %v4783 = vsub.f32 %v4767, %v4777
          %v4784 = vsub.f32 %v4768, %v4780
          %v4785 = vmul.f32 %v4781, 1.442695
          %v4786 = vpow.pop %v4785
          %v4787 = vmul.f32 %v4782, 1.442695
          %v4788 = vpow.pop %v4787
          %v4789 = vmul.f32 %v4783, 1.442695
          %v4790 = vpow.pop %v4789
          %v4791 = vmul.f32 %v4784, 1.442695
          %v4792 = vpow.pop %v4791
          %v4793 = vsel %vm4236, %v4786, 0.0
          %4794 = vadd.xlane.f32.xlu0 %v4793
          %v4795 = vpop.xlane.xlu0 %4794
          %v4796 = vsel %vm4236, %v4788, 0.0
          %4797 = vadd.xlane.f32.xlu0 %v4796
          %v4798 = vpop.xlane.xlu0 %4797
          %v4799 = vsel %vm4236, %v4790, 0.0
          %4800 = vadd.xlane.f32.xlu0 %v4799
          %v4801 = vpop.xlane.xlu0 %4800
          %v4802 = vsel %vm4236, %v4792, 0.0
          %4803 = vadd.xlane.f32.xlu0 %v4802
          %v4804 = vpop.xlane.xlu0 %4803
          %v4805 = vrcp.pop %v4795
          %v4806 = vrcp.pop %v4798
          %v4807 = vrcp.pop %v4801
          %v4808 = vrcp.pop %v4804
          %v4809 = vmul.f32 %v4786, %v4805
          %v4810 = vmul.f32 %v4788, %v4806
          %v4811 = vmul.f32 %v4790, %v4807
          %v4812 = vmul.f32 %v4792, %v4808
          %v4814 = vsel %vm4236, %v4809, 0
          %v4817 = vsel %vm4236, %v4810, 0
          %v4820 = vsel %vm4236, %v4811, 0
          %v4823 = vsel %vm4236, %v4812, 0
          %4825 = vmatprep.subr.mxu0 0.0
          %4826 = vmatpush1.msra.mxu0 %v3897
          %4827 = vmatprep.subr.mxu0 0.0
          %4828 = vmatpush1.msra.mxu0 %v3901
          %4829 = vmatprep.subr.mxu0 0.0
          %4830 = vmatpush1.msra.mxu0 %v3907
          %4831 = vmatprep.subr.mxu0 0.0
          %4832 = vmatpush1.msra.mxu0 %v3911
          %4833 = vmatprep.subr.mxu0 0.0
          %4834 = vmatpush1.msra.mxu0 0.0
          %4835 = vmatprep.subr.mxu0 0.0
          %4836 = vmatpush1.msra.mxu0 0.0
          %4837 = vmatprep.subr.mxu0 0.0
          %4838 = vmatpush1.msra.mxu0 0.0
          %4839 = vmatprep.subr.mxu0 0.0
          %4840 = vmatpush1.msra.mxu0 0.0
          %4841 = vmatprep.subr.mxu0 0.0
          %4842 = vmatpush1.msra.mxu0 0.0
          %4843 = vmatprep.subr.mxu0 0.0
          %4844 = vmatpush1.msra.mxu0 0.0
          %4845 = vmatprep.subr.mxu0 0.0
          %4846 = vmatpush1.msra.mxu0 0.0
          %4847 = vmatprep.subr.mxu0 0.0
          %4848 = vmatpush1.msra.mxu0 0.0
          %4849 = vmatprep.subr.mxu0 0.0
          %4850 = vmatpush1.msra.mxu0 0.0
          %4851 = vmatprep.subr.mxu0 0.0
          %4852 = vmatpush1.msra.mxu0 0.0
          %4853 = vmatprep.subr.mxu0 0.0
          %4854 = vmatpush1.msra.mxu0 0.0
          %4855 = vmatprep.subr.mxu0 0.0
          %4856 = vmatpush1.msra.mxu0 0.0
          %4857 = vmatprep.subr.mxu0 0.0
          %4858 = vmatpush1.msra.mxu0 0.0
          %4859 = vmatprep.subr.mxu0 0.0
          %4860 = vmatpush1.msra.mxu0 0.0
          %4861 = vmatprep.subr.mxu0 0.0
          %4862 = vmatpush1.msra.mxu0 0.0
          %4863 = vmatprep.subr.mxu0 0.0
          %4864 = vmatpush1.msra.mxu0 0.0
          %4865 = vmatprep.subr.mxu0 0.0
          %4866 = vmatpush1.msra.mxu0 0.0
          %4867 = vmatprep.subr.mxu0 0.0
          %4868 = vmatpush1.msra.mxu0 0.0
          %4869 = vmatprep.subr.mxu0 0.0
          %4870 = vmatpush1.msra.mxu0 0.0
          %4871 = vmatprep.subr.mxu0 0.0
          %4872 = vmatpush1.msra.mxu0 0.0
          %4873 = vmatprep.subr.mxu0 0.0
          %4874 = vmatpush1.msra.mxu0 0.0
          %4875 = vmatprep.subr.mxu0 0.0
          %4876 = vmatpush1.msra.mxu0 0.0
          %4877 = vmatprep.subr.mxu0 0.0
          %4878 = vmatpush1.msra.mxu0 0.0
          %4879 = vmatprep.subr.mxu0 0.0
          %4880 = vmatpush1.msra.mxu0 0.0
          %4881 = vmatprep.subr.mxu0 0.0
          %4882 = vmatpush1.msra.mxu0 0.0
          %4883 = vmatprep.subr.mxu0 0.0
          %4884 = vmatpush1.msra.mxu0 0.0
          %4885 = vmatprep.subr.mxu0 0.0
          %4886 = vmatpush1.msra.mxu0 0.0
          %4887 = vmatprep.subr.mxu0 0.0
          %4888 = vmatpush1.msra.mxu0 0.0
          %4889 = vmatprep.mubr.f32.mxu0 0.0
          %4890 = vmatmul.mubr.f32.gmra.mrb[0].mxu0 %v4814
          %v4891 = vpop.f32.mrb[0].mxu0
          %v4892 = vadd.f32 0.0, %v4891
          %v4893 = vpop.f32.mrb[0].mxu0
          %4894 = vmatprep.mubr.f32.mxu0 0.0
          %4895 = vmatmul.mubr.f32.gmra.mrb[0].mxu0 %v4817
          %v4896 = vpop.f32.mrb[0].mxu0
          %v4897 = vadd.f32 0.0, %v4896
          %v4898 = vpop.f32.mrb[0].mxu0
          %4899 = vmatprep.mubr.f32.mxu0 0.0
          %4900 = vmatmul.mubr.f32.gmra.mrb[0].mxu0 %v4820
          %v4901 = vpop.f32.mrb[0].mxu0
          %v4902 = vadd.f32 0.0, %v4901
          %v4903 = vpop.f32.mrb[0].mxu0
          %4904 = vmatprep.mubr.f32.mxu0 0.0
          %4905 = vmatmul.mubr.f32.gmra.mrb[0].mxu0 %v4823
          %v4906 = vpop.f32.mrb[0].mxu0
          %v4907 = vadd.f32 0.0, %v4906
          %v4908 = vpop.f32.mrb[0].mxu0
          %4909 = vdwg.mxu0
          %4910 = vrot.lane.b32.xlu0 %v4020, 64
          %v4911 = vpop.permute.xlu0 %4910
          %4912 = vrot.lane.b32.xlu0 %v4024, 64
          %v4913 = vpop.permute.xlu0 %4912
          %4914 = vrot.lane.b32.xlu0 %v4028, 64
          %v4915 = vpop.permute.xlu0 %4914
          %4916 = vrot.lane.b32.xlu0 %v4032, 64
          %v4917 = vpop.permute.xlu0 %4916
          %4918 = vrot.lane.b32.xlu0 %v4036, 64
          %v4919 = vpop.permute.xlu0 %4918
          %4920 = vrot.lane.b32.xlu0 %v4040, 64
          %v4921 = vpop.permute.xlu0 %4920
          %4922 = vrot.lane.b32.xlu0 %v4044, 64
          %v4923 = vpop.permute.xlu0 %4922
          %4924 = vrot.lane.b32.xlu0 %v4048, 64
          %v4925 = vpop.permute.xlu0 %4924
          %v4926 = vsel %vm4122, %v4911, 0
          %v4928 = vsel %vm4122, %v4913, 0
          %v4930 = vsel %vm4122, %v4915, 0
          %v4932 = vsel %vm4122, %v4917, 0
          %v4934 = vsel %vm4122, %v4919, 0
          %v4936 = vsel %vm4122, %v4921, 0
          %v4938 = vsel %vm4122, %v4923, 0
          %v4940 = vsel %vm4122, %v4925, 0
          %4942 = vmatprep.subr.mxu0 0.0
          %4943 = vmatpush1.xpose.msra.mxu0 %v4934
          %4944 = vmatprep.subr.mxu0 0.0
          %4945 = vmatpush1.xpose.msra.mxu0 %v4936
          %4946 = vmatprep.subr.mxu0 0.0
          %4947 = vmatpush1.xpose.msra.mxu0 %v4938
          %4948 = vmatprep.subr.mxu0 0.0
          %4949 = vmatpush1.xpose.msra.mxu0 %v4940
          %4950 = vmatprep.subr.mxu0 0.0
          %4951 = vmatpush1.xpose.msra.mxu0 0.0
          %4952 = vmatprep.subr.mxu0 0.0
          %4953 = vmatpush1.xpose.msra.mxu0 0.0
          %4954 = vmatprep.subr.mxu0 0.0
          %4955 = vmatpush1.xpose.msra.mxu0 0.0
          %4956 = vmatprep.subr.mxu0 0.0
          %4957 = vmatpush1.xpose.msra.mxu0 0.0
          %4958 = vmatprep.subr.mxu0 0.0
          %4959 = vmatpush1.xpose.msra.mxu0 0.0
          %4960 = vmatprep.subr.mxu0 0.0
          %4961 = vmatpush1.xpose.msra.mxu0 0.0
          %4962 = vmatprep.subr.mxu0 0.0
          %4963 = vmatpush1.xpose.msra.mxu0 0.0
          %4964 = vmatprep.subr.mxu0 0.0
          %4965 = vmatpush1.xpose.msra.mxu0 0.0
          %4966 = vmatprep.subr.mxu0 0.0
          %4967 = vmatpush1.xpose.msra.mxu0 0.0
          %4968 = vmatprep.subr.mxu0 0.0
          %4969 = vmatpush1.xpose.msra.mxu0 0.0
          %4970 = vmatprep.subr.mxu0 0.0
          %4971 = vmatpush1.xpose.msra.mxu0 0.0
          %4972 = vmatprep.subr.mxu0 0.0
          %4973 = vmatpush1.xpose.msra.mxu0 0.0
          %4974 = vmatprep.subr.mxu0 0.0
          %4975 = vmatpush1.xpose.msra.mxu0 0.0
          %4976 = vmatprep.subr.mxu0 0.0
          %4977 = vmatpush1.xpose.msra.mxu0 0.0
          %4978 = vmatprep.subr.mxu0 0.0
          %4979 = vmatpush1.xpose.msra.mxu0 0.0
          %4980 = vmatprep.subr.mxu0 0.0
          %4981 = vmatpush1.xpose.msra.mxu0 0.0
          %4982 = vmatprep.subr.mxu0 0.0
          %4983 = vmatpush1.xpose.msra.mxu0 0.0
          %4984 = vmatprep.subr.mxu0 0.0
          %4985 = vmatpush1.xpose.msra.mxu0 0.0
          %4986 = vmatprep.subr.mxu0 0.0
          %4987 = vmatpush1.xpose.msra.mxu0 0.0
          %4988 = vmatprep.subr.mxu0 0.0
          %4989 = vmatpush1.xpose.msra.mxu0 0.0
          %4990 = vmatprep.subr.mxu0 0.0
          %4991 = vmatpush1.xpose.msra.mxu0 0.0
          %4992 = vmatprep.subr.mxu0 0.0
          %4993 = vmatpush1.xpose.msra.mxu0 0.0
          %4994 = vmatprep.subr.mxu0 0.0
          %4995 = vmatpush1.xpose.msra.mxu0 0.0
          %4996 = vmatprep.subr.mxu0 0.0
          %4997 = vmatpush1.xpose.msra.mxu0 0.0
          %4998 = vmatprep.subr.mxu0 0.0
          %4999 = vmatpush1.xpose.msra.mxu0 0.0
          %5000 = vmatprep.subr.mxu0 0.0
          %5001 = vmatpush1.xpose.msra.mxu0 0.0
          %5002 = vmatprep.subr.mxu0 0.0
          %5003 = vmatpush1.xpose.msra.mxu0 0.0
          %5004 = vmatprep.subr.mxu0 0.0
          %5005 = vmatpush1.xpose.msra.mxu0 0.0
          %5006 = vmatprep.mubr.f32.mxu0 0.0
          %5007 = vmatmul.mubr.f32.gmra.mrb[0].mxu0 %v4926
          %v5008 = vpop.f32.mrb[0].mxu0
          %v5009 = vadd.f32 0.0, %v5008
          %v5010 = vpop.f32.mrb[0].mxu0
          %5011 = vmatprep.mubr.f32.mxu0 0.0
          %5012 = vmatmul.mubr.f32.gmra.mrb[0].mxu0 %v4928
          %v5013 = vpop.f32.mrb[0].mxu0
          %v5014 = vadd.f32 0.0, %v5013
          %v5015 = vpop.f32.mrb[0].mxu0
          %5016 = vmatprep.mubr.f32.mxu0 0.0
          %5017 = vmatmul.mubr.f32.gmra.mrb[0].mxu0 %v4930
          %v5018 = vpop.f32.mrb[0].mxu0
          %v5019 = vadd.f32 0.0, %v5018
          %v5020 = vpop.f32.mrb[0].mxu0
          %5021 = vmatprep.mubr.f32.mxu0 0.0
          %5022 = vmatmul.mubr.f32.gmra.mrb[0].mxu0 %v4932
          %v5023 = vpop.f32.mrb[0].mxu0
          %v5024 = vadd.f32 0.0, %v5023
          %v5025 = vpop.f32.mrb[0].mxu0
          %5026 = vdwg.mxu0
          %v5027 = vsel %vm4118, %v5009, -1e+30
          %v5028 = vsel %vm4119, %v5014, -1e+30
          %v5029 = vsel %vm4120, %v5019, -1e+30
          %v5030 = vsel %vm4121, %v5024, -1e+30
          %v5031 = vsel %vm4236, %v5027, -inf
          %5032 = vmax.xlane.f32.xlu0 %v5031
          %v5033 = vpop.xlane.xlu0 %5032
          %v5034 = vsel %vm4236, %v5028, -inf
          %5035 = vmax.xlane.f32.xlu0 %v5034
          %v5036 = vpop.xlane.xlu0 %5035
          %v5037 = vsel %vm4236, %v5029, -inf
          %5038 = vmax.xlane.f32.xlu0 %v5037
          %v5039 = vpop.xlane.xlu0 %5038
          %v5040 = vsel %vm4236, %v5030, -inf
          %5041 = vmax.xlane.f32.xlu0 %v5040
          %v5042 = vpop.xlane.xlu0 %5041
          %v5043 = vsub.f32 %v5027, %v5033
          %v5044 = vsub.f32 %v5028, %v5036
          %v5045 = vsub.f32 %v5029, %v5039
          %v5046 = vsub.f32 %v5030, %v5042
          %v5047 = vmul.f32 %v5043, 1.442695
          %v5048 = vpow.pop %v5047
          %v5049 = vmul.f32 %v5044, 1.442695
          %v5050 = vpow.pop %v5049
          %v5051 = vmul.f32 %v5045, 1.442695
          %v5052 = vpow.pop %v5051
          %v5053 = vmul.f32 %v5046, 1.442695
          %v5054 = vpow.pop %v5053
          %v5055 = vsel %vm4236, %v5048, 0.0
          %5056 = vadd.xlane.f32.xlu0 %v5055
          %v5057 = vpop.xlane.xlu0 %5056
          %v5058 = vsel %vm4236, %v5050, 0.0
          %5059 = vadd.xlane.f32.xlu0 %v5058
          %v5060 = vpop.xlane.xlu0 %5059
          %v5061 = vsel %vm4236, %v5052, 0.0
          %5062 = vadd.xlane.f32.xlu0 %v5061
          %v5063 = vpop.xlane.xlu0 %5062
          %v5064 = vsel %vm4236, %v5054, 0.0
          %5065 = vadd.xlane.f32.xlu0 %v5064
          %v5066 = vpop.xlane.xlu0 %5065
          %v5067 = vrcp.pop %v5057
          %v5068 = vrcp.pop %v5060
          %v5069 = vrcp.pop %v5063
          %v5070 = vrcp.pop %v5066
          %v5071 = vmul.f32 %v5048, %v5067
          %v5072 = vmul.f32 %v5050, %v5068
          %v5073 = vmul.f32 %v5052, %v5069
          %v5074 = vmul.f32 %v5054, %v5070
          %5079 = vrot.lane.b32.xlu0 %v3897, 64
          %v5080 = vpop.permute.xlu0 %5079
          %5081 = vrot.lane.b32.xlu0 %v3901, 64
          %v5082 = vpop.permute.xlu0 %5081
          %5083 = vrot.lane.b32.xlu0 %v3907, 64
          %v5084 = vpop.permute.xlu0 %5083
          %5085 = vrot.lane.b32.xlu0 %v3911, 64
          %v5086 = vpop.permute.xlu0 %5085
          %v5092 = vsel %vm4236, %v5071, 0
          %v5095 = vsel %vm4236, %v5072, 0
          %v5098 = vsel %vm4236, %v5073, 0
          %v5101 = vsel %vm4236, %v5074, 0
          %5103 = vmatprep.subr.mxu0 0.0
          %5104 = vmatpush1.msra.mxu0 %v5080
          %5105 = vmatprep.subr.mxu0 0.0
          %5106 = vmatpush1.msra.mxu0 %v5082
          %5107 = vmatprep.subr.mxu0 0.0
          %5108 = vmatpush1.msra.mxu0 %v5084
          %5109 = vmatprep.subr.mxu0 0.0
          %5110 = vmatpush1.msra.mxu0 %v5086
          %5111 = vmatprep.subr.mxu0 0.0
          %5112 = vmatpush1.msra.mxu0 0.0
          %5113 = vmatprep.subr.mxu0 0.0
          %5114 = vmatpush1.msra.mxu0 0.0
          %5115 = vmatprep.subr.mxu0 0.0
          %5116 = vmatpush1.msra.mxu0 0.0
          %5117 = vmatprep.subr.mxu0 0.0
          %5118 = vmatpush1.msra.mxu0 0.0
          %5119 = vmatprep.subr.mxu0 0.0
          %5120 = vmatpush1.msra.mxu0 0.0
          %5121 = vmatprep.subr.mxu0 0.0
          %5122 = vmatpush1.msra.mxu0 0.0
          %5123 = vmatprep.subr.mxu0 0.0
          %5124 = vmatpush1.msra.mxu0 0.0
          %5125 = vmatprep.subr.mxu0 0.0
          %5126 = vmatpush1.msra.mxu0 0.0
          %5127 = vmatprep.subr.mxu0 0.0
          %5128 = vmatpush1.msra.mxu0 0.0
          %5129 = vmatprep.subr.mxu0 0.0
          %5130 = vmatpush1.msra.mxu0 0.0
          %5131 = vmatprep.subr.mxu0 0.0
          %5132 = vmatpush1.msra.mxu0 0.0
          %5133 = vmatprep.subr.mxu0 0.0
          %5134 = vmatpush1.msra.mxu0 0.0
          %5135 = vmatprep.subr.mxu0 0.0
          %5136 = vmatpush1.msra.mxu0 0.0
          %5137 = vmatprep.subr.mxu0 0.0
          %5138 = vmatpush1.msra.mxu0 0.0
          %5139 = vmatprep.subr.mxu0 0.0
          %5140 = vmatpush1.msra.mxu0 0.0
          %5141 = vmatprep.subr.mxu0 0.0
          %5142 = vmatpush1.msra.mxu0 0.0
          %5143 = vmatprep.subr.mxu0 0.0
          %5144 = vmatpush1.msra.mxu0 0.0
          %5145 = vmatprep.subr.mxu0 0.0
          %5146 = vmatpush1.msra.mxu0 0.0
          %5147 = vmatprep.subr.mxu0 0.0
          %5148 = vmatpush1.msra.mxu0 0.0
          %5149 = vmatprep.subr.mxu0 0.0
          %5150 = vmatpush1.msra.mxu0 0.0
          %5151 = vmatprep.subr.mxu0 0.0
          %5152 = vmatpush1.msra.mxu0 0.0
          %5153 = vmatprep.subr.mxu0 0.0
          %5154 = vmatpush1.msra.mxu0 0.0
          %5155 = vmatprep.subr.mxu0 0.0
          %5156 = vmatpush1.msra.mxu0 0.0
          %5157 = vmatprep.subr.mxu0 0.0
          %5158 = vmatpush1.msra.mxu0 0.0
          %5159 = vmatprep.subr.mxu0 0.0
          %5160 = vmatpush1.msra.mxu0 0.0
          %5161 = vmatprep.subr.mxu0 0.0
          %5162 = vmatpush1.msra.mxu0 0.0
          %5163 = vmatprep.subr.mxu0 0.0
          %5164 = vmatpush1.msra.mxu0 0.0
          %5165 = vmatprep.subr.mxu0 0.0
          %5166 = vmatpush1.msra.mxu0 0.0
          %5167 = vmatprep.mubr.f32.mxu0 0.0
          %5168 = vmatmul.mubr.f32.gmra.mrb[0].mxu0 %v5092
          %v5169 = vpop.f32.mrb[0].mxu0
          %v5170 = vadd.f32 0.0, %v5169
          %v5171 = vpop.f32.mrb[0].mxu0
          %5172 = vmatprep.mubr.f32.mxu0 0.0
          %5173 = vmatmul.mubr.f32.gmra.mrb[0].mxu0 %v5095
          %v5174 = vpop.f32.mrb[0].mxu0
          %v5175 = vadd.f32 0.0, %v5174
          %v5176 = vpop.f32.mrb[0].mxu0
          %5177 = vmatprep.mubr.f32.mxu0 0.0
          %5178 = vmatmul.mubr.f32.gmra.mrb[0].mxu0 %v5098
          %v5179 = vpop.f32.mrb[0].mxu0
          %v5180 = vadd.f32 0.0, %v5179
          %v5181 = vpop.f32.mrb[0].mxu0
          %5182 = vmatprep.mubr.f32.mxu0 0.0
          %5183 = vmatmul.mubr.f32.gmra.mrb[0].mxu0 %v5101
          %v5184 = vpop.f32.mrb[0].mxu0
          %v5185 = vadd.f32 0.0, %v5184
          %v5186 = vpop.f32.mrb[0].mxu0
          %5187 = vdwg.mxu0
          %v5189 = vsel %vm4122, %v4021, 0
          %v5192 = vsel %vm4122, %v4025, 0
          %v5195 = vsel %vm4122, %v4029, 0
          %v5198 = vsel %vm4122, %v4033, 0
          %v5201 = vsel %vm4122, %v4037, 0
          %v5204 = vsel %vm4122, %v4041, 0
          %v5207 = vsel %vm4122, %v4045, 0
          %v5210 = vsel %vm4122, %v4049, 0
          %5212 = vmatprep.subr.mxu0 0.0
          %5213 = vmatpush1.xpose.msra.mxu0 %v5201
          %5214 = vmatprep.subr.mxu0 0.0
          %5215 = vmatpush1.xpose.msra.mxu0 %v5204
          %5216 = vmatprep.subr.mxu0 0.0
          %5217 = vmatpush1.xpose.msra.mxu0 %v5207
          %5218 = vmatprep.subr.mxu0 0.0
          %5219 = vmatpush1.xpose.msra.mxu0 %v5210
          %5220 = vmatprep.subr.mxu0 0.0
          %5221 = vmatpush1.xpose.msra.mxu0 0.0
          %5222 = vmatprep.subr.mxu0 0.0
          %5223 = vmatpush1.xpose.msra.mxu0 0.0
          %5224 = vmatprep.subr.mxu0 0.0
          %5225 = vmatpush1.xpose.msra.mxu0 0.0
          %5226 = vmatprep.subr.mxu0 0.0
          %5227 = vmatpush1.xpose.msra.mxu0 0.0
          %5228 = vmatprep.subr.mxu0 0.0
          %5229 = vmatpush1.xpose.msra.mxu0 0.0
          %5230 = vmatprep.subr.mxu0 0.0
          %5231 = vmatpush1.xpose.msra.mxu0 0.0
          %5232 = vmatprep.subr.mxu0 0.0
          %5233 = vmatpush1.xpose.msra.mxu0 0.0
          %5234 = vmatprep.subr.mxu0 0.0
          %5235 = vmatpush1.xpose.msra.mxu0 0.0
          %5236 = vmatprep.subr.mxu0 0.0
          %5237 = vmatpush1.xpose.msra.mxu0 0.0
          %5238 = vmatprep.subr.mxu0 0.0
          %5239 = vmatpush1.xpose.msra.mxu0 0.0
          %5240 = vmatprep.subr.mxu0 0.0
          %5241 = vmatpush1.xpose.msra.mxu0 0.0
          %5242 = vmatprep.subr.mxu0 0.0
          %5243 = vmatpush1.xpose.msra.mxu0 0.0
          %5244 = vmatprep.subr.mxu0 0.0
          %5245 = vmatpush1.xpose.msra.mxu0 0.0
          %5246 = vmatprep.subr.mxu0 0.0
          %5247 = vmatpush1.xpose.msra.mxu0 0.0
          %5248 = vmatprep.subr.mxu0 0.0
          %5249 = vmatpush1.xpose.msra.mxu0 0.0
          %5250 = vmatprep.subr.mxu0 0.0
          %5251 = vmatpush1.xpose.msra.mxu0 0.0
          %5252 = vmatprep.subr.mxu0 0.0
          %5253 = vmatpush1.xpose.msra.mxu0 0.0
          %5254 = vmatprep.subr.mxu0 0.0
          %5255 = vmatpush1.xpose.msra.mxu0 0.0
          %5256 = vmatprep.subr.mxu0 0.0
          %5257 = vmatpush1.xpose.msra.mxu0 0.0
          %5258 = vmatprep.subr.mxu0 0.0
          %5259 = vmatpush1.xpose.msra.mxu0 0.0
          %5260 = vmatprep.subr.mxu0 0.0
          %5261 = vmatpush1.xpose.msra.mxu0 0.0
          %5262 = vmatprep.subr.mxu0 0.0
          %5263 = vmatpush1.xpose.msra.mxu0 0.0
          %5264 = vmatprep.subr.mxu0 0.0
          %5265 = vmatpush1.xpose.msra.mxu0 0.0
          %5266 = vmatprep.subr.mxu0 0.0
          %5267 = vmatpush1.xpose.msra.mxu0 0.0
          %5268 = vmatprep.subr.mxu0 0.0
          %5269 = vmatpush1.xpose.msra.mxu0 0.0
          %5270 = vmatprep.subr.mxu0 0.0
          %5271 = vmatpush1.xpose.msra.mxu0 0.0
          %5272 = vmatprep.subr.mxu0 0.0
          %5273 = vmatpush1.xpose.msra.mxu0 0.0
          %5274 = vmatprep.subr.mxu0 0.0
          %5275 = vmatpush1.xpose.msra.mxu0 0.0
          %5276 = vmatprep.mubr.f32.mxu0 0.0
          %5277 = vmatmul.mubr.f32.gmra.mrb[0].mxu0 %v5189
          %v5278 = vpop.f32.mrb[0].mxu0
          %v5279 = vadd.f32 0.0, %v5278
          %v5280 = vpop.f32.mrb[0].mxu0
          %5281 = vmatprep.mubr.f32.mxu0 0.0
          %5282 = vmatmul.mubr.f32.gmra.mrb[0].mxu0 %v5192
          %v5283 = vpop.f32.mrb[0].mxu0
          %v5284 = vadd.f32 0.0, %v5283
          %v5285 = vpop.f32.mrb[0].mxu0
          %5286 = vmatprep.mubr.f32.mxu0 0.0
          %5287 = vmatmul.mubr.f32.gmra.mrb[0].mxu0 %v5195
          %v5288 = vpop.f32.mrb[0].mxu0
          %v5289 = vadd.f32 0.0, %v5288
          %v5290 = vpop.f32.mrb[0].mxu0
          %5291 = vmatprep.mubr.f32.mxu0 0.0
          %5292 = vmatmul.mubr.f32.gmra.mrb[0].mxu0 %v5198
          %v5293 = vpop.f32.mrb[0].mxu0
          %v5294 = vadd.f32 0.0, %v5293
          %v5295 = vpop.f32.mrb[0].mxu0
          %5296 = vdwg.mxu0
          %v5297 = vsel %vm4118, %v5279, -1e+30
          %v5298 = vsel %vm4119, %v5284, -1e+30
          %v5299 = vsel %vm4120, %v5289, -1e+30
          %v5300 = vsel %vm4121, %v5294, -1e+30
          %v5301 = vsel %vm4236, %v5297, -inf
          %5302 = vmax.xlane.f32.xlu0 %v5301
          %v5303 = vpop.xlane.xlu0 %5302
          %v5304 = vsel %vm4236, %v5298, -inf
          %5305 = vmax.xlane.f32.xlu0 %v5304
          %v5306 = vpop.xlane.xlu0 %5305
          %v5307 = vsel %vm4236, %v5299, -inf
          %5308 = vmax.xlane.f32.xlu0 %v5307
          %v5309 = vpop.xlane.xlu0 %5308
          %v5310 = vsel %vm4236, %v5300, -inf
          %5311 = vmax.xlane.f32.xlu0 %v5310
          %v5312 = vpop.xlane.xlu0 %5311
          %v5313 = vsub.f32 %v5297, %v5303
          %v5314 = vsub.f32 %v5298, %v5306
          %v5315 = vsub.f32 %v5299, %v5309
          %v5316 = vsub.f32 %v5300, %v5312
          %v5317 = vmul.f32 %v5313, 1.442695
          %v5318 = vpow.pop %v5317
          %v5319 = vmul.f32 %v5314, 1.442695
          %v5320 = vpow.pop %v5319
          %v5321 = vmul.f32 %v5315, 1.442695
          %v5322 = vpow.pop %v5321
          %v5323 = vmul.f32 %v5316, 1.442695
          %v5324 = vpow.pop %v5323
          %v5325 = vsel %vm4236, %v5318, 0.0
          %5326 = vadd.xlane.f32.xlu0 %v5325
          %v5327 = vpop.xlane.xlu0 %5326
          %v5328 = vsel %vm4236, %v5320, 0.0
          %5329 = vadd.xlane.f32.xlu0 %v5328
          %v5330 = vpop.xlane.xlu0 %5329
          %v5331 = vsel %vm4236, %v5322, 0.0
          %5332 = vadd.xlane.f32.xlu0 %v5331
          %v5333 = vpop.xlane.xlu0 %5332
          %v5334 = vsel %vm4236, %v5324, 0.0
          %5335 = vadd.xlane.f32.xlu0 %v5334
          %v5336 = vpop.xlane.xlu0 %5335
          %v5337 = vrcp.pop %v5327
          %v5338 = vrcp.pop %v5330
          %v5339 = vrcp.pop %v5333
          %v5340 = vrcp.pop %v5336
          %v5341 = vmul.f32 %v5318, %v5337
          %v5342 = vmul.f32 %v5320, %v5338
          %v5343 = vmul.f32 %v5322, %v5339
          %v5344 = vmul.f32 %v5324, %v5340
          %v5346 = vsel %vm4236, %v5341, 0
          %v5349 = vsel %vm4236, %v5342, 0
          %v5352 = vsel %vm4236, %v5343, 0
          %v5355 = vsel %vm4236, %v5344, 0
          %5357 = vmatprep.subr.mxu0 0.0
          %5358 = vmatpush1.msra.mxu0 %v4001
          %5359 = vmatprep.subr.mxu0 0.0
          %5360 = vmatpush1.msra.mxu0 %v4005
          %5361 = vmatprep.subr.mxu0 0.0
          %5362 = vmatpush1.msra.mxu0 %v4011
          %5363 = vmatprep.subr.mxu0 0.0
          %5364 = vmatpush1.msra.mxu0 %v4015
          %5365 = vmatprep.subr.mxu0 0.0
          %5366 = vmatpush1.msra.mxu0 0.0
          %5367 = vmatprep.subr.mxu0 0.0
          %5368 = vmatpush1.msra.mxu0 0.0
          %5369 = vmatprep.subr.mxu0 0.0
          %5370 = vmatpush1.msra.mxu0 0.0
          %5371 = vmatprep.subr.mxu0 0.0
          %5372 = vmatpush1.msra.mxu0 0.0
          %5373 = vmatprep.subr.mxu0 0.0
          %5374 = vmatpush1.msra.mxu0 0.0
          %5375 = vmatprep.subr.mxu0 0.0
          %5376 = vmatpush1.msra.mxu0 0.0
          %5377 = vmatprep.subr.mxu0 0.0
          %5378 = vmatpush1.msra.mxu0 0.0
          %5379 = vmatprep.subr.mxu0 0.0
          %5380 = vmatpush1.msra.mxu0 0.0
          %5381 = vmatprep.subr.mxu0 0.0
          %5382 = vmatpush1.msra.mxu0 0.0
          %5383 = vmatprep.subr.mxu0 0.0
          %5384 = vmatpush1.msra.mxu0 0.0
          %5385 = vmatprep.subr.mxu0 0.0
          %5386 = vmatpush1.msra.mxu0 0.0
          %5387 = vmatprep.subr.mxu0 0.0
          %5388 = vmatpush1.msra.mxu0 0.0
          %5389 = vmatprep.subr.mxu0 0.0
          %5390 = vmatpush1.msra.mxu0 0.0
          %5391 = vmatprep.subr.mxu0 0.0
          %5392 = vmatpush1.msra.mxu0 0.0
          %5393 = vmatprep.subr.mxu0 0.0
          %5394 = vmatpush1.msra.mxu0 0.0
          %5395 = vmatprep.subr.mxu0 0.0
          %5396 = vmatpush1.msra.mxu0 0.0
          %5397 = vmatprep.subr.mxu0 0.0
          %5398 = vmatpush1.msra.mxu0 0.0
          %5399 = vmatprep.subr.mxu0 0.0
          %5400 = vmatpush1.msra.mxu0 0.0
          %5401 = vmatprep.subr.mxu0 0.0
          %5402 = vmatpush1.msra.mxu0 0.0
          %5403 = vmatprep.subr.mxu0 0.0
          %5404 = vmatpush1.msra.mxu0 0.0
          %5405 = vmatprep.subr.mxu0 0.0
          %5406 = vmatpush1.msra.mxu0 0.0
          %5407 = vmatprep.subr.mxu0 0.0
          %5408 = vmatpush1.msra.mxu0 0.0
          %5409 = vmatprep.subr.mxu0 0.0
          %5410 = vmatpush1.msra.mxu0 0.0
          %5411 = vmatprep.subr.mxu0 0.0
          %5412 = vmatpush1.msra.mxu0 0.0
          %5413 = vmatprep.subr.mxu0 0.0
          %5414 = vmatpush1.msra.mxu0 0.0
          %5415 = vmatprep.subr.mxu0 0.0
          %5416 = vmatpush1.msra.mxu0 0.0
          %5417 = vmatprep.subr.mxu0 0.0
          %5418 = vmatpush1.msra.mxu0 0.0
          %5419 = vmatprep.subr.mxu0 0.0
          %5420 = vmatpush1.msra.mxu0 0.0
          %5421 = vmatprep.mubr.f32.mxu0 0.0
          %5422 = vmatmul.mubr.f32.gmra.mrb[0].mxu0 %v5346
          %v5423 = vpop.f32.mrb[0].mxu0
          %v5424 = vadd.f32 0.0, %v5423
          %v5425 = vpop.f32.mrb[0].mxu0
          %5426 = vmatprep.mubr.f32.mxu0 0.0
          %5427 = vmatmul.mubr.f32.gmra.mrb[0].mxu0 %v5349
          %v5428 = vpop.f32.mrb[0].mxu0
          %v5429 = vadd.f32 0.0, %v5428
          %v5430 = vpop.f32.mrb[0].mxu0
          %5431 = vmatprep.mubr.f32.mxu0 0.0
          %5432 = vmatmul.mubr.f32.gmra.mrb[0].mxu0 %v5352
          %v5433 = vpop.f32.mrb[0].mxu0
          %v5434 = vadd.f32 0.0, %v5433
          %v5435 = vpop.f32.mrb[0].mxu0
          %5436 = vmatprep.mubr.f32.mxu0 0.0
          %5437 = vmatmul.mubr.f32.gmra.mrb[0].mxu0 %v5355
          %v5438 = vpop.f32.mrb[0].mxu0
          %v5439 = vadd.f32 0.0, %v5438
          %v5440 = vpop.f32.mrb[0].mxu0
          %5441 = vdwg.mxu0
          %5442 = vrot.lane.b32.xlu0 %v4021, 64
          %v5443 = vpop.permute.xlu0 %5442
          %5444 = vrot.lane.b32.xlu0 %v4025, 64
          %v5445 = vpop.permute.xlu0 %5444
          %5446 = vrot.lane.b32.xlu0 %v4029, 64
          %v5447 = vpop.permute.xlu0 %5446
          %5448 = vrot.lane.b32.xlu0 %v4033, 64
          %v5449 = vpop.permute.xlu0 %5448
          %5450 = vrot.lane.b32.xlu0 %v4037, 64
          %v5451 = vpop.permute.xlu0 %5450
          %5452 = vrot.lane.b32.xlu0 %v4041, 64
          %v5453 = vpop.permute.xlu0 %5452
          %5454 = vrot.lane.b32.xlu0 %v4045, 64
          %v5455 = vpop.permute.xlu0 %5454
          %5456 = vrot.lane.b32.xlu0 %v4049, 64
          %v5457 = vpop.permute.xlu0 %5456
          %v5458 = vsel %vm4122, %v5443, 0
          %v5460 = vsel %vm4122, %v5445, 0
          %v5462 = vsel %vm4122, %v5447, 0
          %v5464 = vsel %vm4122, %v5449, 0
          %v5466 = vsel %vm4122, %v5451, 0
          %v5468 = vsel %vm4122, %v5453, 0
          %v5470 = vsel %vm4122, %v5455, 0
          %v5472 = vsel %vm4122, %v5457, 0
          %5474 = vmatprep.subr.mxu0 0.0
          %5475 = vmatpush1.xpose.msra.mxu0 %v5466
          %5476 = vmatprep.subr.mxu0 0.0
          %5477 = vmatpush1.xpose.msra.mxu0 %v5468
          %5478 = vmatprep.subr.mxu0 0.0
          %5479 = vmatpush1.xpose.msra.mxu0 %v5470
          %5480 = vmatprep.subr.mxu0 0.0
          %5481 = vmatpush1.xpose.msra.mxu0 %v5472
          %5482 = vmatprep.subr.mxu0 0.0
          %5483 = vmatpush1.xpose.msra.mxu0 0.0
          %5484 = vmatprep.subr.mxu0 0.0
          %5485 = vmatpush1.xpose.msra.mxu0 0.0
          %5486 = vmatprep.subr.mxu0 0.0
          %5487 = vmatpush1.xpose.msra.mxu0 0.0
          %5488 = vmatprep.subr.mxu0 0.0
          %5489 = vmatpush1.xpose.msra.mxu0 0.0
          %5490 = vmatprep.subr.mxu0 0.0
          %5491 = vmatpush1.xpose.msra.mxu0 0.0
          %5492 = vmatprep.subr.mxu0 0.0
          %5493 = vmatpush1.xpose.msra.mxu0 0.0
          %5494 = vmatprep.subr.mxu0 0.0
          %5495 = vmatpush1.xpose.msra.mxu0 0.0
          %5496 = vmatprep.subr.mxu0 0.0
          %5497 = vmatpush1.xpose.msra.mxu0 0.0
          %5498 = vmatprep.subr.mxu0 0.0
          %5499 = vmatpush1.xpose.msra.mxu0 0.0
          %5500 = vmatprep.subr.mxu0 0.0
          %5501 = vmatpush1.xpose.msra.mxu0 0.0
          %5502 = vmatprep.subr.mxu0 0.0
          %5503 = vmatpush1.xpose.msra.mxu0 0.0
          %5504 = vmatprep.subr.mxu0 0.0
          %5505 = vmatpush1.xpose.msra.mxu0 0.0
          %5506 = vmatprep.subr.mxu0 0.0
          %5507 = vmatpush1.xpose.msra.mxu0 0.0
          %5508 = vmatprep.subr.mxu0 0.0
          %5509 = vmatpush1.xpose.msra.mxu0 0.0
          %5510 = vmatprep.subr.mxu0 0.0
          %5511 = vmatpush1.xpose.msra.mxu0 0.0
          %5512 = vmatprep.subr.mxu0 0.0
          %5513 = vmatpush1.xpose.msra.mxu0 0.0
          %5514 = vmatprep.subr.mxu0 0.0
          %5515 = vmatpush1.xpose.msra.mxu0 0.0
          %5516 = vmatprep.subr.mxu0 0.0
          %5517 = vmatpush1.xpose.msra.mxu0 0.0
          %5518 = vmatprep.subr.mxu0 0.0
          %5519 = vmatpush1.xpose.msra.mxu0 0.0
          %5520 = vmatprep.subr.mxu0 0.0
          %5521 = vmatpush1.xpose.msra.mxu0 0.0
          %5522 = vmatprep.subr.mxu0 0.0
          %5523 = vmatpush1.xpose.msra.mxu0 0.0
          %5524 = vmatprep.subr.mxu0 0.0
          %5525 = vmatpush1.xpose.msra.mxu0 0.0
          %5526 = vmatprep.subr.mxu0 0.0
          %5527 = vmatpush1.xpose.msra.mxu0 0.0
          %5528 = vmatprep.subr.mxu0 0.0
          %5529 = vmatpush1.xpose.msra.mxu0 0.0
          %5530 = vmatprep.subr.mxu0 0.0
          %5531 = vmatpush1.xpose.msra.mxu0 0.0
          %5532 = vmatprep.subr.mxu0 0.0
          %5533 = vmatpush1.xpose.msra.mxu0 0.0
          %5534 = vmatprep.subr.mxu0 0.0
          %5535 = vmatpush1.xpose.msra.mxu0 0.0
          %5536 = vmatprep.subr.mxu0 0.0
          %5537 = vmatpush1.xpose.msra.mxu0 0.0
          %5538 = vmatprep.mubr.f32.mxu0 0.0
          %5539 = vmatmul.mubr.f32.gmra.mrb[0].mxu0 %v5458
          %v5540 = vpop.f32.mrb[0].mxu0
          %v5541 = vadd.f32 0.0, %v5540
          %v5542 = vpop.f32.mrb[0].mxu0
          %5543 = vmatprep.mubr.f32.mxu0 0.0
          %5544 = vmatmul.mubr.f32.gmra.mrb[0].mxu0 %v5460
          %v5545 = vpop.f32.mrb[0].mxu0
          %v5546 = vadd.f32 0.0, %v5545
          %v5547 = vpop.f32.mrb[0].mxu0
          %5548 = vmatprep.mubr.f32.mxu0 0.0
          %5549 = vmatmul.mubr.f32.gmra.mrb[0].mxu0 %v5462
          %v5550 = vpop.f32.mrb[0].mxu0
          %v5551 = vadd.f32 0.0, %v5550
          %v5552 = vpop.f32.mrb[0].mxu0
          %5553 = vmatprep.mubr.f32.mxu0 0.0
          %5554 = vmatmul.mubr.f32.gmra.mrb[0].mxu0 %v5464
          %v5555 = vpop.f32.mrb[0].mxu0
          %v5556 = vadd.f32 0.0, %v5555
          %v5557 = vpop.f32.mrb[0].mxu0
          %5558 = vdwg.mxu0
          %v5559 = vsel %vm4118, %v5541, -1e+30
          %v5560 = vsel %vm4119, %v5546, -1e+30
          %v5561 = vsel %vm4120, %v5551, -1e+30
          %v5562 = vsel %vm4121, %v5556, -1e+30
          %v5563 = vsel %vm4236, %v5559, -inf
          %5564 = vmax.xlane.f32.xlu0 %v5563
          %v5565 = vpop.xlane.xlu0 %5564
          %v5566 = vsel %vm4236, %v5560, -inf
          %5567 = vmax.xlane.f32.xlu0 %v5566
          %v5568 = vpop.xlane.xlu0 %5567
          %v5569 = vsel %vm4236, %v5561, -inf
          %5570 = vmax.xlane.f32.xlu0 %v5569
          %v5571 = vpop.xlane.xlu0 %5570
          %v5572 = vsel %vm4236, %v5562, -inf
          %5573 = vmax.xlane.f32.xlu0 %v5572
          %v5574 = vpop.xlane.xlu0 %5573
          %v5575 = vsub.f32 %v5559, %v5565
          %v5576 = vsub.f32 %v5560, %v5568
          %v5577 = vsub.f32 %v5561, %v5571
          %v5578 = vsub.f32 %v5562, %v5574
          %v5579 = vmul.f32 %v5575, 1.442695
          %v5580 = vpow.pop %v5579
          %v5581 = vmul.f32 %v5576, 1.442695
          %v5582 = vpow.pop %v5581
          %v5583 = vmul.f32 %v5577, 1.442695
          %v5584 = vpow.pop %v5583
          %v5585 = vmul.f32 %v5578, 1.442695
          %v5586 = vpow.pop %v5585
          %v5587 = vsel %vm4236, %v5580, 0.0
          %5588 = vadd.xlane.f32.xlu0 %v5587
          %v5589 = vpop.xlane.xlu0 %5588
          %v5590 = vsel %vm4236, %v5582, 0.0
          %5591 = vadd.xlane.f32.xlu0 %v5590
          %v5592 = vpop.xlane.xlu0 %5591
          %v5593 = vsel %vm4236, %v5584, 0.0
          %5594 = vadd.xlane.f32.xlu0 %v5593
          %v5595 = vpop.xlane.xlu0 %5594
          %v5596 = vsel %vm4236, %v5586, 0.0
          %5597 = vadd.xlane.f32.xlu0 %v5596
          %v5598 = vpop.xlane.xlu0 %5597
          %v5599 = vrcp.pop %v5589
          %v5600 = vrcp.pop %v5592
          %v5601 = vrcp.pop %v5595
          %v5602 = vrcp.pop %v5598
          %v5603 = vmul.f32 %v5580, %v5599
          %v5604 = vmul.f32 %v5582, %v5600
          %v5605 = vmul.f32 %v5584, %v5601
          %v5606 = vmul.f32 %v5586, %v5602
          %5611 = vrot.lane.b32.xlu0 %v4001, 64
          %v5612 = vpop.permute.xlu0 %5611
          %5613 = vrot.lane.b32.xlu0 %v4005, 64
          %v5614 = vpop.permute.xlu0 %5613
          %5615 = vrot.lane.b32.xlu0 %v4011, 64
          %v5616 = vpop.permute.xlu0 %5615
          %5617 = vrot.lane.b32.xlu0 %v4015, 64
          %v5618 = vpop.permute.xlu0 %5617
          %v5624 = vsel %vm4236, %v5603, 0
          %v5627 = vsel %vm4236, %v5604, 0
          %v5630 = vsel %vm4236, %v5605, 0
          %v5633 = vsel %vm4236, %v5606, 0
          %5635 = vmatprep.subr.mxu0 0.0
          %5636 = vmatpush1.msra.mxu0 %v5612
          %5637 = vmatprep.subr.mxu0 0.0
          %5638 = vmatpush1.msra.mxu0 %v5614
          %5639 = vmatprep.subr.mxu0 0.0
          %5640 = vmatpush1.msra.mxu0 %v5616
          %5641 = vmatprep.subr.mxu0 0.0
          %5642 = vmatpush1.msra.mxu0 %v5618
          %5643 = vmatprep.subr.mxu0 0.0
          %5644 = vmatpush1.msra.mxu0 0.0
          %5645 = vmatprep.subr.mxu0 0.0
          %5646 = vmatpush1.msra.mxu0 0.0
          %5647 = vmatprep.subr.mxu0 0.0
          %5648 = vmatpush1.msra.mxu0 0.0
          %5649 = vmatprep.subr.mxu0 0.0
          %5650 = vmatpush1.msra.mxu0 0.0
          %5651 = vmatprep.subr.mxu0 0.0
          %5652 = vmatpush1.msra.mxu0 0.0
          %5653 = vmatprep.subr.mxu0 0.0
          %5654 = vmatpush1.msra.mxu0 0.0
          %5655 = vmatprep.subr.mxu0 0.0
          %5656 = vmatpush1.msra.mxu0 0.0
          %5657 = vmatprep.subr.mxu0 0.0
          %5658 = vmatpush1.msra.mxu0 0.0
          %5659 = vmatprep.subr.mxu0 0.0
          %5660 = vmatpush1.msra.mxu0 0.0
          %5661 = vmatprep.subr.mxu0 0.0
          %5662 = vmatpush1.msra.mxu0 0.0
          %5663 = vmatprep.subr.mxu0 0.0
          %5664 = vmatpush1.msra.mxu0 0.0
          %5665 = vmatprep.subr.mxu0 0.0
          %5666 = vmatpush1.msra.mxu0 0.0
          %5667 = vmatprep.subr.mxu0 0.0
          %5668 = vmatpush1.msra.mxu0 0.0
          %5669 = vmatprep.subr.mxu0 0.0
          %5670 = vmatpush1.msra.mxu0 0.0
          %5671 = vmatprep.subr.mxu0 0.0
          %5672 = vmatpush1.msra.mxu0 0.0
          %5673 = vmatprep.subr.mxu0 0.0
          %5674 = vmatpush1.msra.mxu0 0.0
          %5675 = vmatprep.subr.mxu0 0.0
          %5676 = vmatpush1.msra.mxu0 0.0
          %5677 = vmatprep.subr.mxu0 0.0
          %5678 = vmatpush1.msra.mxu0 0.0
          %5679 = vmatprep.subr.mxu0 0.0
          %5680 = vmatpush1.msra.mxu0 0.0
          %5681 = vmatprep.subr.mxu0 0.0
          %5682 = vmatpush1.msra.mxu0 0.0
          %5683 = vmatprep.subr.mxu0 0.0
          %5684 = vmatpush1.msra.mxu0 0.0
          %5685 = vmatprep.subr.mxu0 0.0
          %5686 = vmatpush1.msra.mxu0 0.0
          %5687 = vmatprep.subr.mxu0 0.0
          %5688 = vmatpush1.msra.mxu0 0.0
          %5689 = vmatprep.subr.mxu0 0.0
          %5690 = vmatpush1.msra.mxu0 0.0
          %5691 = vmatprep.subr.mxu0 0.0
          %5692 = vmatpush1.msra.mxu0 0.0
          %5693 = vmatprep.subr.mxu0 0.0
          %5694 = vmatpush1.msra.mxu0 0.0
          %5695 = vmatprep.subr.mxu0 0.0
          %5696 = vmatpush1.msra.mxu0 0.0
          %5697 = vmatprep.subr.mxu0 0.0
          %5698 = vmatpush1.msra.mxu0 0.0
          %5699 = vmatprep.mubr.f32.mxu0 0.0
          %5700 = vmatmul.mubr.f32.gmra.mrb[0].mxu0 %v5624
          %v5701 = vpop.f32.mrb[0].mxu0
          %v5702 = vadd.f32 0.0, %v5701
          %v5703 = vpop.f32.mrb[0].mxu0
          %5704 = vmatprep.mubr.f32.mxu0 0.0
          %5705 = vmatmul.mubr.f32.gmra.mrb[0].mxu0 %v5627
          %v5706 = vpop.f32.mrb[0].mxu0
          %v5707 = vadd.f32 0.0, %v5706
          %v5708 = vpop.f32.mrb[0].mxu0
          %5709 = vmatprep.mubr.f32.mxu0 0.0
          %5710 = vmatmul.mubr.f32.gmra.mrb[0].mxu0 %v5630
          %v5711 = vpop.f32.mrb[0].mxu0
          %v5712 = vadd.f32 0.0, %v5711
          %v5713 = vpop.f32.mrb[0].mxu0
          %5714 = vmatprep.mubr.f32.mxu0 0.0
          %5715 = vmatmul.mubr.f32.gmra.mrb[0].mxu0 %v5633
          %v5716 = vpop.f32.mrb[0].mxu0
          %v5717 = vadd.f32 0.0, %v5716
          %v5718 = vpop.f32.mrb[0].mxu0
          %5719 = vdwg.mxu0
          %v5721 = vsel %vm4122, %v4022, 0
          %v5724 = vsel %vm4122, %v4026, 0
          %v5727 = vsel %vm4122, %v4030, 0
          %v5730 = vsel %vm4122, %v4034, 0
          %v5733 = vsel %vm4122, %v4038, 0
          %v5736 = vsel %vm4122, %v4042, 0
          %v5739 = vsel %vm4122, %v4046, 0
          %v5742 = vsel %vm4122, %v4050, 0
          %5744 = vmatprep.subr.mxu0 0.0
          %5745 = vmatpush1.xpose.msra.mxu0 %v5733
          %5746 = vmatprep.subr.mxu0 0.0
          %5747 = vmatpush1.xpose.msra.mxu0 %v5736
          %5748 = vmatprep.subr.mxu0 0.0
          %5749 = vmatpush1.xpose.msra.mxu0 %v5739
          %5750 = vmatprep.subr.mxu0 0.0
          %5751 = vmatpush1.xpose.msra.mxu0 %v5742
          %5752 = vmatprep.subr.mxu0 0.0
          %5753 = vmatpush1.xpose.msra.mxu0 0.0
          %5754 = vmatprep.subr.mxu0 0.0
          %5755 = vmatpush1.xpose.msra.mxu0 0.0
          %5756 = vmatprep.subr.mxu0 0.0
          %5757 = vmatpush1.xpose.msra.mxu0 0.0
          %5758 = vmatprep.subr.mxu0 0.0
          %5759 = vmatpush1.xpose.msra.mxu0 0.0
          %5760 = vmatprep.subr.mxu0 0.0
          %5761 = vmatpush1.xpose.msra.mxu0 0.0
          %5762 = vmatprep.subr.mxu0 0.0
          %5763 = vmatpush1.xpose.msra.mxu0 0.0
          %5764 = vmatprep.subr.mxu0 0.0
          %5765 = vmatpush1.xpose.msra.mxu0 0.0
          %5766 = vmatprep.subr.mxu0 0.0
          %5767 = vmatpush1.xpose.msra.mxu0 0.0
          %5768 = vmatprep.subr.mxu0 0.0
          %5769 = vmatpush1.xpose.msra.mxu0 0.0
          %5770 = vmatprep.subr.mxu0 0.0
          %5771 = vmatpush1.xpose.msra.mxu0 0.0
          %5772 = vmatprep.subr.mxu0 0.0
          %5773 = vmatpush1.xpose.msra.mxu0 0.0
          %5774 = vmatprep.subr.mxu0 0.0
          %5775 = vmatpush1.xpose.msra.mxu0 0.0
          %5776 = vmatprep.subr.mxu0 0.0
          %5777 = vmatpush1.xpose.msra.mxu0 0.0
          %5778 = vmatprep.subr.mxu0 0.0
          %5779 = vmatpush1.xpose.msra.mxu0 0.0
          %5780 = vmatprep.subr.mxu0 0.0
          %5781 = vmatpush1.xpose.msra.mxu0 0.0
          %5782 = vmatprep.subr.mxu0 0.0
          %5783 = vmatpush1.xpose.msra.mxu0 0.0
          %5784 = vmatprep.subr.mxu0 0.0
          %5785 = vmatpush1.xpose.msra.mxu0 0.0
          %5786 = vmatprep.subr.mxu0 0.0
          %5787 = vmatpush1.xpose.msra.mxu0 0.0
          %5788 = vmatprep.subr.mxu0 0.0
          %5789 = vmatpush1.xpose.msra.mxu0 0.0
          %5790 = vmatprep.subr.mxu0 0.0
          %5791 = vmatpush1.xpose.msra.mxu0 0.0
          %5792 = vmatprep.subr.mxu0 0.0
          %5793 = vmatpush1.xpose.msra.mxu0 0.0
          %5794 = vmatprep.subr.mxu0 0.0
          %5795 = vmatpush1.xpose.msra.mxu0 0.0
          %5796 = vmatprep.subr.mxu0 0.0
          %5797 = vmatpush1.xpose.msra.mxu0 0.0
          %5798 = vmatprep.subr.mxu0 0.0
          %5799 = vmatpush1.xpose.msra.mxu0 0.0
          %5800 = vmatprep.subr.mxu0 0.0
          %5801 = vmatpush1.xpose.msra.mxu0 0.0
          %5802 = vmatprep.subr.mxu0 0.0
          %5803 = vmatpush1.xpose.msra.mxu0 0.0
          %5804 = vmatprep.subr.mxu0 0.0
          %5805 = vmatpush1.xpose.msra.mxu0 0.0
          %5806 = vmatprep.subr.mxu0 0.0
          %5807 = vmatpush1.xpose.msra.mxu0 0.0
          %5808 = vmatprep.mubr.f32.mxu0 0.0
          %5809 = vmatmul.mubr.f32.gmra.mrb[0].mxu0 %v5721
          %v5810 = vpop.f32.mrb[0].mxu0
          %v5811 = vadd.f32 0.0, %v5810
          %v5812 = vpop.f32.mrb[0].mxu0
          %5813 = vmatprep.mubr.f32.mxu0 0.0
          %5814 = vmatmul.mubr.f32.gmra.mrb[0].mxu0 %v5724
          %v5815 = vpop.f32.mrb[0].mxu0
          %v5816 = vadd.f32 0.0, %v5815
          %v5817 = vpop.f32.mrb[0].mxu0
          %5818 = vmatprep.mubr.f32.mxu0 0.0
          %5819 = vmatmul.mubr.f32.gmra.mrb[0].mxu0 %v5727
          %v5820 = vpop.f32.mrb[0].mxu0
          %v5821 = vadd.f32 0.0, %v5820
          %v5822 = vpop.f32.mrb[0].mxu0
          %5823 = vmatprep.mubr.f32.mxu0 0.0
          %5824 = vmatmul.mubr.f32.gmra.mrb[0].mxu0 %v5730
          %v5825 = vpop.f32.mrb[0].mxu0
          %v5826 = vadd.f32 0.0, %v5825
          %v5827 = vpop.f32.mrb[0].mxu0
          %5828 = vdwg.mxu0
          %v5829 = vsel %vm4118, %v5811, -1e+30
          %v5830 = vsel %vm4119, %v5816, -1e+30
          %v5831 = vsel %vm4120, %v5821, -1e+30
          %v5832 = vsel %vm4121, %v5826, -1e+30
          %v5833 = vsel %vm4236, %v5829, -inf
          %5834 = vmax.xlane.f32.xlu0 %v5833
          %v5835 = vpop.xlane.xlu0 %5834
          %v5836 = vsel %vm4236, %v5830, -inf
          %5837 = vmax.xlane.f32.xlu0 %v5836
          %v5838 = vpop.xlane.xlu0 %5837
          %v5839 = vsel %vm4236, %v5831, -inf
          %5840 = vmax.xlane.f32.xlu0 %v5839
          %v5841 = vpop.xlane.xlu0 %5840
          %v5842 = vsel %vm4236, %v5832, -inf
          %5843 = vmax.xlane.f32.xlu0 %v5842
          %v5844 = vpop.xlane.xlu0 %5843
          %v5845 = vsub.f32 %v5829, %v5835
          %v5846 = vsub.f32 %v5830, %v5838
          %v5847 = vsub.f32 %v5831, %v5841
          %v5848 = vsub.f32 %v5832, %v5844
          %v5849 = vmul.f32 %v5845, 1.442695
          %v5850 = vpow.pop %v5849
          %v5851 = vmul.f32 %v5846, 1.442695
          %v5852 = vpow.pop %v5851
          %v5853 = vmul.f32 %v5847, 1.442695
          %v5854 = vpow.pop %v5853
          %v5855 = vmul.f32 %v5848, 1.442695
          %v5856 = vpow.pop %v5855
          %v5857 = vsel %vm4236, %v5850, 0.0
          %5858 = vadd.xlane.f32.xlu0 %v5857
          %v5859 = vpop.xlane.xlu0 %5858
          %v5860 = vsel %vm4236, %v5852, 0.0
          %5861 = vadd.xlane.f32.xlu0 %v5860
          %v5862 = vpop.xlane.xlu0 %5861
          %v5863 = vsel %vm4236, %v5854, 0.0
          %5864 = vadd.xlane.f32.xlu0 %v5863
          %v5865 = vpop.xlane.xlu0 %5864
          %v5866 = vsel %vm4236, %v5856, 0.0
          %5867 = vadd.xlane.f32.xlu0 %v5866
          %v5868 = vpop.xlane.xlu0 %5867
          %v5869 = vrcp.pop %v5859
          %v5870 = vrcp.pop %v5862
          %v5871 = vrcp.pop %v5865
          %v5872 = vrcp.pop %v5868
          %v5873 = vmul.f32 %v5850, %v5869
          %v5874 = vmul.f32 %v5852, %v5870
          %v5875 = vmul.f32 %v5854, %v5871
          %v5876 = vmul.f32 %v5856, %v5872
          %v5878 = vsel %vm4236, %v5873, 0
          %v5881 = vsel %vm4236, %v5874, 0
          %v5884 = vsel %vm4236, %v5875, 0
          %v5887 = vsel %vm4236, %v5876, 0
          %5889 = vmatprep.subr.mxu0 0.0
          %5890 = vmatpush1.msra.mxu0 %v4003
          %5891 = vmatprep.subr.mxu0 0.0
          %5892 = vmatpush1.msra.mxu0 %v4007
          %5893 = vmatprep.subr.mxu0 0.0
          %5894 = vmatpush1.msra.mxu0 %v4013
          %5895 = vmatprep.subr.mxu0 0.0
          %5896 = vmatpush1.msra.mxu0 %v4017
          %5897 = vmatprep.subr.mxu0 0.0
          %5898 = vmatpush1.msra.mxu0 0.0
          %5899 = vmatprep.subr.mxu0 0.0
          %5900 = vmatpush1.msra.mxu0 0.0
          %5901 = vmatprep.subr.mxu0 0.0
          %5902 = vmatpush1.msra.mxu0 0.0
          %5903 = vmatprep.subr.mxu0 0.0
          %5904 = vmatpush1.msra.mxu0 0.0
          %5905 = vmatprep.subr.mxu0 0.0
          %5906 = vmatpush1.msra.mxu0 0.0
          %5907 = vmatprep.subr.mxu0 0.0
          %5908 = vmatpush1.msra.mxu0 0.0
          %5909 = vmatprep.subr.mxu0 0.0
          %5910 = vmatpush1.msra.mxu0 0.0
          %5911 = vmatprep.subr.mxu0 0.0
          %5912 = vmatpush1.msra.mxu0 0.0
          %5913 = vmatprep.subr.mxu0 0.0
          %5914 = vmatpush1.msra.mxu0 0.0
          %5915 = vmatprep.subr.mxu0 0.0
          %5916 = vmatpush1.msra.mxu0 0.0
          %5917 = vmatprep.subr.mxu0 0.0
          %5918 = vmatpush1.msra.mxu0 0.0
          %5919 = vmatprep.subr.mxu0 0.0
          %5920 = vmatpush1.msra.mxu0 0.0
          %5921 = vmatprep.subr.mxu0 0.0
          %5922 = vmatpush1.msra.mxu0 0.0
          %5923 = vmatprep.subr.mxu0 0.0
          %5924 = vmatpush1.msra.mxu0 0.0
          %5925 = vmatprep.subr.mxu0 0.0
          %5926 = vmatpush1.msra.mxu0 0.0
          %5927 = vmatprep.subr.mxu0 0.0
          %5928 = vmatpush1.msra.mxu0 0.0
          %5929 = vmatprep.subr.mxu0 0.0
          %5930 = vmatpush1.msra.mxu0 0.0
          %5931 = vmatprep.subr.mxu0 0.0
          %5932 = vmatpush1.msra.mxu0 0.0
          %5933 = vmatprep.subr.mxu0 0.0
          %5934 = vmatpush1.msra.mxu0 0.0
          %5935 = vmatprep.subr.mxu0 0.0
          %5936 = vmatpush1.msra.mxu0 0.0
          %5937 = vmatprep.subr.mxu0 0.0
          %5938 = vmatpush1.msra.mxu0 0.0
          %5939 = vmatprep.subr.mxu0 0.0
          %5940 = vmatpush1.msra.mxu0 0.0
          %5941 = vmatprep.subr.mxu0 0.0
          %5942 = vmatpush1.msra.mxu0 0.0
          %5943 = vmatprep.subr.mxu0 0.0
          %5944 = vmatpush1.msra.mxu0 0.0
          %5945 = vmatprep.subr.mxu0 0.0
          %5946 = vmatpush1.msra.mxu0 0.0
          %5947 = vmatprep.subr.mxu0 0.0
          %5948 = vmatpush1.msra.mxu0 0.0
          %5949 = vmatprep.subr.mxu0 0.0
          %5950 = vmatpush1.msra.mxu0 0.0
          %5951 = vmatprep.subr.mxu0 0.0
          %5952 = vmatpush1.msra.mxu0 0.0
          %5953 = vmatprep.mubr.f32.mxu0 0.0
          %5954 = vmatmul.mubr.f32.gmra.mrb[0].mxu0 %v5878
          %v5955 = vpop.f32.mrb[0].mxu0
          %v5956 = vadd.f32 0.0, %v5955
          %v5957 = vpop.f32.mrb[0].mxu0
          %5958 = vmatprep.mubr.f32.mxu0 0.0
          %5959 = vmatmul.mubr.f32.gmra.mrb[0].mxu0 %v5881
          %v5960 = vpop.f32.mrb[0].mxu0
          %v5961 = vadd.f32 0.0, %v5960
          %v5962 = vpop.f32.mrb[0].mxu0
          %5963 = vmatprep.mubr.f32.mxu0 0.0
          %5964 = vmatmul.mubr.f32.gmra.mrb[0].mxu0 %v5884
          %v5965 = vpop.f32.mrb[0].mxu0
          %v5966 = vadd.f32 0.0, %v5965
          %v5967 = vpop.f32.mrb[0].mxu0
          %5968 = vmatprep.mubr.f32.mxu0 0.0
          %5969 = vmatmul.mubr.f32.gmra.mrb[0].mxu0 %v5887
          %v5970 = vpop.f32.mrb[0].mxu0
          %v5971 = vadd.f32 0.0, %v5970
          %v5972 = vpop.f32.mrb[0].mxu0
          %5973 = vdwg.mxu0
          %5974 = vrot.lane.b32.xlu0 %v4022, 64
          %v5975 = vpop.permute.xlu0 %5974
          %5976 = vrot.lane.b32.xlu0 %v4026, 64
          %v5977 = vpop.permute.xlu0 %5976
          %5978 = vrot.lane.b32.xlu0 %v4030, 64
          %v5979 = vpop.permute.xlu0 %5978
          %5980 = vrot.lane.b32.xlu0 %v4034, 64
          %v5981 = vpop.permute.xlu0 %5980
          %5982 = vrot.lane.b32.xlu0 %v4038, 64
          %v5983 = vpop.permute.xlu0 %5982
          %5984 = vrot.lane.b32.xlu0 %v4042, 64
          %v5985 = vpop.permute.xlu0 %5984
          %5986 = vrot.lane.b32.xlu0 %v4046, 64
          %v5987 = vpop.permute.xlu0 %5986
          %5988 = vrot.lane.b32.xlu0 %v4050, 64
          %v5989 = vpop.permute.xlu0 %5988
          %v5990 = vsel %vm4122, %v5975, 0
          %v5992 = vsel %vm4122, %v5977, 0
          %v5994 = vsel %vm4122, %v5979, 0
          %v5996 = vsel %vm4122, %v5981, 0
          %v5998 = vsel %vm4122, %v5983, 0
          %v6000 = vsel %vm4122, %v5985, 0
          %v6002 = vsel %vm4122, %v5987, 0
          %v6004 = vsel %vm4122, %v5989, 0
          %6006 = vmatprep.subr.mxu0 0.0
          %6007 = vmatpush1.xpose.msra.mxu0 %v5998
          %6008 = vmatprep.subr.mxu0 0.0
          %6009 = vmatpush1.xpose.msra.mxu0 %v6000
          %6010 = vmatprep.subr.mxu0 0.0
          %6011 = vmatpush1.xpose.msra.mxu0 %v6002
          %6012 = vmatprep.subr.mxu0 0.0
          %6013 = vmatpush1.xpose.msra.mxu0 %v6004
          %6014 = vmatprep.subr.mxu0 0.0
          %6015 = vmatpush1.xpose.msra.mxu0 0.0
          %6016 = vmatprep.subr.mxu0 0.0
          %6017 = vmatpush1.xpose.msra.mxu0 0.0
          %6018 = vmatprep.subr.mxu0 0.0
          %6019 = vmatpush1.xpose.msra.mxu0 0.0
          %6020 = vmatprep.subr.mxu0 0.0
          %6021 = vmatpush1.xpose.msra.mxu0 0.0
          %6022 = vmatprep.subr.mxu0 0.0
          %6023 = vmatpush1.xpose.msra.mxu0 0.0
          %6024 = vmatprep.subr.mxu0 0.0
          %6025 = vmatpush1.xpose.msra.mxu0 0.0
          %6026 = vmatprep.subr.mxu0 0.0
          %6027 = vmatpush1.xpose.msra.mxu0 0.0
          %6028 = vmatprep.subr.mxu0 0.0
          %6029 = vmatpush1.xpose.msra.mxu0 0.0
          %6030 = vmatprep.subr.mxu0 0.0
          %6031 = vmatpush1.xpose.msra.mxu0 0.0
          %6032 = vmatprep.subr.mxu0 0.0
          %6033 = vmatpush1.xpose.msra.mxu0 0.0
          %6034 = vmatprep.subr.mxu0 0.0
          %6035 = vmatpush1.xpose.msra.mxu0 0.0
          %6036 = vmatprep.subr.mxu0 0.0
          %6037 = vmatpush1.xpose.msra.mxu0 0.0
          %6038 = vmatprep.subr.mxu0 0.0
          %6039 = vmatpush1.xpose.msra.mxu0 0.0
          %6040 = vmatprep.subr.mxu0 0.0
          %6041 = vmatpush1.xpose.msra.mxu0 0.0
          %6042 = vmatprep.subr.mxu0 0.0
          %6043 = vmatpush1.xpose.msra.mxu0 0.0
          %6044 = vmatprep.subr.mxu0 0.0
          %6045 = vmatpush1.xpose.msra.mxu0 0.0
          %6046 = vmatprep.subr.mxu0 0.0
          %6047 = vmatpush1.xpose.msra.mxu0 0.0
          %6048 = vmatprep.subr.mxu0 0.0
          %6049 = vmatpush1.xpose.msra.mxu0 0.0
          %6050 = vmatprep.subr.mxu0 0.0
          %6051 = vmatpush1.xpose.msra.mxu0 0.0
          %6052 = vmatprep.subr.mxu0 0.0
          %6053 = vmatpush1.xpose.msra.mxu0 0.0
          %6054 = vmatprep.subr.mxu0 0.0
          %6055 = vmatpush1.xpose.msra.mxu0 0.0
          %6056 = vmatprep.subr.mxu0 0.0
          %6057 = vmatpush1.xpose.msra.mxu0 0.0
          %6058 = vmatprep.subr.mxu0 0.0
          %6059 = vmatpush1.xpose.msra.mxu0 0.0
          %6060 = vmatprep.subr.mxu0 0.0
          %6061 = vmatpush1.xpose.msra.mxu0 0.0
          %6062 = vmatprep.subr.mxu0 0.0
          %6063 = vmatpush1.xpose.msra.mxu0 0.0
          %6064 = vmatprep.subr.mxu0 0.0
          %6065 = vmatpush1.xpose.msra.mxu0 0.0
          %6066 = vmatprep.subr.mxu0 0.0
          %6067 = vmatpush1.xpose.msra.mxu0 0.0
          %6068 = vmatprep.subr.mxu0 0.0
          %6069 = vmatpush1.xpose.msra.mxu0 0.0
          %6070 = vmatprep.mubr.f32.mxu0 0.0
          %6071 = vmatmul.mubr.f32.gmra.mrb[0].mxu0 %v5990
          %v6072 = vpop.f32.mrb[0].mxu0
          %v6073 = vadd.f32 0.0, %v6072
          %v6074 = vpop.f32.mrb[0].mxu0
          %6075 = vmatprep.mubr.f32.mxu0 0.0
          %6076 = vmatmul.mubr.f32.gmra.mrb[0].mxu0 %v5992
          %v6077 = vpop.f32.mrb[0].mxu0
          %v6078 = vadd.f32 0.0, %v6077
          %v6079 = vpop.f32.mrb[0].mxu0
          %6080 = vmatprep.mubr.f32.mxu0 0.0
          %6081 = vmatmul.mubr.f32.gmra.mrb[0].mxu0 %v5994
          %v6082 = vpop.f32.mrb[0].mxu0
          %v6083 = vadd.f32 0.0, %v6082
          %v6084 = vpop.f32.mrb[0].mxu0
          %6085 = vmatprep.mubr.f32.mxu0 0.0
          %6086 = vmatmul.mubr.f32.gmra.mrb[0].mxu0 %v5996
          %v6087 = vpop.f32.mrb[0].mxu0
          %v6088 = vadd.f32 0.0, %v6087
          %v6089 = vpop.f32.mrb[0].mxu0
          %6090 = vdwg.mxu0
          %v6091 = vsel %vm4118, %v6073, -1e+30
          %v6092 = vsel %vm4119, %v6078, -1e+30
          %v6093 = vsel %vm4120, %v6083, -1e+30
          %v6094 = vsel %vm4121, %v6088, -1e+30
          %v6095 = vsel %vm4236, %v6091, -inf
          %6096 = vmax.xlane.f32.xlu0 %v6095
          %v6097 = vpop.xlane.xlu0 %6096
          %v6098 = vsel %vm4236, %v6092, -inf
          %6099 = vmax.xlane.f32.xlu0 %v6098
          %v6100 = vpop.xlane.xlu0 %6099
          %v6101 = vsel %vm4236, %v6093, -inf
          %6102 = vmax.xlane.f32.xlu0 %v6101
          %v6103 = vpop.xlane.xlu0 %6102
          %v6104 = vsel %vm4236, %v6094, -inf
          %6105 = vmax.xlane.f32.xlu0 %v6104
          %v6106 = vpop.xlane.xlu0 %6105
          %v6107 = vsub.f32 %v6091, %v6097
          %v6108 = vsub.f32 %v6092, %v6100
          %v6109 = vsub.f32 %v6093, %v6103
          %v6110 = vsub.f32 %v6094, %v6106
          %v6111 = vmul.f32 %v6107, 1.442695
          %v6112 = vpow.pop %v6111
          %v6113 = vmul.f32 %v6108, 1.442695
          %v6114 = vpow.pop %v6113
          %v6115 = vmul.f32 %v6109, 1.442695
          %v6116 = vpow.pop %v6115
          %v6117 = vmul.f32 %v6110, 1.442695
          %v6118 = vpow.pop %v6117
          %v6119 = vsel %vm4236, %v6112, 0.0
          %6120 = vadd.xlane.f32.xlu0 %v6119
          %v6121 = vpop.xlane.xlu0 %6120
          %v6122 = vsel %vm4236, %v6114, 0.0
          %6123 = vadd.xlane.f32.xlu0 %v6122
          %v6124 = vpop.xlane.xlu0 %6123
          %v6125 = vsel %vm4236, %v6116, 0.0
          %6126 = vadd.xlane.f32.xlu0 %v6125
          %v6127 = vpop.xlane.xlu0 %6126
          %v6128 = vsel %vm4236, %v6118, 0.0
          %6129 = vadd.xlane.f32.xlu0 %v6128
          %v6130 = vpop.xlane.xlu0 %6129
          %v6131 = vrcp.pop %v6121
          %v6132 = vrcp.pop %v6124
          %v6133 = vrcp.pop %v6127
          %v6134 = vrcp.pop %v6130
          %v6135 = vmul.f32 %v6112, %v6131
          %v6136 = vmul.f32 %v6114, %v6132
          %v6137 = vmul.f32 %v6116, %v6133
          %v6138 = vmul.f32 %v6118, %v6134
          %6143 = vrot.lane.b32.xlu0 %v4003, 64
          %v6144 = vpop.permute.xlu0 %6143
          %6145 = vrot.lane.b32.xlu0 %v4007, 64
          %v6146 = vpop.permute.xlu0 %6145
          %6147 = vrot.lane.b32.xlu0 %v4013, 64
          %v6148 = vpop.permute.xlu0 %6147
          %6149 = vrot.lane.b32.xlu0 %v4017, 64
          %v6150 = vpop.permute.xlu0 %6149
          %v6156 = vsel %vm4236, %v6135, 0
          %v6159 = vsel %vm4236, %v6136, 0
          %v6162 = vsel %vm4236, %v6137, 0
          %v6165 = vsel %vm4236, %v6138, 0
          %6167 = vmatprep.subr.mxu0 0.0
          %6168 = vmatpush1.msra.mxu0 %v6144
          %6169 = vmatprep.subr.mxu0 0.0
          %6170 = vmatpush1.msra.mxu0 %v6146
          %6171 = vmatprep.subr.mxu0 0.0
          %6172 = vmatpush1.msra.mxu0 %v6148
          %6173 = vmatprep.subr.mxu0 0.0
          %6174 = vmatpush1.msra.mxu0 %v6150
          %6175 = vmatprep.subr.mxu0 0.0
          %6176 = vmatpush1.msra.mxu0 0.0
          %6177 = vmatprep.subr.mxu0 0.0
          %6178 = vmatpush1.msra.mxu0 0.0
          %6179 = vmatprep.subr.mxu0 0.0
          %6180 = vmatpush1.msra.mxu0 0.0
          %6181 = vmatprep.subr.mxu0 0.0
          %6182 = vmatpush1.msra.mxu0 0.0
          %6183 = vmatprep.subr.mxu0 0.0
          %6184 = vmatpush1.msra.mxu0 0.0
          %6185 = vmatprep.subr.mxu0 0.0
          %6186 = vmatpush1.msra.mxu0 0.0
          %6187 = vmatprep.subr.mxu0 0.0
          %6188 = vmatpush1.msra.mxu0 0.0
          %6189 = vmatprep.subr.mxu0 0.0
          %6190 = vmatpush1.msra.mxu0 0.0
          %6191 = vmatprep.subr.mxu0 0.0
          %6192 = vmatpush1.msra.mxu0 0.0
          %6193 = vmatprep.subr.mxu0 0.0
          %6194 = vmatpush1.msra.mxu0 0.0
          %6195 = vmatprep.subr.mxu0 0.0
          %6196 = vmatpush1.msra.mxu0 0.0
          %6197 = vmatprep.subr.mxu0 0.0
          %6198 = vmatpush1.msra.mxu0 0.0
          %6199 = vmatprep.subr.mxu0 0.0
          %6200 = vmatpush1.msra.mxu0 0.0
          %6201 = vmatprep.subr.mxu0 0.0
          %6202 = vmatpush1.msra.mxu0 0.0
          %6203 = vmatprep.subr.mxu0 0.0
          %6204 = vmatpush1.msra.mxu0 0.0
          %6205 = vmatprep.subr.mxu0 0.0
          %6206 = vmatpush1.msra.mxu0 0.0
          %6207 = vmatprep.subr.mxu0 0.0
          %6208 = vmatpush1.msra.mxu0 0.0
          %6209 = vmatprep.subr.mxu0 0.0
          %6210 = vmatpush1.msra.mxu0 0.0
          %6211 = vmatprep.subr.mxu0 0.0
          %6212 = vmatpush1.msra.mxu0 0.0
          %6213 = vmatprep.subr.mxu0 0.0
          %6214 = vmatpush1.msra.mxu0 0.0
          %6215 = vmatprep.subr.mxu0 0.0
          %6216 = vmatpush1.msra.mxu0 0.0
          %6217 = vmatprep.subr.mxu0 0.0
          %6218 = vmatpush1.msra.mxu0 0.0
          %6219 = vmatprep.subr.mxu0 0.0
          %6220 = vmatpush1.msra.mxu0 0.0
          %6221 = vmatprep.subr.mxu0 0.0
          %6222 = vmatpush1.msra.mxu0 0.0
          %6223 = vmatprep.subr.mxu0 0.0
          %6224 = vmatpush1.msra.mxu0 0.0
          %6225 = vmatprep.subr.mxu0 0.0
          %6226 = vmatpush1.msra.mxu0 0.0
          %6227 = vmatprep.subr.mxu0 0.0
          %6228 = vmatpush1.msra.mxu0 0.0
          %6229 = vmatprep.subr.mxu0 0.0
          %6230 = vmatpush1.msra.mxu0 0.0
          %6231 = vmatprep.mubr.f32.mxu0 0.0
          %6232 = vmatmul.mubr.f32.gmra.mrb[0].mxu0 %v6156
          %v6233 = vpop.f32.mrb[0].mxu0
          %v6234 = vadd.f32 0.0, %v6233
          %v6235 = vpop.f32.mrb[0].mxu0
          %6236 = vmatprep.mubr.f32.mxu0 0.0
          %6237 = vmatmul.mubr.f32.gmra.mrb[0].mxu0 %v6159
          %v6238 = vpop.f32.mrb[0].mxu0
          %v6239 = vadd.f32 0.0, %v6238
          %v6240 = vpop.f32.mrb[0].mxu0
          %6241 = vmatprep.mubr.f32.mxu0 0.0
          %6242 = vmatmul.mubr.f32.gmra.mrb[0].mxu0 %v6162
          %v6243 = vpop.f32.mrb[0].mxu0
          %v6244 = vadd.f32 0.0, %v6243
          %v6245 = vpop.f32.mrb[0].mxu0
          %6246 = vmatprep.mubr.f32.mxu0 0.0
          %6247 = vmatmul.mubr.f32.gmra.mrb[0].mxu0 %v6165
          %v6248 = vpop.f32.mrb[0].mxu0
          %v6249 = vadd.f32 0.0, %v6248
          %v6250 = vpop.f32.mrb[0].mxu0
          %6251 = vdwg.mxu0
          %6256 = vrot.lane.b32.xlu0 %v4638, 64
          %v6257 = vpop.permute.xlu0 %6256
          %6258 = vrot.lane.b32.xlu0 %v4643, 64
          %v6259 = vpop.permute.xlu0 %6258
          %6260 = vrot.lane.b32.xlu0 %v4648, 64
          %v6261 = vpop.permute.xlu0 %6260
          %6262 = vrot.lane.b32.xlu0 %v4653, 64
          %v6263 = vpop.permute.xlu0 %6262
          %6272 = vrot.lane.b32.xlu0 %v5170, 64
          %v6273 = vpop.permute.xlu0 %6272
          %6274 = vrot.lane.b32.xlu0 %v5175, 64
          %v6275 = vpop.permute.xlu0 %6274
          %6276 = vrot.lane.b32.xlu0 %v5180, 64
          %v6277 = vpop.permute.xlu0 %6276
          %6278 = vrot.lane.b32.xlu0 %v5185, 64
          %v6279 = vpop.permute.xlu0 %6278
          %6288 = vrot.lane.b32.xlu0 %v5702, 64
          %v6289 = vpop.permute.xlu0 %6288
          %6290 = vrot.lane.b32.xlu0 %v5707, 64
          %v6291 = vpop.permute.xlu0 %6290
          %6292 = vrot.lane.b32.xlu0 %v5712, 64
          %v6293 = vpop.permute.xlu0 %6292
          %6294 = vrot.lane.b32.xlu0 %v5717, 64
          %v6295 = vpop.permute.xlu0 %6294
          %6304 = vrot.lane.b32.xlu0 %v6234, 64
          %v6305 = vpop.permute.xlu0 %6304
          %6306 = vrot.lane.b32.xlu0 %v6239, 64
          %v6307 = vpop.permute.xlu0 %6306
          %6308 = vrot.lane.b32.xlu0 %v6244, 64
          %v6309 = vpop.permute.xlu0 %6308
          %6310 = vrot.lane.b32.xlu0 %v6249, 64
          %v6311 = vpop.permute.xlu0 %6310
          %v6316 = vsel %vm4122, %v4360, %v6257
          %v6317 = vsel %vm4122, %v4365, %v6259
          %v6318 = vsel %vm4122, %v4370, %v6261
          %v6319 = vsel %vm4122, %v4375, %v6263
          %v6320 = vsel %vm4122, %v4892, %v6273
          %v6321 = vsel %vm4122, %v4897, %v6275
          %v6322 = vsel %vm4122, %v4902, %v6277
          %v6323 = vsel %vm4122, %v4907, %v6279
          %v6324 = vsel %vm4122, %v5424, %v6289
          %v6325 = vsel %vm4122, %v5429, %v6291
          %v6326 = vsel %vm4122, %v5434, %v6293
          %v6327 = vsel %vm4122, %v5439, %v6295
          %v6328 = vsel %vm4122, %v5956, %v6305
          %v6329 = vsel %vm4122, %v5961, %v6307
          %v6330 = vsel %vm4122, %v5966, %v6309
          %v6331 = vsel %vm4122, %v5971, %v6311
          %v6332 = vpack.c.bf16 %v6317, %v6316
          %v6333 = vpack.c.bf16 %v6321, %v6320
          %v6334 = vpack.c.bf16 %v6325, %v6324
          %v6335 = vpack.c.bf16 %v6329, %v6328
          %v6336 = vpack.c.bf16 %v6319, %v6318
          %v6337 = vpack.c.bf16 %v6323, %v6322
          %v6338 = vpack.c.bf16 %v6327, %v6326
          %v6339 = vpack.c.bf16 %v6331, %v6330
          %v6340 = vld [vmem:[#allocation16] sm:$0xff]
          %v6341 = vld [vmem:[#allocation16 + $0x8] sm:$0xff]
          %v6342 = vld [vmem:[#allocation16 + $0x10] sm:$0xff]
          %v6343 = vld [vmem:[#allocation16 + $0x18] sm:$0xff]
          %v6344 = vld [vmem:[#allocation16 + $0x20] sm:$0xff]
          %v6345 = vld [vmem:[#allocation16 + $0x28] sm:$0xff]
          %v6346 = vld [vmem:[#allocation16 + $0x30] sm:$0xff]
          %v6347 = vld [vmem:[#allocation16 + $0x38] sm:$0xff]
          %v6348 = vld [vmem:[#allocation16 + $0x40] sm:$0xff]
          %v6349 = vld [vmem:[#allocation16 + $0x48] sm:$0xff]
          %v6350 = vld [vmem:[#allocation16 + $0x50] sm:$0xff]
          %v6351 = vld [vmem:[#allocation16 + $0x58] sm:$0xff]
          %v6352 = vld [vmem:[#allocation16 + $0x60] sm:$0xff]
          %v6353 = vld [vmem:[#allocation16 + $0x68] sm:$0xff]
          %v6354 = vld [vmem:[#allocation16 + $0x70] sm:$0xff]
          %v6355 = vld [vmem:[#allocation16 + $0x78] sm:$0xff]
          %v6356 = vld [vmem:[#allocation16 + $0x80] sm:$0xff]
          %v6357 = vld [vmem:[#allocation16 + $0x88] sm:$0xff]
          %v6358 = vld [vmem:[#allocation16 + $0x90] sm:$0xff]
          %v6359 = vld [vmem:[#allocation16 + $0x98] sm:$0xff]
          %v6360 = vld [vmem:[#allocation16 + $0xa0] sm:$0xff]
          %v6361 = vld [vmem:[#allocation16 + $0xa8] sm:$0xff]
          %v6362 = vld [vmem:[#allocation16 + $0xb0] sm:$0xff]
          %v6363 = vld [vmem:[#allocation16 + $0xb8] sm:$0xff]
          %v6364 = vld [vmem:[#allocation16 + $0xc0] sm:$0xff]
          %v6365 = vld [vmem:[#allocation16 + $0xc8] sm:$0xff]
          %v6366 = vld [vmem:[#allocation16 + $0xd0] sm:$0xff]
          %v6367 = vld [vmem:[#allocation16 + $0xd8] sm:$0xff]
          %v6368 = vld [vmem:[#allocation16 + $0xe0] sm:$0xff]
          %v6369 = vld [vmem:[#allocation16 + $0xe8] sm:$0xff]
          %v6370 = vld [vmem:[#allocation16 + $0xf0] sm:$0xff]
          %v6371 = vld [vmem:[#allocation16 + $0xf8] sm:$0xff]
          %v6372 = vld [vmem:[#allocation16 + $0x100] sm:$0xff]
          %v6373 = vld [vmem:[#allocation16 + $0x108] sm:$0xff]
          %v6374 = vld [vmem:[#allocation16 + $0x110] sm:$0xff]
          %v6375 = vld [vmem:[#allocation16 + $0x118] sm:$0xff]
          %v6376 = vld [vmem:[#allocation16 + $0x120] sm:$0xff]
          %v6377 = vld [vmem:[#allocation16 + $0x128] sm:$0xff]
          %v6378 = vld [vmem:[#allocation16 + $0x130] sm:$0xff]
          %v6379 = vld [vmem:[#allocation16 + $0x138] sm:$0xff]
          %v6380 = vld [vmem:[#allocation16 + $0x140] sm:$0xff]
          %v6381 = vld [vmem:[#allocation16 + $0x148] sm:$0xff]
          %v6382 = vld [vmem:[#allocation16 + $0x150] sm:$0xff]
          %v6383 = vld [vmem:[#allocation16 + $0x158] sm:$0xff]
          %v6384 = vld [vmem:[#allocation16 + $0x160] sm:$0xff]
          %v6385 = vld [vmem:[#allocation16 + $0x168] sm:$0xff]
          %v6386 = vld [vmem:[#allocation16 + $0x170] sm:$0xff]
          %v6387 = vld [vmem:[#allocation16 + $0x178] sm:$0xff]
          %v6388 = vld [vmem:[#allocation16 + $0x180] sm:$0xff]
          %v6389 = vld [vmem:[#allocation16 + $0x188] sm:$0xff]
          %v6390 = vld [vmem:[#allocation16 + $0x190] sm:$0xff]
          %v6391 = vld [vmem:[#allocation16 + $0x198] sm:$0xff]
          %v6392 = vld [vmem:[#allocation16 + $0x1a0] sm:$0xff]
          %v6393 = vld [vmem:[#allocation16 + $0x1a8] sm:$0xff]
          %v6394 = vld [vmem:[#allocation16 + $0x1b0] sm:$0xff]
          %v6395 = vld [vmem:[#allocation16 + $0x1b8] sm:$0xff]
          %v6396 = vld [vmem:[#allocation16 + $0x1c0] sm:$0xff]
          %v6397 = vld [vmem:[#allocation16 + $0x1c8] sm:$0xff]
          %v6398 = vld [vmem:[#allocation16 + $0x1d0] sm:$0xff]
          %v6399 = vld [vmem:[#allocation16 + $0x1d8] sm:$0xff]
          %v6400 = vld [vmem:[#allocation16 + $0x1e0] sm:$0xff]
          %v6401 = vld [vmem:[#allocation16 + $0x1e8] sm:$0xff]
          %v6402 = vld [vmem:[#allocation16 + $0x1f0] sm:$0xff]
          %v6403 = vld [vmem:[#allocation16 + $0x1f8] sm:$0xff]
          %v6404 = vld [vmem:[#allocation16 + $0x200] sm:$0xff]
          %v6405 = vld [vmem:[#allocation16 + $0x208] sm:$0xff]
          %v6406 = vld [vmem:[#allocation16 + $0x210] sm:$0xff]
          %v6407 = vld [vmem:[#allocation16 + $0x218] sm:$0xff]
          %v6408 = vld [vmem:[#allocation16 + $0x220] sm:$0xff]
          %v6409 = vld [vmem:[#allocation16 + $0x228] sm:$0xff]
          %v6410 = vld [vmem:[#allocation16 + $0x230] sm:$0xff]
          %v6411 = vld [vmem:[#allocation16 + $0x238] sm:$0xff]
          %v6412 = vld [vmem:[#allocation16 + $0x240] sm:$0xff]
          %v6413 = vld [vmem:[#allocation16 + $0x248] sm:$0xff]
          %v6414 = vld [vmem:[#allocation16 + $0x250] sm:$0xff]
          %v6415 = vld [vmem:[#allocation16 + $0x258] sm:$0xff]
          %v6416 = vld [vmem:[#allocation16 + $0x260] sm:$0xff]
          %v6417 = vld [vmem:[#allocation16 + $0x268] sm:$0xff]
          %v6418 = vld [vmem:[#allocation16 + $0x270] sm:$0xff]
          %v6419 = vld [vmem:[#allocation16 + $0x278] sm:$0xff]
          %v6420 = vld [vmem:[#allocation16 + $0x280] sm:$0xff]
          %v6421 = vld [vmem:[#allocation16 + $0x288] sm:$0xff]
          %v6422 = vld [vmem:[#allocation16 + $0x290] sm:$0xff]
          %v6423 = vld [vmem:[#allocation16 + $0x298] sm:$0xff]
          %v6424 = vld [vmem:[#allocation16 + $0x2a0] sm:$0xff]
          %v6425 = vld [vmem:[#allocation16 + $0x2a8] sm:$0xff]
          %v6426 = vld [vmem:[#allocation16 + $0x2b0] sm:$0xff]
          %v6427 = vld [vmem:[#allocation16 + $0x2b8] sm:$0xff]
          %v6428 = vld [vmem:[#allocation16 + $0x2c0] sm:$0xff]
          %v6429 = vld [vmem:[#allocation16 + $0x2c8] sm:$0xff]
          %v6430 = vld [vmem:[#allocation16 + $0x2d0] sm:$0xff]
          %v6431 = vld [vmem:[#allocation16 + $0x2d8] sm:$0xff]
          %v6432 = vld [vmem:[#allocation16 + $0x2e0] sm:$0xff]
          %v6433 = vld [vmem:[#allocation16 + $0x2e8] sm:$0xff]
          %v6434 = vld [vmem:[#allocation16 + $0x2f0] sm:$0xff]
          %v6435 = vld [vmem:[#allocation16 + $0x2f8] sm:$0xff]
          %v6436 = vld [vmem:[#allocation16 + $0x300] sm:$0xff]
          %v6437 = vld [vmem:[#allocation16 + $0x308] sm:$0xff]
          %v6438 = vld [vmem:[#allocation16 + $0x310] sm:$0xff]
          %v6439 = vld [vmem:[#allocation16 + $0x318] sm:$0xff]
          %v6440 = vld [vmem:[#allocation16 + $0x320] sm:$0xff]
          %v6441 = vld [vmem:[#allocation16 + $0x328] sm:$0xff]
          %v6442 = vld [vmem:[#allocation16 + $0x330] sm:$0xff]
          %v6443 = vld [vmem:[#allocation16 + $0x338] sm:$0xff]
          %v6444 = vld [vmem:[#allocation16 + $0x340] sm:$0xff]
          %v6445 = vld [vmem:[#allocation16 + $0x348] sm:$0xff]
          %v6446 = vld [vmem:[#allocation16 + $0x350] sm:$0xff]
          %v6447 = vld [vmem:[#allocation16 + $0x358] sm:$0xff]
          %v6448 = vld [vmem:[#allocation16 + $0x360] sm:$0xff]
          %v6449 = vld [vmem:[#allocation16 + $0x368] sm:$0xff]
          %v6450 = vld [vmem:[#allocation16 + $0x370] sm:$0xff]
          %v6451 = vld [vmem:[#allocation16 + $0x378] sm:$0xff]
          %v6452 = vld [vmem:[#allocation16 + $0x380] sm:$0xff]
          %v6453 = vld [vmem:[#allocation16 + $0x388] sm:$0xff]
          %v6454 = vld [vmem:[#allocation16 + $0x390] sm:$0xff]
          %v6455 = vld [vmem:[#allocation16 + $0x398] sm:$0xff]
          %v6456 = vld [vmem:[#allocation16 + $0x3a0] sm:$0xff]
          %v6457 = vld [vmem:[#allocation16 + $0x3a8] sm:$0xff]
          %v6458 = vld [vmem:[#allocation16 + $0x3b0] sm:$0xff]
          %v6459 = vld [vmem:[#allocation16 + $0x3b8] sm:$0xff]
          %v6460 = vld [vmem:[#allocation16 + $0x3c0] sm:$0xff]
          %v6461 = vld [vmem:[#allocation16 + $0x3c8] sm:$0xff]
          %v6462 = vld [vmem:[#allocation16 + $0x3d0] sm:$0xff]
          %v6463 = vld [vmem:[#allocation16 + $0x3d8] sm:$0xff]
          %v6464 = vld [vmem:[#allocation16 + $0x3e0] sm:$0xff]
          %v6465 = vld [vmem:[#allocation16 + $0x3e8] sm:$0xff]
          %v6466 = vld [vmem:[#allocation16 + $0x3f0] sm:$0xff]
          %v6467 = vld [vmem:[#allocation16 + $0x3f8] sm:$0xff]
          %v6468 = vld [vmem:[#allocation17] sm:$0xf]
          %v6470 = vlaneseq
          %v6471 = vshrl.u32 %v6470, 7
          %v6472 = vsub.s32 0, %v6471
          %v6473 = vrot.slane %v6468, %v6472
          %v6474 = vlaneseq
          %v6475 = vshrl.u32 %v6474, 7
          %v6476 = vsub.s32 1, %v6475
          %v6477 = vrot.slane %v6468, %v6476
          %v6478 = vlaneseq
          %v6479 = vshrl.u32 %v6478, 7
          %v6480 = vsub.s32 2, %v6479
          %v6481 = vrot.slane %v6468, %v6480
          %v6482 = vlaneseq
          %v6483 = vshrl.u32 %v6482, 7
          %v6484 = vsub.s32 3, %v6483
          %v6485 = vrot.slane %v6468, %v6484
          %v6618 = vunpack.c.l.b16 %v6340
          %v6619 = vunpack.c.h.b16 %v6340
          %v6620 = vunpack.c.l.b16 %v6341
          %v6621 = vunpack.c.h.b16 %v6341
          %v6622 = vunpack.c.l.b16 %v6342
          %v6623 = vunpack.c.h.b16 %v6342
          %v6624 = vunpack.c.l.b16 %v6343
          %v6625 = vunpack.c.h.b16 %v6343
          %v6626 = vunpack.c.l.b16 %v6344
          %v6627 = vunpack.c.h.b16 %v6344
          %v6628 = vunpack.c.l.b16 %v6345
          %v6629 = vunpack.c.h.b16 %v6345
          %v6630 = vunpack.c.l.b16 %v6346
          %v6631 = vunpack.c.h.b16 %v6346
          %v6632 = vunpack.c.l.b16 %v6347
          %v6633 = vunpack.c.h.b16 %v6347
          %v6634 = vunpack.c.l.b16 %v6348
          %v6635 = vunpack.c.h.b16 %v6348
          %v6636 = vunpack.c.l.b16 %v6349
          %v6637 = vunpack.c.h.b16 %v6349
          %v6638 = vunpack.c.l.b16 %v6350
          %v6639 = vunpack.c.h.b16 %v6350
          %v6640 = vunpack.c.l.b16 %v6351
          %v6641 = vunpack.c.h.b16 %v6351
          %v6642 = vunpack.c.l.b16 %v6352
          %v6643 = vunpack.c.h.b16 %v6352
          %v6644 = vunpack.c.l.b16 %v6353
          %v6645 = vunpack.c.h.b16 %v6353
          %v6646 = vunpack.c.l.b16 %v6354
          %v6647 = vunpack.c.h.b16 %v6354
          %v6648 = vunpack.c.l.b16 %v6355
          %v6649 = vunpack.c.h.b16 %v6355
          %v6650 = vunpack.c.l.b16 %v6356
          %v6651 = vunpack.c.h.b16 %v6356
          %v6652 = vunpack.c.l.b16 %v6357
          %v6653 = vunpack.c.h.b16 %v6357
          %v6654 = vunpack.c.l.b16 %v6358
          %v6655 = vunpack.c.h.b16 %v6358
          %v6656 = vunpack.c.l.b16 %v6359
          %v6657 = vunpack.c.h.b16 %v6359
          %v6658 = vunpack.c.l.b16 %v6360
          %v6659 = vunpack.c.h.b16 %v6360
          %v6660 = vunpack.c.l.b16 %v6361
          %v6661 = vunpack.c.h.b16 %v6361
          %v6662 = vunpack.c.l.b16 %v6362
          %v6663 = vunpack.c.h.b16 %v6362
          %v6664 = vunpack.c.l.b16 %v6363
          %v6665 = vunpack.c.h.b16 %v6363
          %v6666 = vunpack.c.l.b16 %v6364
          %v6667 = vunpack.c.h.b16 %v6364
          %v6668 = vunpack.c.l.b16 %v6365
          %v6669 = vunpack.c.h.b16 %v6365
          %v6670 = vunpack.c.l.b16 %v6366
          %v6671 = vunpack.c.h.b16 %v6366
          %v6672 = vunpack.c.l.b16 %v6367
          %v6673 = vunpack.c.h.b16 %v6367
          %v6674 = vunpack.c.l.b16 %v6368
          %v6675 = vunpack.c.h.b16 %v6368
          %v6676 = vunpack.c.l.b16 %v6369
          %v6677 = vunpack.c.h.b16 %v6369
          %v6678 = vunpack.c.l.b16 %v6370
          %v6679 = vunpack.c.h.b16 %v6370
          %v6680 = vunpack.c.l.b16 %v6371
          %v6681 = vunpack.c.h.b16 %v6371
          %v6682 = vunpack.c.l.b16 %v6372
          %v6683 = vunpack.c.h.b16 %v6372
          %v6684 = vunpack.c.l.b16 %v6373
          %v6685 = vunpack.c.h.b16 %v6373
          %v6686 = vunpack.c.l.b16 %v6374
          %v6687 = vunpack.c.h.b16 %v6374
          %v6688 = vunpack.c.l.b16 %v6375
          %v6689 = vunpack.c.h.b16 %v6375
          %v6690 = vunpack.c.l.b16 %v6376
          %v6691 = vunpack.c.h.b16 %v6376
          %v6692 = vunpack.c.l.b16 %v6377
          %v6693 = vunpack.c.h.b16 %v6377
          %v6694 = vunpack.c.l.b16 %v6378
          %v6695 = vunpack.c.h.b16 %v6378
          %v6696 = vunpack.c.l.b16 %v6379
          %v6697 = vunpack.c.h.b16 %v6379
          %v6698 = vunpack.c.l.b16 %v6380
          %v6699 = vunpack.c.h.b16 %v6380
          %v6700 = vunpack.c.l.b16 %v6381
          %v6701 = vunpack.c.h.b16 %v6381
          %v6702 = vunpack.c.l.b16 %v6382
          %v6703 = vunpack.c.h.b16 %v6382
          %v6704 = vunpack.c.l.b16 %v6383
          %v6705 = vunpack.c.h.b16 %v6383
          %v6706 = vunpack.c.l.b16 %v6384
          %v6707 = vunpack.c.h.b16 %v6384
          %v6708 = vunpack.c.l.b16 %v6385
          %v6709 = vunpack.c.h.b16 %v6385
          %v6710 = vunpack.c.l.b16 %v6386
          %v6711 = vunpack.c.h.b16 %v6386
          %v6712 = vunpack.c.l.b16 %v6387
          %v6713 = vunpack.c.h.b16 %v6387
          %v6714 = vunpack.c.l.b16 %v6388
          %v6715 = vunpack.c.h.b16 %v6388
          %v6716 = vunpack.c.l.b16 %v6389
          %v6717 = vunpack.c.h.b16 %v6389
          %v6718 = vunpack.c.l.b16 %v6390
          %v6719 = vunpack.c.h.b16 %v6390
          %v6720 = vunpack.c.l.b16 %v6391
          %v6721 = vunpack.c.h.b16 %v6391
          %v6722 = vunpack.c.l.b16 %v6392
          %v6723 = vunpack.c.h.b16 %v6392
          %v6724 = vunpack.c.l.b16 %v6393
          %v6725 = vunpack.c.h.b16 %v6393
          %v6726 = vunpack.c.l.b16 %v6394
          %v6727 = vunpack.c.h.b16 %v6394
          %v6728 = vunpack.c.l.b16 %v6395
          %v6729 = vunpack.c.h.b16 %v6395
          %v6730 = vunpack.c.l.b16 %v6396
          %v6731 = vunpack.c.h.b16 %v6396
          %v6732 = vunpack.c.l.b16 %v6397
          %v6733 = vunpack.c.h.b16 %v6397
          %v6734 = vunpack.c.l.b16 %v6398
          %v6735 = vunpack.c.h.b16 %v6398
          %v6736 = vunpack.c.l.b16 %v6399
          %v6737 = vunpack.c.h.b16 %v6399
          %v6738 = vunpack.c.l.b16 %v6400
          %v6739 = vunpack.c.h.b16 %v6400
          %v6740 = vunpack.c.l.b16 %v6401
          %v6741 = vunpack.c.h.b16 %v6401
          %v6742 = vunpack.c.l.b16 %v6402
          %v6743 = vunpack.c.h.b16 %v6402
          %v6744 = vunpack.c.l.b16 %v6403
          %v6745 = vunpack.c.h.b16 %v6403
          %v6746 = vunpack.c.l.b16 %v6404
          %v6747 = vunpack.c.h.b16 %v6404
          %v6748 = vunpack.c.l.b16 %v6405
          %v6749 = vunpack.c.h.b16 %v6405
          %v6750 = vunpack.c.l.b16 %v6406
          %v6751 = vunpack.c.h.b16 %v6406
          %v6752 = vunpack.c.l.b16 %v6407
          %v6753 = vunpack.c.h.b16 %v6407
          %v6754 = vunpack.c.l.b16 %v6408
          %v6755 = vunpack.c.h.b16 %v6408
          %v6756 = vunpack.c.l.b16 %v6409
          %v6757 = vunpack.c.h.b16 %v6409
          %v6758 = vunpack.c.l.b16 %v6410
          %v6759 = vunpack.c.h.b16 %v6410
          %v6760 = vunpack.c.l.b16 %v6411
          %v6761 = vunpack.c.h.b16 %v6411
          %v6762 = vunpack.c.l.b16 %v6412
          %v6763 = vunpack.c.h.b16 %v6412
          %v6764 = vunpack.c.l.b16 %v6413
          %v6765 = vunpack.c.h.b16 %v6413
          %v6766 = vunpack.c.l.b16 %v6414
          %v6767 = vunpack.c.h.b16 %v6414
          %v6768 = vunpack.c.l.b16 %v6415
          %v6769 = vunpack.c.h.b16 %v6415
          %v6770 = vunpack.c.l.b16 %v6416
          %v6771 = vunpack.c.h.b16 %v6416
          %v6772 = vunpack.c.l.b16 %v6417
          %v6773 = vunpack.c.h.b16 %v6417
          %v6774 = vunpack.c.l.b16 %v6418
          %v6775 = vunpack.c.h.b16 %v6418
          %v6776 = vunpack.c.l.b16 %v6419
          %v6777 = vunpack.c.h.b16 %v6419
          %v6778 = vunpack.c.l.b16 %v6420
          %v6779 = vunpack.c.h.b16 %v6420
          %v6780 = vunpack.c.l.b16 %v6421
          %v6781 = vunpack.c.h.b16 %v6421
          %v6782 = vunpack.c.l.b16 %v6422
          %v6783 = vunpack.c.h.b16 %v6422
          %v6784 = vunpack.c.l.b16 %v6423
          %v6785 = vunpack.c.h.b16 %v6423
          %v6786 = vunpack.c.l.b16 %v6424
          %v6787 = vunpack.c.h.b16 %v6424
          %v6788 = vunpack.c.l.b16 %v6425
          %v6789 = vunpack.c.h.b16 %v6425
          %v6790 = vunpack.c.l.b16 %v6426
          %v6791 = vunpack.c.h.b16 %v6426
          %v6792 = vunpack.c.l.b16 %v6427
          %v6793 = vunpack.c.h.b16 %v6427
          %v6794 = vunpack.c.l.b16 %v6428
          %v6795 = vunpack.c.h.b16 %v6428
          %v6796 = vunpack.c.l.b16 %v6429
          %v6797 = vunpack.c.h.b16 %v6429
          %v6798 = vunpack.c.l.b16 %v6430
          %v6799 = vunpack.c.h.b16 %v6430
          %v6800 = vunpack.c.l.b16 %v6431
          %v6801 = vunpack.c.h.b16 %v6431
          %v6802 = vunpack.c.l.b16 %v6432
          %v6803 = vunpack.c.h.b16 %v6432
          %v6804 = vunpack.c.l.b16 %v6433
          %v6805 = vunpack.c.h.b16 %v6433
          %v6806 = vunpack.c.l.b16 %v6434
          %v6807 = vunpack.c.h.b16 %v6434
          %v6808 = vunpack.c.l.b16 %v6435
          %v6809 = vunpack.c.h.b16 %v6435
          %v6810 = vunpack.c.l.b16 %v6436
          %v6811 = vunpack.c.h.b16 %v6436
          %v6812 = vunpack.c.l.b16 %v6437
          %v6813 = vunpack.c.h.b16 %v6437
          %v6814 = vunpack.c.l.b16 %v6438
          %v6815 = vunpack.c.h.b16 %v6438
          %v6816 = vunpack.c.l.b16 %v6439
          %v6817 = vunpack.c.h.b16 %v6439
          %v6818 = vunpack.c.l.b16 %v6440
          %v6819 = vunpack.c.h.b16 %v6440
          %v6820 = vunpack.c.l.b16 %v6441
          %v6821 = vunpack.c.h.b16 %v6441
          %v6822 = vunpack.c.l.b16 %v6442
          %v6823 = vunpack.c.h.b16 %v6442
          %v6824 = vunpack.c.l.b16 %v6443
          %v6825 = vunpack.c.h.b16 %v6443
          %v6826 = vunpack.c.l.b16 %v6444
          %v6827 = vunpack.c.h.b16 %v6444
          %v6828 = vunpack.c.l.b16 %v6445
          %v6829 = vunpack.c.h.b16 %v6445
          %v6830 = vunpack.c.l.b16 %v6446
          %v6831 = vunpack.c.h.b16 %v6446
          %v6832 = vunpack.c.l.b16 %v6447
          %v6833 = vunpack.c.h.b16 %v6447
          %v6834 = vunpack.c.l.b16 %v6448
          %v6835 = vunpack.c.h.b16 %v6448
          %v6836 = vunpack.c.l.b16 %v6449
          %v6837 = vunpack.c.h.b16 %v6449
          %v6838 = vunpack.c.l.b16 %v6450
          %v6839 = vunpack.c.h.b16 %v6450
          %v6840 = vunpack.c.l.b16 %v6451
          %v6841 = vunpack.c.h.b16 %v6451
          %v6842 = vunpack.c.l.b16 %v6452
          %v6843 = vunpack.c.h.b16 %v6452
          %v6844 = vunpack.c.l.b16 %v6453
          %v6845 = vunpack.c.h.b16 %v6453
          %v6846 = vunpack.c.l.b16 %v6454
          %v6847 = vunpack.c.h.b16 %v6454
          %v6848 = vunpack.c.l.b16 %v6455
          %v6849 = vunpack.c.h.b16 %v6455
          %v6850 = vunpack.c.l.b16 %v6456
          %v6851 = vunpack.c.h.b16 %v6456
          %v6852 = vunpack.c.l.b16 %v6457
          %v6853 = vunpack.c.h.b16 %v6457
          %v6854 = vunpack.c.l.b16 %v6458
          %v6855 = vunpack.c.h.b16 %v6458
          %v6856 = vunpack.c.l.b16 %v6459
          %v6857 = vunpack.c.h.b16 %v6459
          %v6858 = vunpack.c.l.b16 %v6460
          %v6859 = vunpack.c.h.b16 %v6460
          %v6860 = vunpack.c.l.b16 %v6461
          %v6861 = vunpack.c.h.b16 %v6461
          %v6862 = vunpack.c.l.b16 %v6462
          %v6863 = vunpack.c.h.b16 %v6462
          %v6864 = vunpack.c.l.b16 %v6463
          %v6865 = vunpack.c.h.b16 %v6463
          %v6866 = vunpack.c.l.b16 %v6464
          %v6867 = vunpack.c.h.b16 %v6464
          %v6868 = vunpack.c.l.b16 %v6465
          %v6869 = vunpack.c.h.b16 %v6465
          %v6870 = vunpack.c.l.b16 %v6466
          %v6871 = vunpack.c.h.b16 %v6466
          %v6872 = vunpack.c.l.b16 %v6467
          %v6873 = vunpack.c.h.b16 %v6467
          %v6874 = vpack.c.b16 %v6622, %v6618
          %v6875 = vpack.c.b16 %v6623, %v6619
          %v6876 = vpack.c.b16 %v6624, %v6620
          %v6877 = vpack.c.b16 %v6625, %v6621
          %v6878 = vpack.c.b16 %v6630, %v6626
          %v6879 = vpack.c.b16 %v6631, %v6627
          %v6880 = vpack.c.b16 %v6632, %v6628
          %v6881 = vpack.c.b16 %v6633, %v6629
          %v6882 = vpack.c.b16 %v6638, %v6634
          %v6883 = vpack.c.b16 %v6639, %v6635
          %v6884 = vpack.c.b16 %v6640, %v6636
          %v6885 = vpack.c.b16 %v6641, %v6637
          %v6886 = vpack.c.b16 %v6646, %v6642
          %v6887 = vpack.c.b16 %v6647, %v6643
          %v6888 = vpack.c.b16 %v6648, %v6644
          %v6889 = vpack.c.b16 %v6649, %v6645
          %v6890 = vpack.c.b16 %v6654, %v6650
          %v6891 = vpack.c.b16 %v6655, %v6651
          %v6892 = vpack.c.b16 %v6656, %v6652
          %v6893 = vpack.c.b16 %v6657, %v6653
          %v6894 = vpack.c.b16 %v6662, %v6658
          %v6895 = vpack.c.b16 %v6663, %v6659
          %v6896 = vpack.c.b16 %v6664, %v6660
          %v6897 = vpack.c.b16 %v6665, %v6661
          %v6898 = vpack.c.b16 %v6670, %v6666
          %v6899 = vpack.c.b16 %v6671, %v6667
          %v6900 = vpack.c.b16 %v6672, %v6668
          %v6901 = vpack.c.b16 %v6673, %v6669
          %v6902 = vpack.c.b16 %v6678, %v6674
          %v6903 = vpack.c.b16 %v6679, %v6675
          %v6904 = vpack.c.b16 %v6680, %v6676
          %v6905 = vpack.c.b16 %v6681, %v6677
          %v6906 = vpack.c.b16 %v6686, %v6682
          %v6907 = vpack.c.b16 %v6687, %v6683
          %v6908 = vpack.c.b16 %v6688, %v6684
          %v6909 = vpack.c.b16 %v6689, %v6685
          %v6910 = vpack.c.b16 %v6694, %v6690
          %v6911 = vpack.c.b16 %v6695, %v6691
          %v6912 = vpack.c.b16 %v6696, %v6692
          %v6913 = vpack.c.b16 %v6697, %v6693
          %v6914 = vpack.c.b16 %v6702, %v6698
          %v6915 = vpack.c.b16 %v6703, %v6699
          %v6916 = vpack.c.b16 %v6704, %v6700
          %v6917 = vpack.c.b16 %v6705, %v6701
          %v6918 = vpack.c.b16 %v6710, %v6706
          %v6919 = vpack.c.b16 %v6711, %v6707
          %v6920 = vpack.c.b16 %v6712, %v6708
          %v6921 = vpack.c.b16 %v6713, %v6709
          %v6922 = vpack.c.b16 %v6718, %v6714
          %v6923 = vpack.c.b16 %v6719, %v6715
          %v6924 = vpack.c.b16 %v6720, %v6716
          %v6925 = vpack.c.b16 %v6721, %v6717
          %v6926 = vpack.c.b16 %v6726, %v6722
          %v6927 = vpack.c.b16 %v6727, %v6723
          %v6928 = vpack.c.b16 %v6728, %v6724
          %v6929 = vpack.c.b16 %v6729, %v6725
          %v6930 = vpack.c.b16 %v6734, %v6730
          %v6931 = vpack.c.b16 %v6735, %v6731
          %v6932 = vpack.c.b16 %v6736, %v6732
          %v6933 = vpack.c.b16 %v6737, %v6733
          %v6934 = vpack.c.b16 %v6742, %v6738
          %v6935 = vpack.c.b16 %v6743, %v6739
          %v6936 = vpack.c.b16 %v6744, %v6740
          %v6937 = vpack.c.b16 %v6745, %v6741
          %v6938 = vpack.c.b16 %v6750, %v6746
          %v6939 = vpack.c.b16 %v6751, %v6747
          %v6940 = vpack.c.b16 %v6752, %v6748
          %v6941 = vpack.c.b16 %v6753, %v6749
          %v6942 = vpack.c.b16 %v6758, %v6754
          %v6943 = vpack.c.b16 %v6759, %v6755
          %v6944 = vpack.c.b16 %v6760, %v6756
          %v6945 = vpack.c.b16 %v6761, %v6757
          %v6946 = vpack.c.b16 %v6766, %v6762
          %v6947 = vpack.c.b16 %v6767, %v6763
          %v6948 = vpack.c.b16 %v6768, %v6764
          %v6949 = vpack.c.b16 %v6769, %v6765
          %v6950 = vpack.c.b16 %v6774, %v6770
          %v6951 = vpack.c.b16 %v6775, %v6771
          %v6952 = vpack.c.b16 %v6776, %v6772
          %v6953 = vpack.c.b16 %v6777, %v6773
          %v6954 = vpack.c.b16 %v6782, %v6778
          %v6955 = vpack.c.b16 %v6783, %v6779
          %v6956 = vpack.c.b16 %v6784, %v6780
          %v6957 = vpack.c.b16 %v6785, %v6781
          %v6958 = vpack.c.b16 %v6790, %v6786
          %v6959 = vpack.c.b16 %v6791, %v6787
          %v6960 = vpack.c.b16 %v6792, %v6788
          %v6961 = vpack.c.b16 %v6793, %v6789
          %v6962 = vpack.c.b16 %v6798, %v6794
          %v6963 = vpack.c.b16 %v6799, %v6795
          %v6964 = vpack.c.b16 %v6800, %v6796
          %v6965 = vpack.c.b16 %v6801, %v6797
          %v6966 = vpack.c.b16 %v6806, %v6802
          %v6967 = vpack.c.b16 %v6807, %v6803
          %v6968 = vpack.c.b16 %v6808, %v6804
          %v6969 = vpack.c.b16 %v6809, %v6805
          %v6970 = vpack.c.b16 %v6814, %v6810
          %v6971 = vpack.c.b16 %v6815, %v6811
          %v6972 = vpack.c.b16 %v6816, %v6812
          %v6973 = vpack.c.b16 %v6817, %v6813
          %v6974 = vpack.c.b16 %v6822, %v6818
          %v6975 = vpack.c.b16 %v6823, %v6819
          %v6976 = vpack.c.b16 %v6824, %v6820
          %v6977 = vpack.c.b16 %v6825, %v6821
          %v6978 = vpack.c.b16 %v6830, %v6826
          %v6979 = vpack.c.b16 %v6831, %v6827
          %v6980 = vpack.c.b16 %v6832, %v6828
          %v6981 = vpack.c.b16 %v6833, %v6829
          %v6982 = vpack.c.b16 %v6838, %v6834
          %v6983 = vpack.c.b16 %v6839, %v6835
          %v6984 = vpack.c.b16 %v6840, %v6836
          %v6985 = vpack.c.b16 %v6841, %v6837
          %v6986 = vpack.c.b16 %v6846, %v6842
          %v6987 = vpack.c.b16 %v6847, %v6843
          %v6988 = vpack.c.b16 %v6848, %v6844
          %v6989 = vpack.c.b16 %v6849, %v6845
          %v6990 = vpack.c.b16 %v6854, %v6850
          %v6991 = vpack.c.b16 %v6855, %v6851
          %v6992 = vpack.c.b16 %v6856, %v6852
          %v6993 = vpack.c.b16 %v6857, %v6853
          %v6994 = vpack.c.b16 %v6862, %v6858
          %v6995 = vpack.c.b16 %v6863, %v6859
          %v6996 = vpack.c.b16 %v6864, %v6860
          %v6997 = vpack.c.b16 %v6865, %v6861
          %v6998 = vpack.c.b16 %v6870, %v6866
          %v6999 = vpack.c.b16 %v6871, %v6867
          %v7000 = vpack.c.b16 %v6872, %v6868
          %v7001 = vpack.c.b16 %v6873, %v6869
          %7130 = vmatprep.subr.bf16.mxu0 %v6875
          %7131 = vmatpush1.bf16.msra.mxu0 %v6874
          %7132 = vmatprep.subr.bf16.mxu0 %v6879
          %7133 = vmatpush1.bf16.msra.mxu0 %v6878
          %7134 = vmatprep.subr.bf16.mxu0 %v6883
          %7135 = vmatpush1.bf16.msra.mxu0 %v6882
          %7136 = vmatprep.subr.bf16.mxu0 %v6887
          %7137 = vmatpush1.bf16.msra.mxu0 %v6886
          %7138 = vmatprep.subr.bf16.mxu0 %v6891
          %7139 = vmatpush1.bf16.msra.mxu0 %v6890
          %7140 = vmatprep.subr.bf16.mxu0 %v6895
          %7141 = vmatpush1.bf16.msra.mxu0 %v6894
          %7142 = vmatprep.subr.bf16.mxu0 %v6899
          %7143 = vmatpush1.bf16.msra.mxu0 %v6898
          %7144 = vmatprep.subr.bf16.mxu0 %v6903
          %7145 = vmatpush1.bf16.msra.mxu0 %v6902
          %7146 = vmatprep.subr.bf16.mxu0 %v6907
          %7147 = vmatpush1.bf16.msra.mxu0 %v6906
          %7148 = vmatprep.subr.bf16.mxu0 %v6911
          %7149 = vmatpush1.bf16.msra.mxu0 %v6910
          %7150 = vmatprep.subr.bf16.mxu0 %v6915
          %7151 = vmatpush1.bf16.msra.mxu0 %v6914
          %7152 = vmatprep.subr.bf16.mxu0 %v6919
          %7153 = vmatpush1.bf16.msra.mxu0 %v6918
          %7154 = vmatprep.subr.bf16.mxu0 %v6923
          %7155 = vmatpush1.bf16.msra.mxu0 %v6922
          %7156 = vmatprep.subr.bf16.mxu0 %v6927
          %7157 = vmatpush1.bf16.msra.mxu0 %v6926
          %7158 = vmatprep.subr.bf16.mxu0 %v6931
          %7159 = vmatpush1.bf16.msra.mxu0 %v6930
          %7160 = vmatprep.subr.bf16.mxu0 %v6935
          %7161 = vmatpush1.bf16.msra.mxu0 %v6934
          %7162 = vmatprep.mubr.bf16.mxu0 %v6333
          %7163 = vmatmul.mubr.bf16.gmra.mrb[0].mxu0 %v6332
          %v7164 = vpop.f32.mrb[0].mxu0
          %v7165 = vadd.f32 %v6473, %v7164
          %v7166 = vpop.f32.mrb[0].mxu0
          %v7167 = vadd.f32 %v6477, %v7166
          %v7168 = vpop.f32.mrb[0].mxu0
          %v7169 = vadd.f32 %v6473, %v7168
          %v7170 = vpop.f32.mrb[0].mxu0
          %v7171 = vadd.f32 %v6477, %v7170
          %7172 = vmatprep.mubr.bf16.mxu0 %v6337
          %7173 = vmatmul.mubr.bf16.gmra.mrb[0].mxu0 %v6336
          %v7174 = vpop.f32.mrb[0].mxu0
          %v7175 = vadd.f32 %v6473, %v7174
          %v7176 = vpop.f32.mrb[0].mxu0
          %v7177 = vadd.f32 %v6477, %v7176
          %v7178 = vpop.f32.mrb[0].mxu0
          %v7179 = vadd.f32 %v6473, %v7178
          %v7180 = vpop.f32.mrb[0].mxu0
          %v7181 = vadd.f32 %v6477, %v7180
          %7182 = vdwg.mxu0
          %7183 = vmatprep.subr.bf16.mxu0 %v6939
          %7184 = vmatpush1.bf16.msra.mxu0 %v6938
          %7185 = vmatprep.subr.bf16.mxu0 %v6943
          %7186 = vmatpush1.bf16.msra.mxu0 %v6942
          %7187 = vmatprep.subr.bf16.mxu0 %v6947
          %7188 = vmatpush1.bf16.msra.mxu0 %v6946
          %7189 = vmatprep.subr.bf16.mxu0 %v6951
          %7190 = vmatpush1.bf16.msra.mxu0 %v6950
          %7191 = vmatprep.subr.bf16.mxu0 %v6955
          %7192 = vmatpush1.bf16.msra.mxu0 %v6954
          %7193 = vmatprep.subr.bf16.mxu0 %v6959
          %7194 = vmatpush1.bf16.msra.mxu0 %v6958
          %7195 = vmatprep.subr.bf16.mxu0 %v6963
          %7196 = vmatpush1.bf16.msra.mxu0 %v6962
          %7197 = vmatprep.subr.bf16.mxu0 %v6967
          %7198 = vmatpush1.bf16.msra.mxu0 %v6966
          %7199 = vmatprep.subr.bf16.mxu0 %v6971
          %7200 = vmatpush1.bf16.msra.mxu0 %v6970
          %7201 = vmatprep.subr.bf16.mxu0 %v6975
          %7202 = vmatpush1.bf16.msra.mxu0 %v6974
          %7203 = vmatprep.subr.bf16.mxu0 %v6979
          %7204 = vmatpush1.bf16.msra.mxu0 %v6978
          %7205 = vmatprep.subr.bf16.mxu0 %v6983
          %7206 = vmatpush1.bf16.msra.mxu0 %v6982
          %7207 = vmatprep.subr.bf16.mxu0 %v6987
          %7208 = vmatpush1.bf16.msra.mxu0 %v6986
          %7209 = vmatprep.subr.bf16.mxu0 %v6991
          %7210 = vmatpush1.bf16.msra.mxu0 %v6990
          %7211 = vmatprep.subr.bf16.mxu0 %v6995
          %7212 = vmatpush1.bf16.msra.mxu0 %v6994
          %7213 = vmatprep.subr.bf16.mxu0 %v6999
          %7214 = vmatpush1.bf16.msra.mxu0 %v6998
          %7215 = vmatprep.mubr.bf16.mxu0 %v6335
          %7216 = vmatmul.mubr.bf16.gmra.mrb[0].mxu0 %v6334
          %v7217 = vpop.f32.mrb[0].mxu0
          %v7218 = vadd.f32 %v7165, %v7217
          %v7219 = vpop.f32.mrb[0].mxu0
          %v7220 = vadd.f32 %v7167, %v7219
          %v7221 = vpop.f32.mrb[0].mxu0
          %v7222 = vadd.f32 %v7169, %v7221
          %v7223 = vpop.f32.mrb[0].mxu0
          %v7224 = vadd.f32 %v7171, %v7223
          %7225 = vmatprep.mubr.bf16.mxu0 %v6339
          %7226 = vmatmul.mubr.bf16.gmra.mrb[0].mxu0 %v6338
          %v7227 = vpop.f32.mrb[0].mxu0
          %v7228 = vadd.f32 %v7175, %v7227
          %v7229 = vpop.f32.mrb[0].mxu0
          %v7230 = vadd.f32 %v7177, %v7229
          %v7231 = vpop.f32.mrb[0].mxu0
          %v7232 = vadd.f32 %v7179, %v7231
          %v7233 = vpop.f32.mrb[0].mxu0
          %v7234 = vadd.f32 %v7181, %v7233
          %7235 = vdwg.mxu0
          %7236 = vmatprep.subr.bf16.mxu0 %v6877
          %7237 = vmatpush1.bf16.msra.mxu0 %v6876
          %7238 = vmatprep.subr.bf16.mxu0 %v6881
          %7239 = vmatpush1.bf16.msra.mxu0 %v6880
          %7240 = vmatprep.subr.bf16.mxu0 %v6885
          %7241 = vmatpush1.bf16.msra.mxu0 %v6884
          %7242 = vmatprep.subr.bf16.mxu0 %v6889
          %7243 = vmatpush1.bf16.msra.mxu0 %v6888
          %7244 = vmatprep.subr.bf16.mxu0 %v6893
          %7245 = vmatpush1.bf16.msra.mxu0 %v6892
          %7246 = vmatprep.subr.bf16.mxu0 %v6897
          %7247 = vmatpush1.bf16.msra.mxu0 %v6896
          %7248 = vmatprep.subr.bf16.mxu0 %v6901
          %7249 = vmatpush1.bf16.msra.mxu0 %v6900
          %7250 = vmatprep.subr.bf16.mxu0 %v6905
          %7251 = vmatpush1.bf16.msra.mxu0 %v6904
          %7252 = vmatprep.subr.bf16.mxu0 %v6909
          %7253 = vmatpush1.bf16.msra.mxu0 %v6908
          %7254 = vmatprep.subr.bf16.mxu0 %v6913
          %7255 = vmatpush1.bf16.msra.mxu0 %v6912
          %7256 = vmatprep.subr.bf16.mxu0 %v6917
          %7257 = vmatpush1.bf16.msra.mxu0 %v6916
          %7258 = vmatprep.subr.bf16.mxu0 %v6921
          %7259 = vmatpush1.bf16.msra.mxu0 %v6920
          %7260 = vmatprep.subr.bf16.mxu0 %v6925
          %7261 = vmatpush1.bf16.msra.mxu0 %v6924
          %7262 = vmatprep.subr.bf16.mxu0 %v6929
          %7263 = vmatpush1.bf16.msra.mxu0 %v6928
          %7264 = vmatprep.subr.bf16.mxu0 %v6933
          %7265 = vmatpush1.bf16.msra.mxu0 %v6932
          %7266 = vmatprep.subr.bf16.mxu0 %v6937
          %7267 = vmatpush1.bf16.msra.mxu0 %v6936
          %7268 = vmatprep.mubr.bf16.mxu0 %v6333
          %7269 = vmatmul.mubr.bf16.gmra.mrb[0].mxu0 %v6332
          %v7270 = vpop.f32.mrb[0].mxu0
          %v7271 = vadd.f32 %v6481, %v7270
          %v7272 = vpop.f32.mrb[0].mxu0
          %v7273 = vadd.f32 %v6485, %v7272
          %v7274 = vpop.f32.mrb[0].mxu0
          %v7275 = vadd.f32 %v6481, %v7274
          %v7276 = vpop.f32.mrb[0].mxu0
          %v7277 = vadd.f32 %v6485, %v7276
          %7278 = vmatprep.mubr.bf16.mxu0 %v6337
          %7279 = vmatmul.mubr.bf16.gmra.mrb[0].mxu0 %v6336
          %v7280 = vpop.f32.mrb[0].mxu0
          %v7281 = vadd.f32 %v6481, %v7280
          %v7282 = vpop.f32.mrb[0].mxu0
          %v7283 = vadd.f32 %v6485, %v7282
          %v7284 = vpop.f32.mrb[0].mxu0
          %v7285 = vadd.f32 %v6481, %v7284
          %v7286 = vpop.f32.mrb[0].mxu0
          %v7287 = vadd.f32 %v6485, %v7286
          %7288 = vdwg.mxu0
          %7289 = vmatprep.subr.bf16.mxu0 %v6941
          %7290 = vmatpush1.bf16.msra.mxu0 %v6940
          %7291 = vmatprep.subr.bf16.mxu0 %v6945
          %7292 = vmatpush1.bf16.msra.mxu0 %v6944
          %7293 = vmatprep.subr.bf16.mxu0 %v6949
          %7294 = vmatpush1.bf16.msra.mxu0 %v6948
          %7295 = vmatprep.subr.bf16.mxu0 %v6953
          %7296 = vmatpush1.bf16.msra.mxu0 %v6952
          %7297 = vmatprep.subr.bf16.mxu0 %v6957
          %7298 = vmatpush1.bf16.msra.mxu0 %v6956
          %7299 = vmatprep.subr.bf16.mxu0 %v6961
          %7300 = vmatpush1.bf16.msra.mxu0 %v6960
          %7301 = vmatprep.subr.bf16.mxu0 %v6965
          %7302 = vmatpush1.bf16.msra.mxu0 %v6964
          %7303 = vmatprep.subr.bf16.mxu0 %v6969
          %7304 = vmatpush1.bf16.msra.mxu0 %v6968
          %7305 = vmatprep.subr.bf16.mxu0 %v6973
          %7306 = vmatpush1.bf16.msra.mxu0 %v6972
          %7307 = vmatprep.subr.bf16.mxu0 %v6977
          %7308 = vmatpush1.bf16.msra.mxu0 %v6976
          %7309 = vmatprep.subr.bf16.mxu0 %v6981
          %7310 = vmatpush1.bf16.msra.mxu0 %v6980
          %7311 = vmatprep.subr.bf16.mxu0 %v6985
          %7312 = vmatpush1.bf16.msra.mxu0 %v6984
          %7313 = vmatprep.subr.bf16.mxu0 %v6989
          %7314 = vmatpush1.bf16.msra.mxu0 %v6988
          %7315 = vmatprep.subr.bf16.mxu0 %v6993
          %7316 = vmatpush1.bf16.msra.mxu0 %v6992
          %7317 = vmatprep.subr.bf16.mxu0 %v6997
          %7318 = vmatpush1.bf16.msra.mxu0 %v6996
          %7319 = vmatprep.subr.bf16.mxu0 %v7001
          %7320 = vmatpush1.bf16.msra.mxu0 %v7000
          %7321 = vmatprep.mubr.bf16.mxu0 %v6335
          %7322 = vmatmul.mubr.bf16.gmra.mrb[0].mxu0 %v6334
          %v7323 = vpop.f32.mrb[0].mxu0
          %v7324 = vadd.f32 %v7271, %v7323
          %v7325 = vpop.f32.mrb[0].mxu0
          %v7326 = vadd.f32 %v7273, %v7325
          %v7327 = vpop.f32.mrb[0].mxu0
          %v7328 = vadd.f32 %v7275, %v7327
          %v7329 = vpop.f32.mrb[0].mxu0
          %v7330 = vadd.f32 %v7277, %v7329
          %7331 = vmatprep.mubr.bf16.mxu0 %v6339
          %7332 = vmatmul.mubr.bf16.gmra.mrb[0].mxu0 %v6338
          %v7333 = vpop.f32.mrb[0].mxu0
          %v7334 = vadd.f32 %v7281, %v7333
          %v7335 = vpop.f32.mrb[0].mxu0
          %v7336 = vadd.f32 %v7283, %v7335
          %v7337 = vpop.f32.mrb[0].mxu0
          %v7338 = vadd.f32 %v7285, %v7337
          %v7339 = vpop.f32.mrb[0].mxu0
          %v7340 = vadd.f32 %v7287, %v7339
          %7341 = vdwg.mxu0
          %v7342 = vld [vmem:[%s0] sm:$0xff]
          %v7343 = vld [vmem:[%s0 + $0x8] sm:$0xff]
          %v7344 = vld [vmem:[%s0 + $0x10] sm:$0xff]
          %v7345 = vld [vmem:[%s0 + $0x18] sm:$0xff]
          %v7346 = vld [vmem:[%s0 + $0x20] sm:$0xff]
          %v7347 = vld [vmem:[%s0 + $0x28] sm:$0xff]
          %v7348 = vld [vmem:[%s0 + $0x30] sm:$0xff]
          %v7349 = vld [vmem:[%s0 + $0x38] sm:$0xff]
          %v7350 = vld [vmem:[%s0 + $0x40] sm:$0xff]
          %v7351 = vld [vmem:[%s0 + $0x48] sm:$0xff]
          %v7352 = vld [vmem:[%s0 + $0x50] sm:$0xff]
          %v7353 = vld [vmem:[%s0 + $0x58] sm:$0xff]
          %v7354 = vld [vmem:[%s0 + $0x60] sm:$0xff]
          %v7355 = vld [vmem:[%s0 + $0x68] sm:$0xff]
          %v7356 = vld [vmem:[%s0 + $0x70] sm:$0xff]
          %v7357 = vld [vmem:[%s0 + $0x78] sm:$0xff]
          %v7358 = vadd.f32 %v7342, %v7218
          %v7359 = vadd.f32 %v7343, %v7220
          %v7360 = vadd.f32 %v7344, %v7324
          %v7361 = vadd.f32 %v7345, %v7326
          %v7362 = vadd.f32 %v7346, %v7222
          %v7363 = vadd.f32 %v7347, %v7224
          %v7364 = vadd.f32 %v7348, %v7328
          %v7365 = vadd.f32 %v7349, %v7330
          %v7366 = vadd.f32 %v7350, %v7228
          %v7367 = vadd.f32 %v7351, %v7230
          %v7368 = vadd.f32 %v7352, %v7334
          %v7369 = vadd.f32 %v7353, %v7336
          %v7370 = vadd.f32 %v7354, %v7232
          %v7371 = vadd.f32 %v7355, %v7234
          %v7372 = vadd.f32 %v7356, %v7338
          %v7373 = vadd.f32 %v7357, %v7340
          %7374 = vst [vmem:[#allocation6] sm:$0xff] %v7358
          %7375 = vst [vmem:[#allocation6 + $0x8] sm:$0xff] %v7359
          %7376 = vst [vmem:[#allocation6 + $0x10] sm:$0xff] %v7360
          %7377 = vst [vmem:[#allocation6 + $0x18] sm:$0xff] %v7361
          %7378 = vst [vmem:[#allocation6 + $0x20] sm:$0xff] %v7362
          %7379 = vst [vmem:[#allocation6 + $0x28] sm:$0xff] %v7363
          %7380 = vst [vmem:[#allocation6 + $0x30] sm:$0xff] %v7364
          %7381 = vst [vmem:[#allocation6 + $0x38] sm:$0xff] %v7365
          %7382 = vst [vmem:[#allocation6 + $0x40] sm:$0xff] %v7366
          %7383 = vst [vmem:[#allocation6 + $0x48] sm:$0xff] %v7367
          %7384 = vst [vmem:[#allocation6 + $0x50] sm:$0xff] %v7368
          %7385 = vst [vmem:[#allocation6 + $0x58] sm:$0xff] %v7369
          %7386 = vst [vmem:[#allocation6 + $0x60] sm:$0xff] %v7370
          %7387 = vst [vmem:[#allocation6 + $0x68] sm:$0xff] %v7371
          %7388 = vst [vmem:[#allocation6 + $0x70] sm:$0xff] %v7372
          %7389 = vst [vmem:[#allocation6 + $0x78] sm:$0xff] %v7373
          %v7390 = vld [vmem:[#allocation11] sm:$0xf]
          %v7391 = vld [vmem:[#allocation12] sm:$0xf]
          %v7392 = vadd.f32 %v7358, %v7359
          %v7393 = vadd.f32 %v7392, %v7360
          %v7394 = vadd.f32 %v7393, %v7361
          %7395 = vadd.xlane.f32.xlu0 %v7394
          %v7396 = vpop.xlane.xlu0 %7395
          %v7397 = vadd.f32 %v7362, %v7363
          %v7398 = vadd.f32 %v7397, %v7364
          %v7399 = vadd.f32 %v7398, %v7365
          %7400 = vadd.xlane.f32.xlu0 %v7399
          %v7401 = vpop.xlane.xlu0 %7400
          %v7402 = vadd.f32 %v7366, %v7367
          %v7403 = vadd.f32 %v7402, %v7368
          %v7404 = vadd.f32 %v7403, %v7369
          %7405 = vadd.xlane.f32.xlu0 %v7404
          %v7406 = vpop.xlane.xlu0 %7405
          %v7407 = vadd.f32 %v7370, %v7371
          %v7408 = vadd.f32 %v7407, %v7372
          %v7409 = vadd.f32 %v7408, %v7373
          %7410 = vadd.xlane.f32.xlu0 %v7409
          %v7411 = vpop.xlane.xlu0 %7410
          %v7412 = vrcp.pop 512.0
          %v7413 = vmul.f32 %v7396, %v7412
          %v7414 = vmul.f32 %v7401, %v7412
          %v7415 = vmul.f32 %v7406, %v7412
          %v7416 = vmul.f32 %v7411, %v7412
          %v7417 = vsub.f32 %v7358, %v7413
          %v7418 = vsub.f32 %v7359, %v7413
          %v7419 = vsub.f32 %v7360, %v7413
          %v7420 = vsub.f32 %v7361, %v7413
          %v7421 = vsub.f32 %v7362, %v7414
          %v7422 = vsub.f32 %v7363, %v7414
          %v7423 = vsub.f32 %v7364, %v7414
          %v7424 = vsub.f32 %v7365, %v7414
          %v7425 = vsub.f32 %v7366, %v7415
          %v7426 = vsub.f32 %v7367, %v7415
          %v7427 = vsub.f32 %v7368, %v7415
          %v7428 = vsub.f32 %v7369, %v7415
          %v7429 = vsub.f32 %v7370, %v7416
          %v7430 = vsub.f32 %v7371, %v7416
          %v7431 = vsub.f32 %v7372, %v7416
          %v7432 = vsub.f32 %v7373, %v7416
          %v7433 = vmul.f32 %v7417, %v7417
          %v7434 = vmul.f32 %v7418, %v7418
          %v7435 = vmul.f32 %v7419, %v7419
          %v7436 = vmul.f32 %v7420, %v7420
          %v7437 = vmul.f32 %v7421, %v7421
          %v7438 = vmul.f32 %v7422, %v7422
          %v7439 = vmul.f32 %v7423, %v7423
          %v7440 = vmul.f32 %v7424, %v7424
          %v7441 = vmul.f32 %v7425, %v7425
          %v7442 = vmul.f32 %v7426, %v7426
          %v7443 = vmul.f32 %v7427, %v7427
          %v7444 = vmul.f32 %v7428, %v7428
          %v7445 = vmul.f32 %v7429, %v7429
          %v7446 = vmul.f32 %v7430, %v7430
          %v7447 = vmul.f32 %v7431, %v7431
          %v7448 = vmul.f32 %v7432, %v7432
          %v7449 = vadd.f32 %v7433, %v7434
          %v7450 = vadd.f32 %v7449, %v7435
          %v7451 = vadd.f32 %v7450, %v7436
          %7452 = vadd.xlane.f32.xlu0 %v7451
          %v7453 = vpop.xlane.xlu0 %7452
          %v7454 = vadd.f32 %v7437, %v7438
          %v7455 = vadd.f32 %v7454, %v7439
          %v7456 = vadd.f32 %v7455, %v7440
          %7457 = vadd.xlane.f32.xlu0 %v7456
          %v7458 = vpop.xlane.xlu0 %7457
          %v7459 = vadd.f32 %v7441, %v7442
          %v7460 = vadd.f32 %v7459, %v7443
          %v7461 = vadd.f32 %v7460, %v7444
          %7462 = vadd.xlane.f32.xlu0 %v7461
          %v7463 = vpop.xlane.xlu0 %7462
          %v7464 = vadd.f32 %v7445, %v7446
          %v7465 = vadd.f32 %v7464, %v7447
          %v7466 = vadd.f32 %v7465, %v7448
          %7467 = vadd.xlane.f32.xlu0 %v7466
          %v7468 = vpop.xlane.xlu0 %7467
          %v7469 = vmul.f32 %v7453, %v7412
          %v7470 = vmul.f32 %v7458, %v7412
          %v7471 = vmul.f32 %v7463, %v7412
          %v7472 = vmul.f32 %v7468, %v7412
          %v7473 = vadd.f32 %v7469, 1e-05
          %v7474 = vadd.f32 %v7470, 1e-05
          %v7475 = vadd.f32 %v7471, 1e-05
          %v7476 = vadd.f32 %v7472, 1e-05
          %v7477 = vrsqrt.pop %v7473
          %v7478 = vrsqrt.pop %v7474
          %v7479 = vrsqrt.pop %v7475
          %v7480 = vrsqrt.pop %v7476
          %v7481 = vmul.f32 %v7417, %v7477
          %v7482 = vmul.f32 %v7418, %v7477
          %v7483 = vmul.f32 %v7419, %v7477
          %v7484 = vmul.f32 %v7420, %v7477
          %v7485 = vmul.f32 %v7421, %v7478
          %v7486 = vmul.f32 %v7422, %v7478
          %v7487 = vmul.f32 %v7423, %v7478
          %v7488 = vmul.f32 %v7424, %v7478
          %v7489 = vmul.f32 %v7425, %v7479
          %v7490 = vmul.f32 %v7426, %v7479
          %v7491 = vmul.f32 %v7427, %v7479
          %v7492 = vmul.f32 %v7428, %v7479
          %v7493 = vmul.f32 %v7429, %v7480
          %v7494 = vmul.f32 %v7430, %v7480
          %v7495 = vmul.f32 %v7431, %v7480
          %v7496 = vmul.f32 %v7432, %v7480
          %v7498 = vlaneseq
          %v7499 = vshrl.u32 %v7498, 7
          %v7500 = vsub.s32 0, %v7499
          %v7501 = vrot.slane %v7390, %v7500
          %v7502 = vlaneseq
          %v7503 = vshrl.u32 %v7502, 7
          %v7504 = vsub.s32 1, %v7503
          %v7505 = vrot.slane %v7390, %v7504
          %v7506 = vlaneseq
          %v7507 = vshrl.u32 %v7506, 7
          %v7508 = vsub.s32 2, %v7507
          %v7509 = vrot.slane %v7390, %v7508
          %v7510 = vlaneseq
          %v7511 = vshrl.u32 %v7510, 7
          %v7512 = vsub.s32 3, %v7511
          %v7513 = vrot.slane %v7390, %v7512
          %v7518 = vmul.f32 %v7481, %v7501
          %v7519 = vmul.f32 %v7482, %v7505
          %v7520 = vmul.f32 %v7483, %v7509
          %v7521 = vmul.f32 %v7484, %v7513
          %v7522 = vmul.f32 %v7485, %v7501
          %v7523 = vmul.f32 %v7486, %v7505
          %v7524 = vmul.f32 %v7487, %v7509
          %v7525 = vmul.f32 %v7488, %v7513
          %v7526 = vmul.f32 %v7489, %v7501
          %v7527 = vmul.f32 %v7490, %v7505
          %v7528 = vmul.f32 %v7491, %v7509
          %v7529 = vmul.f32 %v7492, %v7513
          %v7530 = vmul.f32 %v7493, %v7501
          %v7531 = vmul.f32 %v7494, %v7505
          %v7532 = vmul.f32 %v7495, %v7509
          %v7533 = vmul.f32 %v7496, %v7513
          %v7535 = vlaneseq
          %v7536 = vshrl.u32 %v7535, 7
          %v7537 = vsub.s32 0, %v7536
          %v7538 = vrot.slane %v7391, %v7537
          %v7539 = vlaneseq
          %v7540 = vshrl.u32 %v7539, 7
          %v7541 = vsub.s32 1, %v7540
          %v7542 = vrot.slane %v7391, %v7541
          %v7543 = vlaneseq
          %v7544 = vshrl.u32 %v7543, 7
          %v7545 = vsub.s32 2, %v7544
          %v7546 = vrot.slane %v7391, %v7545
          %v7547 = vlaneseq
          %v7548 = vshrl.u32 %v7547, 7
          %v7549 = vsub.s32 3, %v7548
          %v7550 = vrot.slane %v7391, %v7549
          %v7555 = vadd.f32 %v7518, %v7538
          %v7556 = vadd.f32 %v7519, %v7542
          %v7557 = vadd.f32 %v7520, %v7546
          %v7558 = vadd.f32 %v7521, %v7550
          %v7559 = vadd.f32 %v7522, %v7538
          %v7560 = vadd.f32 %v7523, %v7542
          %v7561 = vadd.f32 %v7524, %v7546
          %v7562 = vadd.f32 %v7525, %v7550
          %v7563 = vadd.f32 %v7526, %v7538
          %v7564 = vadd.f32 %v7527, %v7542
          %v7565 = vadd.f32 %v7528, %v7546
          %v7566 = vadd.f32 %v7529, %v7550
          %v7567 = vadd.f32 %v7530, %v7538
          %v7568 = vadd.f32 %v7531, %v7542
          %v7569 = vadd.f32 %v7532, %v7546
          %v7570 = vadd.f32 %v7533, %v7550
          %v7571 = vpack.c.bf16 %v7559, %v7555
          %v7572 = vpack.c.bf16 %v7560, %v7556
          %v7573 = vpack.c.bf16 %v7561, %v7557
          %v7574 = vpack.c.bf16 %v7562, %v7558
          %v7575 = vpack.c.bf16 %v7567, %v7563
          %v7576 = vpack.c.bf16 %v7568, %v7564
          %v7577 = vpack.c.bf16 %v7569, %v7565
          %v7578 = vpack.c.bf16 %v7570, %v7566
          %7579 = vst [vmem:[#allocation5] sm:$0xff] %v7571
          %7580 = vst [vmem:[#allocation5 + $0x8] sm:$0xff] %v7572
          %7581 = vst [vmem:[#allocation5 + $0x10] sm:$0xff] %v7573
          %7582 = vst [vmem:[#allocation5 + $0x18] sm:$0xff] %v7574
          %7583 = vst [vmem:[#allocation5 + $0x20] sm:$0xff] %v7575
          %7584 = vst [vmem:[#allocation5 + $0x28] sm:$0xff] %v7576
          %7585 = vst [vmem:[#allocation5 + $0x30] sm:$0xff] %v7577
          %7586 = vst [vmem:[#allocation5 + $0x38] sm:$0xff] %v7578
        $region132: #{transformer_encoder.1} parent=71 // pred_fallthru
          _
        %p7587 = scmp.ge.s32.totalorder %s33, 3
        // Predicated region
        $region133: #{transformer_encoder.1} parent=71 // pred_check
          %p7588 = pneg %p7587
        $region134: #{transformer_encoder.1} parent=71 // pred_check_branch
          %7590 = sbr.rel (%p7588) target = $region136
        $region135: #{transformer_encoder.1} parent=71 // pred_region
          %v7591 = vld [vmem:[#allocation5] sm:$0xff]
          %v7592 = vld [vmem:[#allocation5 + $0x8] sm:$0xff]
          %v7593 = vld [vmem:[#allocation5 + $0x10] sm:$0xff]
          %v7594 = vld [vmem:[#allocation5 + $0x18] sm:$0xff]
          %v7595 = vld [vmem:[#allocation5 + $0x20] sm:$0xff]
          %v7596 = vld [vmem:[#allocation5 + $0x28] sm:$0xff]
          %v7597 = vld [vmem:[#allocation5 + $0x30] sm:$0xff]
          %v7598 = vld [vmem:[#allocation5 + $0x38] sm:$0xff]
          %v7599 = vld [vmem:[%s642] sm:$0xff]
          %v7600 = vld [vmem:[%s642 + $0x8] sm:$0xff]
          %v7601 = vld [vmem:[%s642 + $0x10] sm:$0xff]
          %v7602 = vld [vmem:[%s642 + $0x18] sm:$0xff]
          %v7603 = vld [vmem:[%s642 + $0x20] sm:$0xff]
          %v7604 = vld [vmem:[%s642 + $0x28] sm:$0xff]
          %v7605 = vld [vmem:[%s642 + $0x30] sm:$0xff]
          %v7606 = vld [vmem:[%s642 + $0x38] sm:$0xff]
          %v7607 = vld [vmem:[%s642 + $0x40] sm:$0xff]
          %v7608 = vld [vmem:[%s642 + $0x48] sm:$0xff]
          %v7609 = vld [vmem:[%s642 + $0x50] sm:$0xff]
          %v7610 = vld [vmem:[%s642 + $0x58] sm:$0xff]
          %v7611 = vld [vmem:[%s642 + $0x60] sm:$0xff]
          %v7612 = vld [vmem:[%s642 + $0x68] sm:$0xff]
          %v7613 = vld [vmem:[%s642 + $0x70] sm:$0xff]
          %v7614 = vld [vmem:[%s642 + $0x78] sm:$0xff]
          %v7615 = vld [vmem:[%s642 + $0x80] sm:$0xff]
          %v7616 = vld [vmem:[%s642 + $0x88] sm:$0xff]
          %v7617 = vld [vmem:[%s642 + $0x90] sm:$0xff]
          %v7618 = vld [vmem:[%s642 + $0x98] sm:$0xff]
          %v7619 = vld [vmem:[%s642 + $0xa0] sm:$0xff]
          %v7620 = vld [vmem:[%s642 + $0xa8] sm:$0xff]
          %v7621 = vld [vmem:[%s642 + $0xb0] sm:$0xff]
          %v7622 = vld [vmem:[%s642 + $0xb8] sm:$0xff]
          %v7623 = vld [vmem:[%s642 + $0xc0] sm:$0xff]
          %v7624 = vld [vmem:[%s642 + $0xc8] sm:$0xff]
          %v7625 = vld [vmem:[%s642 + $0xd0] sm:$0xff]
          %v7626 = vld [vmem:[%s642 + $0xd8] sm:$0xff]
          %v7627 = vld [vmem:[%s642 + $0xe0] sm:$0xff]
          %v7628 = vld [vmem:[%s642 + $0xe8] sm:$0xff]
          %v7629 = vld [vmem:[%s642 + $0xf0] sm:$0xff]
          %v7630 = vld [vmem:[%s642 + $0xf8] sm:$0xff]
          %v7631 = vld [vmem:[%s642 + $0x100] sm:$0xff]
          %v7632 = vld [vmem:[%s642 + $0x108] sm:$0xff]
          %v7633 = vld [vmem:[%s642 + $0x110] sm:$0xff]
          %v7634 = vld [vmem:[%s642 + $0x118] sm:$0xff]
          %v7635 = vld [vmem:[%s642 + $0x120] sm:$0xff]
          %v7636 = vld [vmem:[%s642 + $0x128] sm:$0xff]
          %v7637 = vld [vmem:[%s642 + $0x130] sm:$0xff]
          %v7638 = vld [vmem:[%s642 + $0x138] sm:$0xff]
          %v7639 = vld [vmem:[%s642 + $0x140] sm:$0xff]
          %v7640 = vld [vmem:[%s642 + $0x148] sm:$0xff]
          %v7641 = vld [vmem:[%s642 + $0x150] sm:$0xff]
          %v7642 = vld [vmem:[%s642 + $0x158] sm:$0xff]
          %v7643 = vld [vmem:[%s642 + $0x160] sm:$0xff]
          %v7644 = vld [vmem:[%s642 + $0x168] sm:$0xff]
          %v7645 = vld [vmem:[%s642 + $0x170] sm:$0xff]
          %v7646 = vld [vmem:[%s642 + $0x178] sm:$0xff]
          %v7647 = vld [vmem:[%s642 + $0x180] sm:$0xff]
          %v7648 = vld [vmem:[%s642 + $0x188] sm:$0xff]
          %v7649 = vld [vmem:[%s642 + $0x190] sm:$0xff]
          %v7650 = vld [vmem:[%s642 + $0x198] sm:$0xff]
          %v7651 = vld [vmem:[%s642 + $0x1a0] sm:$0xff]
          %v7652 = vld [vmem:[%s642 + $0x1a8] sm:$0xff]
          %v7653 = vld [vmem:[%s642 + $0x1b0] sm:$0xff]
          %v7654 = vld [vmem:[%s642 + $0x1b8] sm:$0xff]
          %v7655 = vld [vmem:[%s642 + $0x1c0] sm:$0xff]
          %v7656 = vld [vmem:[%s642 + $0x1c8] sm:$0xff]
          %v7657 = vld [vmem:[%s642 + $0x1d0] sm:$0xff]
          %v7658 = vld [vmem:[%s642 + $0x1d8] sm:$0xff]
          %v7659 = vld [vmem:[%s642 + $0x1e0] sm:$0xff]
          %v7660 = vld [vmem:[%s642 + $0x1e8] sm:$0xff]
          %v7661 = vld [vmem:[%s642 + $0x1f0] sm:$0xff]
          %v7662 = vld [vmem:[%s642 + $0x1f8] sm:$0xff]
          %v7663 = vld [vmem:[%s642 + $0x200] sm:$0xff]
          %v7664 = vld [vmem:[%s642 + $0x208] sm:$0xff]
          %v7665 = vld [vmem:[%s642 + $0x210] sm:$0xff]
          %v7666 = vld [vmem:[%s642 + $0x218] sm:$0xff]
          %v7667 = vld [vmem:[%s642 + $0x220] sm:$0xff]
          %v7668 = vld [vmem:[%s642 + $0x228] sm:$0xff]
          %v7669 = vld [vmem:[%s642 + $0x230] sm:$0xff]
          %v7670 = vld [vmem:[%s642 + $0x238] sm:$0xff]
          %v7671 = vld [vmem:[%s642 + $0x240] sm:$0xff]
          %v7672 = vld [vmem:[%s642 + $0x248] sm:$0xff]
          %v7673 = vld [vmem:[%s642 + $0x250] sm:$0xff]
          %v7674 = vld [vmem:[%s642 + $0x258] sm:$0xff]
          %v7675 = vld [vmem:[%s642 + $0x260] sm:$0xff]
          %v7676 = vld [vmem:[%s642 + $0x268] sm:$0xff]
          %v7677 = vld [vmem:[%s642 + $0x270] sm:$0xff]
          %v7678 = vld [vmem:[%s642 + $0x278] sm:$0xff]
          %v7679 = vld [vmem:[%s642 + $0x280] sm:$0xff]
          %v7680 = vld [vmem:[%s642 + $0x288] sm:$0xff]
          %v7681 = vld [vmem:[%s642 + $0x290] sm:$0xff]
          %v7682 = vld [vmem:[%s642 + $0x298] sm:$0xff]
          %v7683 = vld [vmem:[%s642 + $0x2a0] sm:$0xff]
          %v7684 = vld [vmem:[%s642 + $0x2a8] sm:$0xff]
          %v7685 = vld [vmem:[%s642 + $0x2b0] sm:$0xff]
          %v7686 = vld [vmem:[%s642 + $0x2b8] sm:$0xff]
          %v7687 = vld [vmem:[%s642 + $0x2c0] sm:$0xff]
          %v7688 = vld [vmem:[%s642 + $0x2c8] sm:$0xff]
          %v7689 = vld [vmem:[%s642 + $0x2d0] sm:$0xff]
          %v7690 = vld [vmem:[%s642 + $0x2d8] sm:$0xff]
          %v7691 = vld [vmem:[%s642 + $0x2e0] sm:$0xff]
          %v7692 = vld [vmem:[%s642 + $0x2e8] sm:$0xff]
          %v7693 = vld [vmem:[%s642 + $0x2f0] sm:$0xff]
          %v7694 = vld [vmem:[%s642 + $0x2f8] sm:$0xff]
          %v7695 = vld [vmem:[%s642 + $0x300] sm:$0xff]
          %v7696 = vld [vmem:[%s642 + $0x308] sm:$0xff]
          %v7697 = vld [vmem:[%s642 + $0x310] sm:$0xff]
          %v7698 = vld [vmem:[%s642 + $0x318] sm:$0xff]
          %v7699 = vld [vmem:[%s642 + $0x320] sm:$0xff]
          %v7700 = vld [vmem:[%s642 + $0x328] sm:$0xff]
          %v7701 = vld [vmem:[%s642 + $0x330] sm:$0xff]
          %v7702 = vld [vmem:[%s642 + $0x338] sm:$0xff]
          %v7703 = vld [vmem:[%s642 + $0x340] sm:$0xff]
          %v7704 = vld [vmem:[%s642 + $0x348] sm:$0xff]
          %v7705 = vld [vmem:[%s642 + $0x350] sm:$0xff]
          %v7706 = vld [vmem:[%s642 + $0x358] sm:$0xff]
          %v7707 = vld [vmem:[%s642 + $0x360] sm:$0xff]
          %v7708 = vld [vmem:[%s642 + $0x368] sm:$0xff]
          %v7709 = vld [vmem:[%s642 + $0x370] sm:$0xff]
          %v7710 = vld [vmem:[%s642 + $0x378] sm:$0xff]
          %v7711 = vld [vmem:[%s642 + $0x380] sm:$0xff]
          %v7712 = vld [vmem:[%s642 + $0x388] sm:$0xff]
          %v7713 = vld [vmem:[%s642 + $0x390] sm:$0xff]
          %v7714 = vld [vmem:[%s642 + $0x398] sm:$0xff]
          %v7715 = vld [vmem:[%s642 + $0x3a0] sm:$0xff]
          %v7716 = vld [vmem:[%s642 + $0x3a8] sm:$0xff]
          %v7717 = vld [vmem:[%s642 + $0x3b0] sm:$0xff]
          %v7718 = vld [vmem:[%s642 + $0x3b8] sm:$0xff]
          %v7719 = vld [vmem:[%s642 + $0x3c0] sm:$0xff]
          %v7720 = vld [vmem:[%s642 + $0x3c8] sm:$0xff]
          %v7721 = vld [vmem:[%s642 + $0x3d0] sm:$0xff]
          %v7722 = vld [vmem:[%s642 + $0x3d8] sm:$0xff]
          %v7723 = vld [vmem:[%s642 + $0x3e0] sm:$0xff]
          %v7724 = vld [vmem:[%s642 + $0x3e8] sm:$0xff]
          %v7725 = vld [vmem:[%s642 + $0x3f0] sm:$0xff]
          %v7726 = vld [vmem:[%s642 + $0x3f8] sm:$0xff]
          %v7727 = vld [vmem:[%s651] sm:$0xf]
          %v7729 = vlaneseq
          %v7730 = vshrl.u32 %v7729, 7
          %v7731 = vsub.s32 0, %v7730
          %v7732 = vrot.slane %v7727, %v7731
          %v7733 = vlaneseq
          %v7734 = vshrl.u32 %v7733, 7
          %v7735 = vsub.s32 1, %v7734
          %v7736 = vrot.slane %v7727, %v7735
          %v7737 = vlaneseq
          %v7738 = vshrl.u32 %v7737, 7
          %v7739 = vsub.s32 2, %v7738
          %v7740 = vrot.slane %v7727, %v7739
          %v7741 = vlaneseq
          %v7742 = vshrl.u32 %v7741, 7
          %v7743 = vsub.s32 3, %v7742
          %v7744 = vrot.slane %v7727, %v7743
          %v7877 = vunpack.c.l.b16 %v7599
          %v7878 = vunpack.c.h.b16 %v7599
          %v7879 = vunpack.c.l.b16 %v7600
          %v7880 = vunpack.c.h.b16 %v7600
          %v7881 = vunpack.c.l.b16 %v7601
          %v7882 = vunpack.c.h.b16 %v7601
          %v7883 = vunpack.c.l.b16 %v7602
          %v7884 = vunpack.c.h.b16 %v7602
          %v7885 = vunpack.c.l.b16 %v7603
          %v7886 = vunpack.c.h.b16 %v7603
          %v7887 = vunpack.c.l.b16 %v7604
          %v7888 = vunpack.c.h.b16 %v7604
          %v7889 = vunpack.c.l.b16 %v7605
          %v7890 = vunpack.c.h.b16 %v7605
          %v7891 = vunpack.c.l.b16 %v7606
          %v7892 = vunpack.c.h.b16 %v7606
          %v7893 = vunpack.c.l.b16 %v7607
          %v7894 = vunpack.c.h.b16 %v7607
          %v7895 = vunpack.c.l.b16 %v7608
          %v7896 = vunpack.c.h.b16 %v7608
          %v7897 = vunpack.c.l.b16 %v7609
          %v7898 = vunpack.c.h.b16 %v7609
          %v7899 = vunpack.c.l.b16 %v7610
          %v7900 = vunpack.c.h.b16 %v7610
          %v7901 = vunpack.c.l.b16 %v7611
          %v7902 = vunpack.c.h.b16 %v7611
          %v7903 = vunpack.c.l.b16 %v7612
          %v7904 = vunpack.c.h.b16 %v7612
          %v7905 = vunpack.c.l.b16 %v7613
          %v7906 = vunpack.c.h.b16 %v7613
          %v7907 = vunpack.c.l.b16 %v7614
          %v7908 = vunpack.c.h.b16 %v7614
          %v7909 = vunpack.c.l.b16 %v7615
          %v7910 = vunpack.c.h.b16 %v7615
          %v7911 = vunpack.c.l.b16 %v7616
          %v7912 = vunpack.c.h.b16 %v7616
          %v7913 = vunpack.c.l.b16 %v7617
          %v7914 = vunpack.c.h.b16 %v7617
          %v7915 = vunpack.c.l.b16 %v7618
          %v7916 = vunpack.c.h.b16 %v7618
          %v7917 = vunpack.c.l.b16 %v7619
          %v7918 = vunpack.c.h.b16 %v7619
          %v7919 = vunpack.c.l.b16 %v7620
          %v7920 = vunpack.c.h.b16 %v7620
          %v7921 = vunpack.c.l.b16 %v7621
          %v7922 = vunpack.c.h.b16 %v7621
          %v7923 = vunpack.c.l.b16 %v7622
          %v7924 = vunpack.c.h.b16 %v7622
          %v7925 = vunpack.c.l.b16 %v7623
          %v7926 = vunpack.c.h.b16 %v7623
          %v7927 = vunpack.c.l.b16 %v7624
          %v7928 = vunpack.c.h.b16 %v7624
          %v7929 = vunpack.c.l.b16 %v7625
          %v7930 = vunpack.c.h.b16 %v7625
          %v7931 = vunpack.c.l.b16 %v7626
          %v7932 = vunpack.c.h.b16 %v7626
          %v7933 = vunpack.c.l.b16 %v7627
          %v7934 = vunpack.c.h.b16 %v7627
          %v7935 = vunpack.c.l.b16 %v7628
          %v7936 = vunpack.c.h.b16 %v7628
          %v7937 = vunpack.c.l.b16 %v7629
          %v7938 = vunpack.c.h.b16 %v7629
          %v7939 = vunpack.c.l.b16 %v7630
          %v7940 = vunpack.c.h.b16 %v7630
          %v7941 = vunpack.c.l.b16 %v7631
          %v7942 = vunpack.c.h.b16 %v7631
          %v7943 = vunpack.c.l.b16 %v7632
          %v7944 = vunpack.c.h.b16 %v7632
          %v7945 = vunpack.c.l.b16 %v7633
          %v7946 = vunpack.c.h.b16 %v7633
          %v7947 = vunpack.c.l.b16 %v7634
          %v7948 = vunpack.c.h.b16 %v7634
          %v7949 = vunpack.c.l.b16 %v7635
          %v7950 = vunpack.c.h.b16 %v7635
          %v7951 = vunpack.c.l.b16 %v7636
          %v7952 = vunpack.c.h.b16 %v7636
          %v7953 = vunpack.c.l.b16 %v7637
          %v7954 = vunpack.c.h.b16 %v7637
          %v7955 = vunpack.c.l.b16 %v7638
          %v7956 = vunpack.c.h.b16 %v7638
          %v7957 = vunpack.c.l.b16 %v7639
          %v7958 = vunpack.c.h.b16 %v7639
          %v7959 = vunpack.c.l.b16 %v7640
          %v7960 = vunpack.c.h.b16 %v7640
          %v7961 = vunpack.c.l.b16 %v7641
          %v7962 = vunpack.c.h.b16 %v7641
          %v7963 = vunpack.c.l.b16 %v7642
          %v7964 = vunpack.c.h.b16 %v7642
          %v7965 = vunpack.c.l.b16 %v7643
          %v7966 = vunpack.c.h.b16 %v7643
          %v7967 = vunpack.c.l.b16 %v7644
          %v7968 = vunpack.c.h.b16 %v7644
          %v7969 = vunpack.c.l.b16 %v7645
          %v7970 = vunpack.c.h.b16 %v7645
          %v7971 = vunpack.c.l.b16 %v7646
          %v7972 = vunpack.c.h.b16 %v7646
          %v7973 = vunpack.c.l.b16 %v7647
          %v7974 = vunpack.c.h.b16 %v7647
          %v7975 = vunpack.c.l.b16 %v7648
          %v7976 = vunpack.c.h.b16 %v7648
          %v7977 = vunpack.c.l.b16 %v7649
          %v7978 = vunpack.c.h.b16 %v7649
          %v7979 = vunpack.c.l.b16 %v7650
          %v7980 = vunpack.c.h.b16 %v7650
          %v7981 = vunpack.c.l.b16 %v7651
          %v7982 = vunpack.c.h.b16 %v7651
          %v7983 = vunpack.c.l.b16 %v7652
          %v7984 = vunpack.c.h.b16 %v7652
          %v7985 = vunpack.c.l.b16 %v7653
          %v7986 = vunpack.c.h.b16 %v7653
          %v7987 = vunpack.c.l.b16 %v7654
          %v7988 = vunpack.c.h.b16 %v7654
          %v7989 = vunpack.c.l.b16 %v7655
          %v7990 = vunpack.c.h.b16 %v7655
          %v7991 = vunpack.c.l.b16 %v7656
          %v7992 = vunpack.c.h.b16 %v7656
          %v7993 = vunpack.c.l.b16 %v7657
          %v7994 = vunpack.c.h.b16 %v7657
          %v7995 = vunpack.c.l.b16 %v7658
          %v7996 = vunpack.c.h.b16 %v7658
          %v7997 = vunpack.c.l.b16 %v7659
          %v7998 = vunpack.c.h.b16 %v7659
          %v7999 = vunpack.c.l.b16 %v7660
          %v8000 = vunpack.c.h.b16 %v7660
          %v8001 = vunpack.c.l.b16 %v7661
          %v8002 = vunpack.c.h.b16 %v7661
          %v8003 = vunpack.c.l.b16 %v7662
          %v8004 = vunpack.c.h.b16 %v7662
          %v8005 = vunpack.c.l.b16 %v7663
          %v8006 = vunpack.c.h.b16 %v7663
          %v8007 = vunpack.c.l.b16 %v7664
          %v8008 = vunpack.c.h.b16 %v7664
          %v8009 = vunpack.c.l.b16 %v7665
          %v8010 = vunpack.c.h.b16 %v7665
          %v8011 = vunpack.c.l.b16 %v7666
          %v8012 = vunpack.c.h.b16 %v7666
          %v8013 = vunpack.c.l.b16 %v7667
          %v8014 = vunpack.c.h.b16 %v7667
          %v8015 = vunpack.c.l.b16 %v7668
          %v8016 = vunpack.c.h.b16 %v7668
          %v8017 = vunpack.c.l.b16 %v7669
          %v8018 = vunpack.c.h.b16 %v7669
          %v8019 = vunpack.c.l.b16 %v7670
          %v8020 = vunpack.c.h.b16 %v7670
          %v8021 = vunpack.c.l.b16 %v7671
          %v8022 = vunpack.c.h.b16 %v7671
          %v8023 = vunpack.c.l.b16 %v7672
          %v8024 = vunpack.c.h.b16 %v7672
          %v8025 = vunpack.c.l.b16 %v7673
          %v8026 = vunpack.c.h.b16 %v7673
          %v8027 = vunpack.c.l.b16 %v7674
          %v8028 = vunpack.c.h.b16 %v7674
          %v8029 = vunpack.c.l.b16 %v7675
          %v8030 = vunpack.c.h.b16 %v7675
          %v8031 = vunpack.c.l.b16 %v7676
          %v8032 = vunpack.c.h.b16 %v7676
          %v8033 = vunpack.c.l.b16 %v7677
          %v8034 = vunpack.c.h.b16 %v7677
          %v8035 = vunpack.c.l.b16 %v7678
          %v8036 = vunpack.c.h.b16 %v7678
          %v8037 = vunpack.c.l.b16 %v7679
          %v8038 = vunpack.c.h.b16 %v7679
          %v8039 = vunpack.c.l.b16 %v7680
          %v8040 = vunpack.c.h.b16 %v7680
          %v8041 = vunpack.c.l.b16 %v7681
          %v8042 = vunpack.c.h.b16 %v7681
          %v8043 = vunpack.c.l.b16 %v7682
          %v8044 = vunpack.c.h.b16 %v7682
          %v8045 = vunpack.c.l.b16 %v7683
          %v8046 = vunpack.c.h.b16 %v7683
          %v8047 = vunpack.c.l.b16 %v7684
          %v8048 = vunpack.c.h.b16 %v7684
          %v8049 = vunpack.c.l.b16 %v7685
          %v8050 = vunpack.c.h.b16 %v7685
          %v8051 = vunpack.c.l.b16 %v7686
          %v8052 = vunpack.c.h.b16 %v7686
          %v8053 = vunpack.c.l.b16 %v7687
          %v8054 = vunpack.c.h.b16 %v7687
          %v8055 = vunpack.c.l.b16 %v7688
          %v8056 = vunpack.c.h.b16 %v7688
          %v8057 = vunpack.c.l.b16 %v7689
          %v8058 = vunpack.c.h.b16 %v7689
          %v8059 = vunpack.c.l.b16 %v7690
          %v8060 = vunpack.c.h.b16 %v7690
          %v8061 = vunpack.c.l.b16 %v7691
          %v8062 = vunpack.c.h.b16 %v7691
          %v8063 = vunpack.c.l.b16 %v7692
          %v8064 = vunpack.c.h.b16 %v7692
          %v8065 = vunpack.c.l.b16 %v7693
          %v8066 = vunpack.c.h.b16 %v7693
          %v8067 = vunpack.c.l.b16 %v7694
          %v8068 = vunpack.c.h.b16 %v7694
          %v8069 = vunpack.c.l.b16 %v7695
          %v8070 = vunpack.c.h.b16 %v7695
          %v8071 = vunpack.c.l.b16 %v7696
          %v8072 = vunpack.c.h.b16 %v7696
          %v8073 = vunpack.c.l.b16 %v7697
          %v8074 = vunpack.c.h.b16 %v7697
          %v8075 = vunpack.c.l.b16 %v7698
          %v8076 = vunpack.c.h.b16 %v7698
          %v8077 = vunpack.c.l.b16 %v7699
          %v8078 = vunpack.c.h.b16 %v7699
          %v8079 = vunpack.c.l.b16 %v7700
          %v8080 = vunpack.c.h.b16 %v7700
          %v8081 = vunpack.c.l.b16 %v7701
          %v8082 = vunpack.c.h.b16 %v7701
          %v8083 = vunpack.c.l.b16 %v7702
          %v8084 = vunpack.c.h.b16 %v7702
          %v8085 = vunpack.c.l.b16 %v7703
          %v8086 = vunpack.c.h.b16 %v7703
          %v8087 = vunpack.c.l.b16 %v7704
          %v8088 = vunpack.c.h.b16 %v7704
          %v8089 = vunpack.c.l.b16 %v7705
          %v8090 = vunpack.c.h.b16 %v7705
          %v8091 = vunpack.c.l.b16 %v7706
          %v8092 = vunpack.c.h.b16 %v7706
          %v8093 = vunpack.c.l.b16 %v7707
          %v8094 = vunpack.c.h.b16 %v7707
          %v8095 = vunpack.c.l.b16 %v7708
          %v8096 = vunpack.c.h.b16 %v7708
          %v8097 = vunpack.c.l.b16 %v7709
          %v8098 = vunpack.c.h.b16 %v7709
          %v8099 = vunpack.c.l.b16 %v7710
          %v8100 = vunpack.c.h.b16 %v7710
          %v8101 = vunpack.c.l.b16 %v7711
          %v8102 = vunpack.c.h.b16 %v7711
          %v8103 = vunpack.c.l.b16 %v7712
          %v8104 = vunpack.c.h.b16 %v7712
          %v8105 = vunpack.c.l.b16 %v7713
          %v8106 = vunpack.c.h.b16 %v7713
          %v8107 = vunpack.c.l.b16 %v7714
          %v8108 = vunpack.c.h.b16 %v7714
          %v8109 = vunpack.c.l.b16 %v7715
          %v8110 = vunpack.c.h.b16 %v7715
          %v8111 = vunpack.c.l.b16 %v7716
          %v8112 = vunpack.c.h.b16 %v7716
          %v8113 = vunpack.c.l.b16 %v7717
          %v8114 = vunpack.c.h.b16 %v7717
          %v8115 = vunpack.c.l.b16 %v7718
          %v8116 = vunpack.c.h.b16 %v7718
          %v8117 = vunpack.c.l.b16 %v7719
          %v8118 = vunpack.c.h.b16 %v7719
          %v8119 = vunpack.c.l.b16 %v7720
          %v8120 = vunpack.c.h.b16 %v7720
          %v8121 = vunpack.c.l.b16 %v7721
          %v8122 = vunpack.c.h.b16 %v7721
          %v8123 = vunpack.c.l.b16 %v7722
          %v8124 = vunpack.c.h.b16 %v7722
          %v8125 = vunpack.c.l.b16 %v7723
          %v8126 = vunpack.c.h.b16 %v7723
          %v8127 = vunpack.c.l.b16 %v7724
          %v8128 = vunpack.c.h.b16 %v7724
          %v8129 = vunpack.c.l.b16 %v7725
          %v8130 = vunpack.c.h.b16 %v7725
          %v8131 = vunpack.c.l.b16 %v7726
          %v8132 = vunpack.c.h.b16 %v7726
          %v8133 = vpack.c.b16 %v7881, %v7877
          %v8134 = vpack.c.b16 %v7882, %v7878
          %v8135 = vpack.c.b16 %v7883, %v7879
          %v8136 = vpack.c.b16 %v7884, %v7880
          %v8137 = vpack.c.b16 %v7889, %v7885
          %v8138 = vpack.c.b16 %v7890, %v7886
          %v8139 = vpack.c.b16 %v7891, %v7887
          %v8140 = vpack.c.b16 %v7892, %v7888
          %v8141 = vpack.c.b16 %v7897, %v7893
          %v8142 = vpack.c.b16 %v7898, %v7894
          %v8143 = vpack.c.b16 %v7899, %v7895
          %v8144 = vpack.c.b16 %v7900, %v7896
          %v8145 = vpack.c.b16 %v7905, %v7901
          %v8146 = vpack.c.b16 %v7906, %v7902
          %v8147 = vpack.c.b16 %v7907, %v7903
          %v8148 = vpack.c.b16 %v7908, %v7904
          %v8149 = vpack.c.b16 %v7913, %v7909
          %v8150 = vpack.c.b16 %v7914, %v7910
          %v8151 = vpack.c.b16 %v7915, %v7911
          %v8152 = vpack.c.b16 %v7916, %v7912
          %v8153 = vpack.c.b16 %v7921, %v7917
          %v8154 = vpack.c.b16 %v7922, %v7918
          %v8155 = vpack.c.b16 %v7923, %v7919
          %v8156 = vpack.c.b16 %v7924, %v7920
          %v8157 = vpack.c.b16 %v7929, %v7925
          %v8158 = vpack.c.b16 %v7930, %v7926
          %v8159 = vpack.c.b16 %v7931, %v7927
          %v8160 = vpack.c.b16 %v7932, %v7928
          %v8161 = vpack.c.b16 %v7937, %v7933
          %v8162 = vpack.c.b16 %v7938, %v7934
          %v8163 = vpack.c.b16 %v7939, %v7935
          %v8164 = vpack.c.b16 %v7940, %v7936
          %v8165 = vpack.c.b16 %v7945, %v7941
          %v8166 = vpack.c.b16 %v7946, %v7942
          %v8167 = vpack.c.b16 %v7947, %v7943
          %v8168 = vpack.c.b16 %v7948, %v7944
          %v8169 = vpack.c.b16 %v7953, %v7949
          %v8170 = vpack.c.b16 %v7954, %v7950
          %v8171 = vpack.c.b16 %v7955, %v7951
          %v8172 = vpack.c.b16 %v7956, %v7952
          %v8173 = vpack.c.b16 %v7961, %v7957
          %v8174 = vpack.c.b16 %v7962, %v7958
          %v8175 = vpack.c.b16 %v7963, %v7959
          %v8176 = vpack.c.b16 %v7964, %v7960
          %v8177 = vpack.c.b16 %v7969, %v7965
          %v8178 = vpack.c.b16 %v7970, %v7966
          %v8179 = vpack.c.b16 %v7971, %v7967
          %v8180 = vpack.c.b16 %v7972, %v7968
          %v8181 = vpack.c.b16 %v7977, %v7973
          %v8182 = vpack.c.b16 %v7978, %v7974
          %v8183 = vpack.c.b16 %v7979, %v7975
          %v8184 = vpack.c.b16 %v7980, %v7976
          %v8185 = vpack.c.b16 %v7985, %v7981
          %v8186 = vpack.c.b16 %v7986, %v7982
          %v8187 = vpack.c.b16 %v7987, %v7983
          %v8188 = vpack.c.b16 %v7988, %v7984
          %v8189 = vpack.c.b16 %v7993, %v7989
          %v8190 = vpack.c.b16 %v7994, %v7990
          %v8191 = vpack.c.b16 %v7995, %v7991
          %v8192 = vpack.c.b16 %v7996, %v7992
          %v8193 = vpack.c.b16 %v8001, %v7997
          %v8194 = vpack.c.b16 %v8002, %v7998
          %v8195 = vpack.c.b16 %v8003, %v7999
          %v8196 = vpack.c.b16 %v8004, %v8000
          %v8197 = vpack.c.b16 %v8009, %v8005
          %v8198 = vpack.c.b16 %v8010, %v8006
          %v8199 = vpack.c.b16 %v8011, %v8007
          %v8200 = vpack.c.b16 %v8012, %v8008
          %v8201 = vpack.c.b16 %v8017, %v8013
          %v8202 = vpack.c.b16 %v8018, %v8014
          %v8203 = vpack.c.b16 %v8019, %v8015
          %v8204 = vpack.c.b16 %v8020, %v8016
          %v8205 = vpack.c.b16 %v8025, %v8021
          %v8206 = vpack.c.b16 %v8026, %v8022
          %v8207 = vpack.c.b16 %v8027, %v8023
          %v8208 = vpack.c.b16 %v8028, %v8024
          %v8209 = vpack.c.b16 %v8033, %v8029
          %v8210 = vpack.c.b16 %v8034, %v8030
          %v8211 = vpack.c.b16 %v8035, %v8031
          %v8212 = vpack.c.b16 %v8036, %v8032
          %v8213 = vpack.c.b16 %v8041, %v8037
          %v8214 = vpack.c.b16 %v8042, %v8038
          %v8215 = vpack.c.b16 %v8043, %v8039
          %v8216 = vpack.c.b16 %v8044, %v8040
          %v8217 = vpack.c.b16 %v8049, %v8045
          %v8218 = vpack.c.b16 %v8050, %v8046
          %v8219 = vpack.c.b16 %v8051, %v8047
          %v8220 = vpack.c.b16 %v8052, %v8048
          %v8221 = vpack.c.b16 %v8057, %v8053
          %v8222 = vpack.c.b16 %v8058, %v8054
          %v8223 = vpack.c.b16 %v8059, %v8055
          %v8224 = vpack.c.b16 %v8060, %v8056
          %v8225 = vpack.c.b16 %v8065, %v8061
          %v8226 = vpack.c.b16 %v8066, %v8062
          %v8227 = vpack.c.b16 %v8067, %v8063
          %v8228 = vpack.c.b16 %v8068, %v8064
          %v8229 = vpack.c.b16 %v8073, %v8069
          %v8230 = vpack.c.b16 %v8074, %v8070
          %v8231 = vpack.c.b16 %v8075, %v8071
          %v8232 = vpack.c.b16 %v8076, %v8072
          %v8233 = vpack.c.b16 %v8081, %v8077
          %v8234 = vpack.c.b16 %v8082, %v8078
          %v8235 = vpack.c.b16 %v8083, %v8079
          %v8236 = vpack.c.b16 %v8084, %v8080
          %v8237 = vpack.c.b16 %v8089, %v8085
          %v8238 = vpack.c.b16 %v8090, %v8086
          %v8239 = vpack.c.b16 %v8091, %v8087
          %v8240 = vpack.c.b16 %v8092, %v8088
          %v8241 = vpack.c.b16 %v8097, %v8093
          %v8242 = vpack.c.b16 %v8098, %v8094
          %v8243 = vpack.c.b16 %v8099, %v8095
          %v8244 = vpack.c.b16 %v8100, %v8096
          %v8245 = vpack.c.b16 %v8105, %v8101
          %v8246 = vpack.c.b16 %v8106, %v8102
          %v8247 = vpack.c.b16 %v8107, %v8103
          %v8248 = vpack.c.b16 %v8108, %v8104
          %v8249 = vpack.c.b16 %v8113, %v8109
          %v8250 = vpack.c.b16 %v8114, %v8110
          %v8251 = vpack.c.b16 %v8115, %v8111
          %v8252 = vpack.c.b16 %v8116, %v8112
          %v8253 = vpack.c.b16 %v8121, %v8117
          %v8254 = vpack.c.b16 %v8122, %v8118
          %v8255 = vpack.c.b16 %v8123, %v8119
          %v8256 = vpack.c.b16 %v8124, %v8120
          %v8257 = vpack.c.b16 %v8129, %v8125
          %v8258 = vpack.c.b16 %v8130, %v8126
          %v8259 = vpack.c.b16 %v8131, %v8127
          %v8260 = vpack.c.b16 %v8132, %v8128
          %8389 = vmatprep.subr.bf16.mxu0 %v8134
          %8390 = vmatpush1.bf16.msra.mxu0 %v8133
          %8391 = vmatprep.subr.bf16.mxu0 %v8138
          %8392 = vmatpush1.bf16.msra.mxu0 %v8137
          %8393 = vmatprep.subr.bf16.mxu0 %v8142
          %8394 = vmatpush1.bf16.msra.mxu0 %v8141
          %8395 = vmatprep.subr.bf16.mxu0 %v8146
          %8396 = vmatpush1.bf16.msra.mxu0 %v8145
          %8397 = vmatprep.subr.bf16.mxu0 %v8150
          %8398 = vmatpush1.bf16.msra.mxu0 %v8149
          %8399 = vmatprep.subr.bf16.mxu0 %v8154
          %8400 = vmatpush1.bf16.msra.mxu0 %v8153
          %8401 = vmatprep.subr.bf16.mxu0 %v8158
          %8402 = vmatpush1.bf16.msra.mxu0 %v8157
          %8403 = vmatprep.subr.bf16.mxu0 %v8162
          %8404 = vmatpush1.bf16.msra.mxu0 %v8161
          %8405 = vmatprep.subr.bf16.mxu0 %v8166
          %8406 = vmatpush1.bf16.msra.mxu0 %v8165
          %8407 = vmatprep.subr.bf16.mxu0 %v8170
          %8408 = vmatpush1.bf16.msra.mxu0 %v8169
          %8409 = vmatprep.subr.bf16.mxu0 %v8174
          %8410 = vmatpush1.bf16.msra.mxu0 %v8173
          %8411 = vmatprep.subr.bf16.mxu0 %v8178
          %8412 = vmatpush1.bf16.msra.mxu0 %v8177
          %8413 = vmatprep.subr.bf16.mxu0 %v8182
          %8414 = vmatpush1.bf16.msra.mxu0 %v8181
          %8415 = vmatprep.subr.bf16.mxu0 %v8186
          %8416 = vmatpush1.bf16.msra.mxu0 %v8185
          %8417 = vmatprep.subr.bf16.mxu0 %v8190
          %8418 = vmatpush1.bf16.msra.mxu0 %v8189
          %8419 = vmatprep.subr.bf16.mxu0 %v8194
          %8420 = vmatpush1.bf16.msra.mxu0 %v8193
          %8421 = vmatprep.mubr.bf16.mxu0 %v7592
          %8422 = vmatmul.mubr.bf16.gmra.mrb[0].mxu0 %v7591
          %v8423 = vpop.f32.mrb[0].mxu0
          %v8424 = vadd.f32 %v7732, %v8423
          %v8425 = vpop.f32.mrb[0].mxu0
          %v8426 = vadd.f32 %v7736, %v8425
          %v8427 = vpop.f32.mrb[0].mxu0
          %v8428 = vadd.f32 %v7732, %v8427
          %v8429 = vpop.f32.mrb[0].mxu0
          %v8430 = vadd.f32 %v7736, %v8429
          %8431 = vmatprep.mubr.bf16.mxu0 %v7596
          %8432 = vmatmul.mubr.bf16.gmra.mrb[0].mxu0 %v7595
          %v8433 = vpop.f32.mrb[0].mxu0
          %v8434 = vadd.f32 %v7732, %v8433
          %v8435 = vpop.f32.mrb[0].mxu0
          %v8436 = vadd.f32 %v7736, %v8435
          %v8437 = vpop.f32.mrb[0].mxu0
          %v8438 = vadd.f32 %v7732, %v8437
          %v8439 = vpop.f32.mrb[0].mxu0
          %v8440 = vadd.f32 %v7736, %v8439
          %8441 = vdwg.mxu0
          %8442 = vmatprep.subr.bf16.mxu0 %v8198
          %8443 = vmatpush1.bf16.msra.mxu0 %v8197
          %8444 = vmatprep.subr.bf16.mxu0 %v8202
          %8445 = vmatpush1.bf16.msra.mxu0 %v8201
          %8446 = vmatprep.subr.bf16.mxu0 %v8206
          %8447 = vmatpush1.bf16.msra.mxu0 %v8205
          %8448 = vmatprep.subr.bf16.mxu0 %v8210
          %8449 = vmatpush1.bf16.msra.mxu0 %v8209
          %8450 = vmatprep.subr.bf16.mxu0 %v8214
          %8451 = vmatpush1.bf16.msra.mxu0 %v8213
          %8452 = vmatprep.subr.bf16.mxu0 %v8218
          %8453 = vmatpush1.bf16.msra.mxu0 %v8217
          %8454 = vmatprep.subr.bf16.mxu0 %v8222
          %8455 = vmatpush1.bf16.msra.mxu0 %v8221
          %8456 = vmatprep.subr.bf16.mxu0 %v8226
          %8457 = vmatpush1.bf16.msra.mxu0 %v8225
          %8458 = vmatprep.subr.bf16.mxu0 %v8230
          %8459 = vmatpush1.bf16.msra.mxu0 %v8229
          %8460 = vmatprep.subr.bf16.mxu0 %v8234
          %8461 = vmatpush1.bf16.msra.mxu0 %v8233
          %8462 = vmatprep.subr.bf16.mxu0 %v8238
          %8463 = vmatpush1.bf16.msra.mxu0 %v8237
          %8464 = vmatprep.subr.bf16.mxu0 %v8242
          %8465 = vmatpush1.bf16.msra.mxu0 %v8241
          %8466 = vmatprep.subr.bf16.mxu0 %v8246
          %8467 = vmatpush1.bf16.msra.mxu0 %v8245
          %8468 = vmatprep.subr.bf16.mxu0 %v8250
          %8469 = vmatpush1.bf16.msra.mxu0 %v8249
          %8470 = vmatprep.subr.bf16.mxu0 %v8254
          %8471 = vmatpush1.bf16.msra.mxu0 %v8253
          %8472 = vmatprep.subr.bf16.mxu0 %v8258
          %8473 = vmatpush1.bf16.msra.mxu0 %v8257
          %8474 = vmatprep.mubr.bf16.mxu0 %v7594
          %8475 = vmatmul.mubr.bf16.gmra.mrb[0].mxu0 %v7593
          %v8476 = vpop.f32.mrb[0].mxu0
          %v8477 = vadd.f32 %v8424, %v8476
          %v8478 = vpop.f32.mrb[0].mxu0
          %v8479 = vadd.f32 %v8426, %v8478
          %v8480 = vpop.f32.mrb[0].mxu0
          %v8481 = vadd.f32 %v8428, %v8480
          %v8482 = vpop.f32.mrb[0].mxu0
          %v8483 = vadd.f32 %v8430, %v8482
          %8484 = vmatprep.mubr.bf16.mxu0 %v7598
          %8485 = vmatmul.mubr.bf16.gmra.mrb[0].mxu0 %v7597
          %v8486 = vpop.f32.mrb[0].mxu0
          %v8487 = vadd.f32 %v8434, %v8486
          %v8488 = vpop.f32.mrb[0].mxu0
          %v8489 = vadd.f32 %v8436, %v8488
          %v8490 = vpop.f32.mrb[0].mxu0
          %v8491 = vadd.f32 %v8438, %v8490
          %v8492 = vpop.f32.mrb[0].mxu0
          %v8493 = vadd.f32 %v8440, %v8492
          %8494 = vdwg.mxu0
          %8495 = vmatprep.subr.bf16.mxu0 %v8136
          %8496 = vmatpush1.bf16.msra.mxu0 %v8135
          %8497 = vmatprep.subr.bf16.mxu0 %v8140
          %8498 = vmatpush1.bf16.msra.mxu0 %v8139
          %8499 = vmatprep.subr.bf16.mxu0 %v8144
          %8500 = vmatpush1.bf16.msra.mxu0 %v8143
          %8501 = vmatprep.subr.bf16.mxu0 %v8148
          %8502 = vmatpush1.bf16.msra.mxu0 %v8147
          %8503 = vmatprep.subr.bf16.mxu0 %v8152
          %8504 = vmatpush1.bf16.msra.mxu0 %v8151
          %8505 = vmatprep.subr.bf16.mxu0 %v8156
          %8506 = vmatpush1.bf16.msra.mxu0 %v8155
          %8507 = vmatprep.subr.bf16.mxu0 %v8160
          %8508 = vmatpush1.bf16.msra.mxu0 %v8159
          %8509 = vmatprep.subr.bf16.mxu0 %v8164
          %8510 = vmatpush1.bf16.msra.mxu0 %v8163
          %8511 = vmatprep.subr.bf16.mxu0 %v8168
          %8512 = vmatpush1.bf16.msra.mxu0 %v8167
          %8513 = vmatprep.subr.bf16.mxu0 %v8172
          %8514 = vmatpush1.bf16.msra.mxu0 %v8171
          %8515 = vmatprep.subr.bf16.mxu0 %v8176
          %8516 = vmatpush1.bf16.msra.mxu0 %v8175
          %8517 = vmatprep.subr.bf16.mxu0 %v8180
          %8518 = vmatpush1.bf16.msra.mxu0 %v8179
          %8519 = vmatprep.subr.bf16.mxu0 %v8184
          %8520 = vmatpush1.bf16.msra.mxu0 %v8183
          %8521 = vmatprep.subr.bf16.mxu0 %v8188
          %8522 = vmatpush1.bf16.msra.mxu0 %v8187
          %8523 = vmatprep.subr.bf16.mxu0 %v8192
          %8524 = vmatpush1.bf16.msra.mxu0 %v8191
          %8525 = vmatprep.subr.bf16.mxu0 %v8196
          %8526 = vmatpush1.bf16.msra.mxu0 %v8195
          %8527 = vmatprep.mubr.bf16.mxu0 %v7592
          %8528 = vmatmul.mubr.bf16.gmra.mrb[0].mxu0 %v7591
          %v8529 = vpop.f32.mrb[0].mxu0
          %v8530 = vadd.f32 %v7740, %v8529
          %v8531 = vpop.f32.mrb[0].mxu0
          %v8532 = vadd.f32 %v7744, %v8531
          %v8533 = vpop.f32.mrb[0].mxu0
          %v8534 = vadd.f32 %v7740, %v8533
          %v8535 = vpop.f32.mrb[0].mxu0
          %v8536 = vadd.f32 %v7744, %v8535
          %8537 = vmatprep.mubr.bf16.mxu0 %v7596
          %8538 = vmatmul.mubr.bf16.gmra.mrb[0].mxu0 %v7595
          %v8539 = vpop.f32.mrb[0].mxu0
          %v8540 = vadd.f32 %v7740, %v8539
          %v8541 = vpop.f32.mrb[0].mxu0
          %v8542 = vadd.f32 %v7744, %v8541
          %v8543 = vpop.f32.mrb[0].mxu0
          %v8544 = vadd.f32 %v7740, %v8543
          %v8545 = vpop.f32.mrb[0].mxu0
          %v8546 = vadd.f32 %v7744, %v8545
          %8547 = vdwg.mxu0
          %8548 = vmatprep.subr.bf16.mxu0 %v8200
          %8549 = vmatpush1.bf16.msra.mxu0 %v8199
          %8550 = vmatprep.subr.bf16.mxu0 %v8204
          %8551 = vmatpush1.bf16.msra.mxu0 %v8203
          %8552 = vmatprep.subr.bf16.mxu0 %v8208
          %8553 = vmatpush1.bf16.msra.mxu0 %v8207
          %8554 = vmatprep.subr.bf16.mxu0 %v8212
          %8555 = vmatpush1.bf16.msra.mxu0 %v8211
          %8556 = vmatprep.subr.bf16.mxu0 %v8216
          %8557 = vmatpush1.bf16.msra.mxu0 %v8215
          %8558 = vmatprep.subr.bf16.mxu0 %v8220
          %8559 = vmatpush1.bf16.msra.mxu0 %v8219
          %8560 = vmatprep.subr.bf16.mxu0 %v8224
          %8561 = vmatpush1.bf16.msra.mxu0 %v8223
          %8562 = vmatprep.subr.bf16.mxu0 %v8228
          %8563 = vmatpush1.bf16.msra.mxu0 %v8227
          %8564 = vmatprep.subr.bf16.mxu0 %v8232
          %8565 = vmatpush1.bf16.msra.mxu0 %v8231
          %8566 = vmatprep.subr.bf16.mxu0 %v8236
          %8567 = vmatpush1.bf16.msra.mxu0 %v8235
          %8568 = vmatprep.subr.bf16.mxu0 %v8240
          %8569 = vmatpush1.bf16.msra.mxu0 %v8239
          %8570 = vmatprep.subr.bf16.mxu0 %v8244
          %8571 = vmatpush1.bf16.msra.mxu0 %v8243
          %8572 = vmatprep.subr.bf16.mxu0 %v8248
          %8573 = vmatpush1.bf16.msra.mxu0 %v8247
          %8574 = vmatprep.subr.bf16.mxu0 %v8252
          %8575 = vmatpush1.bf16.msra.mxu0 %v8251
          %8576 = vmatprep.subr.bf16.mxu0 %v8256
          %8577 = vmatpush1.bf16.msra.mxu0 %v8255
          %8578 = vmatprep.subr.bf16.mxu0 %v8260
          %8579 = vmatpush1.bf16.msra.mxu0 %v8259
          %8580 = vmatprep.mubr.bf16.mxu0 %v7594
          %8581 = vmatmul.mubr.bf16.gmra.mrb[0].mxu0 %v7593
          %v8582 = vpop.f32.mrb[0].mxu0
          %v8583 = vadd.f32 %v8530, %v8582
          %v8584 = vpop.f32.mrb[0].mxu0
          %v8585 = vadd.f32 %v8532, %v8584
          %v8586 = vpop.f32.mrb[0].mxu0
          %v8587 = vadd.f32 %v8534, %v8586
          %v8588 = vpop.f32.mrb[0].mxu0
          %v8589 = vadd.f32 %v8536, %v8588
          %8590 = vmatprep.mubr.bf16.mxu0 %v7598
          %8591 = vmatmul.mubr.bf16.gmra.mrb[0].mxu0 %v7597
          %v8592 = vpop.f32.mrb[0].mxu0
          %v8593 = vadd.f32 %v8540, %v8592
          %v8594 = vpop.f32.mrb[0].mxu0
          %v8595 = vadd.f32 %v8542, %v8594
          %v8596 = vpop.f32.mrb[0].mxu0
          %v8597 = vadd.f32 %v8544, %v8596
          %v8598 = vpop.f32.mrb[0].mxu0
          %v8599 = vadd.f32 %v8546, %v8598
          %8600 = vdwg.mxu0
          %v8601 = vmax.f32 %v8477, 0.0
          %v8602 = vmax.f32 %v8479, 0.0
          %v8603 = vmax.f32 %v8583, 0.0
          %v8604 = vmax.f32 %v8585, 0.0
          %v8605 = vmax.f32 %v8481, 0.0
          %v8606 = vmax.f32 %v8483, 0.0
          %v8607 = vmax.f32 %v8587, 0.0
          %v8608 = vmax.f32 %v8589, 0.0
          %v8609 = vmax.f32 %v8487, 0.0
          %v8610 = vmax.f32 %v8489, 0.0
          %v8611 = vmax.f32 %v8593, 0.0
          %v8612 = vmax.f32 %v8595, 0.0
          %v8613 = vmax.f32 %v8491, 0.0
          %v8614 = vmax.f32 %v8493, 0.0
          %v8615 = vmax.f32 %v8597, 0.0
          %v8616 = vmax.f32 %v8599, 0.0
          %v8617 = vld [vmem:[#allocation6] sm:$0xff]
          %v8618 = vld [vmem:[#allocation6 + $0x8] sm:$0xff]
          %v8619 = vld [vmem:[#allocation6 + $0x10] sm:$0xff]
          %v8620 = vld [vmem:[#allocation6 + $0x18] sm:$0xff]
          %v8621 = vld [vmem:[#allocation6 + $0x20] sm:$0xff]
          %v8622 = vld [vmem:[#allocation6 + $0x28] sm:$0xff]
          %v8623 = vld [vmem:[#allocation6 + $0x30] sm:$0xff]
          %v8624 = vld [vmem:[#allocation6 + $0x38] sm:$0xff]
          %v8625 = vld [vmem:[#allocation6 + $0x40] sm:$0xff]
          %v8626 = vld [vmem:[#allocation6 + $0x48] sm:$0xff]
          %v8627 = vld [vmem:[#allocation6 + $0x50] sm:$0xff]
          %v8628 = vld [vmem:[#allocation6 + $0x58] sm:$0xff]
          %v8629 = vld [vmem:[#allocation6 + $0x60] sm:$0xff]
          %v8630 = vld [vmem:[#allocation6 + $0x68] sm:$0xff]
          %v8631 = vld [vmem:[#allocation6 + $0x70] sm:$0xff]
          %v8632 = vld [vmem:[#allocation6 + $0x78] sm:$0xff]
          %v8633 = vpack.c.bf16 %v8605, %v8601
          %v8634 = vpack.c.bf16 %v8606, %v8602
          %v8635 = vpack.c.bf16 %v8607, %v8603
          %v8636 = vpack.c.bf16 %v8608, %v8604
          %v8637 = vpack.c.bf16 %v8613, %v8609
          %v8638 = vpack.c.bf16 %v8614, %v8610
          %v8639 = vpack.c.bf16 %v8615, %v8611
          %v8640 = vpack.c.bf16 %v8616, %v8612
          %v8641 = vld [vmem:[%s660] sm:$0xff]
          %v8642 = vld [vmem:[%s660 + $0x8] sm:$0xff]
          %v8643 = vld [vmem:[%s660 + $0x10] sm:$0xff]
          %v8644 = vld [vmem:[%s660 + $0x18] sm:$0xff]
          %v8645 = vld [vmem:[%s660 + $0x20] sm:$0xff]
          %v8646 = vld [vmem:[%s660 + $0x28] sm:$0xff]
          %v8647 = vld [vmem:[%s660 + $0x30] sm:$0xff]
          %v8648 = vld [vmem:[%s660 + $0x38] sm:$0xff]
          %v8649 = vld [vmem:[%s660 + $0x40] sm:$0xff]
          %v8650 = vld [vmem:[%s660 + $0x48] sm:$0xff]
          %v8651 = vld [vmem:[%s660 + $0x50] sm:$0xff]
          %v8652 = vld [vmem:[%s660 + $0x58] sm:$0xff]
          %v8653 = vld [vmem:[%s660 + $0x60] sm:$0xff]
          %v8654 = vld [vmem:[%s660 + $0x68] sm:$0xff]
          %v8655 = vld [vmem:[%s660 + $0x70] sm:$0xff]
          %v8656 = vld [vmem:[%s660 + $0x78] sm:$0xff]
          %v8657 = vld [vmem:[%s660 + $0x80] sm:$0xff]
          %v8658 = vld [vmem:[%s660 + $0x88] sm:$0xff]
          %v8659 = vld [vmem:[%s660 + $0x90] sm:$0xff]
          %v8660 = vld [vmem:[%s660 + $0x98] sm:$0xff]
          %v8661 = vld [vmem:[%s660 + $0xa0] sm:$0xff]
          %v8662 = vld [vmem:[%s660 + $0xa8] sm:$0xff]
          %v8663 = vld [vmem:[%s660 + $0xb0] sm:$0xff]
          %v8664 = vld [vmem:[%s660 + $0xb8] sm:$0xff]
          %v8665 = vld [vmem:[%s660 + $0xc0] sm:$0xff]
          %v8666 = vld [vmem:[%s660 + $0xc8] sm:$0xff]
          %v8667 = vld [vmem:[%s660 + $0xd0] sm:$0xff]
          %v8668 = vld [vmem:[%s660 + $0xd8] sm:$0xff]
          %v8669 = vld [vmem:[%s660 + $0xe0] sm:$0xff]
          %v8670 = vld [vmem:[%s660 + $0xe8] sm:$0xff]
          %v8671 = vld [vmem:[%s660 + $0xf0] sm:$0xff]
          %v8672 = vld [vmem:[%s660 + $0xf8] sm:$0xff]
          %v8673 = vld [vmem:[%s660 + $0x100] sm:$0xff]
          %v8674 = vld [vmem:[%s660 + $0x108] sm:$0xff]
          %v8675 = vld [vmem:[%s660 + $0x110] sm:$0xff]
          %v8676 = vld [vmem:[%s660 + $0x118] sm:$0xff]
          %v8677 = vld [vmem:[%s660 + $0x120] sm:$0xff]
          %v8678 = vld [vmem:[%s660 + $0x128] sm:$0xff]
          %v8679 = vld [vmem:[%s660 + $0x130] sm:$0xff]
          %v8680 = vld [vmem:[%s660 + $0x138] sm:$0xff]
          %v8681 = vld [vmem:[%s660 + $0x140] sm:$0xff]
          %v8682 = vld [vmem:[%s660 + $0x148] sm:$0xff]
          %v8683 = vld [vmem:[%s660 + $0x150] sm:$0xff]
          %v8684 = vld [vmem:[%s660 + $0x158] sm:$0xff]
          %v8685 = vld [vmem:[%s660 + $0x160] sm:$0xff]
          %v8686 = vld [vmem:[%s660 + $0x168] sm:$0xff]
          %v8687 = vld [vmem:[%s660 + $0x170] sm:$0xff]
          %v8688 = vld [vmem:[%s660 + $0x178] sm:$0xff]
          %v8689 = vld [vmem:[%s660 + $0x180] sm:$0xff]
          %v8690 = vld [vmem:[%s660 + $0x188] sm:$0xff]
          %v8691 = vld [vmem:[%s660 + $0x190] sm:$0xff]
          %v8692 = vld [vmem:[%s660 + $0x198] sm:$0xff]
          %v8693 = vld [vmem:[%s660 + $0x1a0] sm:$0xff]
          %v8694 = vld [vmem:[%s660 + $0x1a8] sm:$0xff]
          %v8695 = vld [vmem:[%s660 + $0x1b0] sm:$0xff]
          %v8696 = vld [vmem:[%s660 + $0x1b8] sm:$0xff]
          %v8697 = vld [vmem:[%s660 + $0x1c0] sm:$0xff]
          %v8698 = vld [vmem:[%s660 + $0x1c8] sm:$0xff]
          %v8699 = vld [vmem:[%s660 + $0x1d0] sm:$0xff]
          %v8700 = vld [vmem:[%s660 + $0x1d8] sm:$0xff]
          %v8701 = vld [vmem:[%s660 + $0x1e0] sm:$0xff]
          %v8702 = vld [vmem:[%s660 + $0x1e8] sm:$0xff]
          %v8703 = vld [vmem:[%s660 + $0x1f0] sm:$0xff]
          %v8704 = vld [vmem:[%s660 + $0x1f8] sm:$0xff]
          %v8705 = vld [vmem:[%s660 + $0x200] sm:$0xff]
          %v8706 = vld [vmem:[%s660 + $0x208] sm:$0xff]
          %v8707 = vld [vmem:[%s660 + $0x210] sm:$0xff]
          %v8708 = vld [vmem:[%s660 + $0x218] sm:$0xff]
          %v8709 = vld [vmem:[%s660 + $0x220] sm:$0xff]
          %v8710 = vld [vmem:[%s660 + $0x228] sm:$0xff]
          %v8711 = vld [vmem:[%s660 + $0x230] sm:$0xff]
          %v8712 = vld [vmem:[%s660 + $0x238] sm:$0xff]
          %v8713 = vld [vmem:[%s660 + $0x240] sm:$0xff]
          %v8714 = vld [vmem:[%s660 + $0x248] sm:$0xff]
          %v8715 = vld [vmem:[%s660 + $0x250] sm:$0xff]
          %v8716 = vld [vmem:[%s660 + $0x258] sm:$0xff]
          %v8717 = vld [vmem:[%s660 + $0x260] sm:$0xff]
          %v8718 = vld [vmem:[%s660 + $0x268] sm:$0xff]
          %v8719 = vld [vmem:[%s660 + $0x270] sm:$0xff]
          %v8720 = vld [vmem:[%s660 + $0x278] sm:$0xff]
          %v8721 = vld [vmem:[%s660 + $0x280] sm:$0xff]
          %v8722 = vld [vmem:[%s660 + $0x288] sm:$0xff]
          %v8723 = vld [vmem:[%s660 + $0x290] sm:$0xff]
          %v8724 = vld [vmem:[%s660 + $0x298] sm:$0xff]
          %v8725 = vld [vmem:[%s660 + $0x2a0] sm:$0xff]
          %v8726 = vld [vmem:[%s660 + $0x2a8] sm:$0xff]
          %v8727 = vld [vmem:[%s660 + $0x2b0] sm:$0xff]
          %v8728 = vld [vmem:[%s660 + $0x2b8] sm:$0xff]
          %v8729 = vld [vmem:[%s660 + $0x2c0] sm:$0xff]
          %v8730 = vld [vmem:[%s660 + $0x2c8] sm:$0xff]
          %v8731 = vld [vmem:[%s660 + $0x2d0] sm:$0xff]
          %v8732 = vld [vmem:[%s660 + $0x2d8] sm:$0xff]
          %v8733 = vld [vmem:[%s660 + $0x2e0] sm:$0xff]
          %v8734 = vld [vmem:[%s660 + $0x2e8] sm:$0xff]
          %v8735 = vld [vmem:[%s660 + $0x2f0] sm:$0xff]
          %v8736 = vld [vmem:[%s660 + $0x2f8] sm:$0xff]
          %v8737 = vld [vmem:[%s660 + $0x300] sm:$0xff]
          %v8738 = vld [vmem:[%s660 + $0x308] sm:$0xff]
          %v8739 = vld [vmem:[%s660 + $0x310] sm:$0xff]
          %v8740 = vld [vmem:[%s660 + $0x318] sm:$0xff]
          %v8741 = vld [vmem:[%s660 + $0x320] sm:$0xff]
          %v8742 = vld [vmem:[%s660 + $0x328] sm:$0xff]
          %v8743 = vld [vmem:[%s660 + $0x330] sm:$0xff]
          %v8744 = vld [vmem:[%s660 + $0x338] sm:$0xff]
          %v8745 = vld [vmem:[%s660 + $0x340] sm:$0xff]
          %v8746 = vld [vmem:[%s660 + $0x348] sm:$0xff]
          %v8747 = vld [vmem:[%s660 + $0x350] sm:$0xff]
          %v8748 = vld [vmem:[%s660 + $0x358] sm:$0xff]
          %v8749 = vld [vmem:[%s660 + $0x360] sm:$0xff]
          %v8750 = vld [vmem:[%s660 + $0x368] sm:$0xff]
          %v8751 = vld [vmem:[%s660 + $0x370] sm:$0xff]
          %v8752 = vld [vmem:[%s660 + $0x378] sm:$0xff]
          %v8753 = vld [vmem:[%s660 + $0x380] sm:$0xff]
          %v8754 = vld [vmem:[%s660 + $0x388] sm:$0xff]
          %v8755 = vld [vmem:[%s660 + $0x390] sm:$0xff]
          %v8756 = vld [vmem:[%s660 + $0x398] sm:$0xff]
          %v8757 = vld [vmem:[%s660 + $0x3a0] sm:$0xff]
          %v8758 = vld [vmem:[%s660 + $0x3a8] sm:$0xff]
          %v8759 = vld [vmem:[%s660 + $0x3b0] sm:$0xff]
          %v8760 = vld [vmem:[%s660 + $0x3b8] sm:$0xff]
          %v8761 = vld [vmem:[%s660 + $0x3c0] sm:$0xff]
          %v8762 = vld [vmem:[%s660 + $0x3c8] sm:$0xff]
          %v8763 = vld [vmem:[%s660 + $0x3d0] sm:$0xff]
          %v8764 = vld [vmem:[%s660 + $0x3d8] sm:$0xff]
          %v8765 = vld [vmem:[%s660 + $0x3e0] sm:$0xff]
          %v8766 = vld [vmem:[%s660 + $0x3e8] sm:$0xff]
          %v8767 = vld [vmem:[%s660 + $0x3f0] sm:$0xff]
          %v8768 = vld [vmem:[%s660 + $0x3f8] sm:$0xff]
          %v8897 = vunpack.c.l.b16 %v8641
          %v8898 = vunpack.c.h.b16 %v8641
          %v8899 = vunpack.c.l.b16 %v8642
          %v8900 = vunpack.c.h.b16 %v8642
          %v8901 = vunpack.c.l.b16 %v8643
          %v8902 = vunpack.c.h.b16 %v8643
          %v8903 = vunpack.c.l.b16 %v8644
          %v8904 = vunpack.c.h.b16 %v8644
          %v8905 = vunpack.c.l.b16 %v8645
          %v8906 = vunpack.c.h.b16 %v8645
          %v8907 = vunpack.c.l.b16 %v8646
          %v8908 = vunpack.c.h.b16 %v8646
          %v8909 = vunpack.c.l.b16 %v8647
          %v8910 = vunpack.c.h.b16 %v8647
          %v8911 = vunpack.c.l.b16 %v8648
          %v8912 = vunpack.c.h.b16 %v8648
          %v8913 = vunpack.c.l.b16 %v8649
          %v8914 = vunpack.c.h.b16 %v8649
          %v8915 = vunpack.c.l.b16 %v8650
          %v8916 = vunpack.c.h.b16 %v8650
          %v8917 = vunpack.c.l.b16 %v8651
          %v8918 = vunpack.c.h.b16 %v8651
          %v8919 = vunpack.c.l.b16 %v8652
          %v8920 = vunpack.c.h.b16 %v8652
          %v8921 = vunpack.c.l.b16 %v8653
          %v8922 = vunpack.c.h.b16 %v8653
          %v8923 = vunpack.c.l.b16 %v8654
          %v8924 = vunpack.c.h.b16 %v8654
          %v8925 = vunpack.c.l.b16 %v8655
          %v8926 = vunpack.c.h.b16 %v8655
          %v8927 = vunpack.c.l.b16 %v8656
          %v8928 = vunpack.c.h.b16 %v8656
          %v8929 = vunpack.c.l.b16 %v8657
          %v8930 = vunpack.c.h.b16 %v8657
          %v8931 = vunpack.c.l.b16 %v8658
          %v8932 = vunpack.c.h.b16 %v8658
          %v8933 = vunpack.c.l.b16 %v8659
          %v8934 = vunpack.c.h.b16 %v8659
          %v8935 = vunpack.c.l.b16 %v8660
          %v8936 = vunpack.c.h.b16 %v8660
          %v8937 = vunpack.c.l.b16 %v8661
          %v8938 = vunpack.c.h.b16 %v8661
          %v8939 = vunpack.c.l.b16 %v8662
          %v8940 = vunpack.c.h.b16 %v8662
          %v8941 = vunpack.c.l.b16 %v8663
          %v8942 = vunpack.c.h.b16 %v8663
          %v8943 = vunpack.c.l.b16 %v8664
          %v8944 = vunpack.c.h.b16 %v8664
          %v8945 = vunpack.c.l.b16 %v8665
          %v8946 = vunpack.c.h.b16 %v8665
          %v8947 = vunpack.c.l.b16 %v8666
          %v8948 = vunpack.c.h.b16 %v8666
          %v8949 = vunpack.c.l.b16 %v8667
          %v8950 = vunpack.c.h.b16 %v8667
          %v8951 = vunpack.c.l.b16 %v8668
          %v8952 = vunpack.c.h.b16 %v8668
          %v8953 = vunpack.c.l.b16 %v8669
          %v8954 = vunpack.c.h.b16 %v8669
          %v8955 = vunpack.c.l.b16 %v8670
          %v8956 = vunpack.c.h.b16 %v8670
          %v8957 = vunpack.c.l.b16 %v8671
          %v8958 = vunpack.c.h.b16 %v8671
          %v8959 = vunpack.c.l.b16 %v8672
          %v8960 = vunpack.c.h.b16 %v8672
          %v8961 = vunpack.c.l.b16 %v8673
          %v8962 = vunpack.c.h.b16 %v8673
          %v8963 = vunpack.c.l.b16 %v8674
          %v8964 = vunpack.c.h.b16 %v8674
          %v8965 = vunpack.c.l.b16 %v8675
          %v8966 = vunpack.c.h.b16 %v8675
          %v8967 = vunpack.c.l.b16 %v8676
          %v8968 = vunpack.c.h.b16 %v8676
          %v8969 = vunpack.c.l.b16 %v8677
          %v8970 = vunpack.c.h.b16 %v8677
          %v8971 = vunpack.c.l.b16 %v8678
          %v8972 = vunpack.c.h.b16 %v8678
          %v8973 = vunpack.c.l.b16 %v8679
          %v8974 = vunpack.c.h.b16 %v8679
          %v8975 = vunpack.c.l.b16 %v8680
          %v8976 = vunpack.c.h.b16 %v8680
          %v8977 = vunpack.c.l.b16 %v8681
          %v8978 = vunpack.c.h.b16 %v8681
          %v8979 = vunpack.c.l.b16 %v8682
          %v8980 = vunpack.c.h.b16 %v8682
          %v8981 = vunpack.c.l.b16 %v8683
          %v8982 = vunpack.c.h.b16 %v8683
          %v8983 = vunpack.c.l.b16 %v8684
          %v8984 = vunpack.c.h.b16 %v8684
          %v8985 = vunpack.c.l.b16 %v8685
          %v8986 = vunpack.c.h.b16 %v8685
          %v8987 = vunpack.c.l.b16 %v8686
          %v8988 = vunpack.c.h.b16 %v8686
          %v8989 = vunpack.c.l.b16 %v8687
          %v8990 = vunpack.c.h.b16 %v8687
          %v8991 = vunpack.c.l.b16 %v8688
          %v8992 = vunpack.c.h.b16 %v8688
          %v8993 = vunpack.c.l.b16 %v8689
          %v8994 = vunpack.c.h.b16 %v8689
          %v8995 = vunpack.c.l.b16 %v8690
          %v8996 = vunpack.c.h.b16 %v8690
          %v8997 = vunpack.c.l.b16 %v8691
          %v8998 = vunpack.c.h.b16 %v8691
          %v8999 = vunpack.c.l.b16 %v8692
          %v9000 = vunpack.c.h.b16 %v8692
          %v9001 = vunpack.c.l.b16 %v8693
          %v9002 = vunpack.c.h.b16 %v8693
          %v9003 = vunpack.c.l.b16 %v8694
          %v9004 = vunpack.c.h.b16 %v8694
          %v9005 = vunpack.c.l.b16 %v8695
          %v9006 = vunpack.c.h.b16 %v8695
          %v9007 = vunpack.c.l.b16 %v8696
          %v9008 = vunpack.c.h.b16 %v8696
          %v9009 = vunpack.c.l.b16 %v8697
          %v9010 = vunpack.c.h.b16 %v8697
          %v9011 = vunpack.c.l.b16 %v8698
          %v9012 = vunpack.c.h.b16 %v8698
          %v9013 = vunpack.c.l.b16 %v8699
          %v9014 = vunpack.c.h.b16 %v8699
          %v9015 = vunpack.c.l.b16 %v8700
          %v9016 = vunpack.c.h.b16 %v8700
          %v9017 = vunpack.c.l.b16 %v8701
          %v9018 = vunpack.c.h.b16 %v8701
          %v9019 = vunpack.c.l.b16 %v8702
          %v9020 = vunpack.c.h.b16 %v8702
          %v9021 = vunpack.c.l.b16 %v8703
          %v9022 = vunpack.c.h.b16 %v8703
          %v9023 = vunpack.c.l.b16 %v8704
          %v9024 = vunpack.c.h.b16 %v8704
          %v9025 = vunpack.c.l.b16 %v8705
          %v9026 = vunpack.c.h.b16 %v8705
          %v9027 = vunpack.c.l.b16 %v8706
          %v9028 = vunpack.c.h.b16 %v8706
          %v9029 = vunpack.c.l.b16 %v8707
          %v9030 = vunpack.c.h.b16 %v8707
          %v9031 = vunpack.c.l.b16 %v8708
          %v9032 = vunpack.c.h.b16 %v8708
          %v9033 = vunpack.c.l.b16 %v8709
          %v9034 = vunpack.c.h.b16 %v8709
          %v9035 = vunpack.c.l.b16 %v8710
          %v9036 = vunpack.c.h.b16 %v8710
          %v9037 = vunpack.c.l.b16 %v8711
          %v9038 = vunpack.c.h.b16 %v8711
          %v9039 = vunpack.c.l.b16 %v8712
          %v9040 = vunpack.c.h.b16 %v8712
          %v9041 = vunpack.c.l.b16 %v8713
          %v9042 = vunpack.c.h.b16 %v8713
          %v9043 = vunpack.c.l.b16 %v8714
          %v9044 = vunpack.c.h.b16 %v8714
          %v9045 = vunpack.c.l.b16 %v8715
          %v9046 = vunpack.c.h.b16 %v8715
          %v9047 = vunpack.c.l.b16 %v8716
          %v9048 = vunpack.c.h.b16 %v8716
          %v9049 = vunpack.c.l.b16 %v8717
          %v9050 = vunpack.c.h.b16 %v8717
          %v9051 = vunpack.c.l.b16 %v8718
          %v9052 = vunpack.c.h.b16 %v8718
          %v9053 = vunpack.c.l.b16 %v8719
          %v9054 = vunpack.c.h.b16 %v8719
          %v9055 = vunpack.c.l.b16 %v8720
          %v9056 = vunpack.c.h.b16 %v8720
          %v9057 = vunpack.c.l.b16 %v8721
          %v9058 = vunpack.c.h.b16 %v8721
          %v9059 = vunpack.c.l.b16 %v8722
          %v9060 = vunpack.c.h.b16 %v8722
          %v9061 = vunpack.c.l.b16 %v8723
          %v9062 = vunpack.c.h.b16 %v8723
          %v9063 = vunpack.c.l.b16 %v8724
          %v9064 = vunpack.c.h.b16 %v8724
          %v9065 = vunpack.c.l.b16 %v8725
          %v9066 = vunpack.c.h.b16 %v8725
          %v9067 = vunpack.c.l.b16 %v8726
          %v9068 = vunpack.c.h.b16 %v8726
          %v9069 = vunpack.c.l.b16 %v8727
          %v9070 = vunpack.c.h.b16 %v8727
          %v9071 = vunpack.c.l.b16 %v8728
          %v9072 = vunpack.c.h.b16 %v8728
          %v9073 = vunpack.c.l.b16 %v8729
          %v9074 = vunpack.c.h.b16 %v8729
          %v9075 = vunpack.c.l.b16 %v8730
          %v9076 = vunpack.c.h.b16 %v8730
          %v9077 = vunpack.c.l.b16 %v8731
          %v9078 = vunpack.c.h.b16 %v8731
          %v9079 = vunpack.c.l.b16 %v8732
          %v9080 = vunpack.c.h.b16 %v8732
          %v9081 = vunpack.c.l.b16 %v8733
          %v9082 = vunpack.c.h.b16 %v8733
          %v9083 = vunpack.c.l.b16 %v8734
          %v9084 = vunpack.c.h.b16 %v8734
          %v9085 = vunpack.c.l.b16 %v8735
          %v9086 = vunpack.c.h.b16 %v8735
          %v9087 = vunpack.c.l.b16 %v8736
          %v9088 = vunpack.c.h.b16 %v8736
          %v9089 = vunpack.c.l.b16 %v8737
          %v9090 = vunpack.c.h.b16 %v8737
          %v9091 = vunpack.c.l.b16 %v8738
          %v9092 = vunpack.c.h.b16 %v8738
          %v9093 = vunpack.c.l.b16 %v8739
          %v9094 = vunpack.c.h.b16 %v8739
          %v9095 = vunpack.c.l.b16 %v8740
          %v9096 = vunpack.c.h.b16 %v8740
          %v9097 = vunpack.c.l.b16 %v8741
          %v9098 = vunpack.c.h.b16 %v8741
          %v9099 = vunpack.c.l.b16 %v8742
          %v9100 = vunpack.c.h.b16 %v8742
          %v9101 = vunpack.c.l.b16 %v8743
          %v9102 = vunpack.c.h.b16 %v8743
          %v9103 = vunpack.c.l.b16 %v8744
          %v9104 = vunpack.c.h.b16 %v8744
          %v9105 = vunpack.c.l.b16 %v8745
          %v9106 = vunpack.c.h.b16 %v8745
          %v9107 = vunpack.c.l.b16 %v8746
          %v9108 = vunpack.c.h.b16 %v8746
          %v9109 = vunpack.c.l.b16 %v8747
          %v9110 = vunpack.c.h.b16 %v8747
          %v9111 = vunpack.c.l.b16 %v8748
          %v9112 = vunpack.c.h.b16 %v8748
          %v9113 = vunpack.c.l.b16 %v8749
          %v9114 = vunpack.c.h.b16 %v8749
          %v9115 = vunpack.c.l.b16 %v8750
          %v9116 = vunpack.c.h.b16 %v8750
          %v9117 = vunpack.c.l.b16 %v8751
          %v9118 = vunpack.c.h.b16 %v8751
          %v9119 = vunpack.c.l.b16 %v8752
          %v9120 = vunpack.c.h.b16 %v8752
          %v9121 = vunpack.c.l.b16 %v8753
          %v9122 = vunpack.c.h.b16 %v8753
          %v9123 = vunpack.c.l.b16 %v8754
          %v9124 = vunpack.c.h.b16 %v8754
          %v9125 = vunpack.c.l.b16 %v8755
          %v9126 = vunpack.c.h.b16 %v8755
          %v9127 = vunpack.c.l.b16 %v8756
          %v9128 = vunpack.c.h.b16 %v8756
          %v9129 = vunpack.c.l.b16 %v8757
          %v9130 = vunpack.c.h.b16 %v8757
          %v9131 = vunpack.c.l.b16 %v8758
          %v9132 = vunpack.c.h.b16 %v8758
          %v9133 = vunpack.c.l.b16 %v8759
          %v9134 = vunpack.c.h.b16 %v8759
          %v9135 = vunpack.c.l.b16 %v8760
          %v9136 = vunpack.c.h.b16 %v8760
          %v9137 = vunpack.c.l.b16 %v8761
          %v9138 = vunpack.c.h.b16 %v8761
          %v9139 = vunpack.c.l.b16 %v8762
          %v9140 = vunpack.c.h.b16 %v8762
          %v9141 = vunpack.c.l.b16 %v8763
          %v9142 = vunpack.c.h.b16 %v8763
          %v9143 = vunpack.c.l.b16 %v8764
          %v9144 = vunpack.c.h.b16 %v8764
          %v9145 = vunpack.c.l.b16 %v8765
          %v9146 = vunpack.c.h.b16 %v8765
          %v9147 = vunpack.c.l.b16 %v8766
          %v9148 = vunpack.c.h.b16 %v8766
          %v9149 = vunpack.c.l.b16 %v8767
          %v9150 = vunpack.c.h.b16 %v8767
          %v9151 = vunpack.c.l.b16 %v8768
          %v9152 = vunpack.c.h.b16 %v8768
          %v9153 = vpack.c.b16 %v8901, %v8897
          %v9154 = vpack.c.b16 %v8902, %v8898
          %v9155 = vpack.c.b16 %v8903, %v8899
          %v9156 = vpack.c.b16 %v8904, %v8900
          %v9157 = vpack.c.b16 %v8909, %v8905
          %v9158 = vpack.c.b16 %v8910, %v8906
          %v9159 = vpack.c.b16 %v8911, %v8907
          %v9160 = vpack.c.b16 %v8912, %v8908
          %v9161 = vpack.c.b16 %v8917, %v8913
          %v9162 = vpack.c.b16 %v8918, %v8914
          %v9163 = vpack.c.b16 %v8919, %v8915
          %v9164 = vpack.c.b16 %v8920, %v8916
          %v9165 = vpack.c.b16 %v8925, %v8921
          %v9166 = vpack.c.b16 %v8926, %v8922
          %v9167 = vpack.c.b16 %v8927, %v8923
          %v9168 = vpack.c.b16 %v8928, %v8924
          %v9169 = vpack.c.b16 %v8933, %v8929
          %v9170 = vpack.c.b16 %v8934, %v8930
          %v9171 = vpack.c.b16 %v8935, %v8931
          %v9172 = vpack.c.b16 %v8936, %v8932
          %v9173 = vpack.c.b16 %v8941, %v8937
          %v9174 = vpack.c.b16 %v8942, %v8938
          %v9175 = vpack.c.b16 %v8943, %v8939
          %v9176 = vpack.c.b16 %v8944, %v8940
          %v9177 = vpack.c.b16 %v8949, %v8945
          %v9178 = vpack.c.b16 %v8950, %v8946
          %v9179 = vpack.c.b16 %v8951, %v8947
          %v9180 = vpack.c.b16 %v8952, %v8948
          %v9181 = vpack.c.b16 %v8957, %v8953
          %v9182 = vpack.c.b16 %v8958, %v8954
          %v9183 = vpack.c.b16 %v8959, %v8955
          %v9184 = vpack.c.b16 %v8960, %v8956
          %v9185 = vpack.c.b16 %v8965, %v8961
          %v9186 = vpack.c.b16 %v8966, %v8962
          %v9187 = vpack.c.b16 %v8967, %v8963
          %v9188 = vpack.c.b16 %v8968, %v8964
          %v9189 = vpack.c.b16 %v8973, %v8969
          %v9190 = vpack.c.b16 %v8974, %v8970
          %v9191 = vpack.c.b16 %v8975, %v8971
          %v9192 = vpack.c.b16 %v8976, %v8972
          %v9193 = vpack.c.b16 %v8981, %v8977
          %v9194 = vpack.c.b16 %v8982, %v8978
          %v9195 = vpack.c.b16 %v8983, %v8979
          %v9196 = vpack.c.b16 %v8984, %v8980
          %v9197 = vpack.c.b16 %v8989, %v8985
          %v9198 = vpack.c.b16 %v8990, %v8986
          %v9199 = vpack.c.b16 %v8991, %v8987
          %v9200 = vpack.c.b16 %v8992, %v8988
          %v9201 = vpack.c.b16 %v8997, %v8993
          %v9202 = vpack.c.b16 %v8998, %v8994
          %v9203 = vpack.c.b16 %v8999, %v8995
          %v9204 = vpack.c.b16 %v9000, %v8996
          %v9205 = vpack.c.b16 %v9005, %v9001
          %v9206 = vpack.c.b16 %v9006, %v9002
          %v9207 = vpack.c.b16 %v9007, %v9003
          %v9208 = vpack.c.b16 %v9008, %v9004
          %v9209 = vpack.c.b16 %v9013, %v9009
          %v9210 = vpack.c.b16 %v9014, %v9010
          %v9211 = vpack.c.b16 %v9015, %v9011
          %v9212 = vpack.c.b16 %v9016, %v9012
          %v9213 = vpack.c.b16 %v9021, %v9017
          %v9214 = vpack.c.b16 %v9022, %v9018
          %v9215 = vpack.c.b16 %v9023, %v9019
          %v9216 = vpack.c.b16 %v9024, %v9020
          %v9217 = vpack.c.b16 %v9029, %v9025
          %v9218 = vpack.c.b16 %v9030, %v9026
          %v9219 = vpack.c.b16 %v9031, %v9027
          %v9220 = vpack.c.b16 %v9032, %v9028
          %v9221 = vpack.c.b16 %v9037, %v9033
          %v9222 = vpack.c.b16 %v9038, %v9034
          %v9223 = vpack.c.b16 %v9039, %v9035
          %v9224 = vpack.c.b16 %v9040, %v9036
          %v9225 = vpack.c.b16 %v9045, %v9041
          %v9226 = vpack.c.b16 %v9046, %v9042
          %v9227 = vpack.c.b16 %v9047, %v9043
          %v9228 = vpack.c.b16 %v9048, %v9044
          %v9229 = vpack.c.b16 %v9053, %v9049
          %v9230 = vpack.c.b16 %v9054, %v9050
          %v9231 = vpack.c.b16 %v9055, %v9051
          %v9232 = vpack.c.b16 %v9056, %v9052
          %v9233 = vpack.c.b16 %v9061, %v9057
          %v9234 = vpack.c.b16 %v9062, %v9058
          %v9235 = vpack.c.b16 %v9063, %v9059
          %v9236 = vpack.c.b16 %v9064, %v9060
          %v9237 = vpack.c.b16 %v9069, %v9065
          %v9238 = vpack.c.b16 %v9070, %v9066
          %v9239 = vpack.c.b16 %v9071, %v9067
          %v9240 = vpack.c.b16 %v9072, %v9068
          %v9241 = vpack.c.b16 %v9077, %v9073
          %v9242 = vpack.c.b16 %v9078, %v9074
          %v9243 = vpack.c.b16 %v9079, %v9075
          %v9244 = vpack.c.b16 %v9080, %v9076
          %v9245 = vpack.c.b16 %v9085, %v9081
          %v9246 = vpack.c.b16 %v9086, %v9082
          %v9247 = vpack.c.b16 %v9087, %v9083
          %v9248 = vpack.c.b16 %v9088, %v9084
          %v9249 = vpack.c.b16 %v9093, %v9089
          %v9250 = vpack.c.b16 %v9094, %v9090
          %v9251 = vpack.c.b16 %v9095, %v9091
          %v9252 = vpack.c.b16 %v9096, %v9092
          %v9253 = vpack.c.b16 %v9101, %v9097
          %v9254 = vpack.c.b16 %v9102, %v9098
          %v9255 = vpack.c.b16 %v9103, %v9099
          %v9256 = vpack.c.b16 %v9104, %v9100
          %v9257 = vpack.c.b16 %v9109, %v9105
          %v9258 = vpack.c.b16 %v9110, %v9106
          %v9259 = vpack.c.b16 %v9111, %v9107
          %v9260 = vpack.c.b16 %v9112, %v9108
          %v9261 = vpack.c.b16 %v9117, %v9113
          %v9262 = vpack.c.b16 %v9118, %v9114
          %v9263 = vpack.c.b16 %v9119, %v9115
          %v9264 = vpack.c.b16 %v9120, %v9116
          %v9265 = vpack.c.b16 %v9125, %v9121
          %v9266 = vpack.c.b16 %v9126, %v9122
          %v9267 = vpack.c.b16 %v9127, %v9123
          %v9268 = vpack.c.b16 %v9128, %v9124
          %v9269 = vpack.c.b16 %v9133, %v9129
          %v9270 = vpack.c.b16 %v9134, %v9130
          %v9271 = vpack.c.b16 %v9135, %v9131
          %v9272 = vpack.c.b16 %v9136, %v9132
          %v9273 = vpack.c.b16 %v9141, %v9137
          %v9274 = vpack.c.b16 %v9142, %v9138
          %v9275 = vpack.c.b16 %v9143, %v9139
          %v9276 = vpack.c.b16 %v9144, %v9140
          %v9277 = vpack.c.b16 %v9149, %v9145
          %v9278 = vpack.c.b16 %v9150, %v9146
          %v9279 = vpack.c.b16 %v9151, %v9147
          %v9280 = vpack.c.b16 %v9152, %v9148
          %9409 = vmatprep.subr.bf16.mxu0 %v9154
          %9410 = vmatpush1.bf16.msra.mxu0 %v9153
          %9411 = vmatprep.subr.bf16.mxu0 %v9158
          %9412 = vmatpush1.bf16.msra.mxu0 %v9157
          %9413 = vmatprep.subr.bf16.mxu0 %v9162
          %9414 = vmatpush1.bf16.msra.mxu0 %v9161
          %9415 = vmatprep.subr.bf16.mxu0 %v9166
          %9416 = vmatpush1.bf16.msra.mxu0 %v9165
          %9417 = vmatprep.subr.bf16.mxu0 %v9170
          %9418 = vmatpush1.bf16.msra.mxu0 %v9169
          %9419 = vmatprep.subr.bf16.mxu0 %v9174
          %9420 = vmatpush1.bf16.msra.mxu0 %v9173
          %9421 = vmatprep.subr.bf16.mxu0 %v9178
          %9422 = vmatpush1.bf16.msra.mxu0 %v9177
          %9423 = vmatprep.subr.bf16.mxu0 %v9182
          %9424 = vmatpush1.bf16.msra.mxu0 %v9181
          %9425 = vmatprep.subr.bf16.mxu0 %v9186
          %9426 = vmatpush1.bf16.msra.mxu0 %v9185
          %9427 = vmatprep.subr.bf16.mxu0 %v9190
          %9428 = vmatpush1.bf16.msra.mxu0 %v9189
          %9429 = vmatprep.subr.bf16.mxu0 %v9194
          %9430 = vmatpush1.bf16.msra.mxu0 %v9193
          %9431 = vmatprep.subr.bf16.mxu0 %v9198
          %9432 = vmatpush1.bf16.msra.mxu0 %v9197
          %9433 = vmatprep.subr.bf16.mxu0 %v9202
          %9434 = vmatpush1.bf16.msra.mxu0 %v9201
          %9435 = vmatprep.subr.bf16.mxu0 %v9206
          %9436 = vmatpush1.bf16.msra.mxu0 %v9205
          %9437 = vmatprep.subr.bf16.mxu0 %v9210
          %9438 = vmatpush1.bf16.msra.mxu0 %v9209
          %9439 = vmatprep.subr.bf16.mxu0 %v9214
          %9440 = vmatpush1.bf16.msra.mxu0 %v9213
          %9441 = vmatprep.mubr.bf16.mxu0 %v8634
          %9442 = vmatmul.mubr.bf16.gmra.mrb[0].mxu0 %v8633
          %v9443 = vpop.f32.mrb[0].mxu0
          %v9444 = vadd.f32 0.0, %v9443
          %v9445 = vpop.f32.mrb[0].mxu0
          %v9446 = vadd.f32 0.0, %v9445
          %v9447 = vpop.f32.mrb[0].mxu0
          %v9448 = vadd.f32 0.0, %v9447
          %v9449 = vpop.f32.mrb[0].mxu0
          %v9450 = vadd.f32 0.0, %v9449
          %9451 = vmatprep.mubr.bf16.mxu0 %v8638
          %9452 = vmatmul.mubr.bf16.gmra.mrb[0].mxu0 %v8637
          %v9453 = vpop.f32.mrb[0].mxu0
          %v9454 = vadd.f32 0.0, %v9453
          %v9455 = vpop.f32.mrb[0].mxu0
          %v9456 = vadd.f32 0.0, %v9455
          %v9457 = vpop.f32.mrb[0].mxu0
          %v9458 = vadd.f32 0.0, %v9457
          %v9459 = vpop.f32.mrb[0].mxu0
          %v9460 = vadd.f32 0.0, %v9459
          %9461 = vdwg.mxu0
          %9462 = vmatprep.subr.bf16.mxu0 %v9218
          %9463 = vmatpush1.bf16.msra.mxu0 %v9217
          %9464 = vmatprep.subr.bf16.mxu0 %v9222
          %9465 = vmatpush1.bf16.msra.mxu0 %v9221
          %9466 = vmatprep.subr.bf16.mxu0 %v9226
          %9467 = vmatpush1.bf16.msra.mxu0 %v9225
          %9468 = vmatprep.subr.bf16.mxu0 %v9230
          %9469 = vmatpush1.bf16.msra.mxu0 %v9229
          %9470 = vmatprep.subr.bf16.mxu0 %v9234
          %9471 = vmatpush1.bf16.msra.mxu0 %v9233
          %9472 = vmatprep.subr.bf16.mxu0 %v9238
          %9473 = vmatpush1.bf16.msra.mxu0 %v9237
          %9474 = vmatprep.subr.bf16.mxu0 %v9242
          %9475 = vmatpush1.bf16.msra.mxu0 %v9241
          %9476 = vmatprep.subr.bf16.mxu0 %v9246
          %9477 = vmatpush1.bf16.msra.mxu0 %v9245
          %9478 = vmatprep.subr.bf16.mxu0 %v9250
          %9479 = vmatpush1.bf16.msra.mxu0 %v9249
          %9480 = vmatprep.subr.bf16.mxu0 %v9254
          %9481 = vmatpush1.bf16.msra.mxu0 %v9253
          %9482 = vmatprep.subr.bf16.mxu0 %v9258
          %9483 = vmatpush1.bf16.msra.mxu0 %v9257
          %9484 = vmatprep.subr.bf16.mxu0 %v9262
          %9485 = vmatpush1.bf16.msra.mxu0 %v9261
          %9486 = vmatprep.subr.bf16.mxu0 %v9266
          %9487 = vmatpush1.bf16.msra.mxu0 %v9265
          %9488 = vmatprep.subr.bf16.mxu0 %v9270
          %9489 = vmatpush1.bf16.msra.mxu0 %v9269
          %9490 = vmatprep.subr.bf16.mxu0 %v9274
          %9491 = vmatpush1.bf16.msra.mxu0 %v9273
          %9492 = vmatprep.subr.bf16.mxu0 %v9278
          %9493 = vmatpush1.bf16.msra.mxu0 %v9277
          %9494 = vmatprep.mubr.bf16.mxu0 %v8636
          %9495 = vmatmul.mubr.bf16.gmra.mrb[0].mxu0 %v8635
          %v9496 = vpop.f32.mrb[0].mxu0
          %v9497 = vadd.f32 %v9444, %v9496
          %v9498 = vpop.f32.mrb[0].mxu0
          %v9499 = vadd.f32 %v9446, %v9498
          %v9500 = vpop.f32.mrb[0].mxu0
          %v9501 = vadd.f32 %v9448, %v9500
          %v9502 = vpop.f32.mrb[0].mxu0
          %v9503 = vadd.f32 %v9450, %v9502
          %9504 = vmatprep.mubr.bf16.mxu0 %v8640
          %9505 = vmatmul.mubr.bf16.gmra.mrb[0].mxu0 %v8639
          %v9506 = vpop.f32.mrb[0].mxu0
          %v9507 = vadd.f32 %v9454, %v9506
          %v9508 = vpop.f32.mrb[0].mxu0
          %v9509 = vadd.f32 %v9456, %v9508
          %v9510 = vpop.f32.mrb[0].mxu0
          %v9511 = vadd.f32 %v9458, %v9510
          %v9512 = vpop.f32.mrb[0].mxu0
          %v9513 = vadd.f32 %v9460, %v9512
          %9514 = vdwg.mxu0
          %9515 = vmatprep.subr.bf16.mxu0 %v9156
          %9516 = vmatpush1.bf16.msra.mxu0 %v9155
          %9517 = vmatprep.subr.bf16.mxu0 %v9160
          %9518 = vmatpush1.bf16.msra.mxu0 %v9159
          %9519 = vmatprep.subr.bf16.mxu0 %v9164
          %9520 = vmatpush1.bf16.msra.mxu0 %v9163
          %9521 = vmatprep.subr.bf16.mxu0 %v9168
          %9522 = vmatpush1.bf16.msra.mxu0 %v9167
          %9523 = vmatprep.subr.bf16.mxu0 %v9172
          %9524 = vmatpush1.bf16.msra.mxu0 %v9171
          %9525 = vmatprep.subr.bf16.mxu0 %v9176
          %9526 = vmatpush1.bf16.msra.mxu0 %v9175
          %9527 = vmatprep.subr.bf16.mxu0 %v9180
          %9528 = vmatpush1.bf16.msra.mxu0 %v9179
          %9529 = vmatprep.subr.bf16.mxu0 %v9184
          %9530 = vmatpush1.bf16.msra.mxu0 %v9183
          %9531 = vmatprep.subr.bf16.mxu0 %v9188
          %9532 = vmatpush1.bf16.msra.mxu0 %v9187
          %9533 = vmatprep.subr.bf16.mxu0 %v9192
          %9534 = vmatpush1.bf16.msra.mxu0 %v9191
          %9535 = vmatprep.subr.bf16.mxu0 %v9196
          %9536 = vmatpush1.bf16.msra.mxu0 %v9195
          %9537 = vmatprep.subr.bf16.mxu0 %v9200
          %9538 = vmatpush1.bf16.msra.mxu0 %v9199
          %9539 = vmatprep.subr.bf16.mxu0 %v9204
          %9540 = vmatpush1.bf16.msra.mxu0 %v9203
          %9541 = vmatprep.subr.bf16.mxu0 %v9208
          %9542 = vmatpush1.bf16.msra.mxu0 %v9207
          %9543 = vmatprep.subr.bf16.mxu0 %v9212
          %9544 = vmatpush1.bf16.msra.mxu0 %v9211
          %9545 = vmatprep.subr.bf16.mxu0 %v9216
          %9546 = vmatpush1.bf16.msra.mxu0 %v9215
          %9547 = vmatprep.mubr.bf16.mxu0 %v8634
          %9548 = vmatmul.mubr.bf16.gmra.mrb[0].mxu0 %v8633
          %v9549 = vpop.f32.mrb[0].mxu0
          %v9550 = vadd.f32 0.0, %v9549
          %v9551 = vpop.f32.mrb[0].mxu0
          %v9552 = vadd.f32 0.0, %v9551
          %v9553 = vpop.f32.mrb[0].mxu0
          %v9554 = vadd.f32 0.0, %v9553
          %v9555 = vpop.f32.mrb[0].mxu0
          %v9556 = vadd.f32 0.0, %v9555
          %9557 = vmatprep.mubr.bf16.mxu0 %v8638
          %9558 = vmatmul.mubr.bf16.gmra.mrb[0].mxu0 %v8637
          %v9559 = vpop.f32.mrb[0].mxu0
          %v9560 = vadd.f32 0.0, %v9559
          %v9561 = vpop.f32.mrb[0].mxu0
          %v9562 = vadd.f32 0.0, %v9561
          %v9563 = vpop.f32.mrb[0].mxu0
          %v9564 = vadd.f32 0.0, %v9563
          %v9565 = vpop.f32.mrb[0].mxu0
          %v9566 = vadd.f32 0.0, %v9565
          %9567 = vdwg.mxu0
          %9568 = vmatprep.subr.bf16.mxu0 %v9220
          %9569 = vmatpush1.bf16.msra.mxu0 %v9219
          %9570 = vmatprep.subr.bf16.mxu0 %v9224
          %9571 = vmatpush1.bf16.msra.mxu0 %v9223
          %9572 = vmatprep.subr.bf16.mxu0 %v9228
          %9573 = vmatpush1.bf16.msra.mxu0 %v9227
          %9574 = vmatprep.subr.bf16.mxu0 %v9232
          %9575 = vmatpush1.bf16.msra.mxu0 %v9231
          %9576 = vmatprep.subr.bf16.mxu0 %v9236
          %9577 = vmatpush1.bf16.msra.mxu0 %v9235
          %9578 = vmatprep.subr.bf16.mxu0 %v9240
          %9579 = vmatpush1.bf16.msra.mxu0 %v9239
          %9580 = vmatprep.subr.bf16.mxu0 %v9244
          %9581 = vmatpush1.bf16.msra.mxu0 %v9243
          %9582 = vmatprep.subr.bf16.mxu0 %v9248
          %9583 = vmatpush1.bf16.msra.mxu0 %v9247
          %9584 = vmatprep.subr.bf16.mxu0 %v9252
          %9585 = vmatpush1.bf16.msra.mxu0 %v9251
          %9586 = vmatprep.subr.bf16.mxu0 %v9256
          %9587 = vmatpush1.bf16.msra.mxu0 %v9255
          %9588 = vmatprep.subr.bf16.mxu0 %v9260
          %9589 = vmatpush1.bf16.msra.mxu0 %v9259
          %9590 = vmatprep.subr.bf16.mxu0 %v9264
          %9591 = vmatpush1.bf16.msra.mxu0 %v9263
          %9592 = vmatprep.subr.bf16.mxu0 %v9268
          %9593 = vmatpush1.bf16.msra.mxu0 %v9267
          %9594 = vmatprep.subr.bf16.mxu0 %v9272
          %9595 = vmatpush1.bf16.msra.mxu0 %v9271
          %9596 = vmatprep.subr.bf16.mxu0 %v9276
          %9597 = vmatpush1.bf16.msra.mxu0 %v9275
          %9598 = vmatprep.subr.bf16.mxu0 %v9280
          %9599 = vmatpush1.bf16.msra.mxu0 %v9279
          %9600 = vmatprep.mubr.bf16.mxu0 %v8636
          %9601 = vmatmul.mubr.bf16.gmra.mrb[0].mxu0 %v8635
          %v9602 = vpop.f32.mrb[0].mxu0
          %v9603 = vadd.f32 %v9550, %v9602
          %v9604 = vpop.f32.mrb[0].mxu0
          %v9605 = vadd.f32 %v9552, %v9604
          %v9606 = vpop.f32.mrb[0].mxu0
          %v9607 = vadd.f32 %v9554, %v9606
          %v9608 = vpop.f32.mrb[0].mxu0
          %v9609 = vadd.f32 %v9556, %v9608
          %9610 = vmatprep.mubr.bf16.mxu0 %v8640
          %9611 = vmatmul.mubr.bf16.gmra.mrb[0].mxu0 %v8639
          %v9612 = vpop.f32.mrb[0].mxu0
          %v9613 = vadd.f32 %v9560, %v9612
          %v9614 = vpop.f32.mrb[0].mxu0
          %v9615 = vadd.f32 %v9562, %v9614
          %v9616 = vpop.f32.mrb[0].mxu0
          %v9617 = vadd.f32 %v9564, %v9616
          %v9618 = vpop.f32.mrb[0].mxu0
          %v9619 = vadd.f32 %v9566, %v9618
          %9620 = vdwg.mxu0
          %v9621 = vadd.f32 %v8617, %v9497
          %v9622 = vadd.f32 %v8618, %v9499
          %v9623 = vadd.f32 %v8619, %v9603
          %v9624 = vadd.f32 %v8620, %v9605
          %v9625 = vadd.f32 %v8621, %v9501
          %v9626 = vadd.f32 %v8622, %v9503
          %v9627 = vadd.f32 %v8623, %v9607
          %v9628 = vadd.f32 %v8624, %v9609
          %v9629 = vadd.f32 %v8625, %v9507
          %v9630 = vadd.f32 %v8626, %v9509
          %v9631 = vadd.f32 %v8627, %v9613
          %v9632 = vadd.f32 %v8628, %v9615
          %v9633 = vadd.f32 %v8629, %v9511
          %v9634 = vadd.f32 %v8630, %v9513
          %v9635 = vadd.f32 %v8631, %v9617
          %v9636 = vadd.f32 %v8632, %v9619
          %9637 = vst [vmem:[#allocation6] sm:$0xff] %v9621
          %9638 = vst [vmem:[#allocation6 + $0x8] sm:$0xff] %v9622
          %9639 = vst [vmem:[#allocation6 + $0x10] sm:$0xff] %v9623
          %9640 = vst [vmem:[#allocation6 + $0x18] sm:$0xff] %v9624
          %9641 = vst [vmem:[#allocation6 + $0x20] sm:$0xff] %v9625
          %9642 = vst [vmem:[#allocation6 + $0x28] sm:$0xff] %v9626
          %9643 = vst [vmem:[#allocation6 + $0x30] sm:$0xff] %v9627
          %9644 = vst [vmem:[#allocation6 + $0x38] sm:$0xff] %v9628
          %9645 = vst [vmem:[#allocation6 + $0x40] sm:$0xff] %v9629
          %9646 = vst [vmem:[#allocation6 + $0x48] sm:$0xff] %v9630
          %9647 = vst [vmem:[#allocation6 + $0x50] sm:$0xff] %v9631
          %9648 = vst [vmem:[#allocation6 + $0x58] sm:$0xff] %v9632
          %9649 = vst [vmem:[#allocation6 + $0x60] sm:$0xff] %v9633
          %9650 = vst [vmem:[#allocation6 + $0x68] sm:$0xff] %v9634
          %9651 = vst [vmem:[#allocation6 + $0x70] sm:$0xff] %v9635
          %9652 = vst [vmem:[#allocation6 + $0x78] sm:$0xff] %v9636
        $region136: #{transformer_encoder.1} parent=71 // pred_fallthru
          _
        %p9653 = scmp.eq.s32.totalorder %s33, 6
        // Predicated region
        $region137: #{transformer_encoder.1} parent=71 // pred_check
          %p9654 = pneg %p9653
        $region138: #{transformer_encoder.1} parent=71 // pred_check_branch
          %9656 = sbr.rel (%p9654) target = $region140
        $region139: #{transformer_encoder.1} parent=71 // pred_region
          %v9657 = vld [vmem:[#allocation6] sm:$0xff]
          %v9658 = vld [vmem:[#allocation6 + $0x8] sm:$0xff]
          %v9659 = vld [vmem:[#allocation6 + $0x10] sm:$0xff]
          %v9660 = vld [vmem:[#allocation6 + $0x18] sm:$0xff]
          %v9661 = vld [vmem:[#allocation6 + $0x20] sm:$0xff]
          %v9662 = vld [vmem:[#allocation6 + $0x28] sm:$0xff]
          %v9663 = vld [vmem:[#allocation6 + $0x30] sm:$0xff]
          %v9664 = vld [vmem:[#allocation6 + $0x38] sm:$0xff]
          %v9665 = vld [vmem:[#allocation6 + $0x40] sm:$0xff]
          %v9666 = vld [vmem:[#allocation6 + $0x48] sm:$0xff]
          %v9667 = vld [vmem:[#allocation6 + $0x50] sm:$0xff]
          %v9668 = vld [vmem:[#allocation6 + $0x58] sm:$0xff]
          %v9669 = vld [vmem:[#allocation6 + $0x60] sm:$0xff]
          %v9670 = vld [vmem:[#allocation6 + $0x68] sm:$0xff]
          %v9671 = vld [vmem:[#allocation6 + $0x70] sm:$0xff]
          %v9672 = vld [vmem:[#allocation6 + $0x78] sm:$0xff]
          %v9673 = vld [vmem:[#allocation23] sm:$0xf]
          %v9675 = vlaneseq
          %v9676 = vshrl.u32 %v9675, 7
          %v9677 = vsub.s32 0, %v9676
          %v9678 = vrot.slane %v9673, %v9677
          %v9679 = vlaneseq
          %v9680 = vshrl.u32 %v9679, 7
          %v9681 = vsub.s32 1, %v9680
          %v9682 = vrot.slane %v9673, %v9681
          %v9683 = vlaneseq
          %v9684 = vshrl.u32 %v9683, 7
          %v9685 = vsub.s32 2, %v9684
          %v9686 = vrot.slane %v9673, %v9685
          %v9687 = vlaneseq
          %v9688 = vshrl.u32 %v9687, 7
          %v9689 = vsub.s32 3, %v9688
          %v9690 = vrot.slane %v9673, %v9689
          %v9695 = vadd.f32 %v9657, %v9678
          %v9696 = vadd.f32 %v9658, %v9682
          %v9697 = vadd.f32 %v9659, %v9686
          %v9698 = vadd.f32 %v9660, %v9690
          %v9699 = vadd.f32 %v9661, %v9678
          %v9700 = vadd.f32 %v9662, %v9682
          %v9701 = vadd.f32 %v9663, %v9686
          %v9702 = vadd.f32 %v9664, %v9690
          %v9703 = vadd.f32 %v9665, %v9678
          %v9704 = vadd.f32 %v9666, %v9682
          %v9705 = vadd.f32 %v9667, %v9686
          %v9706 = vadd.f32 %v9668, %v9690
          %v9707 = vadd.f32 %v9669, %v9678
          %v9708 = vadd.f32 %v9670, %v9682
          %v9709 = vadd.f32 %v9671, %v9686
          %v9710 = vadd.f32 %v9672, %v9690
          %9711 = vst [vmem:[%s13] sm:$0xff] %v9695
          %9712 = vst [vmem:[%s13 + $0x8] sm:$0xff] %v9696
          %9713 = vst [vmem:[%s13 + $0x10] sm:$0xff] %v9697
          %9714 = vst [vmem:[%s13 + $0x18] sm:$0xff] %v9698
          %9715 = vst [vmem:[%s13 + $0x20] sm:$0xff] %v9699
          %9716 = vst [vmem:[%s13 + $0x28] sm:$0xff] %v9700
          %9717 = vst [vmem:[%s13 + $0x30] sm:$0xff] %v9701
          %9718 = vst [vmem:[%s13 + $0x38] sm:$0xff] %v9702
          %9719 = vst [vmem:[%s13 + $0x40] sm:$0xff] %v9703
          %9720 = vst [vmem:[%s13 + $0x48] sm:$0xff] %v9704
          %9721 = vst [vmem:[%s13 + $0x50] sm:$0xff] %v9705
          %9722 = vst [vmem:[%s13 + $0x58] sm:$0xff] %v9706
          %9723 = vst [vmem:[%s13 + $0x60] sm:$0xff] %v9707
          %9724 = vst [vmem:[%s13 + $0x68] sm:$0xff] %v9708
          %9725 = vst [vmem:[%s13 + $0x70] sm:$0xff] %v9709
          %9726 = vst [vmem:[%s13 + $0x78] sm:$0xff] %v9710
        $region140: #{transformer_encoder.1} parent=71 // pred_fallthru
          _
        // Predicated region
        $region141: #{transformer_encoder.1} parent=71 // pred_check
          %p9727 = pneg %p370
        $region142: #{transformer_encoder.1} parent=71 // pred_check_branch
          %9729 = sbr.rel (%p9727) target = $region144
        $region143: #{transformer_encoder.1} parent=71 // pred_region
          _
        $region144: #{transformer_encoder.1} parent=71 // pred_fallthru
          _
        // Predicated region
        $region145: #{transformer_encoder.1} parent=71 // pred_check
          %p9730 = pneg %p370
        $region146: #{transformer_encoder.1} parent=71 // pred_check_branch
          %9732 = sbr.rel (%p9730) target = $region148
        $region147: #{transformer_encoder.1} parent=71 // pred_region
          _
        $region148: #{transformer_encoder.1} parent=71 // pred_fallthru
          _
      $region72: #{transformer_encoder.1} parent=5 // pred_fallthru
        _
      %p9733 = scmp.le.s32.totalorder 2, %s28
      // Predicated region
      $region149: #{transformer_encoder.1} parent=5 // pred_check
        %p9734 = pneg %p9733
      $region150: #{transformer_encoder.1} parent=5 // pred_check_branch
        %9736 = sbr.rel (%p9734) target = $region152
      $region151: #{transformer_encoder.1} parent=5 // pred_region
        %s9737 = ssub.s32 %s28, 2
      $region152: #{transformer_encoder.1} parent=5 // pred_fallthru
        _
    $region6: #{transformer_encoder.1} parent=1 // loop_footer
      %s32 = sadd.s32 1, %s28
    $region7: #{transformer_encoder.1} parent=1 // loop_footer_branch
      %27 = sbr.rel target = $region3
    $region8: #{transformer_encoder.1} parent=1 // loop_exit
      _
    %9738 = vsyncpa [#allocation8], 1
    %s9739 = scalar_lea.sflag [#allocation8], 1
    %9740 = vsyncpa %s9739, 1
    %9741 = vsyncpa [#allocation10], 1
    %9742 = vsyncpa [#allocation13], 1
    %9743 = vsyncpa [#allocation19], 1
    %s9744 = scalar_lea.sflag [#allocation19], 1
    %9745 = vsyncpa %s9744, 1
    %9746 = vsyncpa [#allocation22], 1
    %s9747 = scalar_lea.sflag [#allocation22], 1
    %9748 = vsyncpa %s9747, 1

</llo_original>
